<compile_context>
chip_gen: v7x
topology: tpu7x:2x2x1
jax: 0.10.0
libtpu: 0.0.40
codegen_flags: <defaults>
</compile_context>

<pallas_src>
import functools
import math
from datetime import datetime

import numpy as np
import jax
import jax.numpy as jnp
from jax.experimental import pallas as pl
from jax.experimental.pallas import tpu as pltpu

# ---- model config (matches EncoderBlock defaults) ----
INPUT_DIM = 3          # feature_dim
D_MODEL = 128          # output_dim
NHEAD = 2
NUM_LAYERS = 2
DIM_FF = 128           # dim_feedforward == output_dim
HALF = D_MODEL // 2    # feature-embed / date-embed width
HEAD_DIM = D_MODEL // NHEAD
LN_EPS = 1e-5


def _layer_norm(x, w, b):
    # PyTorch LayerNorm: biased variance over last dim, eps inside sqrt.
    mu = jnp.mean(x, axis=-1, keepdims=True)
    xc = x - mu
    var = jnp.mean(xc * xc, axis=-1, keepdims=True)
    return xc * jax.lax.rsqrt(var + LN_EPS) * w + b


def encoder_block_kernel(src_ref, base_ref, few_ref, hmask_ref,
                         inw_ref, inb_ref, outw_ref, outb_ref,
                         l1w_ref, l1b_ref, l2w_ref, l2b_ref,
                         n1w_ref, n1b_ref, n2w_ref, n2b_ref,
                         out_ref, ctx_ref, *, S, TN):
    D = D_MODEL
    M = S * TN
    bf16 = jnp.bfloat16

    # ---- ObservationEmbedding: base (shared across batch) + one small feature matmul ----
    base = base_ref[0]                                     # (TN, D) f32  [feature_bias | pos]
    src2d = src_ref[...].reshape(M, INPUT_DIM)             # (M, F)
    emb = jnp.dot(src2d.astype(bf16), few_ref[...],        # (M, D); zero in the pos half
                  preferred_element_type=jnp.float32)
    x = jnp.broadcast_to(base[None], (S, TN, D)).reshape(M, D) + emb

    hmask = hmask_ref[...]                                  # (D, D) bf16 block-diag per-head

    # ---- TransformerEncoder: NUM_LAYERS post-norm layers ----
    for l in range(NUM_LAYERS):
        # self-attention (over the S axis, per time row, per head), full lane width
        qkv = jnp.dot(x.astype(bf16), inw_ref[l],
                      preferred_element_type=jnp.float32) + inb_ref[l]    # (M, 3D)
        q = qkv[:, :D]                    # 1/sqrt(head_dim) already folded into inw/inb
        k = qkv[:, D:2 * D]
        v = qkv[:, 2 * D:]

        # All S^2 per-head logit tiles in ONE bf16 MXU matmul: rows = (s,t) pairs stacked
        # along sublanes; each lane ends up holding its own head's logit (replicated).
        prod = (q.reshape(S, 1, TN, D) * k.reshape(1, S, TN, D)).reshape(S * M, D)
        logits = jnp.dot(prod.astype(bf16), hmask,
                         preferred_element_type=jnp.float32)              # (S*S*TN, D)

        for s in range(S):                                  # S (seq == batch) is tiny & static
            row0 = s * S * TN
            lg = [logits[row0 + t * TN: row0 + (t + 1) * TN, :] for t in range(S)]
            m = lg[0]
            for t in range(1, S):
                m = jnp.maximum(m, lg[t])
            e = jnp.exp(lg[0] - m)
            denom = e
            ctx = e * v[0:TN, :]
            for t in range(1, S):
                e = jnp.exp(lg[t] - m)
                denom = denom + e
                ctx = ctx + e * v[t * TN:(t + 1) * TN, :]
            # normalize once per row; ctx is only ever consumed as bf16 -> bf16 scratch store
            ctx_ref[s * TN:(s + 1) * TN, :] = (
                ctx * pl.reciprocal(denom, approx=True)).astype(bf16)

        attn = jnp.dot(ctx_ref[...], outw_ref[l],
                       preferred_element_type=jnp.float32) + outb_ref[l]
        # TODO(synk): dropout (p=0.2) omitted -> eval/inference semantics (deterministic).
        x = _layer_norm(x + attn, n1w_ref[l], n1b_ref[l])

        # feed-forward block (linear1 -> relu -> linear2)
        h1 = jnp.maximum(
            jnp.dot(x.astype(bf16), l1w_ref[l],
                    preferred_element_type=jnp.float32) + l1b_ref[l], 0.0)
        ff = jnp.dot(h1.astype(bf16), l2w_ref[l],
                     preferred_element_type=jnp.float32) + l2b_ref[l]
        x = _layer_norm(x + ff, n2w_ref[l], n2b_ref[l])

    out_ref[...] = x.reshape(S, TN, D)


# ---- generation-aware tile / VMEM selection -------------------------------------------------
def _round_up(v, m):
    return ((v + m - 1) // m) * m


def _vmem_budget():
    try:
        cap = int(getattr(pltpu.get_tpu_info(), "vmem_capacity_bytes", 0) or 0)
    except Exception:
        cap = 0
    if cap <= 0:
        return 32 * 1024 * 1024          # unknown -> conservative, works everywhere
    if cap >= 96 * 1024 * 1024:          # v5e / v6e (128 MiB VMEM per core)
        return 64 * 1024 * 1024
    return 48 * 1024 * 1024              # v7x (64 MiB physical per core)


def _pick_tn(S, N, vmem_limit):
    # Rough per-(S*tn)-row live f32 bytes: x + qkv + h1/ff + S stacked logit/exp tiles.
    bytes_per_row = 4608 + 1280 * S
    m_cap = max(128, (vmem_limit // 2) // bytes_per_row)
    tn_cap = max(16, min(1024, ((m_cap // S) // 16) * 16))
    tn = min(_round_up(max(N, 1), 16), tn_cap)
    # MXU fill: target at least 256 rows (S*tn) per tile, even for tiny T.
    min_tn = min(tn_cap, _round_up(max(1, -(-256 // S)), 16))
    tn = max(tn, min_tn)
    # v7x has 2 TensorCores: prefer >= 2 grid steps when there is enough real work.
    if -(-max(N, 1) // tn) < 2 and tn >= 2 * min_tn:
        tn = max(min_tn, _round_up(tn // 2, 16))
    return tn


def encoder_block_forward(src, pos, p, *, tn=None, vmem_limit=None):
    """src: (B, T, INPUT_DIM) f32, pos: (T, HALF) f32, p: prepared params -> (B, T, D_MODEL)."""
    B, T, F = src.shape
    assert F == INPUT_DIM
    S, N, D = B, T, D_MODEL

    if vmem_limit is None:
        vmem_limit = _vmem_budget()
    if tn is None:
        tn = _pick_tn(S, N, vmem_limit)
    n_pad = -(-N // tn) * tn

    src_p = src if n_pad == N else jnp.pad(src, ((0, 0), (0, n_pad - N), (0, 0)))
    pos_p = pos if n_pad == N else jnp.pad(pos, ((0, n_pad - N), (0, 0)))

    # Embedding base [feature_bias | positional_encoding]: identical for every batch row,
    # so only (1, n_pad, D) is streamed from HBM and broadcast over S inside the kernel.
    base = jnp.concatenate([
        jnp.broadcast_to(p["feb"].reshape(1, 1, HALF), (1, n_pad, HALF)),
        pos_p[None, :, :],
    ], axis=-1).astype(jnp.float32)

    args = (src_p, base, p["few"], p["hmask"],
            p["inw"], p["inb"], p["outw"], p["outb"],
            p["l1w"], p["l1b"], p["l2w"], p["l2b"],
            p["n1w"], p["n1b"], p["n2w"], p["n2b"])

    def resident(a):   # weights: whole array, constant block index -> stays VMEM-resident
        nd = a.ndim
        return pl.BlockSpec(a.shape, lambda i, nd=nd: (0,) * nd)

    in_specs = ([pl.BlockSpec((S, tn, INPUT_DIM), lambda i: (0, i, 0)),   # src tile
                 pl.BlockSpec((1, tn, D), lambda i: (0, i, 0))]           # base tile (no S bcast)
                + [resident(a) for a in args[2:]])
    out_specs = pl.BlockSpec((S, tn, D), lambda i: (0, i, 0))

    kernel = functools.partial(encoder_block_kernel, S=S, TN=tn)
    out = pl.pallas_call(
        kernel,
        out_shape=jax.ShapeDtypeStruct((S, n_pad, D), jnp.float32),
        grid=(n_pad // tn,),
        in_specs=in_specs,
        out_specs=out_specs,
        scratch_shapes=[pltpu.VMEM((S * tn, D), jnp.bfloat16)],
        compiler_params=pltpu.CompilerParams(
            dimension_semantics=("parallel",),
            vmem_limit_bytes=vmem_limit),
    )(*args)
    return out[:, :N, :]


def positional_encoding(dates, date_embed_dim):
    # Exact replica of ObservationEmbedding.positional_encoding (host-side glue).
    start_date = datetime.strptime(min(dates), '%m%d')
    positions = [(datetime.strptime(d, '%m%d') - start_date).days for d in dates]
    pe = np.zeros((len(positions), date_embed_dim), dtype=np.float32)
    for pos, day in enumerate(positions):
        for i in range(0, date_embed_dim, 2):
            pe[pos, i] = np.sin(day / 10000 ** (2 * i / date_embed_dim))
            pe[pos, i + 1] = np.cos(day / 10000 ** (2 * i / date_embed_dim))
    return jnp.asarray(pe)


def init_params(key):
    ks = jax.random.split(key, 10)

    def rnd(k, shape, scale=0.05):
        return scale * jax.random.normal(k, shape, dtype=jnp.float32)

    L, D = NUM_LAYERS, D_MODEL
    return dict(
        # ObservationEmbedding.feature_embed  (stored as weight.T)
        few_t=rnd(ks[0], (INPUT_DIM, HALF)),
        feb=rnd(ks[1], (1, HALF)),
        # MultiheadAttention in_proj / out_proj, stacked over layers (weight.T)
        inw_t=rnd(ks[2], (L, D, 3 * D)),
        inb=rnd(ks[3], (L, 1, 3 * D)),
        outw_t=rnd(ks[4], (L, D, D)),
        outb=rnd(ks[5], (L, 1, D)),
        # feed-forward linear1 / linear2 (weight.T)
        l1w_t=rnd(ks[6], (L, D, DIM_FF)),
        l1b=rnd(ks[7], (L, 1, DIM_FF)),
        l2w_t=rnd(ks[8], (L, DIM_FF, D)),
        l2b=rnd(ks[9], (L, 1, D)),
        # LayerNorms (PyTorch default init: ones / zeros)
        n1w=jnp.ones((L, 1, D), jnp.float32),
        n1b=jnp.zeros((L, 1, D), jnp.float32),
        n2w=jnp.ones((L, 1, D), jnp.float32),
        n2b=jnp.zeros((L, 1, D), jnp.float32),
    )


def prepare_params(params):
    """One-time host-side transform: fold 1/sqrt(head_dim) into the Q columns of in_proj,
    cast matmul weights to bf16, zero-pad the feature-embed weight to full lane width,
    and build the per-head block-diagonal ones mask (bf16)."""
    D = D_MODEL
    bf16 = jnp.bfloat16
    scale = 1.0 / math.sqrt(HEAD_DIM)
    col_scale = jnp.concatenate(
        [jnp.full((D,), scale, jnp.float32), jnp.ones((2 * D,), jnp.float32)])
    head_id = jnp.arange(D, dtype=jnp.int32) // HEAD_DIM
    return dict(
        few=jnp.pad(params["few_t"], ((0, 0), (0, D - HALF))).astype(bf16),   # (F, D)
        feb=params["feb"],                                                    # (1, HALF) f32
        hmask=(head_id[:, None] == head_id[None, :]).astype(bf16),            # (D, D)
        inw=(params["inw_t"] * col_scale).astype(bf16),
        inb=params["inb"] * col_scale,
        outw=params["outw_t"].astype(bf16), outb=params["outb"],
        l1w=params["l1w_t"].astype(bf16), l1b=params["l1b"],
        l2w=params["l2w_t"].astype(bf16), l2b=params["l2b"],
        n1w=params["n1w"], n1b=params["n1b"],
        n2w=params["n2w"], n2b=params["n2b"],
    )


if __name__ == "__main__":
    B, T = 2, 8  # batch=2, time_steps=8, feature_dim=3
    key = jax.random.PRNGKey(0)
    k_src, k_par = jax.random.split(key)

    src = jax.random.normal(k_src, (B, T, INPUT_DIM), dtype=jnp.float32)
    dates = ['0101', '0102', '0103', '0104', '0105', '0106', '0107', '0108']
    pos = positional_encoding(dates, HALF)          # (T, HALF)
    params = prepare_params(init_params(k_par))

    out = encoder_block_forward(src, pos, params)
    out = jax.block_until_ready(out)

    assert out.shape == (B, T, D_MODEL), out.shape
    assert bool(jnp.all(jnp.isfinite(out)))
    print("KERNEL_OK")
</pallas_src>

<mosaic_0001>
module attributes {stable_mosaic.version = 11 : i64} {
  func.func @encoder_block_kernel(%arg0: i32, %arg1: memref<2x128x3xf32, #tpu.memory_space<vmem>>, %arg2: memref<1x128x128xf32, #tpu.memory_space<vmem>>, %arg3: memref<3x128xbf16, #tpu.memory_space<vmem>>, %arg4: memref<128x128xbf16, #tpu.memory_space<vmem>>, %arg5: memref<2x128x384xbf16, #tpu.memory_space<vmem>>, %arg6: memref<2x1x384xf32, #tpu.memory_space<vmem>>, %arg7: memref<2x128x128xbf16, #tpu.memory_space<vmem>>, %arg8: memref<2x1x128xf32, #tpu.memory_space<vmem>>, %arg9: memref<2x128x128xbf16, #tpu.memory_space<vmem>>, %arg10: memref<2x1x128xf32, #tpu.memory_space<vmem>>, %arg11: memref<2x128x128xbf16, #tpu.memory_space<vmem>>, %arg12: memref<2x1x128xf32, #tpu.memory_space<vmem>>, %arg13: memref<2x1x128xf32, #tpu.memory_space<vmem>>, %arg14: memref<2x1x128xf32, #tpu.memory_space<vmem>>, %arg15: memref<2x1x128xf32, #tpu.memory_space<vmem>>, %arg16: memref<2x1x128xf32, #tpu.memory_space<vmem>>, %arg17: memref<2x128x128xf32, #tpu.memory_space<vmem>>, %arg18: memref<256x128xbf16, #tpu.memory_space<vmem>>) attributes {dimension_semantics = [#tpu.dimension_semantics<parallel>], iteration_bounds = array<i64: 1>, scalar_prefetch = 0 : i64, scratch_operands = 1 : i64, tpu.core_type = #tpu.core_type<tc>, window_params = [{transform_indices = @transform_0, window_bounds = array<i64: 2, 128, 3>}, {transform_indices = @transform_1, window_bounds = array<i64: 1, 128, 128>}, {pipeline_mode = #tpu.pipeline_mode<synchronous>, transform_indices = @transform_2, window_bounds = array<i64: 3, 128>}, {pipeline_mode = #tpu.pipeline_mode<synchronous>, transform_indices = @transform_3, window_bounds = array<i64: 128, 128>}, {pipeline_mode = #tpu.pipeline_mode<synchronous>, transform_indices = @transform_4, window_bounds = array<i64: 2, 128, 384>}, {pipeline_mode = #tpu.pipeline_mode<synchronous>, transform_indices = @transform_5, window_bounds = array<i64: 2, 1, 384>}, {pipeline_mode = #tpu.pipeline_mode<synchronous>, transform_indices = @transform_6, window_bounds = array<i64: 2, 128, 128>}, {pipeline_mode = #tpu.pipeline_mode<synchronous>, transform_indices = @transform_7, window_bounds = array<i64: 2, 1, 128>}, {pipeline_mode = #tpu.pipeline_mode<synchronous>, transform_indices = @transform_8, window_bounds = array<i64: 2, 128, 128>}, {pipeline_mode = #tpu.pipeline_mode<synchronous>, transform_indices = @transform_9, window_bounds = array<i64: 2, 1, 128>}, {pipeline_mode = #tpu.pipeline_mode<synchronous>, transform_indices = @transform_10, window_bounds = array<i64: 2, 128, 128>}, {pipeline_mode = #tpu.pipeline_mode<synchronous>, transform_indices = @transform_11, window_bounds = array<i64: 2, 1, 128>}, {pipeline_mode = #tpu.pipeline_mode<synchronous>, transform_indices = @transform_12, window_bounds = array<i64: 2, 1, 128>}, {pipeline_mode = #tpu.pipeline_mode<synchronous>, transform_indices = @transform_13, window_bounds = array<i64: 2, 1, 128>}, {pipeline_mode = #tpu.pipeline_mode<synchronous>, transform_indices = @transform_14, window_bounds = array<i64: 2, 1, 128>}, {pipeline_mode = #tpu.pipeline_mode<synchronous>, transform_indices = @transform_15, window_bounds = array<i64: 2, 1, 128>}, {transform_indices = @transform_16, window_bounds = array<i64: 2, 128, 128>}]} {
    %c0 = arith.constant 0 : index
    %c0_0 = arith.constant 0 : index
    %c0_1 = arith.constant 0 : index
    %0 = vector.load %arg2[%c0, %c0_0, %c0_1] : memref<1x128x128xf32, #tpu.memory_space<vmem>>, vector<1x128x128xf32>
    %1 = vector.shape_cast %0 : vector<1x128x128xf32> to vector<128x128xf32>
    %c0_2 = arith.constant 0 : index
    %c0_3 = arith.constant 0 : index
    %c0_4 = arith.constant 0 : index
    %2 = vector.load %arg1[%c0_2, %c0_3, %c0_4] : memref<2x128x3xf32, #tpu.memory_space<vmem>>, vector<2x128x3xf32>
    %3 = vector.shape_cast %2 : vector<2x128x3xf32> to vector<256x3xf32>
    %4 = arith.truncf %3 : vector<256x3xf32> to vector<256x3xbf16>
    %c0_5 = arith.constant 0 : index
    %c0_6 = arith.constant 0 : index
    %5 = vector.load %arg3[%c0_5, %c0_6] : memref<3x128xbf16, #tpu.memory_space<vmem>>, vector<3x128xbf16>
    %cst = arith.constant dense<0.000000e+00> : vector<256x128xf32>
    %6 = tpu.matmul %4, %5, %cst {dimension_numbers = #tpu.dot_dimension_numbers<[1], [0], [0], [1], [0, 0, 1, 1], [], []>} : vector<256x3xbf16>, vector<3x128xbf16>, vector<256x128xf32> -> vector<256x128xf32>
    %7 = vector.shape_cast %1 : vector<128x128xf32> to vector<1x128x128xf32>
    %8 = vector.shape_cast %7 : vector<1x128x128xf32> to vector<1x128x128xf32>
    %9 = vector.broadcast %8 : vector<1x128x128xf32> to vector<2x128x128xf32>
    %10 = vector.shape_cast %9 : vector<2x128x128xf32> to vector<256x128xf32>
    %11 = arith.addf %10, %6 : vector<256x128xf32>
    %c0_7 = arith.constant 0 : index
    %c0_8 = arith.constant 0 : index
    %12 = vector.load %arg4[%c0_7, %c0_8] : memref<128x128xbf16, #tpu.memory_space<vmem>>, vector<128x128xbf16>
    %13 = arith.truncf %11 : vector<256x128xf32> to vector<256x128xbf16>
    %c0_9 = arith.constant 0 : index
    %c0_10 = arith.constant 0 : index
    %c0_11 = arith.constant 0 : index
    %14 = vector.load %arg5[%c0_9, %c0_10, %c0_11] : memref<2x128x384xbf16, #tpu.memory_space<vmem>>, vector<1x128x384xbf16>
    %15 = vector.shape_cast %14 : vector<1x128x384xbf16> to vector<128x384xbf16>
    %cst_12 = arith.constant dense<0.000000e+00> : vector<256x384xf32>
    %16 = tpu.matmul %13, %15, %cst_12 {dimension_numbers = #tpu.dot_dimension_numbers<[1], [0], [0], [1], [0, 0, 1, 1], [], []>} : vector<256x128xbf16>, vector<128x384xbf16>, vector<256x384xf32> -> vector<256x384xf32>
    %c0_13 = arith.constant 0 : index
    %c0_14 = arith.constant 0 : index
    %c0_15 = arith.constant 0 : index
    %17 = vector.load %arg6[%c0_13, %c0_14, %c0_15] : memref<2x1x384xf32, #tpu.memory_space<vmem>>, vector<1x1x384xf32>
    %18 = vector.shape_cast %17 : vector<1x1x384xf32> to vector<1x384xf32>
    %19 = vector.broadcast %18 : vector<1x384xf32> to vector<256x384xf32>
    %20 = arith.addf %16, %19 : vector<256x384xf32>
    %21 = vector.extract_strided_slice %20 {offsets = [0, 0], sizes = [256, 128], strides = [1, 1]} : vector<256x384xf32> to vector<256x128xf32>
    %22 = vector.extract_strided_slice %20 {offsets = [0, 128], sizes = [256, 128], strides = [1, 1]} : vector<256x384xf32> to vector<256x128xf32>
    %23 = vector.extract_strided_slice %20 {offsets = [0, 256], sizes = [256, 128], strides = [1, 1]} : vector<256x384xf32> to vector<256x128xf32>
    %24 = vector.shape_cast %21 : vector<256x128xf32> to vector<2x1x128x128xf32>
    %25 = vector.shape_cast %22 : vector<256x128xf32> to vector<1x2x128x128xf32>
    %26 = vector.broadcast %24 : vector<2x1x128x128xf32> to vector<2x2x128x128xf32>
    %27 = vector.broadcast %25 : vector<1x2x128x128xf32> to vector<2x2x128x128xf32>
    %28 = arith.mulf %26, %27 : vector<2x2x128x128xf32>
    %29 = vector.shape_cast %28 : vector<2x2x128x128xf32> to vector<512x128xf32>
    %30 = arith.truncf %29 : vector<512x128xf32> to vector<512x128xbf16>
    %cst_16 = arith.constant dense<0.000000e+00> : vector<512x128xf32>
    %31 = tpu.matmul %30, %12, %cst_16 {dimension_numbers = #tpu.dot_dimension_numbers<[1], [0], [0], [1], [0, 0, 1, 1], [], []>} : vector<512x128xbf16>, vector<128x128xbf16>, vector<512x128xf32> -> vector<512x128xf32>
    %32 = vector.extract_strided_slice %31 {offsets = [0, 0], sizes = [128, 128], strides = [1, 1]} : vector<512x128xf32> to vector<128x128xf32>
    %33 = vector.extract_strided_slice %31 {offsets = [128, 0], sizes = [128, 128], strides = [1, 1]} : vector<512x128xf32> to vector<128x128xf32>
    %34 = arith.maximumf %32, %33 : vector<128x128xf32>
    %35 = arith.subf %32, %34 : vector<128x128xf32>
    %36 = math.exp %35 : vector<128x128xf32>
    %37 = vector.extract_strided_slice %23 {offsets = [0, 0], sizes = [128, 128], strides = [1, 1]} : vector<256x128xf32> to vector<128x128xf32>
    %38 = arith.mulf %36, %37 : vector<128x128xf32>
    %39 = arith.subf %33, %34 : vector<128x128xf32>
    %40 = math.exp %39 : vector<128x128xf32>
    %41 = arith.addf %36, %40 : vector<128x128xf32>
    %42 = vector.extract_strided_slice %23 {offsets = [128, 0], sizes = [128, 128], strides = [1, 1]} : vector<256x128xf32> to vector<128x128xf32>
    %43 = arith.mulf %40, %42 : vector<128x128xf32>
    %44 = arith.addf %38, %43 : vector<128x128xf32>
    %45 = tpu.reciprocal %41 {approx = true} : vector<128x128xf32> -> vector<128x128xf32>
    %46 = arith.mulf %44, %45 : vector<128x128xf32>
    %47 = arith.truncf %46 : vector<128x128xf32> to vector<128x128xbf16>
    %c0_17 = arith.constant 0 : index
    %c0_18 = arith.constant 0 : index
    %48 = vector.load %arg18[%c0_17, %c0_18] : memref<256x128xbf16, #tpu.memory_space<vmem>>, vector<128x128xbf16>
    tpu.vector_store %arg18[%c0_17, %c0_18], %47 {strides = array<i32>} : memref<256x128xbf16, #tpu.memory_space<vmem>>, vector<128x128xbf16>,
    %49 = vector.extract_strided_slice %31 {offsets = [256, 0], sizes = [128, 128], strides = [1, 1]} : vector<512x128xf32> to vector<128x128xf32>
    %50 = vector.extract_strided_slice %31 {offsets = [384, 0], sizes = [128, 128], strides = [1, 1]} : vector<512x128xf32> to vector<128x128xf32>
    %51 = arith.maximumf %49, %50 : vector<128x128xf32>
    %52 = arith.subf %49, %51 : vector<128x128xf32>
    %53 = math.exp %52 : vector<128x128xf32>
    %54 = vector.extract_strided_slice %23 {offsets = [0, 0], sizes = [128, 128], strides = [1, 1]} : vector<256x128xf32> to vector<128x128xf32>
    %55 = arith.mulf %53, %54 : vector<128x128xf32>
    %56 = arith.subf %50, %51 : vector<128x128xf32>
    %57 = math.exp %56 : vector<128x128xf32>
    %58 = arith.addf %53, %57 : vector<128x128xf32>
    %59 = vector.extract_strided_slice %23 {offsets = [128, 0], sizes = [128, 128], strides = [1, 1]} : vector<256x128xf32> to vector<128x128xf32>
    %60 = arith.mulf %57, %59 : vector<128x128xf32>
    %61 = arith.addf %55, %60 : vector<128x128xf32>
    %62 = tpu.reciprocal %58 {approx = true} : vector<128x128xf32> -> vector<128x128xf32>
    %63 = arith.mulf %61, %62 : vector<128x128xf32>
    %64 = arith.truncf %63 : vector<128x128xf32> to vector<128x128xbf16>
    %c128 = arith.constant 128 : index
    %c0_19 = arith.constant 0 : index
    %65 = vector.load %arg18[%c128, %c0_19] : memref<256x128xbf16, #tpu.memory_space<vmem>>, vector<128x128xbf16>
    tpu.vector_store %arg18[%c128, %c0_19], %64 {strides = array<i32>} : memref<256x128xbf16, #tpu.memory_space<vmem>>, vector<128x128xbf16>,
    %c0_20 = arith.constant 0 : index
    %c0_21 = arith.constant 0 : index
    %66 = vector.load %arg18[%c0_20, %c0_21] : memref<256x128xbf16, #tpu.memory_space<vmem>>, vector<256x128xbf16>
    %c0_22 = arith.constant 0 : index
    %c0_23 = arith.constant 0 : index
    %c0_24 = arith.constant 0 : index
    %67 = vector.load %arg7[%c0_22, %c0_23, %c0_24] : memref<2x128x128xbf16, #tpu.memory_space<vmem>>, vector<1x128x128xbf16>
    %68 = vector.shape_cast %67 : vector<1x128x128xbf16> to vector<128x128xbf16>
    %cst_25 = arith.constant dense<0.000000e+00> : vector<256x128xf32>
    %69 = tpu.matmul %66, %68, %cst_25 {dimension_numbers = #tpu.dot_dimension_numbers<[1], [0], [0], [1], [0, 0, 1, 1], [], []>} : vector<256x128xbf16>, vector<128x128xbf16>, vector<256x128xf32> -> vector<256x128xf32>
    %c0_26 = arith.constant 0 : index
    %c0_27 = arith.constant 0 : index
    %c0_28 = arith.constant 0 : index
    %70 = vector.load %arg8[%c0_26, %c0_27, %c0_28] : memref<2x1x128xf32, #tpu.memory_space<vmem>>, vector<1x1x128xf32>
    %71 = vector.shape_cast %70 : vector<1x1x128xf32> to vector<1x128xf32>
    %72 = vector.broadcast %71 : vector<1x128xf32> to vector<256x128xf32>
    %73 = arith.addf %69, %72 : vector<256x128xf32>
    %74 = arith.addf %11, %73 : vector<256x128xf32>
    %c0_29 = arith.constant 0 : index
    %c0_30 = arith.constant 0 : index
    %c0_31 = arith.constant 0 : index
    %75 = vector.load %arg13[%c0_29, %c0_30, %c0_31] : memref<2x1x128xf32, #tpu.memory_space<vmem>>, vector<1x1x128xf32>
    %76 = vector.shape_cast %75 : vector<1x1x128xf32> to vector<1x128xf32>
    %c0_32 = arith.constant 0 : index
    %c0_33 = arith.constant 0 : index
    %c0_34 = arith.constant 0 : index
    %77 = vector.load %arg14[%c0_32, %c0_33, %c0_34] : memref<2x1x128xf32, #tpu.memory_space<vmem>>, vector<1x1x128xf32>
    %78 = vector.shape_cast %77 : vector<1x1x128xf32> to vector<1x128xf32>
    %cst_35 = arith.constant dense<0.000000e+00> : vector<256xf32>
    %79 = vector.multi_reduction <add>, %74, %cst_35 [1] : vector<256x128xf32> to vector<256xf32>
    %80 = vector.shape_cast %79 : vector<256xf32> to vector<256x1xf32>
    %cst_36 = arith.constant 1.280000e+02 : f32
    %81 = vector.broadcast %cst_36 : f32 to vector<256x1xf32>
    %82 = arith.divf %80, %81 : vector<256x1xf32>
    %83 = vector.broadcast %82 : vector<256x1xf32> to vector<256x128xf32>
    %84 = arith.subf %74, %83 : vector<256x128xf32>
    %85 = arith.mulf %84, %84 : vector<256x128xf32>
    %cst_37 = arith.constant dense<0.000000e+00> : vector<256xf32>
    %86 = vector.multi_reduction <add>, %85, %cst_37 [1] : vector<256x128xf32> to vector<256xf32>
    %87 = vector.shape_cast %86 : vector<256xf32> to vector<256x1xf32>
    %cst_38 = arith.constant 1.280000e+02 : f32
    %88 = vector.broadcast %cst_38 : f32 to vector<256x1xf32>
    %89 = arith.divf %87, %88 : vector<256x1xf32>
    %cst_39 = arith.constant 9.99999974E-6 : f32
    %90 = vector.broadcast %cst_39 : f32 to vector<256x1xf32>
    %91 = arith.addf %89, %90 : vector<256x1xf32>
    %92 = math.rsqrt %91 : vector<256x1xf32>
    %93 = vector.broadcast %92 : vector<256x1xf32> to vector<256x128xf32>
    %94 = arith.mulf %84, %93 : vector<256x128xf32>
    %95 = vector.broadcast %76 : vector<1x128xf32> to vector<256x128xf32>
    %96 = arith.mulf %94, %95 : vector<256x128xf32>
    %97 = vector.broadcast %78 : vector<1x128xf32> to vector<256x128xf32>
    %98 = arith.addf %96, %97 : vector<256x128xf32>
    %99 = arith.truncf %98 : vector<256x128xf32> to vector<256x128xbf16>
    %c0_40 = arith.constant 0 : index
    %c0_41 = arith.constant 0 : index
    %c0_42 = arith.constant 0 : index
    %100 = vector.load %arg9[%c0_40, %c0_41, %c0_42] : memref<2x128x128xbf16, #tpu.memory_space<vmem>>, vector<1x128x128xbf16>
    %101 = vector.shape_cast %100 : vector<1x128x128xbf16> to vector<128x128xbf16>
    %cst_43 = arith.constant dense<0.000000e+00> : vector<256x128xf32>
    %102 = tpu.matmul %99, %101, %cst_43 {dimension_numbers = #tpu.dot_dimension_numbers<[1], [0], [0], [1], [0, 0, 1, 1], [], []>} : vector<256x128xbf16>, vector<128x128xbf16>, vector<256x128xf32> -> vector<256x128xf32>
    %c0_44 = arith.constant 0 : index
    %c0_45 = arith.constant 0 : index
    %c0_46 = arith.constant 0 : index
    %103 = vector.load %arg10[%c0_44, %c0_45, %c0_46] : memref<2x1x128xf32, #tpu.memory_space<vmem>>, vector<1x1x128xf32>
    %104 = vector.shape_cast %103 : vector<1x1x128xf32> to vector<1x128xf32>
    %105 = vector.broadcast %104 : vector<1x128xf32> to vector<256x128xf32>
    %106 = arith.addf %102, %105 : vector<256x128xf32>
    %cst_47 = arith.constant 0.000000e+00 : f32
    %107 = vector.broadcast %cst_47 : f32 to vector<256x128xf32>
    %108 = arith.maximumf %106, %107 : vector<256x128xf32>
    %109 = arith.truncf %108 : vector<256x128xf32> to vector<256x128xbf16>
    %c0_48 = arith.constant 0 : index
    %c0_49 = arith.constant 0 : index
    %c0_50 = arith.constant 0 : index
    %110 = vector.load %arg11[%c0_48, %c0_49, %c0_50] : memref<2x128x128xbf16, #tpu.memory_space<vmem>>, vector<1x128x128xbf16>
    %111 = vector.shape_cast %110 : vector<1x128x128xbf16> to vector<128x128xbf16>
    %cst_51 = arith.constant dense<0.000000e+00> : vector<256x128xf32>
    %112 = tpu.matmul %109, %111, %cst_51 {dimension_numbers = #tpu.dot_dimension_numbers<[1], [0], [0], [1], [0, 0, 1, 1], [], []>} : vector<256x128xbf16>, vector<128x128xbf16>, vector<256x128xf32> -> vector<256x128xf32>
    %c0_52 = arith.constant 0 : index
    %c0_53 = arith.constant 0 : index
    %c0_54 = arith.constant 0 : index
    %113 = vector.load %arg12[%c0_52, %c0_53, %c0_54] : memref<2x1x128xf32, #tpu.memory_space<vmem>>, vector<1x1x128xf32>
    %114 = vector.shape_cast %113 : vector<1x1x128xf32> to vector<1x128xf32>
    %115 = vector.broadcast %114 : vector<1x128xf32> to vector<256x128xf32>
    %116 = arith.addf %112, %115 : vector<256x128xf32>
    %117 = arith.addf %98, %116 : vector<256x128xf32>
    %c0_55 = arith.constant 0 : index
    %c0_56 = arith.constant 0 : index
    %c0_57 = arith.constant 0 : index
    %118 = vector.load %arg15[%c0_55, %c0_56, %c0_57] : memref<2x1x128xf32, #tpu.memory_space<vmem>>, vector<1x1x128xf32>
    %119 = vector.shape_cast %118 : vector<1x1x128xf32> to vector<1x128xf32>
    %c0_58 = arith.constant 0 : index
    %c0_59 = arith.constant 0 : index
    %c0_60 = arith.constant 0 : index
    %120 = vector.load %arg16[%c0_58, %c0_59, %c0_60] : memref<2x1x128xf32, #tpu.memory_space<vmem>>, vector<1x1x128xf32>
    %121 = vector.shape_cast %120 : vector<1x1x128xf32> to vector<1x128xf32>
    %cst_61 = arith.constant dense<0.000000e+00> : vector<256xf32>
    %122 = vector.multi_reduction <add>, %117, %cst_61 [1] : vector<256x128xf32> to vector<256xf32>
    %123 = vector.shape_cast %122 : vector<256xf32> to vector<256x1xf32>
    %cst_62 = arith.constant 1.280000e+02 : f32
    %124 = vector.broadcast %cst_62 : f32 to vector<256x1xf32>
    %125 = arith.divf %123, %124 : vector<256x1xf32>
    %126 = vector.broadcast %125 : vector<256x1xf32> to vector<256x128xf32>
    %127 = arith.subf %117, %126 : vector<256x128xf32>
    %128 = arith.mulf %127, %127 : vector<256x128xf32>
    %cst_63 = arith.constant dense<0.000000e+00> : vector<256xf32>
    %129 = vector.multi_reduction <add>, %128, %cst_63 [1] : vector<256x128xf32> to vector<256xf32>
    %130 = vector.shape_cast %129 : vector<256xf32> to vector<256x1xf32>
    %cst_64 = arith.constant 1.280000e+02 : f32
    %131 = vector.broadcast %cst_64 : f32 to vector<256x1xf32>
    %132 = arith.divf %130, %131 : vector<256x1xf32>
    %cst_65 = arith.constant 9.99999974E-6 : f32
    %133 = vector.broadcast %cst_65 : f32 to vector<256x1xf32>
    %134 = arith.addf %132, %133 : vector<256x1xf32>
    %135 = math.rsqrt %134 : vector<256x1xf32>
    %136 = vector.broadcast %135 : vector<256x1xf32> to vector<256x128xf32>
    %137 = arith.mulf %127, %136 : vector<256x128xf32>
    %138 = vector.broadcast %119 : vector<1x128xf32> to vector<256x128xf32>
    %139 = arith.mulf %137, %138 : vector<256x128xf32>
    %140 = vector.broadcast %121 : vector<1x128xf32> to vector<256x128xf32>
    %141 = arith.addf %139, %140 : vector<256x128xf32>
    %142 = arith.truncf %141 : vector<256x128xf32> to vector<256x128xbf16>
    %c1 = arith.constant 1 : index
    %c0_66 = arith.constant 0 : index
    %c0_67 = arith.constant 0 : index
    %143 = vector.load %arg5[%c1, %c0_66, %c0_67] : memref<2x128x384xbf16, #tpu.memory_space<vmem>>, vector<1x128x384xbf16>
    %144 = vector.shape_cast %143 : vector<1x128x384xbf16> to vector<128x384xbf16>
    %cst_68 = arith.constant dense<0.000000e+00> : vector<256x384xf32>
    %145 = tpu.matmul %142, %144, %cst_68 {dimension_numbers = #tpu.dot_dimension_numbers<[1], [0], [0], [1], [0, 0, 1, 1], [], []>} : vector<256x128xbf16>, vector<128x384xbf16>, vector<256x384xf32> -> vector<256x384xf32>
    %c1_69 = arith.constant 1 : index
    %c0_70 = arith.constant 0 : index
    %c0_71 = arith.constant 0 : index
    %146 = vector.load %arg6[%c1_69, %c0_70, %c0_71] : memref<2x1x384xf32, #tpu.memory_space<vmem>>, vector<1x1x384xf32>
    %147 = vector.shape_cast %146 : vector<1x1x384xf32> to vector<1x384xf32>
    %148 = vector.broadcast %147 : vector<1x384xf32> to vector<256x384xf32>
    %149 = arith.addf %145, %148 : vector<256x384xf32>
    %150 = vector.extract_strided_slice %149 {offsets = [0, 0], sizes = [256, 128], strides = [1, 1]} : vector<256x384xf32> to vector<256x128xf32>
    %151 = vector.extract_strided_slice %149 {offsets = [0, 128], sizes = [256, 128], strides = [1, 1]} : vector<256x384xf32> to vector<256x128xf32>
    %152 = vector.extract_strided_slice %149 {offsets = [0, 256], sizes = [256, 128], strides = [1, 1]} : vector<256x384xf32> to vector<256x128xf32>
    %153 = vector.shape_cast %150 : vector<256x128xf32> to vector<2x1x128x128xf32>
    %154 = vector.shape_cast %151 : vector<256x128xf32> to vector<1x2x128x128xf32>
    %155 = vector.broadcast %153 : vector<2x1x128x128xf32> to vector<2x2x128x128xf32>
    %156 = vector.broadcast %154 : vector<1x2x128x128xf32> to vector<2x2x128x128xf32>
    %157 = arith.mulf %155, %156 : vector<2x2x128x128xf32>
    %158 = vector.shape_cast %157 : vector<2x2x128x128xf32> to vector<512x128xf32>
    %159 = arith.truncf %158 : vector<512x128xf32> to vector<512x128xbf16>
    %cst_72 = arith.constant dense<0.000000e+00> : vector<512x128xf32>
    %160 = tpu.matmul %159, %12, %cst_72 {dimension_numbers = #tpu.dot_dimension_numbers<[1], [0], [0], [1], [0, 0, 1, 1], [], []>} : vector<512x128xbf16>, vector<128x128xbf16>, vector<512x128xf32> -> vector<512x128xf32>
    %161 = vector.extract_strided_slice %160 {offsets = [0, 0], sizes = [128, 128], strides = [1, 1]} : vector<512x128xf32> to vector<128x128xf32>
    %162 = vector.extract_strided_slice %160 {offsets = [128, 0], sizes = [128, 128], strides = [1, 1]} : vector<512x128xf32> to vector<128x128xf32>
    %163 = arith.maximumf %161, %162 : vector<128x128xf32>
    %164 = arith.subf %161, %163 : vector<128x128xf32>
    %165 = math.exp %164 : vector<128x128xf32>
    %166 = vector.extract_strided_slice %152 {offsets = [0, 0], sizes = [128, 128], strides = [1, 1]} : vector<256x128xf32> to vector<128x128xf32>
    %167 = arith.mulf %165, %166 : vector<128x128xf32>
    %168 = arith.subf %162, %163 : vector<128x128xf32>
    %169 = math.exp %168 : vector<128x128xf32>
    %170 = arith.addf %165, %169 : vector<128x128xf32>
    %171 = vector.extract_strided_slice %152 {offsets = [128, 0], sizes = [128, 128], strides = [1, 1]} : vector<256x128xf32> to vector<128x128xf32>
    %172 = arith.mulf %169, %171 : vector<128x128xf32>
    %173 = arith.addf %167, %172 : vector<128x128xf32>
    %174 = tpu.reciprocal %170 {approx = true} : vector<128x128xf32> -> vector<128x128xf32>
    %175 = arith.mulf %173, %174 : vector<128x128xf32>
    %176 = arith.truncf %175 : vector<128x128xf32> to vector<128x128xbf16>
    %c0_73 = arith.constant 0 : index
    %c0_74 = arith.constant 0 : index
    %177 = vector.load %arg18[%c0_73, %c0_74] : memref<256x128xbf16, #tpu.memory_space<vmem>>, vector<128x128xbf16>
    tpu.vector_store %arg18[%c0_73, %c0_74], %176 {strides = array<i32>} : memref<256x128xbf16, #tpu.memory_space<vmem>>, vector<128x128xbf16>,
    %178 = vector.extract_strided_slice %160 {offsets = [256, 0], sizes = [128, 128], strides = [1, 1]} : vector<512x128xf32> to vector<128x128xf32>
    %179 = vector.extract_strided_slice %160 {offsets = [384, 0], sizes = [128, 128], strides = [1, 1]} : vector<512x128xf32> to vector<128x128xf32>
    %180 = arith.maximumf %178, %179 : vector<128x128xf32>
    %181 = arith.subf %178, %180 : vector<128x128xf32>
    %182 = math.exp %181 : vector<128x128xf32>
    %183 = vector.extract_strided_slice %152 {offsets = [0, 0], sizes = [128, 128], strides = [1, 1]} : vector<256x128xf32> to vector<128x128xf32>
    %184 = arith.mulf %182, %183 : vector<128x128xf32>
    %185 = arith.subf %179, %180 : vector<128x128xf32>
    %186 = math.exp %185 : vector<128x128xf32>
    %187 = arith.addf %182, %186 : vector<128x128xf32>
    %188 = vector.extract_strided_slice %152 {offsets = [128, 0], sizes = [128, 128], strides = [1, 1]} : vector<256x128xf32> to vector<128x128xf32>
    %189 = arith.mulf %186, %188 : vector<128x128xf32>
    %190 = arith.addf %184, %189 : vector<128x128xf32>
    %191 = tpu.reciprocal %187 {approx = true} : vector<128x128xf32> -> vector<128x128xf32>
    %192 = arith.mulf %190, %191 : vector<128x128xf32>
    %193 = arith.truncf %192 : vector<128x128xf32> to vector<128x128xbf16>
    %c128_75 = arith.constant 128 : index
    %c0_76 = arith.constant 0 : index
    %194 = vector.load %arg18[%c128_75, %c0_76] : memref<256x128xbf16, #tpu.memory_space<vmem>>, vector<128x128xbf16>
    tpu.vector_store %arg18[%c128_75, %c0_76], %193 {strides = array<i32>} : memref<256x128xbf16, #tpu.memory_space<vmem>>, vector<128x128xbf16>,
    %c0_77 = arith.constant 0 : index
    %c0_78 = arith.constant 0 : index
    %195 = vector.load %arg18[%c0_77, %c0_78] : memref<256x128xbf16, #tpu.memory_space<vmem>>, vector<256x128xbf16>
    %c1_79 = arith.constant 1 : index
    %c0_80 = arith.constant 0 : index
    %c0_81 = arith.constant 0 : index
    %196 = vector.load %arg7[%c1_79, %c0_80, %c0_81] : memref<2x128x128xbf16, #tpu.memory_space<vmem>>, vector<1x128x128xbf16>
    %197 = vector.shape_cast %196 : vector<1x128x128xbf16> to vector<128x128xbf16>
    %cst_82 = arith.constant dense<0.000000e+00> : vector<256x128xf32>
    %198 = tpu.matmul %195, %197, %cst_82 {dimension_numbers = #tpu.dot_dimension_numbers<[1], [0], [0], [1], [0, 0, 1, 1], [], []>} : vector<256x128xbf16>, vector<128x128xbf16>, vector<256x128xf32> -> vector<256x128xf32>
    %c1_83 = arith.constant 1 : index
    %c0_84 = arith.constant 0 : index
    %c0_85 = arith.constant 0 : index
    %199 = vector.load %arg8[%c1_83, %c0_84, %c0_85] : memref<2x1x128xf32, #tpu.memory_space<vmem>>, vector<1x1x128xf32>
    %200 = vector.shape_cast %199 : vector<1x1x128xf32> to vector<1x128xf32>
    %201 = vector.broadcast %200 : vector<1x128xf32> to vector<256x128xf32>
    %202 = arith.addf %198, %201 : vector<256x128xf32>
    %203 = arith.addf %141, %202 : vector<256x128xf32>
    %c1_86 = arith.constant 1 : index
    %c0_87 = arith.constant 0 : index
    %c0_88 = arith.constant 0 : index
    %204 = vector.load %arg13[%c1_86, %c0_87, %c0_88] : memref<2x1x128xf32, #tpu.memory_space<vmem>>, vector<1x1x128xf32>
    %205 = vector.shape_cast %204 : vector<1x1x128xf32> to vector<1x128xf32>
    %c1_89 = arith.constant 1 : index
    %c0_90 = arith.constant 0 : index
    %c0_91 = arith.constant 0 : index
    %206 = vector.load %arg14[%c1_89, %c0_90, %c0_91] : memref<2x1x128xf32, #tpu.memory_space<vmem>>, vector<1x1x128xf32>
    %207 = vector.shape_cast %206 : vector<1x1x128xf32> to vector<1x128xf32>
    %cst_92 = arith.constant dense<0.000000e+00> : vector<256xf32>
    %208 = vector.multi_reduction <add>, %203, %cst_92 [1] : vector<256x128xf32> to vector<256xf32>
    %209 = vector.shape_cast %208 : vector<256xf32> to vector<256x1xf32>
    %cst_93 = arith.constant 1.280000e+02 : f32
    %210 = vector.broadcast %cst_93 : f32 to vector<256x1xf32>
    %211 = arith.divf %209, %210 : vector<256x1xf32>
    %212 = vector.broadcast %211 : vector<256x1xf32> to vector<256x128xf32>
    %213 = arith.subf %203, %212 : vector<256x128xf32>
    %214 = arith.mulf %213, %213 : vector<256x128xf32>
    %cst_94 = arith.constant dense<0.000000e+00> : vector<256xf32>
    %215 = vector.multi_reduction <add>, %214, %cst_94 [1] : vector<256x128xf32> to vector<256xf32>
    %216 = vector.shape_cast %215 : vector<256xf32> to vector<256x1xf32>
    %cst_95 = arith.constant 1.280000e+02 : f32
    %217 = vector.broadcast %cst_95 : f32 to vector<256x1xf32>
    %218 = arith.divf %216, %217 : vector<256x1xf32>
    %cst_96 = arith.constant 9.99999974E-6 : f32
    %219 = vector.broadcast %cst_96 : f32 to vector<256x1xf32>
    %220 = arith.addf %218, %219 : vector<256x1xf32>
    %221 = math.rsqrt %220 : vector<256x1xf32>
    %222 = vector.broadcast %221 : vector<256x1xf32> to vector<256x128xf32>
    %223 = arith.mulf %213, %222 : vector<256x128xf32>
    %224 = vector.broadcast %205 : vector<1x128xf32> to vector<256x128xf32>
    %225 = arith.mulf %223, %224 : vector<256x128xf32>
    %226 = vector.broadcast %207 : vector<1x128xf32> to vector<256x128xf32>
    %227 = arith.addf %225, %226 : vector<256x128xf32>
    %228 = arith.truncf %227 : vector<256x128xf32> to vector<256x128xbf16>
    %c1_97 = arith.constant 1 : index
    %c0_98 = arith.constant 0 : index
    %c0_99 = arith.constant 0 : index
    %229 = vector.load %arg9[%c1_97, %c0_98, %c0_99] : memref<2x128x128xbf16, #tpu.memory_space<vmem>>, vector<1x128x128xbf16>
    %230 = vector.shape_cast %229 : vector<1x128x128xbf16> to vector<128x128xbf16>
    %cst_100 = arith.constant dense<0.000000e+00> : vector<256x128xf32>
    %231 = tpu.matmul %228, %230, %cst_100 {dimension_numbers = #tpu.dot_dimension_numbers<[1], [0], [0], [1], [0, 0, 1, 1], [], []>} : vector<256x128xbf16>, vector<128x128xbf16>, vector<256x128xf32> -> vector<256x128xf32>
    %c1_101 = arith.constant 1 : index
    %c0_102 = arith.constant 0 : index
    %c0_103 = arith.constant 0 : index
    %232 = vector.load %arg10[%c1_101, %c0_102, %c0_103] : memref<2x1x128xf32, #tpu.memory_space<vmem>>, vector<1x1x128xf32>
    %233 = vector.shape_cast %232 : vector<1x1x128xf32> to vector<1x128xf32>
    %234 = vector.broadcast %233 : vector<1x128xf32> to vector<256x128xf32>
    %235 = arith.addf %231, %234 : vector<256x128xf32>
    %cst_104 = arith.constant 0.000000e+00 : f32
    %236 = vector.broadcast %cst_104 : f32 to vector<256x128xf32>
    %237 = arith.maximumf %235, %236 : vector<256x128xf32>
    %238 = arith.truncf %237 : vector<256x128xf32> to vector<256x128xbf16>
    %c1_105 = arith.constant 1 : index
    %c0_106 = arith.constant 0 : index
    %c0_107 = arith.constant 0 : index
    %239 = vector.load %arg11[%c1_105, %c0_106, %c0_107] : memref<2x128x128xbf16, #tpu.memory_space<vmem>>, vector<1x128x128xbf16>
    %240 = vector.shape_cast %239 : vector<1x128x128xbf16> to vector<128x128xbf16>
    %cst_108 = arith.constant dense<0.000000e+00> : vector<256x128xf32>
    %241 = tpu.matmul %238, %240, %cst_108 {dimension_numbers = #tpu.dot_dimension_numbers<[1], [0], [0], [1], [0, 0, 1, 1], [], []>} : vector<256x128xbf16>, vector<128x128xbf16>, vector<256x128xf32> -> vector<256x128xf32>
    %c1_109 = arith.constant 1 : index
    %c0_110 = arith.constant 0 : index
    %c0_111 = arith.constant 0 : index
    %242 = vector.load %arg12[%c1_109, %c0_110, %c0_111] : memref<2x1x128xf32, #tpu.memory_space<vmem>>, vector<1x1x128xf32>
    %243 = vector.shape_cast %242 : vector<1x1x128xf32> to vector<1x128xf32>
    %244 = vector.broadcast %243 : vector<1x128xf32> to vector<256x128xf32>
    %245 = arith.addf %241, %244 : vector<256x128xf32>
    %246 = arith.addf %227, %245 : vector<256x128xf32>
    %c1_112 = arith.constant 1 : index
    %c0_113 = arith.constant 0 : index
    %c0_114 = arith.constant 0 : index
    %247 = vector.load %arg15[%c1_112, %c0_113, %c0_114] : memref<2x1x128xf32, #tpu.memory_space<vmem>>, vector<1x1x128xf32>
    %248 = vector.shape_cast %247 : vector<1x1x128xf32> to vector<1x128xf32>
    %c1_115 = arith.constant 1 : index
    %c0_116 = arith.constant 0 : index
    %c0_117 = arith.constant 0 : index
    %249 = vector.load %arg16[%c1_115, %c0_116, %c0_117] : memref<2x1x128xf32, #tpu.memory_space<vmem>>, vector<1x1x128xf32>
    %250 = vector.shape_cast %249 : vector<1x1x128xf32> to vector<1x128xf32>
    %cst_118 = arith.constant dense<0.000000e+00> : vector<256xf32>
    %251 = vector.multi_reduction <add>, %246, %cst_118 [1] : vector<256x128xf32> to vector<256xf32>
    %252 = vector.shape_cast %251 : vector<256xf32> to vector<256x1xf32>
    %cst_119 = arith.constant 1.280000e+02 : f32
    %253 = vector.broadcast %cst_119 : f32 to vector<256x1xf32>
    %254 = arith.divf %252, %253 : vector<256x1xf32>
    %255 = vector.broadcast %254 : vector<256x1xf32> to vector<256x128xf32>
    %256 = arith.subf %246, %255 : vector<256x128xf32>
    %257 = arith.mulf %256, %256 : vector<256x128xf32>
    %cst_120 = arith.constant dense<0.000000e+00> : vector<256xf32>
    %258 = vector.multi_reduction <add>, %257, %cst_120 [1] : vector<256x128xf32> to vector<256xf32>
    %259 = vector.shape_cast %258 : vector<256xf32> to vector<256x1xf32>
    %cst_121 = arith.constant 1.280000e+02 : f32
    %260 = vector.broadcast %cst_121 : f32 to vector<256x1xf32>
    %261 = arith.divf %259, %260 : vector<256x1xf32>
    %cst_122 = arith.constant 9.99999974E-6 : f32
    %262 = vector.broadcast %cst_122 : f32 to vector<256x1xf32>
    %263 = arith.addf %261, %262 : vector<256x1xf32>
    %264 = math.rsqrt %263 : vector<256x1xf32>
    %265 = vector.broadcast %264 : vector<256x1xf32> to vector<256x128xf32>
    %266 = arith.mulf %256, %265 : vector<256x128xf32>
    %267 = vector.broadcast %248 : vector<1x128xf32> to vector<256x128xf32>
    %268 = arith.mulf %266, %267 : vector<256x128xf32>
    %269 = vector.broadcast %250 : vector<1x128xf32> to vector<256x128xf32>
    %270 = arith.addf %268, %269 : vector<256x128xf32>
    %271 = vector.shape_cast %270 : vector<256x128xf32> to vector<2x128x128xf32>
    %c0_123 = arith.constant 0 : index
    %c0_124 = arith.constant 0 : index
    %c0_125 = arith.constant 0 : index
    %272 = vector.load %arg17[%c0_123, %c0_124, %c0_125] : memref<2x128x128xf32, #tpu.memory_space<vmem>>, vector<2x128x128xf32>
    tpu.vector_store %arg17[%c0_123, %c0_124, %c0_125], %271 {strides = array<i32>} : memref<2x128x128xf32, #tpu.memory_space<vmem>>, vector<2x128x128xf32>,
    return
  }
  func.func @transform_0(%arg0: i32) -> (i32, i32, i32) {
    %c0_i32 = arith.constant 0 : i32
    %c0_i32_0 = arith.constant 0 : i32
    %c0_i32_1 = arith.constant 0 : i32
    return %c0_i32, %arg0, %c0_i32_0 : i32, i32, i32
  }
  func.func @transform_1(%arg0: i32) -> (i32, i32, i32) {
    %c0_i32 = arith.constant 0 : i32
    %c0_i32_0 = arith.constant 0 : i32
    %c0_i32_1 = arith.constant 0 : i32
    return %c0_i32, %arg0, %c0_i32_0 : i32, i32, i32
  }
  func.func @transform_2(%arg0: i32) -> (i32, i32) {
    %c0_i32 = arith.constant 0 : i32
    %c0_i32_0 = arith.constant 0 : i32
    %c0_i32_1 = arith.constant 0 : i32
    return %c0_i32, %c0_i32_0 : i32, i32
  }
  func.func @transform_3(%arg0: i32) -> (i32, i32) {
    %c0_i32 = arith.constant 0 : i32
    %c0_i32_0 = arith.constant 0 : i32
    %c0_i32_1 = arith.constant 0 : i32
    return %c0_i32, %c0_i32_0 : i32, i32
  }
  func.func @transform_4(%arg0: i32) -> (i32, i32, i32) {
    %c0_i32 = arith.constant 0 : i32
    %c0_i32_0 = arith.constant 0 : i32
    %c0_i32_1 = arith.constant 0 : i32
    %c0_i32_2 = arith.constant 0 : i32
    return %c0_i32, %c0_i32_0, %c0_i32_1 : i32, i32, i32
  }
  func.func @transform_5(%arg0: i32) -> (i32, i32, i32) {
    %c0_i32 = arith.constant 0 : i32
    %c0_i32_0 = arith.constant 0 : i32
    %c0_i32_1 = arith.constant 0 : i32
    %c0_i32_2 = arith.constant 0 : i32
    return %c0_i32, %c0_i32_0, %c0_i32_1 : i32, i32, i32
  }
  func.func @transform_6(%arg0: i32) -> (i32, i32, i32) {
    %c0_i32 = arith.constant 0 : i32
    %c0_i32_0 = arith.constant 0 : i32
    %c0_i32_1 = arith.constant 0 : i32
    %c0_i32_2 = arith.constant 0 : i32
    return %c0_i32, %c0_i32_0, %c0_i32_1 : i32, i32, i32
  }
  func.func @transform_7(%arg0: i32) -> (i32, i32, i32) {
    %c0_i32 = arith.constant 0 : i32
    %c0_i32_0 = arith.constant 0 : i32
    %c0_i32_1 = arith.constant 0 : i32
    %c0_i32_2 = arith.constant 0 : i32
    return %c0_i32, %c0_i32_0, %c0_i32_1 : i32, i32, i32
  }
  func.func @transform_8(%arg0: i32) -> (i32, i32, i32) {
    %c0_i32 = arith.constant 0 : i32
    %c0_i32_0 = arith.constant 0 : i32
    %c0_i32_1 = arith.constant 0 : i32
    %c0_i32_2 = arith.constant 0 : i32
    return %c0_i32, %c0_i32_0, %c0_i32_1 : i32, i32, i32
  }
  func.func @transform_9(%arg0: i32) -> (i32, i32, i32) {
    %c0_i32 = arith.constant 0 : i32
    %c0_i32_0 = arith.constant 0 : i32
    %c0_i32_1 = arith.constant 0 : i32
    %c0_i32_2 = arith.constant 0 : i32
    return %c0_i32, %c0_i32_0, %c0_i32_1 : i32, i32, i32
  }
  func.func @transform_10(%arg0: i32) -> (i32, i32, i32) {
    %c0_i32 = arith.constant 0 : i32
    %c0_i32_0 = arith.constant 0 : i32
    %c0_i32_1 = arith.constant 0 : i32
    %c0_i32_2 = arith.constant 0 : i32
    return %c0_i32, %c0_i32_0, %c0_i32_1 : i32, i32, i32
  }
  func.func @transform_11(%arg0: i32) -> (i32, i32, i32) {
    %c0_i32 = arith.constant 0 : i32
    %c0_i32_0 = arith.constant 0 : i32
    %c0_i32_1 = arith.constant 0 : i32
    %c0_i32_2 = arith.constant 0 : i32
    return %c0_i32, %c0_i32_0, %c0_i32_1 : i32, i32, i32
  }
  func.func @transform_12(%arg0: i32) -> (i32, i32, i32) {
    %c0_i32 = arith.constant 0 : i32
    %c0_i32_0 = arith.constant 0 : i32
    %c0_i32_1 = arith.constant 0 : i32
    %c0_i32_2 = arith.constant 0 : i32
    return %c0_i32, %c0_i32_0, %c0_i32_1 : i32, i32, i32
  }
  func.func @transform_13(%arg0: i32) -> (i32, i32, i32) {
    %c0_i32 = arith.constant 0 : i32
    %c0_i32_0 = arith.constant 0 : i32
    %c0_i32_1 = arith.constant 0 : i32
    %c0_i32_2 = arith.constant 0 : i32
    return %c0_i32, %c0_i32_0, %c0_i32_1 : i32, i32, i32
  }
  func.func @transform_14(%arg0: i32) -> (i32, i32, i32) {
    %c0_i32 = arith.constant 0 : i32
    %c0_i32_0 = arith.constant 0 : i32
    %c0_i32_1 = arith.constant 0 : i32
    %c0_i32_2 = arith.constant 0 : i32
    return %c0_i32, %c0_i32_0, %c0_i32_1 : i32, i32, i32
  }
  func.func @transform_15(%arg0: i32) -> (i32, i32, i32) {
    %c0_i32 = arith.constant 0 : i32
    %c0_i32_0 = arith.constant 0 : i32
    %c0_i32_1 = arith.constant 0 : i32
    %c0_i32_2 = arith.constant 0 : i32
    return %c0_i32, %c0_i32_0, %c0_i32_1 : i32, i32, i32
  }
  func.func @transform_16(%arg0: i32) -> (i32, i32, i32) {
    %c0_i32 = arith.constant 0 : i32
    %c0_i32_0 = arith.constant 0 : i32
    %c0_i32_1 = arith.constant 0 : i32
    return %c0_i32, %arg0, %c0_i32_0 : i32, i32, i32
  }
}

</mosaic_0001>

<llo_original>
// kernel: tpu_custom_call.1
$region0: #{tpu_custom_call.1}
  #allocation0 [shape = 'u32[]', space=smem, size = 0x4, offset = 0x4, fixed_abs, tag = 'smem constant byte address 0x4 - core index']
  #allocation1 [shape = 'u32[144,128]{1,0:T(1,128)}', space=vmem, size = 0x12000, scoped, tag = 'internal scratch']
  #allocation2 [shape = 'bf16[256,128]{1,0:T(16,128)(2,1)}', space=vmem, size = 0x10000, scoped, tag = 'scratch operand']
  %s0 = inlined_call_operand.vmem [shape: f32[2,128,3], index: 0, kind: input, shape index: {}]
  %s1 = inlined_call_operand.vmem [shape: f32[1,128,128], index: 1, kind: input, shape index: {}]
  %s2 = inlined_call_operand.vmem [shape: bf16[3,128], index: 2, kind: input, shape index: {}]
  %s3 = inlined_call_operand.hbm [shape: bf16[128,128], index: 3, kind: input, shape index: {}]
  %s4 = inlined_call_operand.hbm [shape: bf16[2,128,384], index: 4, kind: input, shape index: {}]
  %s5 = inlined_call_operand.vmem [shape: f32[2,1,384], index: 5, kind: input, shape index: {}]
  %s6 = inlined_call_operand.vmem [shape: bf16[2,128,128], index: 6, kind: input, shape index: {}]
  %s7 = inlined_call_operand.vmem [shape: f32[2,1,128], index: 7, kind: input, shape index: {}]
  %s8 = inlined_call_operand.hbm [shape: bf16[2,128,128], index: 8, kind: input, shape index: {}]
  %s9 = inlined_call_operand.vmem [shape: f32[2,1,128], index: 9, kind: input, shape index: {}]
  %s10 = inlined_call_operand.hbm [shape: bf16[2,128,128], index: 10, kind: input, shape index: {}]
  %s11 = inlined_call_operand.vmem [shape: f32[2,1,128], index: 11, kind: input, shape index: {}]
  %s12 = inlined_call_operand.vmem [shape: f32[2,1,128], index: 12, kind: input, shape index: {}]
  %s13 = inlined_call_operand.vmem [shape: f32[2,1,128], index: 13, kind: input, shape index: {}]
  %s14 = inlined_call_operand.vmem [shape: f32[2,1,128], index: 14, kind: input, shape index: {}]
  %s15 = inlined_call_operand.vmem [shape: f32[2,1,128], index: 15, kind: input, shape index: {}]
  %s16 = inlined_call_operand.hbm [shape: f32[2,128,128], index: 16, kind: output, shape index: {}]
  %s17 = sld [smem:[#allocation0]]
  $region90: #{tpu_custom_call.1} parent=0
    _
  %s19 = ssub.s32 1, %s17
  %s20 = scalar_select 0, %s19, %s17
  $region1: #{tpu_custom_call.1} parent=0
    #allocation3 [shape = 'u8[32768]{0}', space=vmem, size = 0x8000, scoped, tag = 'input window, operand 3, single buffered']
    #allocation4 [shape = 's32[1]{0}', space=sflag, size = 0x4, scoped, tag = 'scoped memory for tpu_custom_call.1']
    #allocation5 [shape = 's32[1]{0}', space=sflag, size = 0x4, scoped, tag = 'scoped memory for tpu_custom_call.1']
    #allocation6 [shape = 'u8[196608]{0}', space=vmem, size = 0x30000, scoped, tag = 'input window, operand 4, single buffered']
    #allocation7 [shape = 's32[1]{0}', space=sflag, size = 0x4, scoped, tag = 'scoped memory for tpu_custom_call.1']
    #allocation8 [shape = 'u8[65536]{0}', space=vmem, size = 0x10000, scoped, tag = 'input window, operand 8, single buffered']
    #allocation9 [shape = 'u8[65536]{0}', space=vmem, size = 0x10000, scoped, tag = 'input window, operand 10, single buffered']
    #allocation10 [shape = 's32[1]{0}', space=sflag, size = 0x4, scoped, tag = 'scoped memory for tpu_custom_call.1']
    #allocation11 [shape = 'u8[131072]{0}', space=vmem, size = 0x20000, scoped, tag = 'output window, operand 0, single buffered']
    %21 = vsyncpa [#allocation4], 0
    %22 = vsyncpa [#allocation7], 0
    %23 = vsyncpa [#allocation10], 0
    %24 = vsyncpa [#allocation5], 0
    // Predicated region
    $region2: #{tpu_custom_call.1} parent=1 // pred_check
      _
    $region3: #{tpu_custom_call.1} parent=1 // pred_check_branch
      %26 = sbr.rel (0) target = $region5
    $region4: #{tpu_custom_call.1} parent=1 // pred_region
      _
    $region5: #{tpu_custom_call.1} parent=1 // pred_fallthru
      _
    // Predicated region
    $region6: #{tpu_custom_call.1} parent=1 // pred_check
      _
    $region7: #{tpu_custom_call.1} parent=1 // pred_check_branch
      %28 = sbr.rel (0) target = $region9
    $region8: #{tpu_custom_call.1} parent=1 // pred_region
      _
    $region9: #{tpu_custom_call.1} parent=1 // pred_fallthru
      _
    // Predicated region
    $region10: #{tpu_custom_call.1} parent=1 // pred_check
      _
    $region11: #{tpu_custom_call.1} parent=1 // pred_check_branch
      %30 = sbr.rel (0) target = $region13
    $region12: #{tpu_custom_call.1} parent=1 // pred_region
      _
    $region13: #{tpu_custom_call.1} parent=1 // pred_fallthru
      _
    // Predicated region
    $region14: #{tpu_custom_call.1} parent=1 // pred_check
      _
    $region15: #{tpu_custom_call.1} parent=1 // pred_check_branch
      %32 = sbr.rel (0) target = $region17
    $region16: #{tpu_custom_call.1} parent=1 // pred_region
      %s34 = ssub.s32 1024, 1024
      %35 = vsyncadd [#allocation4], %s34
      %s36 = sshll.u32 [#allocation3], 4
      %s37 = int_to_ptr.vmem [resolvable:$true] %s36
      %42 = dma.hbm_to_vmem [thread:$0]  %s3, 1024, %s37, [#allocation4], 64, 64, 4
    $region17: #{tpu_custom_call.1} parent=1 // pred_fallthru
      _
    // Predicated region
    $region18: #{tpu_custom_call.1} parent=1 // pred_check
      _
    $region19: #{tpu_custom_call.1} parent=1 // pred_check_branch
      %44 = sbr.rel (0) target = $region21
    $region20: #{tpu_custom_call.1} parent=1 // pred_region
      %s46 = ssub.s32 6144, 6144
      %47 = vsyncadd [#allocation7], %s46
      %s48 = sshll.u32 [#allocation6], 4
      %s49 = int_to_ptr.vmem [resolvable:$true] %s48
      %54 = dma.hbm_to_vmem [thread:$0]  %s4, 6144, %s49, [#allocation7], 192, 192, 12
    $region21: #{tpu_custom_call.1} parent=1 // pred_fallthru
      _
    // Predicated region
    $region22: #{tpu_custom_call.1} parent=1 // pred_check
      _
    $region23: #{tpu_custom_call.1} parent=1 // pred_check_branch
      %56 = sbr.rel (0) target = $region25
    $region24: #{tpu_custom_call.1} parent=1 // pred_region
      _
    $region25: #{tpu_custom_call.1} parent=1 // pred_fallthru
      _
    // Predicated region
    $region26: #{tpu_custom_call.1} parent=1 // pred_check
      _
    $region27: #{tpu_custom_call.1} parent=1 // pred_check_branch
      %58 = sbr.rel (0) target = $region29
    $region28: #{tpu_custom_call.1} parent=1 // pred_region
      _
    $region29: #{tpu_custom_call.1} parent=1 // pred_fallthru
      _
    // Predicated region
    $region30: #{tpu_custom_call.1} parent=1 // pred_check
      _
    $region31: #{tpu_custom_call.1} parent=1 // pred_check_branch
      %60 = sbr.rel (0) target = $region33
    $region32: #{tpu_custom_call.1} parent=1 // pred_region
      _
    $region33: #{tpu_custom_call.1} parent=1 // pred_fallthru
      _
    // Predicated region
    $region34: #{tpu_custom_call.1} parent=1 // pred_check
      _
    $region35: #{tpu_custom_call.1} parent=1 // pred_check_branch
      %62 = sbr.rel (0) target = $region37
    $region36: #{tpu_custom_call.1} parent=1 // pred_region
      %s64 = ssub.s32 2048, 2048
      %65 = vsyncadd [#allocation7], %s64
      %s66 = sshll.u32 [#allocation8], 4
      %s67 = int_to_ptr.vmem [resolvable:$true] %s66
      %72 = dma.hbm_to_vmem [thread:$0]  %s8, 2048, %s67, [#allocation7], 64, 64, 4
    $region37: #{tpu_custom_call.1} parent=1 // pred_fallthru
      _
    // Predicated region
    $region38: #{tpu_custom_call.1} parent=1 // pred_check
      _
    $region39: #{tpu_custom_call.1} parent=1 // pred_check_branch
      %74 = sbr.rel (0) target = $region41
    $region40: #{tpu_custom_call.1} parent=1 // pred_region
      _
    $region41: #{tpu_custom_call.1} parent=1 // pred_fallthru
      _
    // Predicated region
    $region42: #{tpu_custom_call.1} parent=1 // pred_check
      _
    $region43: #{tpu_custom_call.1} parent=1 // pred_check_branch
      %76 = sbr.rel (0) target = $region45
    $region44: #{tpu_custom_call.1} parent=1 // pred_region
      %s78 = ssub.s32 2048, 2048
      %79 = vsyncadd [#allocation10], %s78
      %s80 = sshll.u32 [#allocation9], 4
      %s81 = int_to_ptr.vmem [resolvable:$true] %s80
      %86 = dma.hbm_to_vmem [thread:$0]  %s10, 2048, %s81, [#allocation10], 64, 64, 4
    $region45: #{tpu_custom_call.1} parent=1 // pred_fallthru
      _
    // Predicated region
    $region46: #{tpu_custom_call.1} parent=1 // pred_check
      _
    $region47: #{tpu_custom_call.1} parent=1 // pred_check_branch
      %88 = sbr.rel (0) target = $region49
    $region48: #{tpu_custom_call.1} parent=1 // pred_region
      _
    $region49: #{tpu_custom_call.1} parent=1 // pred_fallthru
      _
    // Predicated region
    $region50: #{tpu_custom_call.1} parent=1 // pred_check
      _
    $region51: #{tpu_custom_call.1} parent=1 // pred_check_branch
      %90 = sbr.rel (0) target = $region53
    $region52: #{tpu_custom_call.1} parent=1 // pred_region
      _
    $region53: #{tpu_custom_call.1} parent=1 // pred_fallthru
      _
    // Predicated region
    $region54: #{tpu_custom_call.1} parent=1 // pred_check
      _
    $region55: #{tpu_custom_call.1} parent=1 // pred_check_branch
      %92 = sbr.rel (0) target = $region57
    $region56: #{tpu_custom_call.1} parent=1 // pred_region
      _
    $region57: #{tpu_custom_call.1} parent=1 // pred_fallthru
      _
    // Predicated region
    $region58: #{tpu_custom_call.1} parent=1 // pred_check
      _
    $region59: #{tpu_custom_call.1} parent=1 // pred_check_branch
      %94 = sbr.rel (0) target = $region61
    $region60: #{tpu_custom_call.1} parent=1 // pred_region
      _
    $region61: #{tpu_custom_call.1} parent=1 // pred_fallthru
      _
    // Predicated region
    $region62: #{tpu_custom_call.1} parent=1 // pred_check
      _
    $region63: #{tpu_custom_call.1} parent=1 // pred_check_branch
      %96 = sbr.rel (0) target = $region65
    $region64: #{tpu_custom_call.1} parent=1 // pred_region
      _
    $region65: #{tpu_custom_call.1} parent=1 // pred_fallthru
      _
    // Predicated region
    $region66: #{tpu_custom_call.1} parent=1 // pred_check
      _
    $region67: #{tpu_custom_call.1} parent=1 // pred_check_branch
      %98 = sbr.rel (0) target = $region69
    $region68: #{tpu_custom_call.1} parent=1 // pred_region
      %99 = dma.done [#allocation4], 1024
    $region69: #{tpu_custom_call.1} parent=1 // pred_fallthru
      _
    // Predicated region
    $region70: #{tpu_custom_call.1} parent=1 // pred_check
      _
    $region71: #{tpu_custom_call.1} parent=1 // pred_check_branch
      %101 = sbr.rel (0) target = $region73
    $region72: #{tpu_custom_call.1} parent=1 // pred_region
      %102 = dma.done [#allocation7], 6144
    $region73: #{tpu_custom_call.1} parent=1 // pred_fallthru
      _
    // Predicated region
    $region74: #{tpu_custom_call.1} parent=1 // pred_check
      _
    $region75: #{tpu_custom_call.1} parent=1 // pred_check_branch
      %104 = sbr.rel (0) target = $region77
    $region76: #{tpu_custom_call.1} parent=1 // pred_region
      %105 = dma.done [#allocation7], 2048
    $region77: #{tpu_custom_call.1} parent=1 // pred_fallthru
      _
    // Predicated region
    $region78: #{tpu_custom_call.1} parent=1 // pred_check
      _
    $region79: #{tpu_custom_call.1} parent=1 // pred_check_branch
      %107 = sbr.rel (0) target = $region81
    $region80: #{tpu_custom_call.1} parent=1 // pred_region
      %108 = dma.done [#allocation10], 2048
    $region81: #{tpu_custom_call.1} parent=1 // pred_fallthru
      _
    %v110 = vld [vmem:[%s1] sm:$0xff]
    %v111 = vld [vmem:[%s1 + $0x8] sm:$0xff]
    %v112 = vld [vmem:[%s1 + $0x10] sm:$0xff]
    %v113 = vld [vmem:[%s1 + $0x18] sm:$0xff]
    %v114 = vld [vmem:[%s1 + $0x20] sm:$0xff]
    %v115 = vld [vmem:[%s1 + $0x28] sm:$0xff]
    %v116 = vld [vmem:[%s1 + $0x30] sm:$0xff]
    %v117 = vld [vmem:[%s1 + $0x38] sm:$0xff]
    %v118 = vld [vmem:[%s1 + $0x40] sm:$0xff]
    %v119 = vld [vmem:[%s1 + $0x48] sm:$0xff]
    %v120 = vld [vmem:[%s1 + $0x50] sm:$0xff]
    %v121 = vld [vmem:[%s1 + $0x58] sm:$0xff]
    %v122 = vld [vmem:[%s1 + $0x60] sm:$0xff]
    %v123 = vld [vmem:[%s1 + $0x68] sm:$0xff]
    %v124 = vld [vmem:[%s1 + $0x70] sm:$0xff]
    %v125 = vld [vmem:[%s1 + $0x78] sm:$0xff]
    %v126 = vld [vmem:[%s0] sm:$0xff]
    %v127 = vld [vmem:[%s0 + $0x8] sm:$0xff]
    %v128 = vld [vmem:[%s0 + $0x10] sm:$0xff]
    %v129 = vld [vmem:[%s0 + $0x18] sm:$0xff]
    %v130 = vld [vmem:[%s0 + $0x20] sm:$0xff]
    %v131 = vld [vmem:[%s0 + $0x28] sm:$0xff]
    %v132 = vld [vmem:[%s0 + $0x30] sm:$0xff]
    %v133 = vld [vmem:[%s0 + $0x38] sm:$0xff]
    %v134 = vld [vmem:[%s0 + $0x40] sm:$0xff]
    %v135 = vld [vmem:[%s0 + $0x48] sm:$0xff]
    %v136 = vld [vmem:[%s0 + $0x50] sm:$0xff]
    %v137 = vld [vmem:[%s0 + $0x58] sm:$0xff]
    %v138 = vld [vmem:[%s0 + $0x60] sm:$0xff]
    %v139 = vld [vmem:[%s0 + $0x68] sm:$0xff]
    %v140 = vld [vmem:[%s0 + $0x70] sm:$0xff]
    %v141 = vld [vmem:[%s0 + $0x78] sm:$0xff]
    %v142 = vld [vmem:[%s0 + $0x80] sm:$0xff]
    %v143 = vld [vmem:[%s0 + $0x88] sm:$0xff]
    %v144 = vld [vmem:[%s0 + $0x90] sm:$0xff]
    %v145 = vld [vmem:[%s0 + $0x98] sm:$0xff]
    %v146 = vld [vmem:[%s0 + $0xa0] sm:$0xff]
    %v147 = vld [vmem:[%s0 + $0xa8] sm:$0xff]
    %v148 = vld [vmem:[%s0 + $0xb0] sm:$0xff]
    %v149 = vld [vmem:[%s0 + $0xb8] sm:$0xff]
    %v150 = vld [vmem:[%s0 + $0xc0] sm:$0xff]
    %v151 = vld [vmem:[%s0 + $0xc8] sm:$0xff]
    %v152 = vld [vmem:[%s0 + $0xd0] sm:$0xff]
    %v153 = vld [vmem:[%s0 + $0xd8] sm:$0xff]
    %v154 = vld [vmem:[%s0 + $0xe0] sm:$0xff]
    %v155 = vld [vmem:[%s0 + $0xe8] sm:$0xff]
    %v156 = vld [vmem:[%s0 + $0xf0] sm:$0xff]
    %v157 = vld [vmem:[%s0 + $0xf8] sm:$0xff]
    %v158 = vpack.c.bf16 %v127, %v126
    %v159 = vpack.c.bf16 %v129, %v128
    %v160 = vpack.c.bf16 %v131, %v130
    %v161 = vpack.c.bf16 %v133, %v132
    %v162 = vpack.c.bf16 %v135, %v134
    %v163 = vpack.c.bf16 %v137, %v136
    %v164 = vpack.c.bf16 %v139, %v138
    %v165 = vpack.c.bf16 %v141, %v140
    %v166 = vpack.c.bf16 %v143, %v142
    %v167 = vpack.c.bf16 %v145, %v144
    %v168 = vpack.c.bf16 %v147, %v146
    %v169 = vpack.c.bf16 %v149, %v148
    %v170 = vpack.c.bf16 %v151, %v150
    %v171 = vpack.c.bf16 %v153, %v152
    %v172 = vpack.c.bf16 %v155, %v154
    %v173 = vpack.c.bf16 %v157, %v156
    %v174 = vld [vmem:[%s2] sm:$0x3]
    %vm175 = vcmask 23552
    %v177 = vsel %vm175, %v158, 0
    %v180 = vsel %vm175, %v159, 0
    %v183 = vsel %vm175, %v160, 0
    %v186 = vsel %vm175, %v161, 0
    %v189 = vsel %vm175, %v162, 0
    %v192 = vsel %vm175, %v163, 0
    %v195 = vsel %vm175, %v164, 0
    %v198 = vsel %vm175, %v165, 0
    %v201 = vsel %vm175, %v166, 0
    %v204 = vsel %vm175, %v167, 0
    %v207 = vsel %vm175, %v168, 0
    %v210 = vsel %vm175, %v169, 0
    %v213 = vsel %vm175, %v170, 0
    %v216 = vsel %vm175, %v171, 0
    %v219 = vsel %vm175, %v172, 0
    %v222 = vsel %vm175, %v173, 0
    %vm224 = vcmask 1040384
    %vm225 = vcmask 1041408
    %v226 = vsel %vm224, 4294967295, 65535
    %v227 = vsel %vm225, %v226, 0
    %v229 = vand.u32 %v174, %v227
    %231 = vmatprep.subr.bf16.mxu0 0
    %232 = vmatpush1.bf16.msra.mxu0 %v229
    %233 = vmatprep.subr.bf16.mxu0 0
    %234 = vmatpush1.bf16.msra.mxu0 0
    %235 = vmatprep.subr.bf16.mxu0 0
    %236 = vmatpush1.bf16.msra.mxu0 0
    %237 = vmatprep.subr.bf16.mxu0 0
    %238 = vmatpush1.bf16.msra.mxu0 0
    %239 = vmatprep.subr.bf16.mxu0 0
    %240 = vmatpush1.bf16.msra.mxu0 0
    %241 = vmatprep.subr.bf16.mxu0 0
    %242 = vmatpush1.bf16.msra.mxu0 0
    %243 = vmatprep.subr.bf16.mxu0 0
    %244 = vmatpush1.bf16.msra.mxu0 0
    %245 = vmatprep.subr.bf16.mxu0 0
    %246 = vmatpush1.bf16.msra.mxu0 0
    %247 = vmatprep.subr.bf16.mxu0 0
    %248 = vmatpush1.bf16.msra.mxu0 0
    %249 = vmatprep.subr.bf16.mxu0 0
    %250 = vmatpush1.bf16.msra.mxu0 0
    %251 = vmatprep.subr.bf16.mxu0 0
    %252 = vmatpush1.bf16.msra.mxu0 0
    %253 = vmatprep.subr.bf16.mxu0 0
    %254 = vmatpush1.bf16.msra.mxu0 0
    %255 = vmatprep.subr.bf16.mxu0 0
    %256 = vmatpush1.bf16.msra.mxu0 0
    %257 = vmatprep.subr.bf16.mxu0 0
    %258 = vmatpush1.bf16.msra.mxu0 0
    %259 = vmatprep.subr.bf16.mxu0 0
    %260 = vmatpush1.bf16.msra.mxu0 0
    %261 = vmatprep.subr.bf16.mxu0 0
    %262 = vmatpush1.bf16.msra.mxu0 0
    %263 = vmatprep.mubr.bf16.mxu0 0
    %264 = vmatmul.mubr.bf16.gmra.mrb[0].mxu0 %v177
    %v265 = vpop.f32.mrb[0].mxu0
    %v266 = vadd.f32 0.0, %v265
    %v267 = vpop.f32.mrb[0].mxu0
    %v268 = vpop.f32.mrb[0].mxu0
    %v269 = vadd.f32 0.0, %v268
    %v270 = vpop.f32.mrb[0].mxu0
    %271 = vmatprep.mubr.bf16.mxu0 0
    %272 = vmatmul.mubr.bf16.gmra.mrb[0].mxu0 %v180
    %v273 = vpop.f32.mrb[0].mxu0
    %v274 = vadd.f32 0.0, %v273
    %v275 = vpop.f32.mrb[0].mxu0
    %v276 = vpop.f32.mrb[0].mxu0
    %v277 = vadd.f32 0.0, %v276
    %v278 = vpop.f32.mrb[0].mxu0
    %279 = vmatprep.mubr.bf16.mxu0 0
    %280 = vmatmul.mubr.bf16.gmra.mrb[0].mxu0 %v183
    %v281 = vpop.f32.mrb[0].mxu0
    %v282 = vadd.f32 0.0, %v281
    %v283 = vpop.f32.mrb[0].mxu0
    %v284 = vpop.f32.mrb[0].mxu0
    %v285 = vadd.f32 0.0, %v284
    %v286 = vpop.f32.mrb[0].mxu0
    %287 = vmatprep.mubr.bf16.mxu0 0
    %288 = vmatmul.mubr.bf16.gmra.mrb[0].mxu0 %v186
    %v289 = vpop.f32.mrb[0].mxu0
    %v290 = vadd.f32 0.0, %v289
    %v291 = vpop.f32.mrb[0].mxu0
    %v292 = vpop.f32.mrb[0].mxu0
    %v293 = vadd.f32 0.0, %v292
    %v294 = vpop.f32.mrb[0].mxu0
    %295 = vmatprep.mubr.bf16.mxu0 0
    %296 = vmatmul.mubr.bf16.gmra.mrb[0].mxu0 %v189
    %v297 = vpop.f32.mrb[0].mxu0
    %v298 = vadd.f32 0.0, %v297
    %v299 = vpop.f32.mrb[0].mxu0
    %v300 = vpop.f32.mrb[0].mxu0
    %v301 = vadd.f32 0.0, %v300
    %v302 = vpop.f32.mrb[0].mxu0
    %303 = vmatprep.mubr.bf16.mxu0 0
    %304 = vmatmul.mubr.bf16.gmra.mrb[0].mxu0 %v192
    %v305 = vpop.f32.mrb[0].mxu0
    %v306 = vadd.f32 0.0, %v305
    %v307 = vpop.f32.mrb[0].mxu0
    %v308 = vpop.f32.mrb[0].mxu0
    %v309 = vadd.f32 0.0, %v308
    %v310 = vpop.f32.mrb[0].mxu0
    %311 = vmatprep.mubr.bf16.mxu0 0
    %312 = vmatmul.mubr.bf16.gmra.mrb[0].mxu0 %v195
    %v313 = vpop.f32.mrb[0].mxu0
    %v314 = vadd.f32 0.0, %v313
    %v315 = vpop.f32.mrb[0].mxu0
    %v316 = vpop.f32.mrb[0].mxu0
    %v317 = vadd.f32 0.0, %v316
    %v318 = vpop.f32.mrb[0].mxu0
    %319 = vmatprep.mubr.bf16.mxu0 0
    %320 = vmatmul.mubr.bf16.gmra.mrb[0].mxu0 %v198
    %v321 = vpop.f32.mrb[0].mxu0
    %v322 = vadd.f32 0.0, %v321
    %v323 = vpop.f32.mrb[0].mxu0
    %v324 = vpop.f32.mrb[0].mxu0
    %v325 = vadd.f32 0.0, %v324
    %v326 = vpop.f32.mrb[0].mxu0
    %327 = vmatprep.mubr.bf16.mxu0 0
    %328 = vmatmul.mubr.bf16.gmra.mrb[0].mxu0 %v201
    %v329 = vpop.f32.mrb[0].mxu0
    %v330 = vadd.f32 0.0, %v329
    %v331 = vpop.f32.mrb[0].mxu0
    %v332 = vpop.f32.mrb[0].mxu0
    %v333 = vadd.f32 0.0, %v332
    %v334 = vpop.f32.mrb[0].mxu0
    %335 = vmatprep.mubr.bf16.mxu0 0
    %336 = vmatmul.mubr.bf16.gmra.mrb[0].mxu0 %v204
    %v337 = vpop.f32.mrb[0].mxu0
    %v338 = vadd.f32 0.0, %v337
    %v339 = vpop.f32.mrb[0].mxu0
    %v340 = vpop.f32.mrb[0].mxu0
    %v341 = vadd.f32 0.0, %v340
    %v342 = vpop.f32.mrb[0].mxu0
    %343 = vmatprep.mubr.bf16.mxu0 0
    %344 = vmatmul.mubr.bf16.gmra.mrb[0].mxu0 %v207
    %v345 = vpop.f32.mrb[0].mxu0
    %v346 = vadd.f32 0.0, %v345
    %v347 = vpop.f32.mrb[0].mxu0
    %v348 = vpop.f32.mrb[0].mxu0
    %v349 = vadd.f32 0.0, %v348
    %v350 = vpop.f32.mrb[0].mxu0
    %351 = vmatprep.mubr.bf16.mxu0 0
    %352 = vmatmul.mubr.bf16.gmra.mrb[0].mxu0 %v210
    %v353 = vpop.f32.mrb[0].mxu0
    %v354 = vadd.f32 0.0, %v353
    %v355 = vpop.f32.mrb[0].mxu0
    %v356 = vpop.f32.mrb[0].mxu0
    %v357 = vadd.f32 0.0, %v356
    %v358 = vpop.f32.mrb[0].mxu0
    %359 = vmatprep.mubr.bf16.mxu0 0
    %360 = vmatmul.mubr.bf16.gmra.mrb[0].mxu0 %v213
    %v361 = vpop.f32.mrb[0].mxu0
    %v362 = vadd.f32 0.0, %v361
    %v363 = vpop.f32.mrb[0].mxu0
    %v364 = vpop.f32.mrb[0].mxu0
    %v365 = vadd.f32 0.0, %v364
    %v366 = vpop.f32.mrb[0].mxu0
    %367 = vmatprep.mubr.bf16.mxu0 0
    %368 = vmatmul.mubr.bf16.gmra.mrb[0].mxu0 %v216
    %v369 = vpop.f32.mrb[0].mxu0
    %v370 = vadd.f32 0.0, %v369
    %v371 = vpop.f32.mrb[0].mxu0
    %v372 = vpop.f32.mrb[0].mxu0
    %v373 = vadd.f32 0.0, %v372
    %v374 = vpop.f32.mrb[0].mxu0
    %375 = vmatprep.mubr.bf16.mxu0 0
    %376 = vmatmul.mubr.bf16.gmra.mrb[0].mxu0 %v219
    %v377 = vpop.f32.mrb[0].mxu0
    %v378 = vadd.f32 0.0, %v377
    %v379 = vpop.f32.mrb[0].mxu0
    %v380 = vpop.f32.mrb[0].mxu0
    %v381 = vadd.f32 0.0, %v380
    %v382 = vpop.f32.mrb[0].mxu0
    %383 = vmatprep.mubr.bf16.mxu0 0
    %384 = vmatmul.mubr.bf16.gmra.mrb[0].mxu0 %v222
    %v385 = vpop.f32.mrb[0].mxu0
    %v386 = vadd.f32 0.0, %v385
    %v387 = vpop.f32.mrb[0].mxu0
    %v388 = vpop.f32.mrb[0].mxu0
    %v389 = vadd.f32 0.0, %v388
    %v390 = vpop.f32.mrb[0].mxu0
    %391 = vdwg.mxu0
    %v392 = vadd.f32 %v110, %v266
    %v393 = vadd.f32 %v111, %v269
    %v394 = vadd.f32 %v112, %v274
    %v395 = vadd.f32 %v113, %v277
    %v396 = vadd.f32 %v114, %v282
    %v397 = vadd.f32 %v115, %v285
    %v398 = vadd.f32 %v116, %v290
    %v399 = vadd.f32 %v117, %v293
    %v400 = vadd.f32 %v118, %v298
    %v401 = vadd.f32 %v119, %v301
    %v402 = vadd.f32 %v120, %v306
    %v403 = vadd.f32 %v121, %v309
    %v404 = vadd.f32 %v122, %v314
    %v405 = vadd.f32 %v123, %v317
    %v406 = vadd.f32 %v124, %v322
    %v407 = vadd.f32 %v125, %v325
    %v408 = vadd.f32 %v110, %v330
    %v409 = vadd.f32 %v111, %v333
    %v410 = vadd.f32 %v112, %v338
    %v411 = vadd.f32 %v113, %v341
    %v412 = vadd.f32 %v114, %v346
    %v413 = vadd.f32 %v115, %v349
    %v414 = vadd.f32 %v116, %v354
    %v415 = vadd.f32 %v117, %v357
    %v416 = vadd.f32 %v118, %v362
    %v417 = vadd.f32 %v119, %v365
    %v418 = vadd.f32 %v120, %v370
    %v419 = vadd.f32 %v121, %v373
    %v420 = vadd.f32 %v122, %v378
    %v421 = vadd.f32 %v123, %v381
    %v422 = vadd.f32 %v124, %v386
    %v423 = vadd.f32 %v125, %v389
    %v424 = vld [vmem:[#allocation3] sm:$0xf]
    %v425 = vld [vmem:[#allocation3 + $0x4] sm:$0xf]
    %v426 = vld [vmem:[#allocation3 + $0x8] sm:$0xf]
    %v427 = vld [vmem:[#allocation3 + $0xc] sm:$0xf]
    %v428 = vld [vmem:[#allocation3 + $0x10] sm:$0xf]
    %v429 = vld [vmem:[#allocation3 + $0x14] sm:$0xf]
    %v430 = vld [vmem:[#allocation3 + $0x18] sm:$0xf]
    %v431 = vld [vmem:[#allocation3 + $0x1c] sm:$0xf]
    %v432 = vld [vmem:[#allocation3 + $0x20] sm:$0xf]
    %v433 = vld [vmem:[#allocation3 + $0x24] sm:$0xf]
    %v434 = vld [vmem:[#allocation3 + $0x28] sm:$0xf]
    %v435 = vld [vmem:[#allocation3 + $0x2c] sm:$0xf]
    %v436 = vld [vmem:[#allocation3 + $0x30] sm:$0xf]
    %v437 = vld [vmem:[#allocation3 + $0x34] sm:$0xf]
    %v438 = vld [vmem:[#allocation3 + $0x38] sm:$0xf]
    %v439 = vld [vmem:[#allocation3 + $0x3c] sm:$0xf]
    %v440 = vpack.c.bf16 %v393, %v392
    %v441 = vpack.c.bf16 %v395, %v394
    %v442 = vpack.c.bf16 %v397, %v396
    %v443 = vpack.c.bf16 %v399, %v398
    %v444 = vpack.c.bf16 %v401, %v400
    %v445 = vpack.c.bf16 %v403, %v402
    %v446 = vpack.c.bf16 %v405, %v404
    %v447 = vpack.c.bf16 %v407, %v406
    %v448 = vpack.c.bf16 %v409, %v408
    %v449 = vpack.c.bf16 %v411, %v410
    %v450 = vpack.c.bf16 %v413, %v412
    %v451 = vpack.c.bf16 %v415, %v414
    %v452 = vpack.c.bf16 %v417, %v416
    %v453 = vpack.c.bf16 %v419, %v418
    %v454 = vpack.c.bf16 %v421, %v420
    %v455 = vpack.c.bf16 %v423, %v422
    %v456 = vld [vmem:[#allocation6] sm:$0xff]
    %v457 = vld [vmem:[#allocation6 + $0x8] sm:$0xf]
    %v458 = vld [vmem:[#allocation6 + $0xc] sm:$0xff]
    %v459 = vld [vmem:[#allocation6 + $0x14] sm:$0xf]
    %v460 = vld [vmem:[#allocation6 + $0x18] sm:$0xff]
    %v461 = vld [vmem:[#allocation6 + $0x20] sm:$0xf]
    %v462 = vld [vmem:[#allocation6 + $0x24] sm:$0xff]
    %v463 = vld [vmem:[#allocation6 + $0x2c] sm:$0xf]
    %v464 = vld [vmem:[#allocation6 + $0x30] sm:$0xff]
    %v465 = vld [vmem:[#allocation6 + $0x38] sm:$0xf]
    %v466 = vld [vmem:[#allocation6 + $0x3c] sm:$0xff]
    %v467 = vld [vmem:[#allocation6 + $0x44] sm:$0xf]
    %v468 = vld [vmem:[#allocation6 + $0x48] sm:$0xff]
    %v469 = vld [vmem:[#allocation6 + $0x50] sm:$0xf]
    %v470 = vld [vmem:[#allocation6 + $0x54] sm:$0xff]
    %v471 = vld [vmem:[#allocation6 + $0x5c] sm:$0xf]
    %v472 = vld [vmem:[#allocation6 + $0x60] sm:$0xff]
    %v473 = vld [vmem:[#allocation6 + $0x68] sm:$0xf]
    %v474 = vld [vmem:[#allocation6 + $0x6c] sm:$0xff]
    %v475 = vld [vmem:[#allocation6 + $0x74] sm:$0xf]
    %v476 = vld [vmem:[#allocation6 + $0x78] sm:$0xff]
    %v477 = vld [vmem:[#allocation6 + $0x80] sm:$0xf]
    %v478 = vld [vmem:[#allocation6 + $0x84] sm:$0xff]
    %v479 = vld [vmem:[#allocation6 + $0x8c] sm:$0xf]
    %v480 = vld [vmem:[#allocation6 + $0x90] sm:$0xff]
    %v481 = vld [vmem:[#allocation6 + $0x98] sm:$0xf]
    %v482 = vld [vmem:[#allocation6 + $0x9c] sm:$0xff]
    %v483 = vld [vmem:[#allocation6 + $0xa4] sm:$0xf]
    %v484 = vld [vmem:[#allocation6 + $0xa8] sm:$0xff]
    %v485 = vld [vmem:[#allocation6 + $0xb0] sm:$0xf]
    %v486 = vld [vmem:[#allocation6 + $0xb4] sm:$0xff]
    %v487 = vld [vmem:[#allocation6 + $0xbc] sm:$0xf]
    %v488 = vld [vmem:[%s5] sm:$0x7]
    %v490 = vlaneseq
    %v491 = vshrl.u32 %v490, 7
    %v492 = vsub.s32 0, %v491
    %v493 = vrot.slane %v488, %v492
    %v494 = vlaneseq
    %v495 = vshrl.u32 %v494, 7
    %v496 = vsub.s32 1, %v495
    %v497 = vrot.slane %v488, %v496
    %v498 = vlaneseq
    %v499 = vshrl.u32 %v498, 7
    %v500 = vsub.s32 2, %v499
    %v501 = vrot.slane %v488, %v500
    %v537 = vunpack.c.l.b16 %v456
    %v538 = vunpack.c.h.b16 %v456
    %v539 = vunpack.c.l.b16 %v457
    %v540 = vunpack.c.l.b16 %v458
    %v541 = vunpack.c.h.b16 %v458
    %v542 = vunpack.c.l.b16 %v459
    %v543 = vunpack.c.l.b16 %v460
    %v544 = vunpack.c.h.b16 %v460
    %v545 = vunpack.c.l.b16 %v461
    %v546 = vunpack.c.l.b16 %v462
    %v547 = vunpack.c.h.b16 %v462
    %v548 = vunpack.c.l.b16 %v463
    %v549 = vunpack.c.l.b16 %v464
    %v550 = vunpack.c.h.b16 %v464
    %v551 = vunpack.c.l.b16 %v465
    %v552 = vunpack.c.l.b16 %v466
    %v553 = vunpack.c.h.b16 %v466
    %v554 = vunpack.c.l.b16 %v467
    %v555 = vunpack.c.l.b16 %v468
    %v556 = vunpack.c.h.b16 %v468
    %v557 = vunpack.c.l.b16 %v469
    %v558 = vunpack.c.l.b16 %v470
    %v559 = vunpack.c.h.b16 %v470
    %v560 = vunpack.c.l.b16 %v471
    %v561 = vunpack.c.l.b16 %v472
    %v562 = vunpack.c.h.b16 %v472
    %v563 = vunpack.c.l.b16 %v473
    %v564 = vunpack.c.l.b16 %v474
    %v565 = vunpack.c.h.b16 %v474
    %v566 = vunpack.c.l.b16 %v475
    %v567 = vunpack.c.l.b16 %v476
    %v568 = vunpack.c.h.b16 %v476
    %v569 = vunpack.c.l.b16 %v477
    %v570 = vunpack.c.l.b16 %v478
    %v571 = vunpack.c.h.b16 %v478
    %v572 = vunpack.c.l.b16 %v479
    %v573 = vunpack.c.l.b16 %v480
    %v574 = vunpack.c.h.b16 %v480
    %v575 = vunpack.c.l.b16 %v481
    %v576 = vunpack.c.l.b16 %v482
    %v577 = vunpack.c.h.b16 %v482
    %v578 = vunpack.c.l.b16 %v483
    %v579 = vunpack.c.l.b16 %v484
    %v580 = vunpack.c.h.b16 %v484
    %v581 = vunpack.c.l.b16 %v485
    %v582 = vunpack.c.l.b16 %v486
    %v583 = vunpack.c.h.b16 %v486
    %v584 = vunpack.c.l.b16 %v487
    %v585 = vpack.c.b16 %v540, %v537
    %v586 = vpack.c.b16 %v541, %v538
    %v587 = vpack.c.b16 %v542, %v539
    %v588 = vpack.c.b16 %v546, %v543
    %v589 = vpack.c.b16 %v547, %v544
    %v590 = vpack.c.b16 %v548, %v545
    %v591 = vpack.c.b16 %v552, %v549
    %v592 = vpack.c.b16 %v553, %v550
    %v593 = vpack.c.b16 %v554, %v551
    %v594 = vpack.c.b16 %v558, %v555
    %v595 = vpack.c.b16 %v559, %v556
    %v596 = vpack.c.b16 %v560, %v557
    %v597 = vpack.c.b16 %v564, %v561
    %v598 = vpack.c.b16 %v565, %v562
    %v599 = vpack.c.b16 %v566, %v563
    %v600 = vpack.c.b16 %v570, %v567
    %v601 = vpack.c.b16 %v571, %v568
    %v602 = vpack.c.b16 %v572, %v569
    %v603 = vpack.c.b16 %v576, %v573
    %v604 = vpack.c.b16 %v577, %v574
    %v605 = vpack.c.b16 %v578, %v575
    %v606 = vpack.c.b16 %v582, %v579
    %v607 = vpack.c.b16 %v583, %v580
    %v608 = vpack.c.b16 %v584, %v581
    %633 = vmatprep.subr.bf16.mxu0 %v586
    %634 = vmatpush1.bf16.msra.mxu0 %v585
    %635 = vmatprep.subr.bf16.mxu0 %v589
    %636 = vmatpush1.bf16.msra.mxu0 %v588
    %637 = vmatprep.subr.bf16.mxu0 %v592
    %638 = vmatpush1.bf16.msra.mxu0 %v591
    %639 = vmatprep.subr.bf16.mxu0 %v595
    %640 = vmatpush1.bf16.msra.mxu0 %v594
    %641 = vmatprep.subr.bf16.mxu0 %v598
    %642 = vmatpush1.bf16.msra.mxu0 %v597
    %643 = vmatprep.subr.bf16.mxu0 %v601
    %644 = vmatpush1.bf16.msra.mxu0 %v600
    %645 = vmatprep.subr.bf16.mxu0 %v604
    %646 = vmatpush1.bf16.msra.mxu0 %v603
    %647 = vmatprep.subr.bf16.mxu0 %v607
    %648 = vmatpush1.bf16.msra.mxu0 %v606
    %649 = vmatprep.subr.bf16.mxu0 0
    %650 = vmatpush1.bf16.msra.mxu0 0
    %651 = vmatprep.subr.bf16.mxu0 0
    %652 = vmatpush1.bf16.msra.mxu0 0
    %653 = vmatprep.subr.bf16.mxu0 0
    %654 = vmatpush1.bf16.msra.mxu0 0
    %655 = vmatprep.subr.bf16.mxu0 0
    %656 = vmatpush1.bf16.msra.mxu0 0
    %657 = vmatprep.subr.bf16.mxu0 0
    %658 = vmatpush1.bf16.msra.mxu0 0
    %659 = vmatprep.subr.bf16.mxu0 0
    %660 = vmatpush1.bf16.msra.mxu0 0
    %661 = vmatprep.subr.bf16.mxu0 0
    %662 = vmatpush1.bf16.msra.mxu0 0
    %663 = vmatprep.subr.bf16.mxu0 0
    %664 = vmatpush1.bf16.msra.mxu0 0
    %665 = vmatprep.mubr.bf16.mxu0 0
    %666 = vmatmul.mubr.bf16.gmra.mrb[0].mxu0 %v440
    %v667 = vpop.f32.mrb[0].mxu0
    %v668 = vadd.f32 %v493, %v667
    %v669 = vpop.f32.mrb[0].mxu0
    %v670 = vadd.f32 %v497, %v669
    %v671 = vpop.f32.mrb[0].mxu0
    %v672 = vadd.f32 %v493, %v671
    %v673 = vpop.f32.mrb[0].mxu0
    %v674 = vadd.f32 %v497, %v673
    %675 = vmatprep.mubr.bf16.mxu0 0
    %676 = vmatmul.mubr.bf16.gmra.mrb[0].mxu0 %v441
    %v677 = vpop.f32.mrb[0].mxu0
    %v678 = vadd.f32 %v493, %v677
    %v679 = vpop.f32.mrb[0].mxu0
    %v680 = vadd.f32 %v497, %v679
    %v681 = vpop.f32.mrb[0].mxu0
    %v682 = vadd.f32 %v493, %v681
    %v683 = vpop.f32.mrb[0].mxu0
    %v684 = vadd.f32 %v497, %v683
    %685 = vmatprep.mubr.bf16.mxu0 0
    %686 = vmatmul.mubr.bf16.gmra.mrb[0].mxu0 %v442
    %v687 = vpop.f32.mrb[0].mxu0
    %v688 = vadd.f32 %v493, %v687
    %v689 = vpop.f32.mrb[0].mxu0
    %v690 = vadd.f32 %v497, %v689
    %v691 = vpop.f32.mrb[0].mxu0
    %v692 = vadd.f32 %v493, %v691
    %v693 = vpop.f32.mrb[0].mxu0
    %v694 = vadd.f32 %v497, %v693
    %695 = vmatprep.mubr.bf16.mxu0 0
    %696 = vmatmul.mubr.bf16.gmra.mrb[0].mxu0 %v443
    %v697 = vpop.f32.mrb[0].mxu0
    %v698 = vadd.f32 %v493, %v697
    %v699 = vpop.f32.mrb[0].mxu0
    %v700 = vadd.f32 %v497, %v699
    %v701 = vpop.f32.mrb[0].mxu0
    %v702 = vadd.f32 %v493, %v701
    %v703 = vpop.f32.mrb[0].mxu0
    %v704 = vadd.f32 %v497, %v703
    %705 = vmatprep.mubr.bf16.mxu0 0
    %706 = vmatmul.mubr.bf16.gmra.mrb[0].mxu0 %v444
    %v707 = vpop.f32.mrb[0].mxu0
    %v708 = vadd.f32 %v493, %v707
    %v709 = vpop.f32.mrb[0].mxu0
    %v710 = vadd.f32 %v497, %v709
    %v711 = vpop.f32.mrb[0].mxu0
    %v712 = vadd.f32 %v493, %v711
    %v713 = vpop.f32.mrb[0].mxu0
    %v714 = vadd.f32 %v497, %v713
    %715 = vmatprep.mubr.bf16.mxu0 0
    %716 = vmatmul.mubr.bf16.gmra.mrb[0].mxu0 %v445
    %v717 = vpop.f32.mrb[0].mxu0
    %v718 = vadd.f32 %v493, %v717
    %v719 = vpop.f32.mrb[0].mxu0
    %v720 = vadd.f32 %v497, %v719
    %v721 = vpop.f32.mrb[0].mxu0
    %v722 = vadd.f32 %v493, %v721
    %v723 = vpop.f32.mrb[0].mxu0
    %v724 = vadd.f32 %v497, %v723
    %725 = vmatprep.mubr.bf16.mxu0 0
    %726 = vmatmul.mubr.bf16.gmra.mrb[0].mxu0 %v446
    %v727 = vpop.f32.mrb[0].mxu0
    %v728 = vadd.f32 %v493, %v727
    %v729 = vpop.f32.mrb[0].mxu0
    %v730 = vadd.f32 %v497, %v729
    %v731 = vpop.f32.mrb[0].mxu0
    %v732 = vadd.f32 %v493, %v731
    %v733 = vpop.f32.mrb[0].mxu0
    %v734 = vadd.f32 %v497, %v733
    %735 = vmatprep.mubr.bf16.mxu0 0
    %736 = vmatmul.mubr.bf16.gmra.mrb[0].mxu0 %v447
    %v737 = vpop.f32.mrb[0].mxu0
    %v738 = vadd.f32 %v493, %v737
    %v739 = vpop.f32.mrb[0].mxu0
    %v740 = vadd.f32 %v497, %v739
    %v741 = vpop.f32.mrb[0].mxu0
    %v742 = vadd.f32 %v493, %v741
    %v743 = vpop.f32.mrb[0].mxu0
    %v744 = vadd.f32 %v497, %v743
    %745 = vmatprep.mubr.bf16.mxu0 0
    %746 = vmatmul.mubr.bf16.gmra.mrb[0].mxu0 %v448
    %v747 = vpop.f32.mrb[0].mxu0
    %v748 = vadd.f32 %v493, %v747
    %v749 = vpop.f32.mrb[0].mxu0
    %v750 = vadd.f32 %v497, %v749
    %v751 = vpop.f32.mrb[0].mxu0
    %v752 = vadd.f32 %v493, %v751
    %v753 = vpop.f32.mrb[0].mxu0
    %v754 = vadd.f32 %v497, %v753
    %755 = vmatprep.mubr.bf16.mxu0 0
    %756 = vmatmul.mubr.bf16.gmra.mrb[0].mxu0 %v449
    %v757 = vpop.f32.mrb[0].mxu0
    %v758 = vadd.f32 %v493, %v757
    %v759 = vpop.f32.mrb[0].mxu0
    %v760 = vadd.f32 %v497, %v759
    %v761 = vpop.f32.mrb[0].mxu0
    %v762 = vadd.f32 %v493, %v761
    %v763 = vpop.f32.mrb[0].mxu0
    %v764 = vadd.f32 %v497, %v763
    %765 = vmatprep.mubr.bf16.mxu0 0
    %766 = vmatmul.mubr.bf16.gmra.mrb[0].mxu0 %v450
    %v767 = vpop.f32.mrb[0].mxu0
    %v768 = vadd.f32 %v493, %v767
    %v769 = vpop.f32.mrb[0].mxu0
    %v770 = vadd.f32 %v497, %v769
    %v771 = vpop.f32.mrb[0].mxu0
    %v772 = vadd.f32 %v493, %v771
    %v773 = vpop.f32.mrb[0].mxu0
    %v774 = vadd.f32 %v497, %v773
    %775 = vmatprep.mubr.bf16.mxu0 0
    %776 = vmatmul.mubr.bf16.gmra.mrb[0].mxu0 %v451
    %v777 = vpop.f32.mrb[0].mxu0
    %v778 = vadd.f32 %v493, %v777
    %v779 = vpop.f32.mrb[0].mxu0
    %v780 = vadd.f32 %v497, %v779
    %v781 = vpop.f32.mrb[0].mxu0
    %v782 = vadd.f32 %v493, %v781
    %v783 = vpop.f32.mrb[0].mxu0
    %v784 = vadd.f32 %v497, %v783
    %785 = vmatprep.mubr.bf16.mxu0 0
    %786 = vmatmul.mubr.bf16.gmra.mrb[0].mxu0 %v452
    %v787 = vpop.f32.mrb[0].mxu0
    %v788 = vadd.f32 %v493, %v787
    %v789 = vpop.f32.mrb[0].mxu0
    %v790 = vadd.f32 %v497, %v789
    %v791 = vpop.f32.mrb[0].mxu0
    %v792 = vadd.f32 %v493, %v791
    %v793 = vpop.f32.mrb[0].mxu0
    %v794 = vadd.f32 %v497, %v793
    %795 = vmatprep.mubr.bf16.mxu0 0
    %796 = vmatmul.mubr.bf16.gmra.mrb[0].mxu0 %v453
    %v797 = vpop.f32.mrb[0].mxu0
    %v798 = vadd.f32 %v493, %v797
    %v799 = vpop.f32.mrb[0].mxu0
    %v800 = vadd.f32 %v497, %v799
    %v801 = vpop.f32.mrb[0].mxu0
    %v802 = vadd.f32 %v493, %v801
    %v803 = vpop.f32.mrb[0].mxu0
    %v804 = vadd.f32 %v497, %v803
    %805 = vmatprep.mubr.bf16.mxu0 0
    %806 = vmatmul.mubr.bf16.gmra.mrb[0].mxu0 %v454
    %v807 = vpop.f32.mrb[0].mxu0
    %v808 = vadd.f32 %v493, %v807
    %v809 = vpop.f32.mrb[0].mxu0
    %v810 = vadd.f32 %v497, %v809
    %v811 = vpop.f32.mrb[0].mxu0
    %v812 = vadd.f32 %v493, %v811
    %v813 = vpop.f32.mrb[0].mxu0
    %v814 = vadd.f32 %v497, %v813
    %815 = vmatprep.mubr.bf16.mxu0 0
    %816 = vmatmul.mubr.bf16.gmra.mrb[0].mxu0 %v455
    %v817 = vpop.f32.mrb[0].mxu0
    %v818 = vadd.f32 %v493, %v817
    %v819 = vpop.f32.mrb[0].mxu0
    %v820 = vadd.f32 %v497, %v819
    %v821 = vpop.f32.mrb[0].mxu0
    %v822 = vadd.f32 %v493, %v821
    %v823 = vpop.f32.mrb[0].mxu0
    %v824 = vadd.f32 %v497, %v823
    %825 = vdwg.mxu0
    %826 = vmatprep.subr.bf16.mxu0 0
    %827 = vmatpush1.bf16.msra.mxu0 %v587
    %828 = vmatprep.subr.bf16.mxu0 0
    %829 = vmatpush1.bf16.msra.mxu0 %v590
    %830 = vmatprep.subr.bf16.mxu0 0
    %831 = vmatpush1.bf16.msra.mxu0 %v593
    %832 = vmatprep.subr.bf16.mxu0 0
    %833 = vmatpush1.bf16.msra.mxu0 %v596
    %834 = vmatprep.subr.bf16.mxu0 0
    %835 = vmatpush1.bf16.msra.mxu0 %v599
    %836 = vmatprep.subr.bf16.mxu0 0
    %837 = vmatpush1.bf16.msra.mxu0 %v602
    %838 = vmatprep.subr.bf16.mxu0 0
    %839 = vmatpush1.bf16.msra.mxu0 %v605
    %840 = vmatprep.subr.bf16.mxu0 0
    %841 = vmatpush1.bf16.msra.mxu0 %v608
    %842 = vmatprep.subr.bf16.mxu0 0
    %843 = vmatpush1.bf16.msra.mxu0 0
    %844 = vmatprep.subr.bf16.mxu0 0
    %845 = vmatpush1.bf16.msra.mxu0 0
    %846 = vmatprep.subr.bf16.mxu0 0
    %847 = vmatpush1.bf16.msra.mxu0 0
    %848 = vmatprep.subr.bf16.mxu0 0
    %849 = vmatpush1.bf16.msra.mxu0 0
    %850 = vmatprep.subr.bf16.mxu0 0
    %851 = vmatpush1.bf16.msra.mxu0 0
    %852 = vmatprep.subr.bf16.mxu0 0
    %853 = vmatpush1.bf16.msra.mxu0 0
    %854 = vmatprep.subr.bf16.mxu0 0
    %855 = vmatpush1.bf16.msra.mxu0 0
    %856 = vmatprep.subr.bf16.mxu0 0
    %857 = vmatpush1.bf16.msra.mxu0 0
    %858 = vmatprep.mubr.bf16.mxu0 0
    %859 = vmatmul.mubr.bf16.gmra.mrb[0].mxu0 %v440
    %v860 = vpop.f32.mrb[0].mxu0
    %v861 = vadd.f32 %v501, %v860
    %v862 = vpop.f32.mrb[0].mxu0
    %v863 = vpop.f32.mrb[0].mxu0
    %v864 = vadd.f32 %v501, %v863
    %v865 = vpop.f32.mrb[0].mxu0
    %866 = vmatprep.mubr.bf16.mxu0 0
    %867 = vmatmul.mubr.bf16.gmra.mrb[0].mxu0 %v441
    %v868 = vpop.f32.mrb[0].mxu0
    %v869 = vadd.f32 %v501, %v868
    %v870 = vpop.f32.mrb[0].mxu0
    %v871 = vpop.f32.mrb[0].mxu0
    %v872 = vadd.f32 %v501, %v871
    %v873 = vpop.f32.mrb[0].mxu0
    %874 = vmatprep.mubr.bf16.mxu0 0
    %875 = vmatmul.mubr.bf16.gmra.mrb[0].mxu0 %v442
    %v876 = vpop.f32.mrb[0].mxu0
    %v877 = vadd.f32 %v501, %v876
    %v878 = vpop.f32.mrb[0].mxu0
    %v879 = vpop.f32.mrb[0].mxu0
    %v880 = vadd.f32 %v501, %v879
    %v881 = vpop.f32.mrb[0].mxu0
    %882 = vmatprep.mubr.bf16.mxu0 0
    %883 = vmatmul.mubr.bf16.gmra.mrb[0].mxu0 %v443
    %v884 = vpop.f32.mrb[0].mxu0
    %v885 = vadd.f32 %v501, %v884
    %v886 = vpop.f32.mrb[0].mxu0
    %v887 = vpop.f32.mrb[0].mxu0
    %v888 = vadd.f32 %v501, %v887
    %v889 = vpop.f32.mrb[0].mxu0
    %890 = vmatprep.mubr.bf16.mxu0 0
    %891 = vmatmul.mubr.bf16.gmra.mrb[0].mxu0 %v444
    %v892 = vpop.f32.mrb[0].mxu0
    %v893 = vadd.f32 %v501, %v892
    %v894 = vpop.f32.mrb[0].mxu0
    %v895 = vpop.f32.mrb[0].mxu0
    %v896 = vadd.f32 %v501, %v895
    %v897 = vpop.f32.mrb[0].mxu0
    %898 = vmatprep.mubr.bf16.mxu0 0
    %899 = vmatmul.mubr.bf16.gmra.mrb[0].mxu0 %v445
    %v900 = vpop.f32.mrb[0].mxu0
    %v901 = vadd.f32 %v501, %v900
    %v902 = vpop.f32.mrb[0].mxu0
    %v903 = vpop.f32.mrb[0].mxu0
    %v904 = vadd.f32 %v501, %v903
    %v905 = vpop.f32.mrb[0].mxu0
    %906 = vmatprep.mubr.bf16.mxu0 0
    %907 = vmatmul.mubr.bf16.gmra.mrb[0].mxu0 %v446
    %v908 = vpop.f32.mrb[0].mxu0
    %v909 = vadd.f32 %v501, %v908
    %v910 = vpop.f32.mrb[0].mxu0
    %v911 = vpop.f32.mrb[0].mxu0
    %v912 = vadd.f32 %v501, %v911
    %v913 = vpop.f32.mrb[0].mxu0
    %914 = vmatprep.mubr.bf16.mxu0 0
    %915 = vmatmul.mubr.bf16.gmra.mrb[0].mxu0 %v447
    %v916 = vpop.f32.mrb[0].mxu0
    %v917 = vadd.f32 %v501, %v916
    %v918 = vpop.f32.mrb[0].mxu0
    %v919 = vpop.f32.mrb[0].mxu0
    %v920 = vadd.f32 %v501, %v919
    %v921 = vpop.f32.mrb[0].mxu0
    %922 = vmatprep.mubr.bf16.mxu0 0
    %923 = vmatmul.mubr.bf16.gmra.mrb[0].mxu0 %v448
    %v924 = vpop.f32.mrb[0].mxu0
    %v925 = vadd.f32 %v501, %v924
    %v926 = vpop.f32.mrb[0].mxu0
    %v927 = vpop.f32.mrb[0].mxu0
    %v928 = vadd.f32 %v501, %v927
    %v929 = vpop.f32.mrb[0].mxu0
    %930 = vmatprep.mubr.bf16.mxu0 0
    %931 = vmatmul.mubr.bf16.gmra.mrb[0].mxu0 %v449
    %v932 = vpop.f32.mrb[0].mxu0
    %v933 = vadd.f32 %v501, %v932
    %v934 = vpop.f32.mrb[0].mxu0
    %v935 = vpop.f32.mrb[0].mxu0
    %v936 = vadd.f32 %v501, %v935
    %v937 = vpop.f32.mrb[0].mxu0
    %938 = vmatprep.mubr.bf16.mxu0 0
    %939 = vmatmul.mubr.bf16.gmra.mrb[0].mxu0 %v450
    %v940 = vpop.f32.mrb[0].mxu0
    %v941 = vadd.f32 %v501, %v940
    %v942 = vpop.f32.mrb[0].mxu0
    %v943 = vpop.f32.mrb[0].mxu0
    %v944 = vadd.f32 %v501, %v943
    %v945 = vpop.f32.mrb[0].mxu0
    %946 = vmatprep.mubr.bf16.mxu0 0
    %947 = vmatmul.mubr.bf16.gmra.mrb[0].mxu0 %v451
    %v948 = vpop.f32.mrb[0].mxu0
    %v949 = vadd.f32 %v501, %v948
    %v950 = vpop.f32.mrb[0].mxu0
    %v951 = vpop.f32.mrb[0].mxu0
    %v952 = vadd.f32 %v501, %v951
    %v953 = vpop.f32.mrb[0].mxu0
    %954 = vmatprep.mubr.bf16.mxu0 0
    %955 = vmatmul.mubr.bf16.gmra.mrb[0].mxu0 %v452
    %v956 = vpop.f32.mrb[0].mxu0
    %v957 = vadd.f32 %v501, %v956
    %v958 = vpop.f32.mrb[0].mxu0
    %v959 = vpop.f32.mrb[0].mxu0
    %v960 = vadd.f32 %v501, %v959
    %v961 = vpop.f32.mrb[0].mxu0
    %962 = vmatprep.mubr.bf16.mxu0 0
    %963 = vmatmul.mubr.bf16.gmra.mrb[0].mxu0 %v453
    %v964 = vpop.f32.mrb[0].mxu0
    %v965 = vadd.f32 %v501, %v964
    %v966 = vpop.f32.mrb[0].mxu0
    %v967 = vpop.f32.mrb[0].mxu0
    %v968 = vadd.f32 %v501, %v967
    %v969 = vpop.f32.mrb[0].mxu0
    %970 = vmatprep.mubr.bf16.mxu0 0
    %971 = vmatmul.mubr.bf16.gmra.mrb[0].mxu0 %v454
    %v972 = vpop.f32.mrb[0].mxu0
    %v973 = vadd.f32 %v501, %v972
    %v974 = vpop.f32.mrb[0].mxu0
    %v975 = vpop.f32.mrb[0].mxu0
    %v976 = vadd.f32 %v501, %v975
    %v977 = vpop.f32.mrb[0].mxu0
    %978 = vmatprep.mubr.bf16.mxu0 0
    %979 = vmatmul.mubr.bf16.gmra.mrb[0].mxu0 %v455
    %v980 = vpop.f32.mrb[0].mxu0
    %v981 = vadd.f32 %v501, %v980
    %v982 = vpop.f32.mrb[0].mxu0
    %v983 = vpop.f32.mrb[0].mxu0
    %v984 = vadd.f32 %v501, %v983
    %v985 = vpop.f32.mrb[0].mxu0
    %986 = vdwg.mxu0
    %v987 = vmul.f32 %v668, %v670
    %v988 = vmul.f32 %v672, %v674
    %v989 = vmul.f32 %v678, %v680
    %v990 = vmul.f32 %v682, %v684
    %v991 = vmul.f32 %v688, %v690
    %v992 = vmul.f32 %v692, %v694
    %v993 = vmul.f32 %v698, %v700
    %v994 = vmul.f32 %v702, %v704
    %v995 = vmul.f32 %v708, %v710
    %v996 = vmul.f32 %v712, %v714
    %v997 = vmul.f32 %v718, %v720
    %v998 = vmul.f32 %v722, %v724
    %v999 = vmul.f32 %v728, %v730
    %v1000 = vmul.f32 %v732, %v734
    %v1001 = vmul.f32 %v738, %v740
    %v1002 = vmul.f32 %v742, %v744
    %v1003 = vmul.f32 %v668, %v750
    %v1004 = vmul.f32 %v672, %v754
    %v1005 = vmul.f32 %v678, %v760
    %v1006 = vmul.f32 %v682, %v764
    %v1007 = vmul.f32 %v688, %v770
    %v1008 = vmul.f32 %v692, %v774
    %v1009 = vmul.f32 %v698, %v780
    %v1010 = vmul.f32 %v702, %v784
    %v1011 = vmul.f32 %v708, %v790
    %v1012 = vmul.f32 %v712, %v794
    %v1013 = vmul.f32 %v718, %v800
    %v1014 = vmul.f32 %v722, %v804
    %v1015 = vmul.f32 %v728, %v810
    %v1016 = vmul.f32 %v732, %v814
    %v1017 = vmul.f32 %v738, %v820
    %v1018 = vmul.f32 %v742, %v824
    %v1019 = vmul.f32 %v748, %v670
    %v1020 = vmul.f32 %v752, %v674
    %v1021 = vmul.f32 %v758, %v680
    %v1022 = vmul.f32 %v762, %v684
    %v1023 = vmul.f32 %v768, %v690
    %v1024 = vmul.f32 %v772, %v694
    %v1025 = vmul.f32 %v778, %v700
    %v1026 = vmul.f32 %v782, %v704
    %v1027 = vmul.f32 %v788, %v710
    %v1028 = vmul.f32 %v792, %v714
    %v1029 = vmul.f32 %v798, %v720
    %v1030 = vmul.f32 %v802, %v724
    %v1031 = vmul.f32 %v808, %v730
    %v1032 = vmul.f32 %v812, %v734
    %v1033 = vmul.f32 %v818, %v740
    %v1034 = vmul.f32 %v822, %v744
    %v1035 = vmul.f32 %v748, %v750
    %v1036 = vmul.f32 %v752, %v754
    %v1037 = vmul.f32 %v758, %v760
    %v1038 = vmul.f32 %v762, %v764
    %v1039 = vmul.f32 %v768, %v770
    %v1040 = vmul.f32 %v772, %v774
    %v1041 = vmul.f32 %v778, %v780
    %v1042 = vmul.f32 %v782, %v784
    %v1043 = vmul.f32 %v788, %v790
    %v1044 = vmul.f32 %v792, %v794
    %v1045 = vmul.f32 %v798, %v800
    %v1046 = vmul.f32 %v802, %v804
    %v1047 = vmul.f32 %v808, %v810
    %v1048 = vmul.f32 %v812, %v814
    %v1049 = vmul.f32 %v818, %v820
    %v1050 = vmul.f32 %v822, %v824
    %v1051 = vpack.c.bf16 %v988, %v987
    %v1052 = vpack.c.bf16 %v990, %v989
    %v1053 = vpack.c.bf16 %v992, %v991
    %v1054 = vpack.c.bf16 %v994, %v993
    %v1055 = vpack.c.bf16 %v996, %v995
    %v1056 = vpack.c.bf16 %v998, %v997
    %v1057 = vpack.c.bf16 %v1000, %v999
    %v1058 = vpack.c.bf16 %v1002, %v1001
    %v1059 = vpack.c.bf16 %v1004, %v1003
    %v1060 = vpack.c.bf16 %v1006, %v1005
    %v1061 = vpack.c.bf16 %v1008, %v1007
    %v1062 = vpack.c.bf16 %v1010, %v1009
    %v1063 = vpack.c.bf16 %v1012, %v1011
    %v1064 = vpack.c.bf16 %v1014, %v1013
    %v1065 = vpack.c.bf16 %v1016, %v1015
    %v1066 = vpack.c.bf16 %v1018, %v1017
    %v1067 = vpack.c.bf16 %v1020, %v1019
    %v1068 = vpack.c.bf16 %v1022, %v1021
    %v1069 = vpack.c.bf16 %v1024, %v1023
    %v1070 = vpack.c.bf16 %v1026, %v1025
    %v1071 = vpack.c.bf16 %v1028, %v1027
    %v1072 = vpack.c.bf16 %v1030, %v1029
    %v1073 = vpack.c.bf16 %v1032, %v1031
    %v1074 = vpack.c.bf16 %v1034, %v1033
    %v1075 = vpack.c.bf16 %v1036, %v1035
    %v1076 = vpack.c.bf16 %v1038, %v1037
    %v1077 = vpack.c.bf16 %v1040, %v1039
    %v1078 = vpack.c.bf16 %v1042, %v1041
    %v1079 = vpack.c.bf16 %v1044, %v1043
    %v1080 = vpack.c.bf16 %v1046, %v1045
    %v1081 = vpack.c.bf16 %v1048, %v1047
    %v1082 = vpack.c.bf16 %v1050, %v1049
    %v1099 = vunpack.c.l.b16 %v424
    %v1100 = vunpack.c.l.b16 %v425
    %v1101 = vunpack.c.l.b16 %v426
    %v1102 = vunpack.c.l.b16 %v427
    %v1103 = vunpack.c.l.b16 %v428
    %v1104 = vunpack.c.l.b16 %v429
    %v1105 = vunpack.c.l.b16 %v430
    %v1106 = vunpack.c.l.b16 %v431
    %v1107 = vunpack.c.l.b16 %v432
    %v1108 = vunpack.c.l.b16 %v433
    %v1109 = vunpack.c.l.b16 %v434
    %v1110 = vunpack.c.l.b16 %v435
    %v1111 = vunpack.c.l.b16 %v436
    %v1112 = vunpack.c.l.b16 %v437
    %v1113 = vunpack.c.l.b16 %v438
    %v1114 = vunpack.c.l.b16 %v439
    %v1115 = vpack.c.b16 %v1100, %v1099
    %v1116 = vpack.c.b16 %v1102, %v1101
    %v1117 = vpack.c.b16 %v1104, %v1103
    %v1118 = vpack.c.b16 %v1106, %v1105
    %v1119 = vpack.c.b16 %v1108, %v1107
    %v1120 = vpack.c.b16 %v1110, %v1109
    %v1121 = vpack.c.b16 %v1112, %v1111
    %v1122 = vpack.c.b16 %v1114, %v1113
    %1131 = vmatprep.subr.bf16.mxu0 0
    %1132 = vmatpush1.bf16.msra.mxu0 %v1115
    %1133 = vmatprep.subr.bf16.mxu0 0
    %1134 = vmatpush1.bf16.msra.mxu0 %v1116
    %1135 = vmatprep.subr.bf16.mxu0 0
    %1136 = vmatpush1.bf16.msra.mxu0 %v1117
    %1137 = vmatprep.subr.bf16.mxu0 0
    %1138 = vmatpush1.bf16.msra.mxu0 %v1118
    %1139 = vmatprep.subr.bf16.mxu0 0
    %1140 = vmatpush1.bf16.msra.mxu0 %v1119
    %1141 = vmatprep.subr.bf16.mxu0 0
    %1142 = vmatpush1.bf16.msra.mxu0 %v1120
    %1143 = vmatprep.subr.bf16.mxu0 0
    %1144 = vmatpush1.bf16.msra.mxu0 %v1121
    %1145 = vmatprep.subr.bf16.mxu0 0
    %1146 = vmatpush1.bf16.msra.mxu0 %v1122
    %1147 = vmatprep.subr.bf16.mxu0 0
    %1148 = vmatpush1.bf16.msra.mxu0 0
    %1149 = vmatprep.subr.bf16.mxu0 0
    %1150 = vmatpush1.bf16.msra.mxu0 0
    %1151 = vmatprep.subr.bf16.mxu0 0
    %1152 = vmatpush1.bf16.msra.mxu0 0
    %1153 = vmatprep.subr.bf16.mxu0 0
    %1154 = vmatpush1.bf16.msra.mxu0 0
    %1155 = vmatprep.subr.bf16.mxu0 0
    %1156 = vmatpush1.bf16.msra.mxu0 0
    %1157 = vmatprep.subr.bf16.mxu0 0
    %1158 = vmatpush1.bf16.msra.mxu0 0
    %1159 = vmatprep.subr.bf16.mxu0 0
    %1160 = vmatpush1.bf16.msra.mxu0 0
    %1161 = vmatprep.subr.bf16.mxu0 0
    %1162 = vmatpush1.bf16.msra.mxu0 0
    %1163 = vmatprep.mubr.bf16.mxu0 0
    %1164 = vmatmul.mubr.bf16.gmra.mrb[0].mxu0 %v1051
    %v1165 = vpop.f32.mrb[0].mxu0
    %v1166 = vadd.f32 0.0, %v1165
    %v1167 = vpop.f32.mrb[0].mxu0
    %v1168 = vpop.f32.mrb[0].mxu0
    %v1169 = vadd.f32 0.0, %v1168
    %v1170 = vpop.f32.mrb[0].mxu0
    %1171 = vmatprep.mubr.bf16.mxu0 0
    %1172 = vmatmul.mubr.bf16.gmra.mrb[0].mxu0 %v1052
    %v1173 = vpop.f32.mrb[0].mxu0
    %v1174 = vadd.f32 0.0, %v1173
    %v1175 = vpop.f32.mrb[0].mxu0
    %v1176 = vpop.f32.mrb[0].mxu0
    %v1177 = vadd.f32 0.0, %v1176
    %v1178 = vpop.f32.mrb[0].mxu0
    %1179 = vmatprep.mubr.bf16.mxu0 0
    %1180 = vmatmul.mubr.bf16.gmra.mrb[0].mxu0 %v1053
    %v1181 = vpop.f32.mrb[0].mxu0
    %v1182 = vadd.f32 0.0, %v1181
    %v1183 = vpop.f32.mrb[0].mxu0
    %v1184 = vpop.f32.mrb[0].mxu0
    %v1185 = vadd.f32 0.0, %v1184
    %v1186 = vpop.f32.mrb[0].mxu0
    %1187 = vmatprep.mubr.bf16.mxu0 0
    %1188 = vmatmul.mubr.bf16.gmra.mrb[0].mxu0 %v1054
    %v1189 = vpop.f32.mrb[0].mxu0
    %v1190 = vadd.f32 0.0, %v1189
    %v1191 = vpop.f32.mrb[0].mxu0
    %v1192 = vpop.f32.mrb[0].mxu0
    %v1193 = vadd.f32 0.0, %v1192
    %v1194 = vpop.f32.mrb[0].mxu0
    %1195 = vmatprep.mubr.bf16.mxu0 0
    %1196 = vmatmul.mubr.bf16.gmra.mrb[0].mxu0 %v1055
    %v1197 = vpop.f32.mrb[0].mxu0
    %v1198 = vadd.f32 0.0, %v1197
    %v1199 = vpop.f32.mrb[0].mxu0
    %v1200 = vpop.f32.mrb[0].mxu0
    %v1201 = vadd.f32 0.0, %v1200
    %v1202 = vpop.f32.mrb[0].mxu0
    %1203 = vmatprep.mubr.bf16.mxu0 0
    %1204 = vmatmul.mubr.bf16.gmra.mrb[0].mxu0 %v1056
    %v1205 = vpop.f32.mrb[0].mxu0
    %v1206 = vadd.f32 0.0, %v1205
    %v1207 = vpop.f32.mrb[0].mxu0
    %v1208 = vpop.f32.mrb[0].mxu0
    %v1209 = vadd.f32 0.0, %v1208
    %v1210 = vpop.f32.mrb[0].mxu0
    %1211 = vmatprep.mubr.bf16.mxu0 0
    %1212 = vmatmul.mubr.bf16.gmra.mrb[0].mxu0 %v1057
    %v1213 = vpop.f32.mrb[0].mxu0
    %v1214 = vadd.f32 0.0, %v1213
    %v1215 = vpop.f32.mrb[0].mxu0
    %v1216 = vpop.f32.mrb[0].mxu0
    %v1217 = vadd.f32 0.0, %v1216
    %v1218 = vpop.f32.mrb[0].mxu0
    %1219 = vmatprep.mubr.bf16.mxu0 0
    %1220 = vmatmul.mubr.bf16.gmra.mrb[0].mxu0 %v1058
    %v1221 = vpop.f32.mrb[0].mxu0
    %v1222 = vadd.f32 0.0, %v1221
    %v1223 = vpop.f32.mrb[0].mxu0
    %v1224 = vpop.f32.mrb[0].mxu0
    %v1225 = vadd.f32 0.0, %v1224
    %v1226 = vpop.f32.mrb[0].mxu0
    %1227 = vmatprep.mubr.bf16.mxu0 0
    %1228 = vmatmul.mubr.bf16.gmra.mrb[0].mxu0 %v1059
    %v1229 = vpop.f32.mrb[0].mxu0
    %v1230 = vadd.f32 0.0, %v1229
    %v1231 = vpop.f32.mrb[0].mxu0
    %v1232 = vpop.f32.mrb[0].mxu0
    %v1233 = vadd.f32 0.0, %v1232
    %v1234 = vpop.f32.mrb[0].mxu0
    %1235 = vmatprep.mubr.bf16.mxu0 0
    %1236 = vmatmul.mubr.bf16.gmra.mrb[0].mxu0 %v1060
    %v1237 = vpop.f32.mrb[0].mxu0
    %v1238 = vadd.f32 0.0, %v1237
    %v1239 = vpop.f32.mrb[0].mxu0
    %v1240 = vpop.f32.mrb[0].mxu0
    %v1241 = vadd.f32 0.0, %v1240
    %v1242 = vpop.f32.mrb[0].mxu0
    %1243 = vmatprep.mubr.bf16.mxu0 0
    %1244 = vmatmul.mubr.bf16.gmra.mrb[0].mxu0 %v1061
    %v1245 = vpop.f32.mrb[0].mxu0
    %v1246 = vadd.f32 0.0, %v1245
    %v1247 = vpop.f32.mrb[0].mxu0
    %v1248 = vpop.f32.mrb[0].mxu0
    %v1249 = vadd.f32 0.0, %v1248
    %v1250 = vpop.f32.mrb[0].mxu0
    %1251 = vmatprep.mubr.bf16.mxu0 0
    %1252 = vmatmul.mubr.bf16.gmra.mrb[0].mxu0 %v1062
    %v1253 = vpop.f32.mrb[0].mxu0
    %v1254 = vadd.f32 0.0, %v1253
    %v1255 = vpop.f32.mrb[0].mxu0
    %v1256 = vpop.f32.mrb[0].mxu0
    %v1257 = vadd.f32 0.0, %v1256
    %v1258 = vpop.f32.mrb[0].mxu0
    %1259 = vmatprep.mubr.bf16.mxu0 0
    %1260 = vmatmul.mubr.bf16.gmra.mrb[0].mxu0 %v1063
    %v1261 = vpop.f32.mrb[0].mxu0
    %v1262 = vadd.f32 0.0, %v1261
    %v1263 = vpop.f32.mrb[0].mxu0
    %v1264 = vpop.f32.mrb[0].mxu0
    %v1265 = vadd.f32 0.0, %v1264
    %v1266 = vpop.f32.mrb[0].mxu0
    %1267 = vmatprep.mubr.bf16.mxu0 0
    %1268 = vmatmul.mubr.bf16.gmra.mrb[0].mxu0 %v1064
    %v1269 = vpop.f32.mrb[0].mxu0
    %v1270 = vadd.f32 0.0, %v1269
    %v1271 = vpop.f32.mrb[0].mxu0
    %v1272 = vpop.f32.mrb[0].mxu0
    %v1273 = vadd.f32 0.0, %v1272
    %v1274 = vpop.f32.mrb[0].mxu0
    %1275 = vmatprep.mubr.bf16.mxu0 0
    %1276 = vmatmul.mubr.bf16.gmra.mrb[0].mxu0 %v1065
    %v1277 = vpop.f32.mrb[0].mxu0
    %v1278 = vadd.f32 0.0, %v1277
    %v1279 = vpop.f32.mrb[0].mxu0
    %v1280 = vpop.f32.mrb[0].mxu0
    %v1281 = vadd.f32 0.0, %v1280
    %v1282 = vpop.f32.mrb[0].mxu0
    %1283 = vmatprep.mubr.bf16.mxu0 0
    %1284 = vmatmul.mubr.bf16.gmra.mrb[0].mxu0 %v1066
    %v1285 = vpop.f32.mrb[0].mxu0
    %v1286 = vadd.f32 0.0, %v1285
    %v1287 = vpop.f32.mrb[0].mxu0
    %v1288 = vpop.f32.mrb[0].mxu0
    %v1289 = vadd.f32 0.0, %v1288
    %v1290 = vpop.f32.mrb[0].mxu0
    %1291 = vmatprep.mubr.bf16.mxu0 0
    %1292 = vmatmul.mubr.bf16.gmra.mrb[0].mxu0 %v1067
    %v1293 = vpop.f32.mrb[0].mxu0
    %v1294 = vadd.f32 0.0, %v1293
    %v1295 = vpop.f32.mrb[0].mxu0
    %v1296 = vpop.f32.mrb[0].mxu0
    %v1297 = vadd.f32 0.0, %v1296
    %v1298 = vpop.f32.mrb[0].mxu0
    %1299 = vmatprep.mubr.bf16.mxu0 0
    %1300 = vmatmul.mubr.bf16.gmra.mrb[0].mxu0 %v1068
    %v1301 = vpop.f32.mrb[0].mxu0
    %v1302 = vadd.f32 0.0, %v1301
    %v1303 = vpop.f32.mrb[0].mxu0
    %v1304 = vpop.f32.mrb[0].mxu0
    %v1305 = vadd.f32 0.0, %v1304
    %v1306 = vpop.f32.mrb[0].mxu0
    %1307 = vmatprep.mubr.bf16.mxu0 0
    %1308 = vmatmul.mubr.bf16.gmra.mrb[0].mxu0 %v1069
    %v1309 = vpop.f32.mrb[0].mxu0
    %v1310 = vadd.f32 0.0, %v1309
    %v1311 = vpop.f32.mrb[0].mxu0
    %v1312 = vpop.f32.mrb[0].mxu0
    %v1313 = vadd.f32 0.0, %v1312
    %v1314 = vpop.f32.mrb[0].mxu0
    %1315 = vmatprep.mubr.bf16.mxu0 0
    %1316 = vmatmul.mubr.bf16.gmra.mrb[0].mxu0 %v1070
    %v1317 = vpop.f32.mrb[0].mxu0
    %v1318 = vadd.f32 0.0, %v1317
    %v1319 = vpop.f32.mrb[0].mxu0
    %v1320 = vpop.f32.mrb[0].mxu0
    %v1321 = vadd.f32 0.0, %v1320
    %v1322 = vpop.f32.mrb[0].mxu0
    %1323 = vmatprep.mubr.bf16.mxu0 0
    %1324 = vmatmul.mubr.bf16.gmra.mrb[0].mxu0 %v1071
    %v1325 = vpop.f32.mrb[0].mxu0
    %v1326 = vadd.f32 0.0, %v1325
    %v1327 = vpop.f32.mrb[0].mxu0
    %v1328 = vpop.f32.mrb[0].mxu0
    %v1329 = vadd.f32 0.0, %v1328
    %v1330 = vpop.f32.mrb[0].mxu0
    %1331 = vmatprep.mubr.bf16.mxu0 0
    %1332 = vmatmul.mubr.bf16.gmra.mrb[0].mxu0 %v1072
    %v1333 = vpop.f32.mrb[0].mxu0
    %v1334 = vadd.f32 0.0, %v1333
    %v1335 = vpop.f32.mrb[0].mxu0
    %v1336 = vpop.f32.mrb[0].mxu0
    %v1337 = vadd.f32 0.0, %v1336
    %v1338 = vpop.f32.mrb[0].mxu0
    %1339 = vmatprep.mubr.bf16.mxu0 0
    %1340 = vmatmul.mubr.bf16.gmra.mrb[0].mxu0 %v1073
    %v1341 = vpop.f32.mrb[0].mxu0
    %v1342 = vadd.f32 0.0, %v1341
    %v1343 = vpop.f32.mrb[0].mxu0
    %v1344 = vpop.f32.mrb[0].mxu0
    %v1345 = vadd.f32 0.0, %v1344
    %v1346 = vpop.f32.mrb[0].mxu0
    %1347 = vmatprep.mubr.bf16.mxu0 0
    %1348 = vmatmul.mubr.bf16.gmra.mrb[0].mxu0 %v1074
    %v1349 = vpop.f32.mrb[0].mxu0
    %v1350 = vadd.f32 0.0, %v1349
    %v1351 = vpop.f32.mrb[0].mxu0
    %v1352 = vpop.f32.mrb[0].mxu0
    %v1353 = vadd.f32 0.0, %v1352
    %v1354 = vpop.f32.mrb[0].mxu0
    %1355 = vmatprep.mubr.bf16.mxu0 0
    %1356 = vmatmul.mubr.bf16.gmra.mrb[0].mxu0 %v1075
    %v1357 = vpop.f32.mrb[0].mxu0
    %v1358 = vadd.f32 0.0, %v1357
    %v1359 = vpop.f32.mrb[0].mxu0
    %v1360 = vpop.f32.mrb[0].mxu0
    %v1361 = vadd.f32 0.0, %v1360
    %v1362 = vpop.f32.mrb[0].mxu0
    %1363 = vmatprep.mubr.bf16.mxu0 0
    %1364 = vmatmul.mubr.bf16.gmra.mrb[0].mxu0 %v1076
    %v1365 = vpop.f32.mrb[0].mxu0
    %v1366 = vadd.f32 0.0, %v1365
    %v1367 = vpop.f32.mrb[0].mxu0
    %v1368 = vpop.f32.mrb[0].mxu0
    %v1369 = vadd.f32 0.0, %v1368
    %v1370 = vpop.f32.mrb[0].mxu0
    %1371 = vmatprep.mubr.bf16.mxu0 0
    %1372 = vmatmul.mubr.bf16.gmra.mrb[0].mxu0 %v1077
    %v1373 = vpop.f32.mrb[0].mxu0
    %v1374 = vadd.f32 0.0, %v1373
    %v1375 = vpop.f32.mrb[0].mxu0
    %v1376 = vpop.f32.mrb[0].mxu0
    %v1377 = vadd.f32 0.0, %v1376
    %v1378 = vpop.f32.mrb[0].mxu0
    %1379 = vmatprep.mubr.bf16.mxu0 0
    %1380 = vmatmul.mubr.bf16.gmra.mrb[0].mxu0 %v1078
    %v1381 = vpop.f32.mrb[0].mxu0
    %v1382 = vadd.f32 0.0, %v1381
    %v1383 = vpop.f32.mrb[0].mxu0
    %v1384 = vpop.f32.mrb[0].mxu0
    %v1385 = vadd.f32 0.0, %v1384
    %v1386 = vpop.f32.mrb[0].mxu0
    %1387 = vmatprep.mubr.bf16.mxu0 0
    %1388 = vmatmul.mubr.bf16.gmra.mrb[0].mxu0 %v1079
    %v1389 = vpop.f32.mrb[0].mxu0
    %v1390 = vadd.f32 0.0, %v1389
    %v1391 = vpop.f32.mrb[0].mxu0
    %v1392 = vpop.f32.mrb[0].mxu0
    %v1393 = vadd.f32 0.0, %v1392
    %v1394 = vpop.f32.mrb[0].mxu0
    %1395 = vmatprep.mubr.bf16.mxu0 0
    %1396 = vmatmul.mubr.bf16.gmra.mrb[0].mxu0 %v1080
    %v1397 = vpop.f32.mrb[0].mxu0
    %v1398 = vadd.f32 0.0, %v1397
    %v1399 = vpop.f32.mrb[0].mxu0
    %v1400 = vpop.f32.mrb[0].mxu0
    %v1401 = vadd.f32 0.0, %v1400
    %v1402 = vpop.f32.mrb[0].mxu0
    %1403 = vmatprep.mubr.bf16.mxu0 0
    %1404 = vmatmul.mubr.bf16.gmra.mrb[0].mxu0 %v1081
    %v1405 = vpop.f32.mrb[0].mxu0
    %v1406 = vadd.f32 0.0, %v1405
    %v1407 = vpop.f32.mrb[0].mxu0
    %v1408 = vpop.f32.mrb[0].mxu0
    %v1409 = vadd.f32 0.0, %v1408
    %v1410 = vpop.f32.mrb[0].mxu0
    %1411 = vmatprep.mubr.bf16.mxu0 0
    %1412 = vmatmul.mubr.bf16.gmra.mrb[0].mxu0 %v1082
    %v1413 = vpop.f32.mrb[0].mxu0
    %v1414 = vadd.f32 0.0, %v1413
    %v1415 = vpop.f32.mrb[0].mxu0
    %v1416 = vpop.f32.mrb[0].mxu0
    %v1417 = vadd.f32 0.0, %v1416
    %v1418 = vpop.f32.mrb[0].mxu0
    %1419 = vdwg.mxu0
    %v1420 = vmax.f32 %v1166, %v1230
    %v1421 = vmax.f32 %v1169, %v1233
    %v1422 = vmax.f32 %v1174, %v1238
    %v1423 = vmax.f32 %v1177, %v1241
    %v1424 = vmax.f32 %v1182, %v1246
    %v1425 = vmax.f32 %v1185, %v1249
    %v1426 = vmax.f32 %v1190, %v1254
    %v1427 = vmax.f32 %v1193, %v1257
    %v1428 = vmax.f32 %v1198, %v1262
    %v1429 = vmax.f32 %v1201, %v1265
    %v1430 = vmax.f32 %v1206, %v1270
    %v1431 = vmax.f32 %v1209, %v1273
    %v1432 = vmax.f32 %v1214, %v1278
    %v1433 = vmax.f32 %v1217, %v1281
    %v1434 = vmax.f32 %v1222, %v1286
    %v1435 = vmax.f32 %v1225, %v1289
    %v1436 = vsub.f32 %v1166, %v1420
    %v1437 = vsub.f32 %v1169, %v1421
    %v1438 = vsub.f32 %v1174, %v1422
    %v1439 = vsub.f32 %v1177, %v1423
    %v1440 = vsub.f32 %v1182, %v1424
    %v1441 = vsub.f32 %v1185, %v1425
    %v1442 = vsub.f32 %v1190, %v1426
    %v1443 = vsub.f32 %v1193, %v1427
    %v1444 = vsub.f32 %v1198, %v1428
    %v1445 = vsub.f32 %v1201, %v1429
    %v1446 = vsub.f32 %v1206, %v1430
    %v1447 = vsub.f32 %v1209, %v1431
    %v1448 = vsub.f32 %v1214, %v1432
    %v1449 = vsub.f32 %v1217, %v1433
    %v1450 = vsub.f32 %v1222, %v1434
    %v1451 = vsub.f32 %v1225, %v1435
    %v1452 = vmul.f32 %v1436, 1.442695
    %v1453 = vpow.pop %v1452
    %v1454 = vmul.f32 %v1437, 1.442695
    %v1455 = vpow.pop %v1454
    %v1456 = vmul.f32 %v1438, 1.442695
    %v1457 = vpow.pop %v1456
    %v1458 = vmul.f32 %v1439, 1.442695
    %v1459 = vpow.pop %v1458
    %v1460 = vmul.f32 %v1440, 1.442695
    %v1461 = vpow.pop %v1460
    %v1462 = vmul.f32 %v1441, 1.442695
    %v1463 = vpow.pop %v1462
    %v1464 = vmul.f32 %v1442, 1.442695
    %v1465 = vpow.pop %v1464
    %v1466 = vmul.f32 %v1443, 1.442695
    %v1467 = vpow.pop %v1466
    %v1468 = vmul.f32 %v1444, 1.442695
    %v1469 = vpow.pop %v1468
    %v1470 = vmul.f32 %v1445, 1.442695
    %v1471 = vpow.pop %v1470
    %v1472 = vmul.f32 %v1446, 1.442695
    %v1473 = vpow.pop %v1472
    %v1474 = vmul.f32 %v1447, 1.442695
    %v1475 = vpow.pop %v1474
    %v1476 = vmul.f32 %v1448, 1.442695
    %v1477 = vpow.pop %v1476
    %v1478 = vmul.f32 %v1449, 1.442695
    %v1479 = vpow.pop %v1478
    %v1480 = vmul.f32 %v1450, 1.442695
    %v1481 = vpow.pop %v1480
    %v1482 = vmul.f32 %v1451, 1.442695
    %v1483 = vpow.pop %v1482
    %v1484 = vmul.f32 %v1453, %v861
    %v1485 = vmul.f32 %v1455, %v864
    %v1486 = vmul.f32 %v1457, %v869
    %v1487 = vmul.f32 %v1459, %v872
    %v1488 = vmul.f32 %v1461, %v877
    %v1489 = vmul.f32 %v1463, %v880
    %v1490 = vmul.f32 %v1465, %v885
    %v1491 = vmul.f32 %v1467, %v888
    %v1492 = vmul.f32 %v1469, %v893
    %v1493 = vmul.f32 %v1471, %v896
    %v1494 = vmul.f32 %v1473, %v901
    %v1495 = vmul.f32 %v1475, %v904
    %v1496 = vmul.f32 %v1477, %v909
    %v1497 = vmul.f32 %v1479, %v912
    %v1498 = vmul.f32 %v1481, %v917
    %v1499 = vmul.f32 %v1483, %v920
    %v1500 = vsub.f32 %v1230, %v1420
    %v1501 = vsub.f32 %v1233, %v1421
    %v1502 = vsub.f32 %v1238, %v1422
    %v1503 = vsub.f32 %v1241, %v1423
    %v1504 = vsub.f32 %v1246, %v1424
    %v1505 = vsub.f32 %v1249, %v1425
    %v1506 = vsub.f32 %v1254, %v1426
    %v1507 = vsub.f32 %v1257, %v1427
    %v1508 = vsub.f32 %v1262, %v1428
    %v1509 = vsub.f32 %v1265, %v1429
    %v1510 = vsub.f32 %v1270, %v1430
    %v1511 = vsub.f32 %v1273, %v1431
    %v1512 = vsub.f32 %v1278, %v1432
    %v1513 = vsub.f32 %v1281, %v1433
    %v1514 = vsub.f32 %v1286, %v1434
    %v1515 = vsub.f32 %v1289, %v1435
    %v1516 = vmul.f32 %v1500, 1.442695
    %v1517 = vpow.pop %v1516
    %v1518 = vmul.f32 %v1501, 1.442695
    %v1519 = vpow.pop %v1518
    %v1520 = vmul.f32 %v1502, 1.442695
    %v1521 = vpow.pop %v1520
    %v1522 = vmul.f32 %v1503, 1.442695
    %v1523 = vpow.pop %v1522
    %v1524 = vmul.f32 %v1504, 1.442695
    %v1525 = vpow.pop %v1524
    %v1526 = vmul.f32 %v1505, 1.442695
    %v1527 = vpow.pop %v1526
    %v1528 = vmul.f32 %v1506, 1.442695
    %v1529 = vpow.pop %v1528
    %v1530 = vmul.f32 %v1507, 1.442695
    %v1531 = vpow.pop %v1530
    %v1532 = vmul.f32 %v1508, 1.442695
    %v1533 = vpow.pop %v1532
    %v1534 = vmul.f32 %v1509, 1.442695
    %v1535 = vpow.pop %v1534
    %v1536 = vmul.f32 %v1510, 1.442695
    %v1537 = vpow.pop %v1536
    %v1538 = vmul.f32 %v1511, 1.442695
    %v1539 = vpow.pop %v1538
    %v1540 = vmul.f32 %v1512, 1.442695
    %v1541 = vpow.pop %v1540
    %v1542 = vmul.f32 %v1513, 1.442695
    %v1543 = vpow.pop %v1542
    %v1544 = vmul.f32 %v1514, 1.442695
    %v1545 = vpow.pop %v1544
    %v1546 = vmul.f32 %v1515, 1.442695
    %v1547 = vpow.pop %v1546
    %v1548 = vadd.f32 %v1453, %v1517
    %v1549 = vadd.f32 %v1455, %v1519
    %v1550 = vadd.f32 %v1457, %v1521
    %v1551 = vadd.f32 %v1459, %v1523
    %v1552 = vadd.f32 %v1461, %v1525
    %v1553 = vadd.f32 %v1463, %v1527
    %v1554 = vadd.f32 %v1465, %v1529
    %v1555 = vadd.f32 %v1467, %v1531
    %v1556 = vadd.f32 %v1469, %v1533
    %v1557 = vadd.f32 %v1471, %v1535
    %v1558 = vadd.f32 %v1473, %v1537
    %v1559 = vadd.f32 %v1475, %v1539
    %v1560 = vadd.f32 %v1477, %v1541
    %v1561 = vadd.f32 %v1479, %v1543
    %v1562 = vadd.f32 %v1481, %v1545
    %v1563 = vadd.f32 %v1483, %v1547
    %v1564 = vmul.f32 %v1517, %v925
    %v1565 = vmul.f32 %v1519, %v928
    %v1566 = vmul.f32 %v1521, %v933
    %v1567 = vmul.f32 %v1523, %v936
    %v1568 = vmul.f32 %v1525, %v941
    %v1569 = vmul.f32 %v1527, %v944
    %v1570 = vmul.f32 %v1529, %v949
    %v1571 = vmul.f32 %v1531, %v952
    %v1572 = vmul.f32 %v1533, %v957
    %v1573 = vmul.f32 %v1535, %v960
    %v1574 = vmul.f32 %v1537, %v965
    %v1575 = vmul.f32 %v1539, %v968
    %v1576 = vmul.f32 %v1541, %v973
    %v1577 = vmul.f32 %v1543, %v976
    %v1578 = vmul.f32 %v1545, %v981
    %v1579 = vmul.f32 %v1547, %v984
    %v1580 = vadd.f32 %v1484, %v1564
    %v1581 = vadd.f32 %v1485, %v1565
    %v1582 = vadd.f32 %v1486, %v1566
    %v1583 = vadd.f32 %v1487, %v1567
    %v1584 = vadd.f32 %v1488, %v1568
    %v1585 = vadd.f32 %v1489, %v1569
    %v1586 = vadd.f32 %v1490, %v1570
    %v1587 = vadd.f32 %v1491, %v1571
    %v1588 = vadd.f32 %v1492, %v1572
    %v1589 = vadd.f32 %v1493, %v1573
    %v1590 = vadd.f32 %v1494, %v1574
    %v1591 = vadd.f32 %v1495, %v1575
    %v1592 = vadd.f32 %v1496, %v1576
    %v1593 = vadd.f32 %v1497, %v1577
    %v1594 = vadd.f32 %v1498, %v1578
    %v1595 = vadd.f32 %v1499, %v1579
    %v1596 = vrcp.pop %v1548
    %v1597 = vrcp.pop %v1549
    %v1598 = vrcp.pop %v1550
    %v1599 = vrcp.pop %v1551
    %v1600 = vrcp.pop %v1552
    %v1601 = vrcp.pop %v1553
    %v1602 = vrcp.pop %v1554
    %v1603 = vrcp.pop %v1555
    %v1604 = vrcp.pop %v1556
    %v1605 = vrcp.pop %v1557
    %v1606 = vrcp.pop %v1558
    %v1607 = vrcp.pop %v1559
    %v1608 = vrcp.pop %v1560
    %v1609 = vrcp.pop %v1561
    %v1610 = vrcp.pop %v1562
    %v1611 = vrcp.pop %v1563
    %v1612 = vmul.f32 %v1580, %v1596
    %v1613 = vmul.f32 %v1581, %v1597
    %v1614 = vmul.f32 %v1582, %v1598
    %v1615 = vmul.f32 %v1583, %v1599
    %v1616 = vmul.f32 %v1584, %v1600
    %v1617 = vmul.f32 %v1585, %v1601
    %v1618 = vmul.f32 %v1586, %v1602
    %v1619 = vmul.f32 %v1587, %v1603
    %v1620 = vmul.f32 %v1588, %v1604
    %v1621 = vmul.f32 %v1589, %v1605
    %v1622 = vmul.f32 %v1590, %v1606
    %v1623 = vmul.f32 %v1591, %v1607
    %v1624 = vmul.f32 %v1592, %v1608
    %v1625 = vmul.f32 %v1593, %v1609
    %v1626 = vmul.f32 %v1594, %v1610
    %v1627 = vmul.f32 %v1595, %v1611
    %v1628 = vpack.c.bf16 %v1613, %v1612
    %v1629 = vpack.c.bf16 %v1615, %v1614
    %v1630 = vpack.c.bf16 %v1617, %v1616
    %v1631 = vpack.c.bf16 %v1619, %v1618
    %v1632 = vpack.c.bf16 %v1621, %v1620
    %v1633 = vpack.c.bf16 %v1623, %v1622
    %v1634 = vpack.c.bf16 %v1625, %v1624
    %v1635 = vpack.c.bf16 %v1627, %v1626
    %1636 = vst [vmem:[#allocation2] sm:$0xff] %v1628
    %1637 = vst [vmem:[#allocation2 + $0x8] sm:$0xff] %v1629
    %1638 = vst [vmem:[#allocation2 + $0x10] sm:$0xff] %v1630
    %1639 = vst [vmem:[#allocation2 + $0x18] sm:$0xff] %v1631
    %1640 = vst [vmem:[#allocation2 + $0x20] sm:$0xff] %v1632
    %1641 = vst [vmem:[#allocation2 + $0x28] sm:$0xff] %v1633
    %1642 = vst [vmem:[#allocation2 + $0x30] sm:$0xff] %v1634
    %1643 = vst [vmem:[#allocation2 + $0x38] sm:$0xff] %v1635
    %v1644 = vmax.f32 %v1294, %v1358
    %v1645 = vmax.f32 %v1297, %v1361
    %v1646 = vmax.f32 %v1302, %v1366
    %v1647 = vmax.f32 %v1305, %v1369
    %v1648 = vmax.f32 %v1310, %v1374
    %v1649 = vmax.f32 %v1313, %v1377
    %v1650 = vmax.f32 %v1318, %v1382
    %v1651 = vmax.f32 %v1321, %v1385
    %v1652 = vmax.f32 %v1326, %v1390
    %v1653 = vmax.f32 %v1329, %v1393
    %v1654 = vmax.f32 %v1334, %v1398
    %v1655 = vmax.f32 %v1337, %v1401
    %v1656 = vmax.f32 %v1342, %v1406
    %v1657 = vmax.f32 %v1345, %v1409
    %v1658 = vmax.f32 %v1350, %v1414
    %v1659 = vmax.f32 %v1353, %v1417
    %v1660 = vsub.f32 %v1294, %v1644
    %v1661 = vsub.f32 %v1297, %v1645
    %v1662 = vsub.f32 %v1302, %v1646
    %v1663 = vsub.f32 %v1305, %v1647
    %v1664 = vsub.f32 %v1310, %v1648
    %v1665 = vsub.f32 %v1313, %v1649
    %v1666 = vsub.f32 %v1318, %v1650
    %v1667 = vsub.f32 %v1321, %v1651
    %v1668 = vsub.f32 %v1326, %v1652
    %v1669 = vsub.f32 %v1329, %v1653
    %v1670 = vsub.f32 %v1334, %v1654
    %v1671 = vsub.f32 %v1337, %v1655
    %v1672 = vsub.f32 %v1342, %v1656
    %v1673 = vsub.f32 %v1345, %v1657
    %v1674 = vsub.f32 %v1350, %v1658
    %v1675 = vsub.f32 %v1353, %v1659
    %v1676 = vmul.f32 %v1660, 1.442695
    %v1677 = vpow.pop %v1676
    %v1678 = vmul.f32 %v1661, 1.442695
    %v1679 = vpow.pop %v1678
    %v1680 = vmul.f32 %v1662, 1.442695
    %v1681 = vpow.pop %v1680
    %v1682 = vmul.f32 %v1663, 1.442695
    %v1683 = vpow.pop %v1682
    %v1684 = vmul.f32 %v1664, 1.442695
    %v1685 = vpow.pop %v1684
    %v1686 = vmul.f32 %v1665, 1.442695
    %v1687 = vpow.pop %v1686
    %v1688 = vmul.f32 %v1666, 1.442695
    %v1689 = vpow.pop %v1688
    %v1690 = vmul.f32 %v1667, 1.442695
    %v1691 = vpow.pop %v1690
    %v1692 = vmul.f32 %v1668, 1.442695
    %v1693 = vpow.pop %v1692
    %v1694 = vmul.f32 %v1669, 1.442695
    %v1695 = vpow.pop %v1694
    %v1696 = vmul.f32 %v1670, 1.442695
    %v1697 = vpow.pop %v1696
    %v1698 = vmul.f32 %v1671, 1.442695
    %v1699 = vpow.pop %v1698
    %v1700 = vmul.f32 %v1672, 1.442695
    %v1701 = vpow.pop %v1700
    %v1702 = vmul.f32 %v1673, 1.442695
    %v1703 = vpow.pop %v1702
    %v1704 = vmul.f32 %v1674, 1.442695
    %v1705 = vpow.pop %v1704
    %v1706 = vmul.f32 %v1675, 1.442695
    %v1707 = vpow.pop %v1706
    %v1708 = vmul.f32 %v1677, %v861
    %v1709 = vmul.f32 %v1679, %v864
    %v1710 = vmul.f32 %v1681, %v869
    %v1711 = vmul.f32 %v1683, %v872
    %v1712 = vmul.f32 %v1685, %v877
    %v1713 = vmul.f32 %v1687, %v880
    %v1714 = vmul.f32 %v1689, %v885
    %v1715 = vmul.f32 %v1691, %v888
    %v1716 = vmul.f32 %v1693, %v893
    %v1717 = vmul.f32 %v1695, %v896
    %v1718 = vmul.f32 %v1697, %v901
    %v1719 = vmul.f32 %v1699, %v904
    %v1720 = vmul.f32 %v1701, %v909
    %v1721 = vmul.f32 %v1703, %v912
    %v1722 = vmul.f32 %v1705, %v917
    %v1723 = vmul.f32 %v1707, %v920
    %v1724 = vsub.f32 %v1358, %v1644
    %v1725 = vsub.f32 %v1361, %v1645
    %v1726 = vsub.f32 %v1366, %v1646
    %v1727 = vsub.f32 %v1369, %v1647
    %v1728 = vsub.f32 %v1374, %v1648
    %v1729 = vsub.f32 %v1377, %v1649
    %v1730 = vsub.f32 %v1382, %v1650
    %v1731 = vsub.f32 %v1385, %v1651
    %v1732 = vsub.f32 %v1390, %v1652
    %v1733 = vsub.f32 %v1393, %v1653
    %v1734 = vsub.f32 %v1398, %v1654
    %v1735 = vsub.f32 %v1401, %v1655
    %v1736 = vsub.f32 %v1406, %v1656
    %v1737 = vsub.f32 %v1409, %v1657
    %v1738 = vsub.f32 %v1414, %v1658
    %v1739 = vsub.f32 %v1417, %v1659
    %v1740 = vmul.f32 %v1724, 1.442695
    %v1741 = vpow.pop %v1740
    %v1742 = vmul.f32 %v1725, 1.442695
    %v1743 = vpow.pop %v1742
    %v1744 = vmul.f32 %v1726, 1.442695
    %v1745 = vpow.pop %v1744
    %v1746 = vmul.f32 %v1727, 1.442695
    %v1747 = vpow.pop %v1746
    %v1748 = vmul.f32 %v1728, 1.442695
    %v1749 = vpow.pop %v1748
    %v1750 = vmul.f32 %v1729, 1.442695
    %v1751 = vpow.pop %v1750
    %v1752 = vmul.f32 %v1730, 1.442695
    %v1753 = vpow.pop %v1752
    %v1754 = vmul.f32 %v1731, 1.442695
    %v1755 = vpow.pop %v1754
    %v1756 = vmul.f32 %v1732, 1.442695
    %v1757 = vpow.pop %v1756
    %v1758 = vmul.f32 %v1733, 1.442695
    %v1759 = vpow.pop %v1758
    %v1760 = vmul.f32 %v1734, 1.442695
    %v1761 = vpow.pop %v1760
    %v1762 = vmul.f32 %v1735, 1.442695
    %v1763 = vpow.pop %v1762
    %v1764 = vmul.f32 %v1736, 1.442695
    %v1765 = vpow.pop %v1764
    %v1766 = vmul.f32 %v1737, 1.442695
    %v1767 = vpow.pop %v1766
    %v1768 = vmul.f32 %v1738, 1.442695
    %v1769 = vpow.pop %v1768
    %v1770 = vmul.f32 %v1739, 1.442695
    %v1771 = vpow.pop %v1770
    %v1772 = vadd.f32 %v1677, %v1741
    %v1773 = vadd.f32 %v1679, %v1743
    %v1774 = vadd.f32 %v1681, %v1745
    %v1775 = vadd.f32 %v1683, %v1747
    %v1776 = vadd.f32 %v1685, %v1749
    %v1777 = vadd.f32 %v1687, %v1751
    %v1778 = vadd.f32 %v1689, %v1753
    %v1779 = vadd.f32 %v1691, %v1755
    %v1780 = vadd.f32 %v1693, %v1757
    %v1781 = vadd.f32 %v1695, %v1759
    %v1782 = vadd.f32 %v1697, %v1761
    %v1783 = vadd.f32 %v1699, %v1763
    %v1784 = vadd.f32 %v1701, %v1765
    %v1785 = vadd.f32 %v1703, %v1767
    %v1786 = vadd.f32 %v1705, %v1769
    %v1787 = vadd.f32 %v1707, %v1771
    %v1788 = vmul.f32 %v1741, %v925
    %v1789 = vmul.f32 %v1743, %v928
    %v1790 = vmul.f32 %v1745, %v933
    %v1791 = vmul.f32 %v1747, %v936
    %v1792 = vmul.f32 %v1749, %v941
    %v1793 = vmul.f32 %v1751, %v944
    %v1794 = vmul.f32 %v1753, %v949
    %v1795 = vmul.f32 %v1755, %v952
    %v1796 = vmul.f32 %v1757, %v957
    %v1797 = vmul.f32 %v1759, %v960
    %v1798 = vmul.f32 %v1761, %v965
    %v1799 = vmul.f32 %v1763, %v968
    %v1800 = vmul.f32 %v1765, %v973
    %v1801 = vmul.f32 %v1767, %v976
    %v1802 = vmul.f32 %v1769, %v981
    %v1803 = vmul.f32 %v1771, %v984
    %v1804 = vadd.f32 %v1708, %v1788
    %v1805 = vadd.f32 %v1709, %v1789
    %v1806 = vadd.f32 %v1710, %v1790
    %v1807 = vadd.f32 %v1711, %v1791
    %v1808 = vadd.f32 %v1712, %v1792
    %v1809 = vadd.f32 %v1713, %v1793
    %v1810 = vadd.f32 %v1714, %v1794
    %v1811 = vadd.f32 %v1715, %v1795
    %v1812 = vadd.f32 %v1716, %v1796
    %v1813 = vadd.f32 %v1717, %v1797
    %v1814 = vadd.f32 %v1718, %v1798
    %v1815 = vadd.f32 %v1719, %v1799
    %v1816 = vadd.f32 %v1720, %v1800
    %v1817 = vadd.f32 %v1721, %v1801
    %v1818 = vadd.f32 %v1722, %v1802
    %v1819 = vadd.f32 %v1723, %v1803
    %v1820 = vrcp.pop %v1772
    %v1821 = vrcp.pop %v1773
    %v1822 = vrcp.pop %v1774
    %v1823 = vrcp.pop %v1775
    %v1824 = vrcp.pop %v1776
    %v1825 = vrcp.pop %v1777
    %v1826 = vrcp.pop %v1778
    %v1827 = vrcp.pop %v1779
    %v1828 = vrcp.pop %v1780
    %v1829 = vrcp.pop %v1781
    %v1830 = vrcp.pop %v1782
    %v1831 = vrcp.pop %v1783
    %v1832 = vrcp.pop %v1784
    %v1833 = vrcp.pop %v1785
    %v1834 = vrcp.pop %v1786
    %v1835 = vrcp.pop %v1787
    %v1836 = vmul.f32 %v1804, %v1820
    %v1837 = vmul.f32 %v1805, %v1821
    %v1838 = vmul.f32 %v1806, %v1822
    %v1839 = vmul.f32 %v1807, %v1823
    %v1840 = vmul.f32 %v1808, %v1824
    %v1841 = vmul.f32 %v1809, %v1825
    %v1842 = vmul.f32 %v1810, %v1826
    %v1843 = vmul.f32 %v1811, %v1827
    %v1844 = vmul.f32 %v1812, %v1828
    %v1845 = vmul.f32 %v1813, %v1829
    %v1846 = vmul.f32 %v1814, %v1830
    %v1847 = vmul.f32 %v1815, %v1831
    %v1848 = vmul.f32 %v1816, %v1832
    %v1849 = vmul.f32 %v1817, %v1833
    %v1850 = vmul.f32 %v1818, %v1834
    %v1851 = vmul.f32 %v1819, %v1835
    %v1852 = vpack.c.bf16 %v1837, %v1836
    %v1853 = vpack.c.bf16 %v1839, %v1838
    %v1854 = vpack.c.bf16 %v1841, %v1840
    %v1855 = vpack.c.bf16 %v1843, %v1842
    %v1856 = vpack.c.bf16 %v1845, %v1844
    %v1857 = vpack.c.bf16 %v1847, %v1846
    %v1858 = vpack.c.bf16 %v1849, %v1848
    %v1859 = vpack.c.bf16 %v1851, %v1850
    %1860 = vst [vmem:[#allocation2 + $0x40] sm:$0xff] %v1852
    %1861 = vst [vmem:[#allocation2 + $0x48] sm:$0xff] %v1853
    %1862 = vst [vmem:[#allocation2 + $0x50] sm:$0xff] %v1854
    %1863 = vst [vmem:[#allocation2 + $0x58] sm:$0xff] %v1855
    %1864 = vst [vmem:[#allocation2 + $0x60] sm:$0xff] %v1856
    %1865 = vst [vmem:[#allocation2 + $0x68] sm:$0xff] %v1857
    %1866 = vst [vmem:[#allocation2 + $0x70] sm:$0xff] %v1858
    %1867 = vst [vmem:[#allocation2 + $0x78] sm:$0xff] %v1859
    %v1868 = vld [vmem:[#allocation2] sm:$0xff]
    %v1869 = vld [vmem:[#allocation2 + $0x8] sm:$0xff]
    %v1870 = vld [vmem:[#allocation2 + $0x10] sm:$0xff]
    %v1871 = vld [vmem:[#allocation2 + $0x18] sm:$0xff]
    %v1872 = vld [vmem:[#allocation2 + $0x20] sm:$0xff]
    %v1873 = vld [vmem:[#allocation2 + $0x28] sm:$0xff]
    %v1874 = vld [vmem:[#allocation2 + $0x30] sm:$0xff]
    %v1875 = vld [vmem:[#allocation2 + $0x38] sm:$0xff]
    %v1876 = vld [vmem:[#allocation2 + $0x40] sm:$0xff]
    %v1877 = vld [vmem:[#allocation2 + $0x48] sm:$0xff]
    %v1878 = vld [vmem:[#allocation2 + $0x50] sm:$0xff]
    %v1879 = vld [vmem:[#allocation2 + $0x58] sm:$0xff]
    %v1880 = vld [vmem:[#allocation2 + $0x60] sm:$0xff]
    %v1881 = vld [vmem:[#allocation2 + $0x68] sm:$0xff]
    %v1882 = vld [vmem:[#allocation2 + $0x70] sm:$0xff]
    %v1883 = vld [vmem:[#allocation2 + $0x78] sm:$0xff]
    %v1884 = vld [vmem:[%s6] sm:$0xf]
    %v1885 = vld [vmem:[%s6 + $0x4] sm:$0xf]
    %v1886 = vld [vmem:[%s6 + $0x8] sm:$0xf]
    %v1887 = vld [vmem:[%s6 + $0xc] sm:$0xf]
    %v1888 = vld [vmem:[%s6 + $0x10] sm:$0xf]
    %v1889 = vld [vmem:[%s6 + $0x14] sm:$0xf]
    %v1890 = vld [vmem:[%s6 + $0x18] sm:$0xf]
    %v1891 = vld [vmem:[%s6 + $0x1c] sm:$0xf]
    %v1892 = vld [vmem:[%s6 + $0x20] sm:$0xf]
    %v1893 = vld [vmem:[%s6 + $0x24] sm:$0xf]
    %v1894 = vld [vmem:[%s6 + $0x28] sm:$0xf]
    %v1895 = vld [vmem:[%s6 + $0x2c] sm:$0xf]
    %v1896 = vld [vmem:[%s6 + $0x30] sm:$0xf]
    %v1897 = vld [vmem:[%s6 + $0x34] sm:$0xf]
    %v1898 = vld [vmem:[%s6 + $0x38] sm:$0xf]
    %v1899 = vld [vmem:[%s6 + $0x3c] sm:$0xf]
    %v1900 = vld [vmem:[%s7] sm:$0x1]
    %v1902 = vlaneseq
    %v1903 = vshrl.u32 %v1902, 7
    %v1904 = vsub.s32 0, %v1903
    %v1905 = vrot.slane %v1900, %v1904
    %v1923 = vunpack.c.l.b16 %v1884
    %v1924 = vunpack.c.l.b16 %v1885
    %v1925 = vunpack.c.l.b16 %v1886
    %v1926 = vunpack.c.l.b16 %v1887
    %v1927 = vunpack.c.l.b16 %v1888
    %v1928 = vunpack.c.l.b16 %v1889
    %v1929 = vunpack.c.l.b16 %v1890
    %v1930 = vunpack.c.l.b16 %v1891
    %v1931 = vunpack.c.l.b16 %v1892
    %v1932 = vunpack.c.l.b16 %v1893
    %v1933 = vunpack.c.l.b16 %v1894
    %v1934 = vunpack.c.l.b16 %v1895
    %v1935 = vunpack.c.l.b16 %v1896
    %v1936 = vunpack.c.l.b16 %v1897
    %v1937 = vunpack.c.l.b16 %v1898
    %v1938 = vunpack.c.l.b16 %v1899
    %v1939 = vpack.c.b16 %v1924, %v1923
    %v1940 = vpack.c.b16 %v1926, %v1925
    %v1941 = vpack.c.b16 %v1928, %v1927
    %v1942 = vpack.c.b16 %v1930, %v1929
    %v1943 = vpack.c.b16 %v1932, %v1931
    %v1944 = vpack.c.b16 %v1934, %v1933
    %v1945 = vpack.c.b16 %v1936, %v1935
    %v1946 = vpack.c.b16 %v1938, %v1937
    %1955 = vmatprep.subr.bf16.mxu0 0
    %1956 = vmatpush1.bf16.msra.mxu0 %v1939
    %1957 = vmatprep.subr.bf16.mxu0 0
    %1958 = vmatpush1.bf16.msra.mxu0 %v1940
    %1959 = vmatprep.subr.bf16.mxu0 0
    %1960 = vmatpush1.bf16.msra.mxu0 %v1941
    %1961 = vmatprep.subr.bf16.mxu0 0
    %1962 = vmatpush1.bf16.msra.mxu0 %v1942
    %1963 = vmatprep.subr.bf16.mxu0 0
    %1964 = vmatpush1.bf16.msra.mxu0 %v1943
    %1965 = vmatprep.subr.bf16.mxu0 0
    %1966 = vmatpush1.bf16.msra.mxu0 %v1944
    %1967 = vmatprep.subr.bf16.mxu0 0
    %1968 = vmatpush1.bf16.msra.mxu0 %v1945
    %1969 = vmatprep.subr.bf16.mxu0 0
    %1970 = vmatpush1.bf16.msra.mxu0 %v1946
    %1971 = vmatprep.subr.bf16.mxu0 0
    %1972 = vmatpush1.bf16.msra.mxu0 0
    %1973 = vmatprep.subr.bf16.mxu0 0
    %1974 = vmatpush1.bf16.msra.mxu0 0
    %1975 = vmatprep.subr.bf16.mxu0 0
    %1976 = vmatpush1.bf16.msra.mxu0 0
    %1977 = vmatprep.subr.bf16.mxu0 0
    %1978 = vmatpush1.bf16.msra.mxu0 0
    %1979 = vmatprep.subr.bf16.mxu0 0
    %1980 = vmatpush1.bf16.msra.mxu0 0
    %1981 = vmatprep.subr.bf16.mxu0 0
    %1982 = vmatpush1.bf16.msra.mxu0 0
    %1983 = vmatprep.subr.bf16.mxu0 0
    %1984 = vmatpush1.bf16.msra.mxu0 0
    %1985 = vmatprep.subr.bf16.mxu0 0
    %1986 = vmatpush1.bf16.msra.mxu0 0
    %1987 = vmatprep.mubr.bf16.mxu0 0
    %1988 = vmatmul.mubr.bf16.gmra.mrb[0].mxu0 %v1868
    %v1989 = vpop.f32.mrb[0].mxu0
    %v1990 = vadd.f32 %v1905, %v1989
    %v1991 = vpop.f32.mrb[0].mxu0
    %v1992 = vpop.f32.mrb[0].mxu0
    %v1993 = vadd.f32 %v1905, %v1992
    %v1994 = vpop.f32.mrb[0].mxu0
    %1995 = vmatprep.mubr.bf16.mxu0 0
    %1996 = vmatmul.mubr.bf16.gmra.mrb[0].mxu0 %v1869
    %v1997 = vpop.f32.mrb[0].mxu0
    %v1998 = vadd.f32 %v1905, %v1997
    %v1999 = vpop.f32.mrb[0].mxu0
    %v2000 = vpop.f32.mrb[0].mxu0
    %v2001 = vadd.f32 %v1905, %v2000
    %v2002 = vpop.f32.mrb[0].mxu0
    %2003 = vmatprep.mubr.bf16.mxu0 0
    %2004 = vmatmul.mubr.bf16.gmra.mrb[0].mxu0 %v1870
    %v2005 = vpop.f32.mrb[0].mxu0
    %v2006 = vadd.f32 %v1905, %v2005
    %v2007 = vpop.f32.mrb[0].mxu0
    %v2008 = vpop.f32.mrb[0].mxu0
    %v2009 = vadd.f32 %v1905, %v2008
    %v2010 = vpop.f32.mrb[0].mxu0
    %2011 = vmatprep.mubr.bf16.mxu0 0
    %2012 = vmatmul.mubr.bf16.gmra.mrb[0].mxu0 %v1871
    %v2013 = vpop.f32.mrb[0].mxu0
    %v2014 = vadd.f32 %v1905, %v2013
    %v2015 = vpop.f32.mrb[0].mxu0
    %v2016 = vpop.f32.mrb[0].mxu0
    %v2017 = vadd.f32 %v1905, %v2016
    %v2018 = vpop.f32.mrb[0].mxu0
    %2019 = vmatprep.mubr.bf16.mxu0 0
    %2020 = vmatmul.mubr.bf16.gmra.mrb[0].mxu0 %v1872
    %v2021 = vpop.f32.mrb[0].mxu0
    %v2022 = vadd.f32 %v1905, %v2021
    %v2023 = vpop.f32.mrb[0].mxu0
    %v2024 = vpop.f32.mrb[0].mxu0
    %v2025 = vadd.f32 %v1905, %v2024
    %v2026 = vpop.f32.mrb[0].mxu0
    %2027 = vmatprep.mubr.bf16.mxu0 0
    %2028 = vmatmul.mubr.bf16.gmra.mrb[0].mxu0 %v1873
    %v2029 = vpop.f32.mrb[0].mxu0
    %v2030 = vadd.f32 %v1905, %v2029
    %v2031 = vpop.f32.mrb[0].mxu0
    %v2032 = vpop.f32.mrb[0].mxu0
    %v2033 = vadd.f32 %v1905, %v2032
    %v2034 = vpop.f32.mrb[0].mxu0
    %2035 = vmatprep.mubr.bf16.mxu0 0
    %2036 = vmatmul.mubr.bf16.gmra.mrb[0].mxu0 %v1874
    %v2037 = vpop.f32.mrb[0].mxu0
    %v2038 = vadd.f32 %v1905, %v2037
    %v2039 = vpop.f32.mrb[0].mxu0
    %v2040 = vpop.f32.mrb[0].mxu0
    %v2041 = vadd.f32 %v1905, %v2040
    %v2042 = vpop.f32.mrb[0].mxu0
    %2043 = vmatprep.mubr.bf16.mxu0 0
    %2044 = vmatmul.mubr.bf16.gmra.mrb[0].mxu0 %v1875
    %v2045 = vpop.f32.mrb[0].mxu0
    %v2046 = vadd.f32 %v1905, %v2045
    %v2047 = vpop.f32.mrb[0].mxu0
    %v2048 = vpop.f32.mrb[0].mxu0
    %v2049 = vadd.f32 %v1905, %v2048
    %v2050 = vpop.f32.mrb[0].mxu0
    %2051 = vmatprep.mubr.bf16.mxu0 0
    %2052 = vmatmul.mubr.bf16.gmra.mrb[0].mxu0 %v1876
    %v2053 = vpop.f32.mrb[0].mxu0
    %v2054 = vadd.f32 %v1905, %v2053
    %v2055 = vpop.f32.mrb[0].mxu0
    %v2056 = vpop.f32.mrb[0].mxu0
    %v2057 = vadd.f32 %v1905, %v2056
    %v2058 = vpop.f32.mrb[0].mxu0
    %2059 = vmatprep.mubr.bf16.mxu0 0
    %2060 = vmatmul.mubr.bf16.gmra.mrb[0].mxu0 %v1877
    %v2061 = vpop.f32.mrb[0].mxu0
    %v2062 = vadd.f32 %v1905, %v2061
    %v2063 = vpop.f32.mrb[0].mxu0
    %v2064 = vpop.f32.mrb[0].mxu0
    %v2065 = vadd.f32 %v1905, %v2064
    %v2066 = vpop.f32.mrb[0].mxu0
    %2067 = vmatprep.mubr.bf16.mxu0 0
    %2068 = vmatmul.mubr.bf16.gmra.mrb[0].mxu0 %v1878
    %v2069 = vpop.f32.mrb[0].mxu0
    %v2070 = vadd.f32 %v1905, %v2069
    %v2071 = vpop.f32.mrb[0].mxu0
    %v2072 = vpop.f32.mrb[0].mxu0
    %v2073 = vadd.f32 %v1905, %v2072
    %v2074 = vpop.f32.mrb[0].mxu0
    %2075 = vmatprep.mubr.bf16.mxu0 0
    %2076 = vmatmul.mubr.bf16.gmra.mrb[0].mxu0 %v1879
    %v2077 = vpop.f32.mrb[0].mxu0
    %v2078 = vadd.f32 %v1905, %v2077
    %v2079 = vpop.f32.mrb[0].mxu0
    %v2080 = vpop.f32.mrb[0].mxu0
    %v2081 = vadd.f32 %v1905, %v2080
    %v2082 = vpop.f32.mrb[0].mxu0
    %2083 = vmatprep.mubr.bf16.mxu0 0
    %2084 = vmatmul.mubr.bf16.gmra.mrb[0].mxu0 %v1880
    %v2085 = vpop.f32.mrb[0].mxu0
    %v2086 = vadd.f32 %v1905, %v2085
    %v2087 = vpop.f32.mrb[0].mxu0
    %v2088 = vpop.f32.mrb[0].mxu0
    %v2089 = vadd.f32 %v1905, %v2088
    %v2090 = vpop.f32.mrb[0].mxu0
    %2091 = vmatprep.mubr.bf16.mxu0 0
    %2092 = vmatmul.mubr.bf16.gmra.mrb[0].mxu0 %v1881
    %v2093 = vpop.f32.mrb[0].mxu0
    %v2094 = vadd.f32 %v1905, %v2093
    %v2095 = vpop.f32.mrb[0].mxu0
    %v2096 = vpop.f32.mrb[0].mxu0
    %v2097 = vadd.f32 %v1905, %v2096
    %v2098 = vpop.f32.mrb[0].mxu0
    %2099 = vmatprep.mubr.bf16.mxu0 0
    %2100 = vmatmul.mubr.bf16.gmra.mrb[0].mxu0 %v1882
    %v2101 = vpop.f32.mrb[0].mxu0
    %v2102 = vadd.f32 %v1905, %v2101
    %v2103 = vpop.f32.mrb[0].mxu0
    %v2104 = vpop.f32.mrb[0].mxu0
    %v2105 = vadd.f32 %v1905, %v2104
    %v2106 = vpop.f32.mrb[0].mxu0
    %2107 = vmatprep.mubr.bf16.mxu0 0
    %2108 = vmatmul.mubr.bf16.gmra.mrb[0].mxu0 %v1883
    %v2109 = vpop.f32.mrb[0].mxu0
    %v2110 = vadd.f32 %v1905, %v2109
    %v2111 = vpop.f32.mrb[0].mxu0
    %v2112 = vpop.f32.mrb[0].mxu0
    %v2113 = vadd.f32 %v1905, %v2112
    %v2114 = vpop.f32.mrb[0].mxu0
    %2115 = vdwg.mxu0
    %v2116 = vadd.f32 %v392, %v1990
    %v2117 = vadd.f32 %v393, %v1993
    %v2118 = vadd.f32 %v394, %v1998
    %v2119 = vadd.f32 %v395, %v2001
    %v2120 = vadd.f32 %v396, %v2006
    %v2121 = vadd.f32 %v397, %v2009
    %v2122 = vadd.f32 %v398, %v2014
    %v2123 = vadd.f32 %v399, %v2017
    %v2124 = vadd.f32 %v400, %v2022
    %v2125 = vadd.f32 %v401, %v2025
    %v2126 = vadd.f32 %v402, %v2030
    %v2127 = vadd.f32 %v403, %v2033
    %v2128 = vadd.f32 %v404, %v2038
    %v2129 = vadd.f32 %v405, %v2041
    %v2130 = vadd.f32 %v406, %v2046
    %v2131 = vadd.f32 %v407, %v2049
    %v2132 = vadd.f32 %v408, %v2054
    %v2133 = vadd.f32 %v409, %v2057
    %v2134 = vadd.f32 %v410, %v2062
    %v2135 = vadd.f32 %v411, %v2065
    %v2136 = vadd.f32 %v412, %v2070
    %v2137 = vadd.f32 %v413, %v2073
    %v2138 = vadd.f32 %v414, %v2078
    %v2139 = vadd.f32 %v415, %v2081
    %v2140 = vadd.f32 %v416, %v2086
    %v2141 = vadd.f32 %v417, %v2089
    %v2142 = vadd.f32 %v418, %v2094
    %v2143 = vadd.f32 %v419, %v2097
    %v2144 = vadd.f32 %v420, %v2102
    %v2145 = vadd.f32 %v421, %v2105
    %v2146 = vadd.f32 %v422, %v2110
    %v2147 = vadd.f32 %v423, %v2113
    %v2148 = vld [vmem:[%s12] sm:$0x1]
    %v2149 = vld [vmem:[%s13] sm:$0x1]
    %2150 = vadd.xlane.f32.xlu0 %v2116
    %v2151 = vpop.xlane.xlu0 %2150
    %2152 = vadd.xlane.f32.xlu0 %v2117
    %v2153 = vpop.xlane.xlu0 %2152
    %2154 = vadd.xlane.f32.xlu0 %v2118
    %v2155 = vpop.xlane.xlu0 %2154
    %2156 = vadd.xlane.f32.xlu0 %v2119
    %v2157 = vpop.xlane.xlu0 %2156
    %2158 = vadd.xlane.f32.xlu0 %v2120
    %v2159 = vpop.xlane.xlu0 %2158
    %2160 = vadd.xlane.f32.xlu0 %v2121
    %v2161 = vpop.xlane.xlu0 %2160
    %2162 = vadd.xlane.f32.xlu0 %v2122
    %v2163 = vpop.xlane.xlu0 %2162
    %2164 = vadd.xlane.f32.xlu0 %v2123
    %v2165 = vpop.xlane.xlu0 %2164
    %2166 = vadd.xlane.f32.xlu0 %v2124
    %v2167 = vpop.xlane.xlu0 %2166
    %2168 = vadd.xlane.f32.xlu0 %v2125
    %v2169 = vpop.xlane.xlu0 %2168
    %2170 = vadd.xlane.f32.xlu0 %v2126
    %v2171 = vpop.xlane.xlu0 %2170
    %2172 = vadd.xlane.f32.xlu0 %v2127
    %v2173 = vpop.xlane.xlu0 %2172
    %2174 = vadd.xlane.f32.xlu0 %v2128
    %v2175 = vpop.xlane.xlu0 %2174
    %2176 = vadd.xlane.f32.xlu0 %v2129
    %v2177 = vpop.xlane.xlu0 %2176
    %2178 = vadd.xlane.f32.xlu0 %v2130
    %v2179 = vpop.xlane.xlu0 %2178
    %2180 = vadd.xlane.f32.xlu0 %v2131
    %v2181 = vpop.xlane.xlu0 %2180
    %2182 = vadd.xlane.f32.xlu0 %v2132
    %v2183 = vpop.xlane.xlu0 %2182
    %2184 = vadd.xlane.f32.xlu0 %v2133
    %v2185 = vpop.xlane.xlu0 %2184
    %2186 = vadd.xlane.f32.xlu0 %v2134
    %v2187 = vpop.xlane.xlu0 %2186
    %2188 = vadd.xlane.f32.xlu0 %v2135
    %v2189 = vpop.xlane.xlu0 %2188
    %2190 = vadd.xlane.f32.xlu0 %v2136
    %v2191 = vpop.xlane.xlu0 %2190
    %2192 = vadd.xlane.f32.xlu0 %v2137
    %v2193 = vpop.xlane.xlu0 %2192
    %2194 = vadd.xlane.f32.xlu0 %v2138
    %v2195 = vpop.xlane.xlu0 %2194
    %2196 = vadd.xlane.f32.xlu0 %v2139
    %v2197 = vpop.xlane.xlu0 %2196
    %2198 = vadd.xlane.f32.xlu0 %v2140
    %v2199 = vpop.xlane.xlu0 %2198
    %2200 = vadd.xlane.f32.xlu0 %v2141
    %v2201 = vpop.xlane.xlu0 %2200
    %2202 = vadd.xlane.f32.xlu0 %v2142
    %v2203 = vpop.xlane.xlu0 %2202
    %2204 = vadd.xlane.f32.xlu0 %v2143
    %v2205 = vpop.xlane.xlu0 %2204
    %2206 = vadd.xlane.f32.xlu0 %v2144
    %v2207 = vpop.xlane.xlu0 %2206
    %2208 = vadd.xlane.f32.xlu0 %v2145
    %v2209 = vpop.xlane.xlu0 %2208
    %2210 = vadd.xlane.f32.xlu0 %v2146
    %v2211 = vpop.xlane.xlu0 %2210
    %2212 = vadd.xlane.f32.xlu0 %v2147
    %v2213 = vpop.xlane.xlu0 %2212
    %v2214 = vrcp.pop 128.0
    %v2215 = vmul.f32 %v2151, %v2214
    %v2216 = vmul.f32 %v2153, %v2214
    %v2217 = vmul.f32 %v2155, %v2214
    %v2218 = vmul.f32 %v2157, %v2214
    %v2219 = vmul.f32 %v2159, %v2214
    %v2220 = vmul.f32 %v2161, %v2214
    %v2221 = vmul.f32 %v2163, %v2214
    %v2222 = vmul.f32 %v2165, %v2214
    %v2223 = vmul.f32 %v2167, %v2214
    %v2224 = vmul.f32 %v2169, %v2214
    %v2225 = vmul.f32 %v2171, %v2214
    %v2226 = vmul.f32 %v2173, %v2214
    %v2227 = vmul.f32 %v2175, %v2214
    %v2228 = vmul.f32 %v2177, %v2214
    %v2229 = vmul.f32 %v2179, %v2214
    %v2230 = vmul.f32 %v2181, %v2214
    %v2231 = vmul.f32 %v2183, %v2214
    %v2232 = vmul.f32 %v2185, %v2214
    %v2233 = vmul.f32 %v2187, %v2214
    %v2234 = vmul.f32 %v2189, %v2214
    %v2235 = vmul.f32 %v2191, %v2214
    %v2236 = vmul.f32 %v2193, %v2214
    %v2237 = vmul.f32 %v2195, %v2214
    %v2238 = vmul.f32 %v2197, %v2214
    %v2239 = vmul.f32 %v2199, %v2214
    %v2240 = vmul.f32 %v2201, %v2214
    %v2241 = vmul.f32 %v2203, %v2214
    %v2242 = vmul.f32 %v2205, %v2214
    %v2243 = vmul.f32 %v2207, %v2214
    %v2244 = vmul.f32 %v2209, %v2214
    %v2245 = vmul.f32 %v2211, %v2214
    %v2246 = vmul.f32 %v2213, %v2214
    %v2247 = vsub.f32 %v2116, %v2215
    %v2248 = vsub.f32 %v2117, %v2216
    %v2249 = vsub.f32 %v2118, %v2217
    %v2250 = vsub.f32 %v2119, %v2218
    %v2251 = vsub.f32 %v2120, %v2219
    %v2252 = vsub.f32 %v2121, %v2220
    %v2253 = vsub.f32 %v2122, %v2221
    %v2254 = vsub.f32 %v2123, %v2222
    %v2255 = vsub.f32 %v2124, %v2223
    %v2256 = vsub.f32 %v2125, %v2224
    %v2257 = vsub.f32 %v2126, %v2225
    %v2258 = vsub.f32 %v2127, %v2226
    %v2259 = vsub.f32 %v2128, %v2227
    %v2260 = vsub.f32 %v2129, %v2228
    %v2261 = vsub.f32 %v2130, %v2229
    %v2262 = vsub.f32 %v2131, %v2230
    %v2263 = vsub.f32 %v2132, %v2231
    %v2264 = vsub.f32 %v2133, %v2232
    %v2265 = vsub.f32 %v2134, %v2233
    %v2266 = vsub.f32 %v2135, %v2234
    %v2267 = vsub.f32 %v2136, %v2235
    %v2268 = vsub.f32 %v2137, %v2236
    %v2269 = vsub.f32 %v2138, %v2237
    %v2270 = vsub.f32 %v2139, %v2238
    %v2271 = vsub.f32 %v2140, %v2239
    %v2272 = vsub.f32 %v2141, %v2240
    %v2273 = vsub.f32 %v2142, %v2241
    %v2274 = vsub.f32 %v2143, %v2242
    %v2275 = vsub.f32 %v2144, %v2243
    %v2276 = vsub.f32 %v2145, %v2244
    %v2277 = vsub.f32 %v2146, %v2245
    %v2278 = vsub.f32 %v2147, %v2246
    %v2279 = vmul.f32 %v2247, %v2247
    %v2280 = vmul.f32 %v2248, %v2248
    %v2281 = vmul.f32 %v2249, %v2249
    %v2282 = vmul.f32 %v2250, %v2250
    %v2283 = vmul.f32 %v2251, %v2251
    %v2284 = vmul.f32 %v2252, %v2252
    %v2285 = vmul.f32 %v2253, %v2253
    %v2286 = vmul.f32 %v2254, %v2254
    %v2287 = vmul.f32 %v2255, %v2255
    %v2288 = vmul.f32 %v2256, %v2256
    %v2289 = vmul.f32 %v2257, %v2257
    %v2290 = vmul.f32 %v2258, %v2258
    %v2291 = vmul.f32 %v2259, %v2259
    %v2292 = vmul.f32 %v2260, %v2260
    %v2293 = vmul.f32 %v2261, %v2261
    %v2294 = vmul.f32 %v2262, %v2262
    %v2295 = vmul.f32 %v2263, %v2263
    %v2296 = vmul.f32 %v2264, %v2264
    %v2297 = vmul.f32 %v2265, %v2265
    %v2298 = vmul.f32 %v2266, %v2266
    %v2299 = vmul.f32 %v2267, %v2267
    %v2300 = vmul.f32 %v2268, %v2268
    %v2301 = vmul.f32 %v2269, %v2269
    %v2302 = vmul.f32 %v2270, %v2270
    %v2303 = vmul.f32 %v2271, %v2271
    %v2304 = vmul.f32 %v2272, %v2272
    %v2305 = vmul.f32 %v2273, %v2273
    %v2306 = vmul.f32 %v2274, %v2274
    %v2307 = vmul.f32 %v2275, %v2275
    %v2308 = vmul.f32 %v2276, %v2276
    %v2309 = vmul.f32 %v2277, %v2277
    %v2310 = vmul.f32 %v2278, %v2278
    %2311 = vadd.xlane.f32.xlu0 %v2279
    %v2312 = vpop.xlane.xlu0 %2311
    %2313 = vadd.xlane.f32.xlu0 %v2280
    %v2314 = vpop.xlane.xlu0 %2313
    %2315 = vadd.xlane.f32.xlu0 %v2281
    %v2316 = vpop.xlane.xlu0 %2315
    %2317 = vadd.xlane.f32.xlu0 %v2282
    %v2318 = vpop.xlane.xlu0 %2317
    %2319 = vadd.xlane.f32.xlu0 %v2283
    %v2320 = vpop.xlane.xlu0 %2319
    %2321 = vadd.xlane.f32.xlu0 %v2284
    %v2322 = vpop.xlane.xlu0 %2321
    %2323 = vadd.xlane.f32.xlu0 %v2285
    %v2324 = vpop.xlane.xlu0 %2323
    %2325 = vadd.xlane.f32.xlu0 %v2286
    %v2326 = vpop.xlane.xlu0 %2325
    %2327 = vadd.xlane.f32.xlu0 %v2287
    %v2328 = vpop.xlane.xlu0 %2327
    %2329 = vadd.xlane.f32.xlu0 %v2288
    %v2330 = vpop.xlane.xlu0 %2329
    %2331 = vadd.xlane.f32.xlu0 %v2289
    %v2332 = vpop.xlane.xlu0 %2331
    %2333 = vadd.xlane.f32.xlu0 %v2290
    %v2334 = vpop.xlane.xlu0 %2333
    %2335 = vadd.xlane.f32.xlu0 %v2291
    %v2336 = vpop.xlane.xlu0 %2335
    %2337 = vadd.xlane.f32.xlu0 %v2292
    %v2338 = vpop.xlane.xlu0 %2337
    %2339 = vadd.xlane.f32.xlu0 %v2293
    %v2340 = vpop.xlane.xlu0 %2339
    %2341 = vadd.xlane.f32.xlu0 %v2294
    %v2342 = vpop.xlane.xlu0 %2341
    %2343 = vadd.xlane.f32.xlu0 %v2295
    %v2344 = vpop.xlane.xlu0 %2343
    %2345 = vadd.xlane.f32.xlu0 %v2296
    %v2346 = vpop.xlane.xlu0 %2345
    %2347 = vadd.xlane.f32.xlu0 %v2297
    %v2348 = vpop.xlane.xlu0 %2347
    %2349 = vadd.xlane.f32.xlu0 %v2298
    %v2350 = vpop.xlane.xlu0 %2349
    %2351 = vadd.xlane.f32.xlu0 %v2299
    %v2352 = vpop.xlane.xlu0 %2351
    %2353 = vadd.xlane.f32.xlu0 %v2300
    %v2354 = vpop.xlane.xlu0 %2353
    %2355 = vadd.xlane.f32.xlu0 %v2301
    %v2356 = vpop.xlane.xlu0 %2355
    %2357 = vadd.xlane.f32.xlu0 %v2302
    %v2358 = vpop.xlane.xlu0 %2357
    %2359 = vadd.xlane.f32.xlu0 %v2303
    %v2360 = vpop.xlane.xlu0 %2359
    %2361 = vadd.xlane.f32.xlu0 %v2304
    %v2362 = vpop.xlane.xlu0 %2361
    %2363 = vadd.xlane.f32.xlu0 %v2305
    %v2364 = vpop.xlane.xlu0 %2363
    %2365 = vadd.xlane.f32.xlu0 %v2306
    %v2366 = vpop.xlane.xlu0 %2365
    %2367 = vadd.xlane.f32.xlu0 %v2307
    %v2368 = vpop.xlane.xlu0 %2367
    %2369 = vadd.xlane.f32.xlu0 %v2308
    %v2370 = vpop.xlane.xlu0 %2369
    %2371 = vadd.xlane.f32.xlu0 %v2309
    %v2372 = vpop.xlane.xlu0 %2371
    %2373 = vadd.xlane.f32.xlu0 %v2310
    %v2374 = vpop.xlane.xlu0 %2373
    %v2375 = vmul.f32 %v2312, %v2214
    %v2376 = vmul.f32 %v2314, %v2214
    %v2377 = vmul.f32 %v2316, %v2214
    %v2378 = vmul.f32 %v2318, %v2214
    %v2379 = vmul.f32 %v2320, %v2214
    %v2380 = vmul.f32 %v2322, %v2214
    %v2381 = vmul.f32 %v2324, %v2214
    %v2382 = vmul.f32 %v2326, %v2214
    %v2383 = vmul.f32 %v2328, %v2214
    %v2384 = vmul.f32 %v2330, %v2214
    %v2385 = vmul.f32 %v2332, %v2214
    %v2386 = vmul.f32 %v2334, %v2214
    %v2387 = vmul.f32 %v2336, %v2214
    %v2388 = vmul.f32 %v2338, %v2214
    %v2389 = vmul.f32 %v2340, %v2214
    %v2390 = vmul.f32 %v2342, %v2214
    %v2391 = vmul.f32 %v2344, %v2214
    %v2392 = vmul.f32 %v2346, %v2214
    %v2393 = vmul.f32 %v2348, %v2214
    %v2394 = vmul.f32 %v2350, %v2214
    %v2395 = vmul.f32 %v2352, %v2214
    %v2396 = vmul.f32 %v2354, %v2214
    %v2397 = vmul.f32 %v2356, %v2214
    %v2398 = vmul.f32 %v2358, %v2214
    %v2399 = vmul.f32 %v2360, %v2214
    %v2400 = vmul.f32 %v2362, %v2214
    %v2401 = vmul.f32 %v2364, %v2214
    %v2402 = vmul.f32 %v2366, %v2214
    %v2403 = vmul.f32 %v2368, %v2214
    %v2404 = vmul.f32 %v2370, %v2214
    %v2405 = vmul.f32 %v2372, %v2214
    %v2406 = vmul.f32 %v2374, %v2214
    %v2407 = vadd.f32 %v2375, 1e-05
    %v2408 = vadd.f32 %v2376, 1e-05
    %v2409 = vadd.f32 %v2377, 1e-05
    %v2410 = vadd.f32 %v2378, 1e-05
    %v2411 = vadd.f32 %v2379, 1e-05
    %v2412 = vadd.f32 %v2380, 1e-05
    %v2413 = vadd.f32 %v2381, 1e-05
    %v2414 = vadd.f32 %v2382, 1e-05
    %v2415 = vadd.f32 %v2383, 1e-05
    %v2416 = vadd.f32 %v2384, 1e-05
    %v2417 = vadd.f32 %v2385, 1e-05
    %v2418 = vadd.f32 %v2386, 1e-05
    %v2419 = vadd.f32 %v2387, 1e-05
    %v2420 = vadd.f32 %v2388, 1e-05
    %v2421 = vadd.f32 %v2389, 1e-05
    %v2422 = vadd.f32 %v2390, 1e-05
    %v2423 = vadd.f32 %v2391, 1e-05
    %v2424 = vadd.f32 %v2392, 1e-05
    %v2425 = vadd.f32 %v2393, 1e-05
    %v2426 = vadd.f32 %v2394, 1e-05
    %v2427 = vadd.f32 %v2395, 1e-05
    %v2428 = vadd.f32 %v2396, 1e-05
    %v2429 = vadd.f32 %v2397, 1e-05
    %v2430 = vadd.f32 %v2398, 1e-05
    %v2431 = vadd.f32 %v2399, 1e-05
    %v2432 = vadd.f32 %v2400, 1e-05
    %v2433 = vadd.f32 %v2401, 1e-05
    %v2434 = vadd.f32 %v2402, 1e-05
    %v2435 = vadd.f32 %v2403, 1e-05
    %v2436 = vadd.f32 %v2404, 1e-05
    %v2437 = vadd.f32 %v2405, 1e-05
    %v2438 = vadd.f32 %v2406, 1e-05
    %v2439 = vrsqrt.pop %v2407
    %v2440 = vrsqrt.pop %v2408
    %v2441 = vrsqrt.pop %v2409
    %v2442 = vrsqrt.pop %v2410
    %v2443 = vrsqrt.pop %v2411
    %v2444 = vrsqrt.pop %v2412
    %v2445 = vrsqrt.pop %v2413
    %v2446 = vrsqrt.pop %v2414
    %v2447 = vrsqrt.pop %v2415
    %v2448 = vrsqrt.pop %v2416
    %v2449 = vrsqrt.pop %v2417
    %v2450 = vrsqrt.pop %v2418
    %v2451 = vrsqrt.pop %v2419
    %v2452 = vrsqrt.pop %v2420
    %v2453 = vrsqrt.pop %v2421
    %v2454 = vrsqrt.pop %v2422
    %v2455 = vrsqrt.pop %v2423
    %v2456 = vrsqrt.pop %v2424
    %v2457 = vrsqrt.pop %v2425
    %v2458 = vrsqrt.pop %v2426
    %v2459 = vrsqrt.pop %v2427
    %v2460 = vrsqrt.pop %v2428
    %v2461 = vrsqrt.pop %v2429
    %v2462 = vrsqrt.pop %v2430
    %v2463 = vrsqrt.pop %v2431
    %v2464 = vrsqrt.pop %v2432
    %v2465 = vrsqrt.pop %v2433
    %v2466 = vrsqrt.pop %v2434
    %v2467 = vrsqrt.pop %v2435
    %v2468 = vrsqrt.pop %v2436
    %v2469 = vrsqrt.pop %v2437
    %v2470 = vrsqrt.pop %v2438
    %v2471 = vmul.f32 %v2247, %v2439
    %v2472 = vmul.f32 %v2248, %v2440
    %v2473 = vmul.f32 %v2249, %v2441
    %v2474 = vmul.f32 %v2250, %v2442
    %v2475 = vmul.f32 %v2251, %v2443
    %v2476 = vmul.f32 %v2252, %v2444
    %v2477 = vmul.f32 %v2253, %v2445
    %v2478 = vmul.f32 %v2254, %v2446
    %v2479 = vmul.f32 %v2255, %v2447
    %v2480 = vmul.f32 %v2256, %v2448
    %v2481 = vmul.f32 %v2257, %v2449
    %v2482 = vmul.f32 %v2258, %v2450
    %v2483 = vmul.f32 %v2259, %v2451
    %v2484 = vmul.f32 %v2260, %v2452
    %v2485 = vmul.f32 %v2261, %v2453
    %v2486 = vmul.f32 %v2262, %v2454
    %v2487 = vmul.f32 %v2263, %v2455
    %v2488 = vmul.f32 %v2264, %v2456
    %v2489 = vmul.f32 %v2265, %v2457
    %v2490 = vmul.f32 %v2266, %v2458
    %v2491 = vmul.f32 %v2267, %v2459
    %v2492 = vmul.f32 %v2268, %v2460
    %v2493 = vmul.f32 %v2269, %v2461
    %v2494 = vmul.f32 %v2270, %v2462
    %v2495 = vmul.f32 %v2271, %v2463
    %v2496 = vmul.f32 %v2272, %v2464
    %v2497 = vmul.f32 %v2273, %v2465
    %v2498 = vmul.f32 %v2274, %v2466
    %v2499 = vmul.f32 %v2275, %v2467
    %v2500 = vmul.f32 %v2276, %v2468
    %v2501 = vmul.f32 %v2277, %v2469
    %v2502 = vmul.f32 %v2278, %v2470
    %v2504 = vlaneseq
    %v2505 = vshrl.u32 %v2504, 7
    %v2506 = vsub.s32 0, %v2505
    %v2507 = vrot.slane %v2148, %v2506
    %v2509 = vmul.f32 %v2471, %v2507
    %v2510 = vmul.f32 %v2472, %v2507
    %v2511 = vmul.f32 %v2473, %v2507
    %v2512 = vmul.f32 %v2474, %v2507
    %v2513 = vmul.f32 %v2475, %v2507
    %v2514 = vmul.f32 %v2476, %v2507
    %v2515 = vmul.f32 %v2477, %v2507
    %v2516 = vmul.f32 %v2478, %v2507
    %v2517 = vmul.f32 %v2479, %v2507
    %v2518 = vmul.f32 %v2480, %v2507
    %v2519 = vmul.f32 %v2481, %v2507
    %v2520 = vmul.f32 %v2482, %v2507
    %v2521 = vmul.f32 %v2483, %v2507
    %v2522 = vmul.f32 %v2484, %v2507
    %v2523 = vmul.f32 %v2485, %v2507
    %v2524 = vmul.f32 %v2486, %v2507
    %v2525 = vmul.f32 %v2487, %v2507
    %v2526 = vmul.f32 %v2488, %v2507
    %v2527 = vmul.f32 %v2489, %v2507
    %v2528 = vmul.f32 %v2490, %v2507
    %v2529 = vmul.f32 %v2491, %v2507
    %v2530 = vmul.f32 %v2492, %v2507
    %v2531 = vmul.f32 %v2493, %v2507
    %v2532 = vmul.f32 %v2494, %v2507
    %v2533 = vmul.f32 %v2495, %v2507
    %v2534 = vmul.f32 %v2496, %v2507
    %v2535 = vmul.f32 %v2497, %v2507
    %v2536 = vmul.f32 %v2498, %v2507
    %v2537 = vmul.f32 %v2499, %v2507
    %v2538 = vmul.f32 %v2500, %v2507
    %v2539 = vmul.f32 %v2501, %v2507
    %v2540 = vmul.f32 %v2502, %v2507
    %v2542 = vlaneseq
    %v2543 = vshrl.u32 %v2542, 7
    %v2544 = vsub.s32 0, %v2543
    %v2545 = vrot.slane %v2149, %v2544
    %v2547 = vadd.f32 %v2509, %v2545
    %v2548 = vadd.f32 %v2510, %v2545
    %v2549 = vadd.f32 %v2511, %v2545
    %v2550 = vadd.f32 %v2512, %v2545
    %v2551 = vadd.f32 %v2513, %v2545
    %v2552 = vadd.f32 %v2514, %v2545
    %v2553 = vadd.f32 %v2515, %v2545
    %v2554 = vadd.f32 %v2516, %v2545
    %v2555 = vadd.f32 %v2517, %v2545
    %v2556 = vadd.f32 %v2518, %v2545
    %v2557 = vadd.f32 %v2519, %v2545
    %v2558 = vadd.f32 %v2520, %v2545
    %v2559 = vadd.f32 %v2521, %v2545
    %v2560 = vadd.f32 %v2522, %v2545
    %v2561 = vadd.f32 %v2523, %v2545
    %v2562 = vadd.f32 %v2524, %v2545
    %v2563 = vadd.f32 %v2525, %v2545
    %v2564 = vadd.f32 %v2526, %v2545
    %v2565 = vadd.f32 %v2527, %v2545
    %v2566 = vadd.f32 %v2528, %v2545
    %v2567 = vadd.f32 %v2529, %v2545
    %v2568 = vadd.f32 %v2530, %v2545
    %v2569 = vadd.f32 %v2531, %v2545
    %v2570 = vadd.f32 %v2532, %v2545
    %v2571 = vadd.f32 %v2533, %v2545
    %v2572 = vadd.f32 %v2534, %v2545
    %v2573 = vadd.f32 %v2535, %v2545
    %v2574 = vadd.f32 %v2536, %v2545
    %v2575 = vadd.f32 %v2537, %v2545
    %v2576 = vadd.f32 %v2538, %v2545
    %v2577 = vadd.f32 %v2539, %v2545
    %v2578 = vadd.f32 %v2540, %v2545
    %v2579 = vpack.c.bf16 %v2548, %v2547
    %v2580 = vpack.c.bf16 %v2550, %v2549
    %v2581 = vpack.c.bf16 %v2552, %v2551
    %v2582 = vpack.c.bf16 %v2554, %v2553
    %v2583 = vpack.c.bf16 %v2556, %v2555
    %v2584 = vpack.c.bf16 %v2558, %v2557
    %v2585 = vpack.c.bf16 %v2560, %v2559
    %v2586 = vpack.c.bf16 %v2562, %v2561
    %v2587 = vpack.c.bf16 %v2564, %v2563
    %v2588 = vpack.c.bf16 %v2566, %v2565
    %v2589 = vpack.c.bf16 %v2568, %v2567
    %v2590 = vpack.c.bf16 %v2570, %v2569
    %v2591 = vpack.c.bf16 %v2572, %v2571
    %v2592 = vpack.c.bf16 %v2574, %v2573
    %v2593 = vpack.c.bf16 %v2576, %v2575
    %v2594 = vpack.c.bf16 %v2578, %v2577
    %v2595 = vld [vmem:[#allocation8] sm:$0xf]
    %v2596 = vld [vmem:[#allocation8 + $0x4] sm:$0xf]
    %v2597 = vld [vmem:[#allocation8 + $0x8] sm:$0xf]
    %v2598 = vld [vmem:[#allocation8 + $0xc] sm:$0xf]
    %v2599 = vld [vmem:[#allocation8 + $0x10] sm:$0xf]
    %v2600 = vld [vmem:[#allocation8 + $0x14] sm:$0xf]
    %v2601 = vld [vmem:[#allocation8 + $0x18] sm:$0xf]
    %v2602 = vld [vmem:[#allocation8 + $0x1c] sm:$0xf]
    %v2603 = vld [vmem:[#allocation8 + $0x20] sm:$0xf]
    %v2604 = vld [vmem:[#allocation8 + $0x24] sm:$0xf]
    %v2605 = vld [vmem:[#allocation8 + $0x28] sm:$0xf]
    %v2606 = vld [vmem:[#allocation8 + $0x2c] sm:$0xf]
    %v2607 = vld [vmem:[#allocation8 + $0x30] sm:$0xf]
    %v2608 = vld [vmem:[#allocation8 + $0x34] sm:$0xf]
    %v2609 = vld [vmem:[#allocation8 + $0x38] sm:$0xf]
    %v2610 = vld [vmem:[#allocation8 + $0x3c] sm:$0xf]
    %v2611 = vld [vmem:[%s9] sm:$0x1]
    %v2613 = vlaneseq
    %v2614 = vshrl.u32 %v2613, 7
    %v2615 = vsub.s32 0, %v2614
    %v2616 = vrot.slane %v2611, %v2615
    %v2634 = vunpack.c.l.b16 %v2595
    %v2635 = vunpack.c.l.b16 %v2596
    %v2636 = vunpack.c.l.b16 %v2597
    %v2637 = vunpack.c.l.b16 %v2598
    %v2638 = vunpack.c.l.b16 %v2599
    %v2639 = vunpack.c.l.b16 %v2600
    %v2640 = vunpack.c.l.b16 %v2601
    %v2641 = vunpack.c.l.b16 %v2602
    %v2642 = vunpack.c.l.b16 %v2603
    %v2643 = vunpack.c.l.b16 %v2604
    %v2644 = vunpack.c.l.b16 %v2605
    %v2645 = vunpack.c.l.b16 %v2606
    %v2646 = vunpack.c.l.b16 %v2607
    %v2647 = vunpack.c.l.b16 %v2608
    %v2648 = vunpack.c.l.b16 %v2609
    %v2649 = vunpack.c.l.b16 %v2610
    %v2650 = vpack.c.b16 %v2635, %v2634
    %v2651 = vpack.c.b16 %v2637, %v2636
    %v2652 = vpack.c.b16 %v2639, %v2638
    %v2653 = vpack.c.b16 %v2641, %v2640
    %v2654 = vpack.c.b16 %v2643, %v2642
    %v2655 = vpack.c.b16 %v2645, %v2644
    %v2656 = vpack.c.b16 %v2647, %v2646
    %v2657 = vpack.c.b16 %v2649, %v2648
    %2666 = vmatprep.subr.bf16.mxu0 0
    %2667 = vmatpush1.bf16.msra.mxu0 %v2650
    %2668 = vmatprep.subr.bf16.mxu0 0
    %2669 = vmatpush1.bf16.msra.mxu0 %v2651
    %2670 = vmatprep.subr.bf16.mxu0 0
    %2671 = vmatpush1.bf16.msra.mxu0 %v2652
    %2672 = vmatprep.subr.bf16.mxu0 0
    %2673 = vmatpush1.bf16.msra.mxu0 %v2653
    %2674 = vmatprep.subr.bf16.mxu0 0
    %2675 = vmatpush1.bf16.msra.mxu0 %v2654
    %2676 = vmatprep.subr.bf16.mxu0 0
    %2677 = vmatpush1.bf16.msra.mxu0 %v2655
    %2678 = vmatprep.subr.bf16.mxu0 0
    %2679 = vmatpush1.bf16.msra.mxu0 %v2656
    %2680 = vmatprep.subr.bf16.mxu0 0
    %2681 = vmatpush1.bf16.msra.mxu0 %v2657
    %2682 = vmatprep.subr.bf16.mxu0 0
    %2683 = vmatpush1.bf16.msra.mxu0 0
    %2684 = vmatprep.subr.bf16.mxu0 0
    %2685 = vmatpush1.bf16.msra.mxu0 0
    %2686 = vmatprep.subr.bf16.mxu0 0
    %2687 = vmatpush1.bf16.msra.mxu0 0
    %2688 = vmatprep.subr.bf16.mxu0 0
    %2689 = vmatpush1.bf16.msra.mxu0 0
    %2690 = vmatprep.subr.bf16.mxu0 0
    %2691 = vmatpush1.bf16.msra.mxu0 0
    %2692 = vmatprep.subr.bf16.mxu0 0
    %2693 = vmatpush1.bf16.msra.mxu0 0
    %2694 = vmatprep.subr.bf16.mxu0 0
    %2695 = vmatpush1.bf16.msra.mxu0 0
    %2696 = vmatprep.subr.bf16.mxu0 0
    %2697 = vmatpush1.bf16.msra.mxu0 0
    %2698 = vmatprep.mubr.bf16.mxu0 0
    %2699 = vmatmul.mubr.bf16.gmra.mrb[0].mxu0 %v2579
    %v2700 = vpop.f32.mrb[0].mxu0
    %v2701 = vadd.f32 %v2616, %v2700
    %v2702 = vpop.f32.mrb[0].mxu0
    %v2703 = vpop.f32.mrb[0].mxu0
    %v2704 = vadd.f32 %v2616, %v2703
    %v2705 = vpop.f32.mrb[0].mxu0
    %2706 = vmatprep.mubr.bf16.mxu0 0
    %2707 = vmatmul.mubr.bf16.gmra.mrb[0].mxu0 %v2580
    %v2708 = vpop.f32.mrb[0].mxu0
    %v2709 = vadd.f32 %v2616, %v2708
    %v2710 = vpop.f32.mrb[0].mxu0
    %v2711 = vpop.f32.mrb[0].mxu0
    %v2712 = vadd.f32 %v2616, %v2711
    %v2713 = vpop.f32.mrb[0].mxu0
    %2714 = vmatprep.mubr.bf16.mxu0 0
    %2715 = vmatmul.mubr.bf16.gmra.mrb[0].mxu0 %v2581
    %v2716 = vpop.f32.mrb[0].mxu0
    %v2717 = vadd.f32 %v2616, %v2716
    %v2718 = vpop.f32.mrb[0].mxu0
    %v2719 = vpop.f32.mrb[0].mxu0
    %v2720 = vadd.f32 %v2616, %v2719
    %v2721 = vpop.f32.mrb[0].mxu0
    %2722 = vmatprep.mubr.bf16.mxu0 0
    %2723 = vmatmul.mubr.bf16.gmra.mrb[0].mxu0 %v2582
    %v2724 = vpop.f32.mrb[0].mxu0
    %v2725 = vadd.f32 %v2616, %v2724
    %v2726 = vpop.f32.mrb[0].mxu0
    %v2727 = vpop.f32.mrb[0].mxu0
    %v2728 = vadd.f32 %v2616, %v2727
    %v2729 = vpop.f32.mrb[0].mxu0
    %2730 = vmatprep.mubr.bf16.mxu0 0
    %2731 = vmatmul.mubr.bf16.gmra.mrb[0].mxu0 %v2583
    %v2732 = vpop.f32.mrb[0].mxu0
    %v2733 = vadd.f32 %v2616, %v2732
    %v2734 = vpop.f32.mrb[0].mxu0
    %v2735 = vpop.f32.mrb[0].mxu0
    %v2736 = vadd.f32 %v2616, %v2735
    %v2737 = vpop.f32.mrb[0].mxu0
    %2738 = vmatprep.mubr.bf16.mxu0 0
    %2739 = vmatmul.mubr.bf16.gmra.mrb[0].mxu0 %v2584
    %v2740 = vpop.f32.mrb[0].mxu0
    %v2741 = vadd.f32 %v2616, %v2740
    %v2742 = vpop.f32.mrb[0].mxu0
    %v2743 = vpop.f32.mrb[0].mxu0
    %v2744 = vadd.f32 %v2616, %v2743
    %v2745 = vpop.f32.mrb[0].mxu0
    %2746 = vmatprep.mubr.bf16.mxu0 0
    %2747 = vmatmul.mubr.bf16.gmra.mrb[0].mxu0 %v2585
    %v2748 = vpop.f32.mrb[0].mxu0
    %v2749 = vadd.f32 %v2616, %v2748
    %v2750 = vpop.f32.mrb[0].mxu0
    %v2751 = vpop.f32.mrb[0].mxu0
    %v2752 = vadd.f32 %v2616, %v2751
    %v2753 = vpop.f32.mrb[0].mxu0
    %2754 = vmatprep.mubr.bf16.mxu0 0
    %2755 = vmatmul.mubr.bf16.gmra.mrb[0].mxu0 %v2586
    %v2756 = vpop.f32.mrb[0].mxu0
    %v2757 = vadd.f32 %v2616, %v2756
    %v2758 = vpop.f32.mrb[0].mxu0
    %v2759 = vpop.f32.mrb[0].mxu0
    %v2760 = vadd.f32 %v2616, %v2759
    %v2761 = vpop.f32.mrb[0].mxu0
    %2762 = vmatprep.mubr.bf16.mxu0 0
    %2763 = vmatmul.mubr.bf16.gmra.mrb[0].mxu0 %v2587
    %v2764 = vpop.f32.mrb[0].mxu0
    %v2765 = vadd.f32 %v2616, %v2764
    %v2766 = vpop.f32.mrb[0].mxu0
    %v2767 = vpop.f32.mrb[0].mxu0
    %v2768 = vadd.f32 %v2616, %v2767
    %v2769 = vpop.f32.mrb[0].mxu0
    %2770 = vmatprep.mubr.bf16.mxu0 0
    %2771 = vmatmul.mubr.bf16.gmra.mrb[0].mxu0 %v2588
    %v2772 = vpop.f32.mrb[0].mxu0
    %v2773 = vadd.f32 %v2616, %v2772
    %v2774 = vpop.f32.mrb[0].mxu0
    %v2775 = vpop.f32.mrb[0].mxu0
    %v2776 = vadd.f32 %v2616, %v2775
    %v2777 = vpop.f32.mrb[0].mxu0
    %2778 = vmatprep.mubr.bf16.mxu0 0
    %2779 = vmatmul.mubr.bf16.gmra.mrb[0].mxu0 %v2589
    %v2780 = vpop.f32.mrb[0].mxu0
    %v2781 = vadd.f32 %v2616, %v2780
    %v2782 = vpop.f32.mrb[0].mxu0
    %v2783 = vpop.f32.mrb[0].mxu0
    %v2784 = vadd.f32 %v2616, %v2783
    %v2785 = vpop.f32.mrb[0].mxu0
    %2786 = vmatprep.mubr.bf16.mxu0 0
    %2787 = vmatmul.mubr.bf16.gmra.mrb[0].mxu0 %v2590
    %v2788 = vpop.f32.mrb[0].mxu0
    %v2789 = vadd.f32 %v2616, %v2788
    %v2790 = vpop.f32.mrb[0].mxu0
    %v2791 = vpop.f32.mrb[0].mxu0
    %v2792 = vadd.f32 %v2616, %v2791
    %v2793 = vpop.f32.mrb[0].mxu0
    %2794 = vmatprep.mubr.bf16.mxu0 0
    %2795 = vmatmul.mubr.bf16.gmra.mrb[0].mxu0 %v2591
    %v2796 = vpop.f32.mrb[0].mxu0
    %v2797 = vadd.f32 %v2616, %v2796
    %v2798 = vpop.f32.mrb[0].mxu0
    %v2799 = vpop.f32.mrb[0].mxu0
    %v2800 = vadd.f32 %v2616, %v2799
    %v2801 = vpop.f32.mrb[0].mxu0
    %2802 = vmatprep.mubr.bf16.mxu0 0
    %2803 = vmatmul.mubr.bf16.gmra.mrb[0].mxu0 %v2592
    %v2804 = vpop.f32.mrb[0].mxu0
    %v2805 = vadd.f32 %v2616, %v2804
    %v2806 = vpop.f32.mrb[0].mxu0
    %v2807 = vpop.f32.mrb[0].mxu0
    %v2808 = vadd.f32 %v2616, %v2807
    %v2809 = vpop.f32.mrb[0].mxu0
    %2810 = vmatprep.mubr.bf16.mxu0 0
    %2811 = vmatmul.mubr.bf16.gmra.mrb[0].mxu0 %v2593
    %v2812 = vpop.f32.mrb[0].mxu0
    %v2813 = vadd.f32 %v2616, %v2812
    %v2814 = vpop.f32.mrb[0].mxu0
    %v2815 = vpop.f32.mrb[0].mxu0
    %v2816 = vadd.f32 %v2616, %v2815
    %v2817 = vpop.f32.mrb[0].mxu0
    %2818 = vmatprep.mubr.bf16.mxu0 0
    %2819 = vmatmul.mubr.bf16.gmra.mrb[0].mxu0 %v2594
    %v2820 = vpop.f32.mrb[0].mxu0
    %v2821 = vadd.f32 %v2616, %v2820
    %v2822 = vpop.f32.mrb[0].mxu0
    %v2823 = vpop.f32.mrb[0].mxu0
    %v2824 = vadd.f32 %v2616, %v2823
    %v2825 = vpop.f32.mrb[0].mxu0
    %2826 = vdwg.mxu0
    %v2827 = vmax.f32 %v2701, 0.0
    %v2828 = vmax.f32 %v2704, 0.0
    %v2829 = vmax.f32 %v2709, 0.0
    %v2830 = vmax.f32 %v2712, 0.0
    %v2831 = vmax.f32 %v2717, 0.0
    %v2832 = vmax.f32 %v2720, 0.0
    %v2833 = vmax.f32 %v2725, 0.0
    %v2834 = vmax.f32 %v2728, 0.0
    %v2835 = vmax.f32 %v2733, 0.0
    %v2836 = vmax.f32 %v2736, 0.0
    %v2837 = vmax.f32 %v2741, 0.0
    %v2838 = vmax.f32 %v2744, 0.0
    %v2839 = vmax.f32 %v2749, 0.0
    %v2840 = vmax.f32 %v2752, 0.0
    %v2841 = vmax.f32 %v2757, 0.0
    %v2842 = vmax.f32 %v2760, 0.0
    %v2843 = vmax.f32 %v2765, 0.0
    %v2844 = vmax.f32 %v2768, 0.0
    %v2845 = vmax.f32 %v2773, 0.0
    %v2846 = vmax.f32 %v2776, 0.0
    %v2847 = vmax.f32 %v2781, 0.0
    %v2848 = vmax.f32 %v2784, 0.0
    %v2849 = vmax.f32 %v2789, 0.0
    %v2850 = vmax.f32 %v2792, 0.0
    %v2851 = vmax.f32 %v2797, 0.0
    %v2852 = vmax.f32 %v2800, 0.0
    %v2853 = vmax.f32 %v2805, 0.0
    %v2854 = vmax.f32 %v2808, 0.0
    %v2855 = vmax.f32 %v2813, 0.0
    %v2856 = vmax.f32 %v2816, 0.0
    %v2857 = vmax.f32 %v2821, 0.0
    %v2858 = vmax.f32 %v2824, 0.0
    %v2859 = vpack.c.bf16 %v2828, %v2827
    %v2860 = vpack.c.bf16 %v2830, %v2829
    %v2861 = vpack.c.bf16 %v2832, %v2831
    %v2862 = vpack.c.bf16 %v2834, %v2833
    %v2863 = vpack.c.bf16 %v2836, %v2835
    %v2864 = vpack.c.bf16 %v2838, %v2837
    %v2865 = vpack.c.bf16 %v2840, %v2839
    %v2866 = vpack.c.bf16 %v2842, %v2841
    %v2867 = vpack.c.bf16 %v2844, %v2843
    %v2868 = vpack.c.bf16 %v2846, %v2845
    %v2869 = vpack.c.bf16 %v2848, %v2847
    %v2870 = vpack.c.bf16 %v2850, %v2849
    %v2871 = vpack.c.bf16 %v2852, %v2851
    %v2872 = vpack.c.bf16 %v2854, %v2853
    %v2873 = vpack.c.bf16 %v2856, %v2855
    %v2874 = vpack.c.bf16 %v2858, %v2857
    %v2875 = vld [vmem:[#allocation9] sm:$0xf]
    %v2876 = vld [vmem:[#allocation9 + $0x4] sm:$0xf]
    %v2877 = vld [vmem:[#allocation9 + $0x8] sm:$0xf]
    %v2878 = vld [vmem:[#allocation9 + $0xc] sm:$0xf]
    %v2879 = vld [vmem:[#allocation9 + $0x10] sm:$0xf]
    %v2880 = vld [vmem:[#allocation9 + $0x14] sm:$0xf]
    %v2881 = vld [vmem:[#allocation9 + $0x18] sm:$0xf]
    %v2882 = vld [vmem:[#allocation9 + $0x1c] sm:$0xf]
    %v2883 = vld [vmem:[#allocation9 + $0x20] sm:$0xf]
    %v2884 = vld [vmem:[#allocation9 + $0x24] sm:$0xf]
    %v2885 = vld [vmem:[#allocation9 + $0x28] sm:$0xf]
    %v2886 = vld [vmem:[#allocation9 + $0x2c] sm:$0xf]
    %v2887 = vld [vmem:[#allocation9 + $0x30] sm:$0xf]
    %v2888 = vld [vmem:[#allocation9 + $0x34] sm:$0xf]
    %v2889 = vld [vmem:[#allocation9 + $0x38] sm:$0xf]
    %v2890 = vld [vmem:[#allocation9 + $0x3c] sm:$0xf]
    %v2891 = vld [vmem:[%s11] sm:$0x1]
    %v2893 = vlaneseq
    %v2894 = vshrl.u32 %v2893, 7
    %v2895 = vsub.s32 0, %v2894
    %v2896 = vrot.slane %v2891, %v2895
    %v2914 = vunpack.c.l.b16 %v2875
    %v2915 = vunpack.c.l.b16 %v2876
    %v2916 = vunpack.c.l.b16 %v2877
    %v2917 = vunpack.c.l.b16 %v2878
    %v2918 = vunpack.c.l.b16 %v2879
    %v2919 = vunpack.c.l.b16 %v2880
    %v2920 = vunpack.c.l.b16 %v2881
    %v2921 = vunpack.c.l.b16 %v2882
    %v2922 = vunpack.c.l.b16 %v2883
    %v2923 = vunpack.c.l.b16 %v2884
    %v2924 = vunpack.c.l.b16 %v2885
    %v2925 = vunpack.c.l.b16 %v2886
    %v2926 = vunpack.c.l.b16 %v2887
    %v2927 = vunpack.c.l.b16 %v2888
    %v2928 = vunpack.c.l.b16 %v2889
    %v2929 = vunpack.c.l.b16 %v2890
    %v2930 = vpack.c.b16 %v2915, %v2914
    %v2931 = vpack.c.b16 %v2917, %v2916
    %v2932 = vpack.c.b16 %v2919, %v2918
    %v2933 = vpack.c.b16 %v2921, %v2920
    %v2934 = vpack.c.b16 %v2923, %v2922
    %v2935 = vpack.c.b16 %v2925, %v2924
    %v2936 = vpack.c.b16 %v2927, %v2926
    %v2937 = vpack.c.b16 %v2929, %v2928
    %2946 = vmatprep.subr.bf16.mxu0 0
    %2947 = vmatpush1.bf16.msra.mxu0 %v2930
    %2948 = vmatprep.subr.bf16.mxu0 0
    %2949 = vmatpush1.bf16.msra.mxu0 %v2931
    %2950 = vmatprep.subr.bf16.mxu0 0
    %2951 = vmatpush1.bf16.msra.mxu0 %v2932
    %2952 = vmatprep.subr.bf16.mxu0 0
    %2953 = vmatpush1.bf16.msra.mxu0 %v2933
    %2954 = vmatprep.subr.bf16.mxu0 0
    %2955 = vmatpush1.bf16.msra.mxu0 %v2934
    %2956 = vmatprep.subr.bf16.mxu0 0
    %2957 = vmatpush1.bf16.msra.mxu0 %v2935
    %2958 = vmatprep.subr.bf16.mxu0 0
    %2959 = vmatpush1.bf16.msra.mxu0 %v2936
    %2960 = vmatprep.subr.bf16.mxu0 0
    %2961 = vmatpush1.bf16.msra.mxu0 %v2937
    %2962 = vmatprep.subr.bf16.mxu0 0
    %2963 = vmatpush1.bf16.msra.mxu0 0
    %2964 = vmatprep.subr.bf16.mxu0 0
    %2965 = vmatpush1.bf16.msra.mxu0 0
    %2966 = vmatprep.subr.bf16.mxu0 0
    %2967 = vmatpush1.bf16.msra.mxu0 0
    %2968 = vmatprep.subr.bf16.mxu0 0
    %2969 = vmatpush1.bf16.msra.mxu0 0
    %2970 = vmatprep.subr.bf16.mxu0 0
    %2971 = vmatpush1.bf16.msra.mxu0 0
    %2972 = vmatprep.subr.bf16.mxu0 0
    %2973 = vmatpush1.bf16.msra.mxu0 0
    %2974 = vmatprep.subr.bf16.mxu0 0
    %2975 = vmatpush1.bf16.msra.mxu0 0
    %2976 = vmatprep.subr.bf16.mxu0 0
    %2977 = vmatpush1.bf16.msra.mxu0 0
    %2978 = vmatprep.mubr.bf16.mxu0 0
    %2979 = vmatmul.mubr.bf16.gmra.mrb[0].mxu0 %v2859
    %v2980 = vpop.f32.mrb[0].mxu0
    %v2981 = vadd.f32 %v2896, %v2980
    %v2982 = vpop.f32.mrb[0].mxu0
    %v2983 = vpop.f32.mrb[0].mxu0
    %v2984 = vadd.f32 %v2896, %v2983
    %v2985 = vpop.f32.mrb[0].mxu0
    %2986 = vmatprep.mubr.bf16.mxu0 0
    %2987 = vmatmul.mubr.bf16.gmra.mrb[0].mxu0 %v2860
    %v2988 = vpop.f32.mrb[0].mxu0
    %v2989 = vadd.f32 %v2896, %v2988
    %v2990 = vpop.f32.mrb[0].mxu0
    %v2991 = vpop.f32.mrb[0].mxu0
    %v2992 = vadd.f32 %v2896, %v2991
    %v2993 = vpop.f32.mrb[0].mxu0
    %2994 = vmatprep.mubr.bf16.mxu0 0
    %2995 = vmatmul.mubr.bf16.gmra.mrb[0].mxu0 %v2861
    %v2996 = vpop.f32.mrb[0].mxu0
    %v2997 = vadd.f32 %v2896, %v2996
    %v2998 = vpop.f32.mrb[0].mxu0
    %v2999 = vpop.f32.mrb[0].mxu0
    %v3000 = vadd.f32 %v2896, %v2999
    %v3001 = vpop.f32.mrb[0].mxu0
    %3002 = vmatprep.mubr.bf16.mxu0 0
    %3003 = vmatmul.mubr.bf16.gmra.mrb[0].mxu0 %v2862
    %v3004 = vpop.f32.mrb[0].mxu0
    %v3005 = vadd.f32 %v2896, %v3004
    %v3006 = vpop.f32.mrb[0].mxu0
    %v3007 = vpop.f32.mrb[0].mxu0
    %v3008 = vadd.f32 %v2896, %v3007
    %v3009 = vpop.f32.mrb[0].mxu0
    %3010 = vmatprep.mubr.bf16.mxu0 0
    %3011 = vmatmul.mubr.bf16.gmra.mrb[0].mxu0 %v2863
    %v3012 = vpop.f32.mrb[0].mxu0
    %v3013 = vadd.f32 %v2896, %v3012
    %v3014 = vpop.f32.mrb[0].mxu0
    %v3015 = vpop.f32.mrb[0].mxu0
    %v3016 = vadd.f32 %v2896, %v3015
    %v3017 = vpop.f32.mrb[0].mxu0
    %3018 = vmatprep.mubr.bf16.mxu0 0
    %3019 = vmatmul.mubr.bf16.gmra.mrb[0].mxu0 %v2864
    %v3020 = vpop.f32.mrb[0].mxu0
    %v3021 = vadd.f32 %v2896, %v3020
    %v3022 = vpop.f32.mrb[0].mxu0
    %v3023 = vpop.f32.mrb[0].mxu0
    %v3024 = vadd.f32 %v2896, %v3023
    %v3025 = vpop.f32.mrb[0].mxu0
    %3026 = vmatprep.mubr.bf16.mxu0 0
    %3027 = vmatmul.mubr.bf16.gmra.mrb[0].mxu0 %v2865
    %v3028 = vpop.f32.mrb[0].mxu0
    %v3029 = vadd.f32 %v2896, %v3028
    %v3030 = vpop.f32.mrb[0].mxu0
    %v3031 = vpop.f32.mrb[0].mxu0
    %v3032 = vadd.f32 %v2896, %v3031
    %v3033 = vpop.f32.mrb[0].mxu0
    %3034 = vmatprep.mubr.bf16.mxu0 0
    %3035 = vmatmul.mubr.bf16.gmra.mrb[0].mxu0 %v2866
    %v3036 = vpop.f32.mrb[0].mxu0
    %v3037 = vadd.f32 %v2896, %v3036
    %v3038 = vpop.f32.mrb[0].mxu0
    %v3039 = vpop.f32.mrb[0].mxu0
    %v3040 = vadd.f32 %v2896, %v3039
    %v3041 = vpop.f32.mrb[0].mxu0
    %3042 = vmatprep.mubr.bf16.mxu0 0
    %3043 = vmatmul.mubr.bf16.gmra.mrb[0].mxu0 %v2867
    %v3044 = vpop.f32.mrb[0].mxu0
    %v3045 = vadd.f32 %v2896, %v3044
    %v3046 = vpop.f32.mrb[0].mxu0
    %v3047 = vpop.f32.mrb[0].mxu0
    %v3048 = vadd.f32 %v2896, %v3047
    %v3049 = vpop.f32.mrb[0].mxu0
    %3050 = vmatprep.mubr.bf16.mxu0 0
    %3051 = vmatmul.mubr.bf16.gmra.mrb[0].mxu0 %v2868
    %v3052 = vpop.f32.mrb[0].mxu0
    %v3053 = vadd.f32 %v2896, %v3052
    %v3054 = vpop.f32.mrb[0].mxu0
    %v3055 = vpop.f32.mrb[0].mxu0
    %v3056 = vadd.f32 %v2896, %v3055
    %v3057 = vpop.f32.mrb[0].mxu0
    %3058 = vmatprep.mubr.bf16.mxu0 0
    %3059 = vmatmul.mubr.bf16.gmra.mrb[0].mxu0 %v2869
    %v3060 = vpop.f32.mrb[0].mxu0
    %v3061 = vadd.f32 %v2896, %v3060
    %v3062 = vpop.f32.mrb[0].mxu0
    %v3063 = vpop.f32.mrb[0].mxu0
    %v3064 = vadd.f32 %v2896, %v3063
    %v3065 = vpop.f32.mrb[0].mxu0
    %3066 = vmatprep.mubr.bf16.mxu0 0
    %3067 = vmatmul.mubr.bf16.gmra.mrb[0].mxu0 %v2870
    %v3068 = vpop.f32.mrb[0].mxu0
    %v3069 = vadd.f32 %v2896, %v3068
    %v3070 = vpop.f32.mrb[0].mxu0
    %v3071 = vpop.f32.mrb[0].mxu0
    %v3072 = vadd.f32 %v2896, %v3071
    %v3073 = vpop.f32.mrb[0].mxu0
    %3074 = vmatprep.mubr.bf16.mxu0 0
    %3075 = vmatmul.mubr.bf16.gmra.mrb[0].mxu0 %v2871
    %v3076 = vpop.f32.mrb[0].mxu0
    %v3077 = vadd.f32 %v2896, %v3076
    %v3078 = vpop.f32.mrb[0].mxu0
    %v3079 = vpop.f32.mrb[0].mxu0
    %v3080 = vadd.f32 %v2896, %v3079
    %v3081 = vpop.f32.mrb[0].mxu0
    %3082 = vmatprep.mubr.bf16.mxu0 0
    %3083 = vmatmul.mubr.bf16.gmra.mrb[0].mxu0 %v2872
    %v3084 = vpop.f32.mrb[0].mxu0
    %v3085 = vadd.f32 %v2896, %v3084
    %v3086 = vpop.f32.mrb[0].mxu0
    %v3087 = vpop.f32.mrb[0].mxu0
    %v3088 = vadd.f32 %v2896, %v3087
    %v3089 = vpop.f32.mrb[0].mxu0
    %3090 = vmatprep.mubr.bf16.mxu0 0
    %3091 = vmatmul.mubr.bf16.gmra.mrb[0].mxu0 %v2873
    %v3092 = vpop.f32.mrb[0].mxu0
    %v3093 = vadd.f32 %v2896, %v3092
    %v3094 = vpop.f32.mrb[0].mxu0
    %v3095 = vpop.f32.mrb[0].mxu0
    %v3096 = vadd.f32 %v2896, %v3095
    %v3097 = vpop.f32.mrb[0].mxu0
    %3098 = vmatprep.mubr.bf16.mxu0 0
    %3099 = vmatmul.mubr.bf16.gmra.mrb[0].mxu0 %v2874
    %v3100 = vpop.f32.mrb[0].mxu0
    %v3101 = vadd.f32 %v2896, %v3100
    %v3102 = vpop.f32.mrb[0].mxu0
    %v3103 = vpop.f32.mrb[0].mxu0
    %v3104 = vadd.f32 %v2896, %v3103
    %v3105 = vpop.f32.mrb[0].mxu0
    %3106 = vdwg.mxu0
    %v3107 = vadd.f32 %v2547, %v2981
    %v3108 = vadd.f32 %v2548, %v2984
    %v3109 = vadd.f32 %v2549, %v2989
    %v3110 = vadd.f32 %v2550, %v2992
    %v3111 = vadd.f32 %v2551, %v2997
    %v3112 = vadd.f32 %v2552, %v3000
    %v3113 = vadd.f32 %v2553, %v3005
    %v3114 = vadd.f32 %v2554, %v3008
    %v3115 = vadd.f32 %v2555, %v3013
    %v3116 = vadd.f32 %v2556, %v3016
    %v3117 = vadd.f32 %v2557, %v3021
    %v3118 = vadd.f32 %v2558, %v3024
    %v3119 = vadd.f32 %v2559, %v3029
    %v3120 = vadd.f32 %v2560, %v3032
    %v3121 = vadd.f32 %v2561, %v3037
    %v3122 = vadd.f32 %v2562, %v3040
    %v3123 = vadd.f32 %v2563, %v3045
    %v3124 = vadd.f32 %v2564, %v3048
    %v3125 = vadd.f32 %v2565, %v3053
    %v3126 = vadd.f32 %v2566, %v3056
    %v3127 = vadd.f32 %v2567, %v3061
    %v3128 = vadd.f32 %v2568, %v3064
    %v3129 = vadd.f32 %v2569, %v3069
    %v3130 = vadd.f32 %v2570, %v3072
    %v3131 = vadd.f32 %v2571, %v3077
    %v3132 = vadd.f32 %v2572, %v3080
    %v3133 = vadd.f32 %v2573, %v3085
    %v3134 = vadd.f32 %v2574, %v3088
    %v3135 = vadd.f32 %v2575, %v3093
    %v3136 = vadd.f32 %v2576, %v3096
    %v3137 = vadd.f32 %v2577, %v3101
    %v3138 = vadd.f32 %v2578, %v3104
    %v3139 = vld [vmem:[%s14] sm:$0x1]
    %v3140 = vld [vmem:[%s15] sm:$0x1]
    %3141 = vadd.xlane.f32.xlu0 %v3107
    %v3142 = vpop.xlane.xlu0 %3141
    %3143 = vadd.xlane.f32.xlu0 %v3108
    %v3144 = vpop.xlane.xlu0 %3143
    %3145 = vadd.xlane.f32.xlu0 %v3109
    %v3146 = vpop.xlane.xlu0 %3145
    %3147 = vadd.xlane.f32.xlu0 %v3110
    %v3148 = vpop.xlane.xlu0 %3147
    %3149 = vadd.xlane.f32.xlu0 %v3111
    %v3150 = vpop.xlane.xlu0 %3149
    %3151 = vadd.xlane.f32.xlu0 %v3112
    %v3152 = vpop.xlane.xlu0 %3151
    %3153 = vadd.xlane.f32.xlu0 %v3113
    %v3154 = vpop.xlane.xlu0 %3153
    %3155 = vadd.xlane.f32.xlu0 %v3114
    %v3156 = vpop.xlane.xlu0 %3155
    %3157 = vadd.xlane.f32.xlu0 %v3115
    %v3158 = vpop.xlane.xlu0 %3157
    %3159 = vadd.xlane.f32.xlu0 %v3116
    %v3160 = vpop.xlane.xlu0 %3159
    %3161 = vadd.xlane.f32.xlu0 %v3117
    %v3162 = vpop.xlane.xlu0 %3161
    %3163 = vadd.xlane.f32.xlu0 %v3118
    %v3164 = vpop.xlane.xlu0 %3163
    %3165 = vadd.xlane.f32.xlu0 %v3119
    %v3166 = vpop.xlane.xlu0 %3165
    %3167 = vadd.xlane.f32.xlu0 %v3120
    %v3168 = vpop.xlane.xlu0 %3167
    %3169 = vadd.xlane.f32.xlu0 %v3121
    %v3170 = vpop.xlane.xlu0 %3169
    %3171 = vadd.xlane.f32.xlu0 %v3122
    %v3172 = vpop.xlane.xlu0 %3171
    %3173 = vadd.xlane.f32.xlu0 %v3123
    %v3174 = vpop.xlane.xlu0 %3173
    %3175 = vadd.xlane.f32.xlu0 %v3124
    %v3176 = vpop.xlane.xlu0 %3175
    %3177 = vadd.xlane.f32.xlu0 %v3125
    %v3178 = vpop.xlane.xlu0 %3177
    %3179 = vadd.xlane.f32.xlu0 %v3126
    %v3180 = vpop.xlane.xlu0 %3179
    %3181 = vadd.xlane.f32.xlu0 %v3127
    %v3182 = vpop.xlane.xlu0 %3181
    %3183 = vadd.xlane.f32.xlu0 %v3128
    %v3184 = vpop.xlane.xlu0 %3183
    %3185 = vadd.xlane.f32.xlu0 %v3129
    %v3186 = vpop.xlane.xlu0 %3185
    %3187 = vadd.xlane.f32.xlu0 %v3130
    %v3188 = vpop.xlane.xlu0 %3187
    %3189 = vadd.xlane.f32.xlu0 %v3131
    %v3190 = vpop.xlane.xlu0 %3189
    %3191 = vadd.xlane.f32.xlu0 %v3132
    %v3192 = vpop.xlane.xlu0 %3191
    %3193 = vadd.xlane.f32.xlu0 %v3133
    %v3194 = vpop.xlane.xlu0 %3193
    %3195 = vadd.xlane.f32.xlu0 %v3134
    %v3196 = vpop.xlane.xlu0 %3195
    %3197 = vadd.xlane.f32.xlu0 %v3135
    %v3198 = vpop.xlane.xlu0 %3197
    %3199 = vadd.xlane.f32.xlu0 %v3136
    %v3200 = vpop.xlane.xlu0 %3199
    %3201 = vadd.xlane.f32.xlu0 %v3137
    %v3202 = vpop.xlane.xlu0 %3201
    %3203 = vadd.xlane.f32.xlu0 %v3138
    %v3204 = vpop.xlane.xlu0 %3203
    %v3205 = vmul.f32 %v3142, %v2214
    %v3206 = vmul.f32 %v3144, %v2214
    %v3207 = vmul.f32 %v3146, %v2214
    %v3208 = vmul.f32 %v3148, %v2214
    %v3209 = vmul.f32 %v3150, %v2214
    %v3210 = vmul.f32 %v3152, %v2214
    %v3211 = vmul.f32 %v3154, %v2214
    %v3212 = vmul.f32 %v3156, %v2214
    %v3213 = vmul.f32 %v3158, %v2214
    %v3214 = vmul.f32 %v3160, %v2214
    %v3215 = vmul.f32 %v3162, %v2214
    %v3216 = vmul.f32 %v3164, %v2214
    %v3217 = vmul.f32 %v3166, %v2214
    %v3218 = vmul.f32 %v3168, %v2214
    %v3219 = vmul.f32 %v3170, %v2214
    %v3220 = vmul.f32 %v3172, %v2214
    %v3221 = vmul.f32 %v3174, %v2214
    %v3222 = vmul.f32 %v3176, %v2214
    %v3223 = vmul.f32 %v3178, %v2214
    %v3224 = vmul.f32 %v3180, %v2214
    %v3225 = vmul.f32 %v3182, %v2214
    %v3226 = vmul.f32 %v3184, %v2214
    %v3227 = vmul.f32 %v3186, %v2214
    %v3228 = vmul.f32 %v3188, %v2214
    %v3229 = vmul.f32 %v3190, %v2214
    %v3230 = vmul.f32 %v3192, %v2214
    %v3231 = vmul.f32 %v3194, %v2214
    %v3232 = vmul.f32 %v3196, %v2214
    %v3233 = vmul.f32 %v3198, %v2214
    %v3234 = vmul.f32 %v3200, %v2214
    %v3235 = vmul.f32 %v3202, %v2214
    %v3236 = vmul.f32 %v3204, %v2214
    %v3237 = vsub.f32 %v3107, %v3205
    %v3238 = vsub.f32 %v3108, %v3206
    %v3239 = vsub.f32 %v3109, %v3207
    %v3240 = vsub.f32 %v3110, %v3208
    %v3241 = vsub.f32 %v3111, %v3209
    %v3242 = vsub.f32 %v3112, %v3210
    %v3243 = vsub.f32 %v3113, %v3211
    %v3244 = vsub.f32 %v3114, %v3212
    %v3245 = vsub.f32 %v3115, %v3213
    %v3246 = vsub.f32 %v3116, %v3214
    %v3247 = vsub.f32 %v3117, %v3215
    %v3248 = vsub.f32 %v3118, %v3216
    %v3249 = vsub.f32 %v3119, %v3217
    %v3250 = vsub.f32 %v3120, %v3218
    %v3251 = vsub.f32 %v3121, %v3219
    %v3252 = vsub.f32 %v3122, %v3220
    %v3253 = vsub.f32 %v3123, %v3221
    %v3254 = vsub.f32 %v3124, %v3222
    %v3255 = vsub.f32 %v3125, %v3223
    %v3256 = vsub.f32 %v3126, %v3224
    %v3257 = vsub.f32 %v3127, %v3225
    %v3258 = vsub.f32 %v3128, %v3226
    %v3259 = vsub.f32 %v3129, %v3227
    %v3260 = vsub.f32 %v3130, %v3228
    %v3261 = vsub.f32 %v3131, %v3229
    %v3262 = vsub.f32 %v3132, %v3230
    %v3263 = vsub.f32 %v3133, %v3231
    %v3264 = vsub.f32 %v3134, %v3232
    %v3265 = vsub.f32 %v3135, %v3233
    %v3266 = vsub.f32 %v3136, %v3234
    %v3267 = vsub.f32 %v3137, %v3235
    %v3268 = vsub.f32 %v3138, %v3236
    %v3269 = vmul.f32 %v3237, %v3237
    %v3270 = vmul.f32 %v3238, %v3238
    %v3271 = vmul.f32 %v3239, %v3239
    %v3272 = vmul.f32 %v3240, %v3240
    %v3273 = vmul.f32 %v3241, %v3241
    %v3274 = vmul.f32 %v3242, %v3242
    %v3275 = vmul.f32 %v3243, %v3243
    %v3276 = vmul.f32 %v3244, %v3244
    %v3277 = vmul.f32 %v3245, %v3245
    %v3278 = vmul.f32 %v3246, %v3246
    %v3279 = vmul.f32 %v3247, %v3247
    %v3280 = vmul.f32 %v3248, %v3248
    %v3281 = vmul.f32 %v3249, %v3249
    %v3282 = vmul.f32 %v3250, %v3250
    %v3283 = vmul.f32 %v3251, %v3251
    %v3284 = vmul.f32 %v3252, %v3252
    %v3285 = vmul.f32 %v3253, %v3253
    %v3286 = vmul.f32 %v3254, %v3254
    %v3287 = vmul.f32 %v3255, %v3255
    %v3288 = vmul.f32 %v3256, %v3256
    %v3289 = vmul.f32 %v3257, %v3257
    %v3290 = vmul.f32 %v3258, %v3258
    %v3291 = vmul.f32 %v3259, %v3259
    %v3292 = vmul.f32 %v3260, %v3260
    %v3293 = vmul.f32 %v3261, %v3261
    %v3294 = vmul.f32 %v3262, %v3262
    %v3295 = vmul.f32 %v3263, %v3263
    %v3296 = vmul.f32 %v3264, %v3264
    %v3297 = vmul.f32 %v3265, %v3265
    %v3298 = vmul.f32 %v3266, %v3266
    %v3299 = vmul.f32 %v3267, %v3267
    %v3300 = vmul.f32 %v3268, %v3268
    %3301 = vadd.xlane.f32.xlu0 %v3269
    %v3302 = vpop.xlane.xlu0 %3301
    %3303 = vadd.xlane.f32.xlu0 %v3270
    %v3304 = vpop.xlane.xlu0 %3303
    %3305 = vadd.xlane.f32.xlu0 %v3271
    %v3306 = vpop.xlane.xlu0 %3305
    %3307 = vadd.xlane.f32.xlu0 %v3272
    %v3308 = vpop.xlane.xlu0 %3307
    %3309 = vadd.xlane.f32.xlu0 %v3273
    %v3310 = vpop.xlane.xlu0 %3309
    %3311 = vadd.xlane.f32.xlu0 %v3274
    %v3312 = vpop.xlane.xlu0 %3311
    %3313 = vadd.xlane.f32.xlu0 %v3275
    %v3314 = vpop.xlane.xlu0 %3313
    %3315 = vadd.xlane.f32.xlu0 %v3276
    %v3316 = vpop.xlane.xlu0 %3315
    %3317 = vadd.xlane.f32.xlu0 %v3277
    %v3318 = vpop.xlane.xlu0 %3317
    %3319 = vadd.xlane.f32.xlu0 %v3278
    %v3320 = vpop.xlane.xlu0 %3319
    %3321 = vadd.xlane.f32.xlu0 %v3279
    %v3322 = vpop.xlane.xlu0 %3321
    %3323 = vadd.xlane.f32.xlu0 %v3280
    %v3324 = vpop.xlane.xlu0 %3323
    %3325 = vadd.xlane.f32.xlu0 %v3281
    %v3326 = vpop.xlane.xlu0 %3325
    %3327 = vadd.xlane.f32.xlu0 %v3282
    %v3328 = vpop.xlane.xlu0 %3327
    %3329 = vadd.xlane.f32.xlu0 %v3283
    %v3330 = vpop.xlane.xlu0 %3329
    %3331 = vadd.xlane.f32.xlu0 %v3284
    %v3332 = vpop.xlane.xlu0 %3331
    %3333 = vadd.xlane.f32.xlu0 %v3285
    %v3334 = vpop.xlane.xlu0 %3333
    %3335 = vadd.xlane.f32.xlu0 %v3286
    %v3336 = vpop.xlane.xlu0 %3335
    %3337 = vadd.xlane.f32.xlu0 %v3287
    %v3338 = vpop.xlane.xlu0 %3337
    %3339 = vadd.xlane.f32.xlu0 %v3288
    %v3340 = vpop.xlane.xlu0 %3339
    %3341 = vadd.xlane.f32.xlu0 %v3289
    %v3342 = vpop.xlane.xlu0 %3341
    %3343 = vadd.xlane.f32.xlu0 %v3290
    %v3344 = vpop.xlane.xlu0 %3343
    %3345 = vadd.xlane.f32.xlu0 %v3291
    %v3346 = vpop.xlane.xlu0 %3345
    %3347 = vadd.xlane.f32.xlu0 %v3292
    %v3348 = vpop.xlane.xlu0 %3347
    %3349 = vadd.xlane.f32.xlu0 %v3293
    %v3350 = vpop.xlane.xlu0 %3349
    %3351 = vadd.xlane.f32.xlu0 %v3294
    %v3352 = vpop.xlane.xlu0 %3351
    %3353 = vadd.xlane.f32.xlu0 %v3295
    %v3354 = vpop.xlane.xlu0 %3353
    %3355 = vadd.xlane.f32.xlu0 %v3296
    %v3356 = vpop.xlane.xlu0 %3355
    %3357 = vadd.xlane.f32.xlu0 %v3297
    %v3358 = vpop.xlane.xlu0 %3357
    %3359 = vadd.xlane.f32.xlu0 %v3298
    %v3360 = vpop.xlane.xlu0 %3359
    %3361 = vadd.xlane.f32.xlu0 %v3299
    %v3362 = vpop.xlane.xlu0 %3361
    %3363 = vadd.xlane.f32.xlu0 %v3300
    %v3364 = vpop.xlane.xlu0 %3363
    %v3365 = vmul.f32 %v3302, %v2214
    %v3366 = vmul.f32 %v3304, %v2214
    %v3367 = vmul.f32 %v3306, %v2214
    %v3368 = vmul.f32 %v3308, %v2214
    %v3369 = vmul.f32 %v3310, %v2214
    %v3370 = vmul.f32 %v3312, %v2214
    %v3371 = vmul.f32 %v3314, %v2214
    %v3372 = vmul.f32 %v3316, %v2214
    %v3373 = vmul.f32 %v3318, %v2214
    %v3374 = vmul.f32 %v3320, %v2214
    %v3375 = vmul.f32 %v3322, %v2214
    %v3376 = vmul.f32 %v3324, %v2214
    %v3377 = vmul.f32 %v3326, %v2214
    %v3378 = vmul.f32 %v3328, %v2214
    %v3379 = vmul.f32 %v3330, %v2214
    %v3380 = vmul.f32 %v3332, %v2214
    %v3381 = vmul.f32 %v3334, %v2214
    %v3382 = vmul.f32 %v3336, %v2214
    %v3383 = vmul.f32 %v3338, %v2214
    %v3384 = vmul.f32 %v3340, %v2214
    %v3385 = vmul.f32 %v3342, %v2214
    %v3386 = vmul.f32 %v3344, %v2214
    %v3387 = vmul.f32 %v3346, %v2214
    %v3388 = vmul.f32 %v3348, %v2214
    %v3389 = vmul.f32 %v3350, %v2214
    %v3390 = vmul.f32 %v3352, %v2214
    %v3391 = vmul.f32 %v3354, %v2214
    %v3392 = vmul.f32 %v3356, %v2214
    %v3393 = vmul.f32 %v3358, %v2214
    %v3394 = vmul.f32 %v3360, %v2214
    %v3395 = vmul.f32 %v3362, %v2214
    %v3396 = vmul.f32 %v3364, %v2214
    %v3397 = vadd.f32 %v3365, 1e-05
    %v3398 = vadd.f32 %v3366, 1e-05
    %v3399 = vadd.f32 %v3367, 1e-05
    %v3400 = vadd.f32 %v3368, 1e-05
    %v3401 = vadd.f32 %v3369, 1e-05
    %v3402 = vadd.f32 %v3370, 1e-05
    %v3403 = vadd.f32 %v3371, 1e-05
    %v3404 = vadd.f32 %v3372, 1e-05
    %v3405 = vadd.f32 %v3373, 1e-05
    %v3406 = vadd.f32 %v3374, 1e-05
    %v3407 = vadd.f32 %v3375, 1e-05
    %v3408 = vadd.f32 %v3376, 1e-05
    %v3409 = vadd.f32 %v3377, 1e-05
    %v3410 = vadd.f32 %v3378, 1e-05
    %v3411 = vadd.f32 %v3379, 1e-05
    %v3412 = vadd.f32 %v3380, 1e-05
    %v3413 = vadd.f32 %v3381, 1e-05
    %v3414 = vadd.f32 %v3382, 1e-05
    %v3415 = vadd.f32 %v3383, 1e-05
    %v3416 = vadd.f32 %v3384, 1e-05
    %v3417 = vadd.f32 %v3385, 1e-05
    %v3418 = vadd.f32 %v3386, 1e-05
    %v3419 = vadd.f32 %v3387, 1e-05
    %v3420 = vadd.f32 %v3388, 1e-05
    %v3421 = vadd.f32 %v3389, 1e-05
    %v3422 = vadd.f32 %v3390, 1e-05
    %v3423 = vadd.f32 %v3391, 1e-05
    %v3424 = vadd.f32 %v3392, 1e-05
    %v3425 = vadd.f32 %v3393, 1e-05
    %v3426 = vadd.f32 %v3394, 1e-05
    %v3427 = vadd.f32 %v3395, 1e-05
    %v3428 = vadd.f32 %v3396, 1e-05
    %v3429 = vrsqrt.pop %v3397
    %v3430 = vrsqrt.pop %v3398
    %v3431 = vrsqrt.pop %v3399
    %v3432 = vrsqrt.pop %v3400
    %v3433 = vrsqrt.pop %v3401
    %v3434 = vrsqrt.pop %v3402
    %v3435 = vrsqrt.pop %v3403
    %v3436 = vrsqrt.pop %v3404
    %v3437 = vrsqrt.pop %v3405
    %v3438 = vrsqrt.pop %v3406
    %v3439 = vrsqrt.pop %v3407
    %v3440 = vrsqrt.pop %v3408
    %v3441 = vrsqrt.pop %v3409
    %v3442 = vrsqrt.pop %v3410
    %v3443 = vrsqrt.pop %v3411
    %v3444 = vrsqrt.pop %v3412
    %v3445 = vrsqrt.pop %v3413
    %v3446 = vrsqrt.pop %v3414
    %v3447 = vrsqrt.pop %v3415
    %v3448 = vrsqrt.pop %v3416
    %v3449 = vrsqrt.pop %v3417
    %v3450 = vrsqrt.pop %v3418
    %v3451 = vrsqrt.pop %v3419
    %v3452 = vrsqrt.pop %v3420
    %v3453 = vrsqrt.pop %v3421
    %v3454 = vrsqrt.pop %v3422
    %v3455 = vrsqrt.pop %v3423
    %v3456 = vrsqrt.pop %v3424
    %v3457 = vrsqrt.pop %v3425
    %v3458 = vrsqrt.pop %v3426
    %v3459 = vrsqrt.pop %v3427
    %v3460 = vrsqrt.pop %v3428
    %v3461 = vmul.f32 %v3237, %v3429
    %v3462 = vmul.f32 %v3238, %v3430
    %v3463 = vmul.f32 %v3239, %v3431
    %v3464 = vmul.f32 %v3240, %v3432
    %v3465 = vmul.f32 %v3241, %v3433
    %v3466 = vmul.f32 %v3242, %v3434
    %v3467 = vmul.f32 %v3243, %v3435
    %v3468 = vmul.f32 %v3244, %v3436
    %v3469 = vmul.f32 %v3245, %v3437
    %v3470 = vmul.f32 %v3246, %v3438
    %v3471 = vmul.f32 %v3247, %v3439
    %v3472 = vmul.f32 %v3248, %v3440
    %v3473 = vmul.f32 %v3249, %v3441
    %v3474 = vmul.f32 %v3250, %v3442
    %v3475 = vmul.f32 %v3251, %v3443
    %v3476 = vmul.f32 %v3252, %v3444
    %v3477 = vmul.f32 %v3253, %v3445
    %v3478 = vmul.f32 %v3254, %v3446
    %v3479 = vmul.f32 %v3255, %v3447
    %v3480 = vmul.f32 %v3256, %v3448
    %v3481 = vmul.f32 %v3257, %v3449
    %v3482 = vmul.f32 %v3258, %v3450
    %v3483 = vmul.f32 %v3259, %v3451
    %v3484 = vmul.f32 %v3260, %v3452
    %v3485 = vmul.f32 %v3261, %v3453
    %v3486 = vmul.f32 %v3262, %v3454
    %v3487 = vmul.f32 %v3263, %v3455
    %v3488 = vmul.f32 %v3264, %v3456
    %v3489 = vmul.f32 %v3265, %v3457
    %v3490 = vmul.f32 %v3266, %v3458
    %v3491 = vmul.f32 %v3267, %v3459
    %v3492 = vmul.f32 %v3268, %v3460
    %v3494 = vlaneseq
    %v3495 = vshrl.u32 %v3494, 7
    %v3496 = vsub.s32 0, %v3495
    %v3497 = vrot.slane %v3139, %v3496
    %v3499 = vmul.f32 %v3461, %v3497
    %v3500 = vmul.f32 %v3462, %v3497
    %v3501 = vmul.f32 %v3463, %v3497
    %v3502 = vmul.f32 %v3464, %v3497
    %v3503 = vmul.f32 %v3465, %v3497
    %v3504 = vmul.f32 %v3466, %v3497
    %v3505 = vmul.f32 %v3467, %v3497
    %v3506 = vmul.f32 %v3468, %v3497
    %v3507 = vmul.f32 %v3469, %v3497
    %v3508 = vmul.f32 %v3470, %v3497
    %v3509 = vmul.f32 %v3471, %v3497
    %v3510 = vmul.f32 %v3472, %v3497
    %v3511 = vmul.f32 %v3473, %v3497
    %v3512 = vmul.f32 %v3474, %v3497
    %v3513 = vmul.f32 %v3475, %v3497
    %v3514 = vmul.f32 %v3476, %v3497
    %v3515 = vmul.f32 %v3477, %v3497
    %v3516 = vmul.f32 %v3478, %v3497
    %v3517 = vmul.f32 %v3479, %v3497
    %v3518 = vmul.f32 %v3480, %v3497
    %v3519 = vmul.f32 %v3481, %v3497
    %v3520 = vmul.f32 %v3482, %v3497
    %v3521 = vmul.f32 %v3483, %v3497
    %v3522 = vmul.f32 %v3484, %v3497
    %v3523 = vmul.f32 %v3485, %v3497
    %v3524 = vmul.f32 %v3486, %v3497
    %v3525 = vmul.f32 %v3487, %v3497
    %v3526 = vmul.f32 %v3488, %v3497
    %v3527 = vmul.f32 %v3489, %v3497
    %v3528 = vmul.f32 %v3490, %v3497
    %v3529 = vmul.f32 %v3491, %v3497
    %v3530 = vmul.f32 %v3492, %v3497
    %v3532 = vlaneseq
    %v3533 = vshrl.u32 %v3532, 7
    %v3534 = vsub.s32 0, %v3533
    %v3535 = vrot.slane %v3140, %v3534
    %v3537 = vadd.f32 %v3499, %v3535
    %v3538 = vadd.f32 %v3500, %v3535
    %v3539 = vadd.f32 %v3501, %v3535
    %v3540 = vadd.f32 %v3502, %v3535
    %v3541 = vadd.f32 %v3503, %v3535
    %v3542 = vadd.f32 %v3504, %v3535
    %v3543 = vadd.f32 %v3505, %v3535
    %v3544 = vadd.f32 %v3506, %v3535
    %v3545 = vadd.f32 %v3507, %v3535
    %v3546 = vadd.f32 %v3508, %v3535
    %v3547 = vadd.f32 %v3509, %v3535
    %v3548 = vadd.f32 %v3510, %v3535
    %v3549 = vadd.f32 %v3511, %v3535
    %v3550 = vadd.f32 %v3512, %v3535
    %v3551 = vadd.f32 %v3513, %v3535
    %v3552 = vadd.f32 %v3514, %v3535
    %v3553 = vadd.f32 %v3515, %v3535
    %v3554 = vadd.f32 %v3516, %v3535
    %v3555 = vadd.f32 %v3517, %v3535
    %v3556 = vadd.f32 %v3518, %v3535
    %v3557 = vadd.f32 %v3519, %v3535
    %v3558 = vadd.f32 %v3520, %v3535
    %v3559 = vadd.f32 %v3521, %v3535
    %v3560 = vadd.f32 %v3522, %v3535
    %v3561 = vadd.f32 %v3523, %v3535
    %v3562 = vadd.f32 %v3524, %v3535
    %v3563 = vadd.f32 %v3525, %v3535
    %v3564 = vadd.f32 %v3526, %v3535
    %v3565 = vadd.f32 %v3527, %v3535
    %v3566 = vadd.f32 %v3528, %v3535
    %v3567 = vadd.f32 %v3529, %v3535
    %v3568 = vadd.f32 %v3530, %v3535
    %v3569 = vpack.c.bf16 %v3538, %v3537
    %v3570 = vpack.c.bf16 %v3540, %v3539
    %v3571 = vpack.c.bf16 %v3542, %v3541
    %v3572 = vpack.c.bf16 %v3544, %v3543
    %v3573 = vpack.c.bf16 %v3546, %v3545
    %v3574 = vpack.c.bf16 %v3548, %v3547
    %v3575 = vpack.c.bf16 %v3550, %v3549
    %v3576 = vpack.c.bf16 %v3552, %v3551
    %v3577 = vpack.c.bf16 %v3554, %v3553
    %v3578 = vpack.c.bf16 %v3556, %v3555
    %v3579 = vpack.c.bf16 %v3558, %v3557
    %v3580 = vpack.c.bf16 %v3560, %v3559
    %v3581 = vpack.c.bf16 %v3562, %v3561
    %v3582 = vpack.c.bf16 %v3564, %v3563
    %v3583 = vpack.c.bf16 %v3566, %v3565
    %v3584 = vpack.c.bf16 %v3568, %v3567
    %s3585 = scalar_lea.vmem [#allocation6], 192
    %v3586 = vld [vmem:[%s3585] sm:$0xff]
    %v3587 = vld [vmem:[%s3585 + $0x8] sm:$0xf]
    %v3588 = vld [vmem:[%s3585 + $0xc] sm:$0xff]
    %v3589 = vld [vmem:[%s3585 + $0x14] sm:$0xf]
    %v3590 = vld [vmem:[%s3585 + $0x18] sm:$0xff]
    %v3591 = vld [vmem:[%s3585 + $0x20] sm:$0xf]
    %v3592 = vld [vmem:[%s3585 + $0x24] sm:$0xff]
    %v3593 = vld [vmem:[%s3585 + $0x2c] sm:$0xf]
    %v3594 = vld [vmem:[%s3585 + $0x30] sm:$0xff]
    %v3595 = vld [vmem:[%s3585 + $0x38] sm:$0xf]
    %v3596 = vld [vmem:[%s3585 + $0x3c] sm:$0xff]
    %v3597 = vld [vmem:[%s3585 + $0x44] sm:$0xf]
    %v3598 = vld [vmem:[%s3585 + $0x48] sm:$0xff]
    %v3599 = vld [vmem:[%s3585 + $0x50] sm:$0xf]
    %v3600 = vld [vmem:[%s3585 + $0x54] sm:$0xff]
    %v3601 = vld [vmem:[%s3585 + $0x5c] sm:$0xf]
    %v3602 = vld [vmem:[%s3585 + $0x60] sm:$0xff]
    %v3603 = vld [vmem:[%s3585 + $0x68] sm:$0xf]
    %v3604 = vld [vmem:[%s3585 + $0x6c] sm:$0xff]
    %v3605 = vld [vmem:[%s3585 + $0x74] sm:$0xf]
    %v3606 = vld [vmem:[%s3585 + $0x78] sm:$0xff]
    %v3607 = vld [vmem:[%s3585 + $0x80] sm:$0xf]
    %v3608 = vld [vmem:[%s3585 + $0x84] sm:$0xff]
    %v3609 = vld [vmem:[%s3585 + $0x8c] sm:$0xf]
    %v3610 = vld [vmem:[%s3585 + $0x90] sm:$0xff]
    %v3611 = vld [vmem:[%s3585 + $0x98] sm:$0xf]
    %v3612 = vld [vmem:[%s3585 + $0x9c] sm:$0xff]
    %v3613 = vld [vmem:[%s3585 + $0xa4] sm:$0xf]
    %v3614 = vld [vmem:[%s3585 + $0xa8] sm:$0xff]
    %v3615 = vld [vmem:[%s3585 + $0xb0] sm:$0xf]
    %v3616 = vld [vmem:[%s3585 + $0xb4] sm:$0xff]
    %v3617 = vld [vmem:[%s3585 + $0xbc] sm:$0xf]
    %s3618 = scalar_lea.vmem %s5, 3
    %v3619 = vld [vmem:[%s3618] sm:$0x7]
    %v3621 = vlaneseq
    %v3622 = vshrl.u32 %v3621, 7
    %v3623 = vsub.s32 0, %v3622
    %v3624 = vrot.slane %v3619, %v3623
    %v3625 = vlaneseq
    %v3626 = vshrl.u32 %v3625, 7
    %v3627 = vsub.s32 1, %v3626
    %v3628 = vrot.slane %v3619, %v3627
    %v3629 = vlaneseq
    %v3630 = vshrl.u32 %v3629, 7
    %v3631 = vsub.s32 2, %v3630
    %v3632 = vrot.slane %v3619, %v3631
    %v3668 = vunpack.c.l.b16 %v3586
    %v3669 = vunpack.c.h.b16 %v3586
    %v3670 = vunpack.c.l.b16 %v3587
    %v3671 = vunpack.c.l.b16 %v3588
    %v3672 = vunpack.c.h.b16 %v3588
    %v3673 = vunpack.c.l.b16 %v3589
    %v3674 = vunpack.c.l.b16 %v3590
    %v3675 = vunpack.c.h.b16 %v3590
    %v3676 = vunpack.c.l.b16 %v3591
    %v3677 = vunpack.c.l.b16 %v3592
    %v3678 = vunpack.c.h.b16 %v3592
    %v3679 = vunpack.c.l.b16 %v3593
    %v3680 = vunpack.c.l.b16 %v3594
    %v3681 = vunpack.c.h.b16 %v3594
    %v3682 = vunpack.c.l.b16 %v3595
    %v3683 = vunpack.c.l.b16 %v3596
    %v3684 = vunpack.c.h.b16 %v3596
    %v3685 = vunpack.c.l.b16 %v3597
    %v3686 = vunpack.c.l.b16 %v3598
    %v3687 = vunpack.c.h.b16 %v3598
    %v3688 = vunpack.c.l.b16 %v3599
    %v3689 = vunpack.c.l.b16 %v3600
    %v3690 = vunpack.c.h.b16 %v3600
    %v3691 = vunpack.c.l.b16 %v3601
    %v3692 = vunpack.c.l.b16 %v3602
    %v3693 = vunpack.c.h.b16 %v3602
    %v3694 = vunpack.c.l.b16 %v3603
    %v3695 = vunpack.c.l.b16 %v3604
    %v3696 = vunpack.c.h.b16 %v3604
    %v3697 = vunpack.c.l.b16 %v3605
    %v3698 = vunpack.c.l.b16 %v3606
    %v3699 = vunpack.c.h.b16 %v3606
    %v3700 = vunpack.c.l.b16 %v3607
    %v3701 = vunpack.c.l.b16 %v3608
    %v3702 = vunpack.c.h.b16 %v3608
    %v3703 = vunpack.c.l.b16 %v3609
    %v3704 = vunpack.c.l.b16 %v3610
    %v3705 = vunpack.c.h.b16 %v3610
    %v3706 = vunpack.c.l.b16 %v3611
    %v3707 = vunpack.c.l.b16 %v3612
    %v3708 = vunpack.c.h.b16 %v3612
    %v3709 = vunpack.c.l.b16 %v3613
    %v3710 = vunpack.c.l.b16 %v3614
    %v3711 = vunpack.c.h.b16 %v3614
    %v3712 = vunpack.c.l.b16 %v3615
    %v3713 = vunpack.c.l.b16 %v3616
    %v3714 = vunpack.c.h.b16 %v3616
    %v3715 = vunpack.c.l.b16 %v3617
    %v3716 = vpack.c.b16 %v3671, %v3668
    %v3717 = vpack.c.b16 %v3672, %v3669
    %v3718 = vpack.c.b16 %v3673, %v3670
    %v3719 = vpack.c.b16 %v3677, %v3674
    %v3720 = vpack.c.b16 %v3678, %v3675
    %v3721 = vpack.c.b16 %v3679, %v3676
    %v3722 = vpack.c.b16 %v3683, %v3680
    %v3723 = vpack.c.b16 %v3684, %v3681
    %v3724 = vpack.c.b16 %v3685, %v3682
    %v3725 = vpack.c.b16 %v3689, %v3686
    %v3726 = vpack.c.b16 %v3690, %v3687
    %v3727 = vpack.c.b16 %v3691, %v3688
    %v3728 = vpack.c.b16 %v3695, %v3692
    %v3729 = vpack.c.b16 %v3696, %v3693
    %v3730 = vpack.c.b16 %v3697, %v3694
    %v3731 = vpack.c.b16 %v3701, %v3698
    %v3732 = vpack.c.b16 %v3702, %v3699
    %v3733 = vpack.c.b16 %v3703, %v3700
    %v3734 = vpack.c.b16 %v3707, %v3704
    %v3735 = vpack.c.b16 %v3708, %v3705
    %v3736 = vpack.c.b16 %v3709, %v3706
    %v3737 = vpack.c.b16 %v3713, %v3710
    %v3738 = vpack.c.b16 %v3714, %v3711
    %v3739 = vpack.c.b16 %v3715, %v3712
    %3764 = vmatprep.subr.bf16.mxu0 %v3717
    %3765 = vmatpush1.bf16.msra.mxu0 %v3716
    %3766 = vmatprep.subr.bf16.mxu0 %v3720
    %3767 = vmatpush1.bf16.msra.mxu0 %v3719
    %3768 = vmatprep.subr.bf16.mxu0 %v3723
    %3769 = vmatpush1.bf16.msra.mxu0 %v3722
    %3770 = vmatprep.subr.bf16.mxu0 %v3726
    %3771 = vmatpush1.bf16.msra.mxu0 %v3725
    %3772 = vmatprep.subr.bf16.mxu0 %v3729
    %3773 = vmatpush1.bf16.msra.mxu0 %v3728
    %3774 = vmatprep.subr.bf16.mxu0 %v3732
    %3775 = vmatpush1.bf16.msra.mxu0 %v3731
    %3776 = vmatprep.subr.bf16.mxu0 %v3735
    %3777 = vmatpush1.bf16.msra.mxu0 %v3734
    %3778 = vmatprep.subr.bf16.mxu0 %v3738
    %3779 = vmatpush1.bf16.msra.mxu0 %v3737
    %3780 = vmatprep.subr.bf16.mxu0 0
    %3781 = vmatpush1.bf16.msra.mxu0 0
    %3782 = vmatprep.subr.bf16.mxu0 0
    %3783 = vmatpush1.bf16.msra.mxu0 0
    %3784 = vmatprep.subr.bf16.mxu0 0
    %3785 = vmatpush1.bf16.msra.mxu0 0
    %3786 = vmatprep.subr.bf16.mxu0 0
    %3787 = vmatpush1.bf16.msra.mxu0 0
    %3788 = vmatprep.subr.bf16.mxu0 0
    %3789 = vmatpush1.bf16.msra.mxu0 0
    %3790 = vmatprep.subr.bf16.mxu0 0
    %3791 = vmatpush1.bf16.msra.mxu0 0
    %3792 = vmatprep.subr.bf16.mxu0 0
    %3793 = vmatpush1.bf16.msra.mxu0 0
    %3794 = vmatprep.subr.bf16.mxu0 0
    %3795 = vmatpush1.bf16.msra.mxu0 0
    %3796 = vmatprep.mubr.bf16.mxu0 0
    %3797 = vmatmul.mubr.bf16.gmra.mrb[0].mxu0 %v3569
    %v3798 = vpop.f32.mrb[0].mxu0
    %v3799 = vadd.f32 %v3624, %v3798
    %v3800 = vpop.f32.mrb[0].mxu0
    %v3801 = vadd.f32 %v3628, %v3800
    %v3802 = vpop.f32.mrb[0].mxu0
    %v3803 = vadd.f32 %v3624, %v3802
    %v3804 = vpop.f32.mrb[0].mxu0
    %v3805 = vadd.f32 %v3628, %v3804
    %3806 = vmatprep.mubr.bf16.mxu0 0
    %3807 = vmatmul.mubr.bf16.gmra.mrb[0].mxu0 %v3570
    %v3808 = vpop.f32.mrb[0].mxu0
    %v3809 = vadd.f32 %v3624, %v3808
    %v3810 = vpop.f32.mrb[0].mxu0
    %v3811 = vadd.f32 %v3628, %v3810
    %v3812 = vpop.f32.mrb[0].mxu0
    %v3813 = vadd.f32 %v3624, %v3812
    %v3814 = vpop.f32.mrb[0].mxu0
    %v3815 = vadd.f32 %v3628, %v3814
    %3816 = vmatprep.mubr.bf16.mxu0 0
    %3817 = vmatmul.mubr.bf16.gmra.mrb[0].mxu0 %v3571
    %v3818 = vpop.f32.mrb[0].mxu0
    %v3819 = vadd.f32 %v3624, %v3818
    %v3820 = vpop.f32.mrb[0].mxu0
    %v3821 = vadd.f32 %v3628, %v3820
    %v3822 = vpop.f32.mrb[0].mxu0
    %v3823 = vadd.f32 %v3624, %v3822
    %v3824 = vpop.f32.mrb[0].mxu0
    %v3825 = vadd.f32 %v3628, %v3824
    %3826 = vmatprep.mubr.bf16.mxu0 0
    %3827 = vmatmul.mubr.bf16.gmra.mrb[0].mxu0 %v3572
    %v3828 = vpop.f32.mrb[0].mxu0
    %v3829 = vadd.f32 %v3624, %v3828
    %v3830 = vpop.f32.mrb[0].mxu0
    %v3831 = vadd.f32 %v3628, %v3830
    %v3832 = vpop.f32.mrb[0].mxu0
    %v3833 = vadd.f32 %v3624, %v3832
    %v3834 = vpop.f32.mrb[0].mxu0
    %v3835 = vadd.f32 %v3628, %v3834
    %3836 = vmatprep.mubr.bf16.mxu0 0
    %3837 = vmatmul.mubr.bf16.gmra.mrb[0].mxu0 %v3573
    %v3838 = vpop.f32.mrb[0].mxu0
    %v3839 = vadd.f32 %v3624, %v3838
    %v3840 = vpop.f32.mrb[0].mxu0
    %v3841 = vadd.f32 %v3628, %v3840
    %v3842 = vpop.f32.mrb[0].mxu0
    %v3843 = vadd.f32 %v3624, %v3842
    %v3844 = vpop.f32.mrb[0].mxu0
    %v3845 = vadd.f32 %v3628, %v3844
    %3846 = vmatprep.mubr.bf16.mxu0 0
    %3847 = vmatmul.mubr.bf16.gmra.mrb[0].mxu0 %v3574
    %v3848 = vpop.f32.mrb[0].mxu0
    %v3849 = vadd.f32 %v3624, %v3848
    %v3850 = vpop.f32.mrb[0].mxu0
    %v3851 = vadd.f32 %v3628, %v3850
    %v3852 = vpop.f32.mrb[0].mxu0
    %v3853 = vadd.f32 %v3624, %v3852
    %v3854 = vpop.f32.mrb[0].mxu0
    %v3855 = vadd.f32 %v3628, %v3854
    %3856 = vmatprep.mubr.bf16.mxu0 0
    %3857 = vmatmul.mubr.bf16.gmra.mrb[0].mxu0 %v3575
    %v3858 = vpop.f32.mrb[0].mxu0
    %v3859 = vadd.f32 %v3624, %v3858
    %v3860 = vpop.f32.mrb[0].mxu0
    %v3861 = vadd.f32 %v3628, %v3860
    %v3862 = vpop.f32.mrb[0].mxu0
    %v3863 = vadd.f32 %v3624, %v3862
    %v3864 = vpop.f32.mrb[0].mxu0
    %v3865 = vadd.f32 %v3628, %v3864
    %3866 = vmatprep.mubr.bf16.mxu0 0
    %3867 = vmatmul.mubr.bf16.gmra.mrb[0].mxu0 %v3576
    %v3868 = vpop.f32.mrb[0].mxu0
    %v3869 = vadd.f32 %v3624, %v3868
    %v3870 = vpop.f32.mrb[0].mxu0
    %v3871 = vadd.f32 %v3628, %v3870
    %v3872 = vpop.f32.mrb[0].mxu0
    %v3873 = vadd.f32 %v3624, %v3872
    %v3874 = vpop.f32.mrb[0].mxu0
    %v3875 = vadd.f32 %v3628, %v3874
    %3876 = vmatprep.mubr.bf16.mxu0 0
    %3877 = vmatmul.mubr.bf16.gmra.mrb[0].mxu0 %v3577
    %v3878 = vpop.f32.mrb[0].mxu0
    %v3879 = vadd.f32 %v3624, %v3878
    %v3880 = vpop.f32.mrb[0].mxu0
    %v3881 = vadd.f32 %v3628, %v3880
    %v3882 = vpop.f32.mrb[0].mxu0
    %v3883 = vadd.f32 %v3624, %v3882
    %v3884 = vpop.f32.mrb[0].mxu0
    %v3885 = vadd.f32 %v3628, %v3884
    %3886 = vmatprep.mubr.bf16.mxu0 0
    %3887 = vmatmul.mubr.bf16.gmra.mrb[0].mxu0 %v3578
    %v3888 = vpop.f32.mrb[0].mxu0
    %v3889 = vadd.f32 %v3624, %v3888
    %v3890 = vpop.f32.mrb[0].mxu0
    %v3891 = vadd.f32 %v3628, %v3890
    %v3892 = vpop.f32.mrb[0].mxu0
    %v3893 = vadd.f32 %v3624, %v3892
    %v3894 = vpop.f32.mrb[0].mxu0
    %v3895 = vadd.f32 %v3628, %v3894
    %3896 = vmatprep.mubr.bf16.mxu0 0
    %3897 = vmatmul.mubr.bf16.gmra.mrb[0].mxu0 %v3579
    %v3898 = vpop.f32.mrb[0].mxu0
    %v3899 = vadd.f32 %v3624, %v3898
    %v3900 = vpop.f32.mrb[0].mxu0
    %v3901 = vadd.f32 %v3628, %v3900
    %v3902 = vpop.f32.mrb[0].mxu0
    %v3903 = vadd.f32 %v3624, %v3902
    %v3904 = vpop.f32.mrb[0].mxu0
    %v3905 = vadd.f32 %v3628, %v3904
    %3906 = vmatprep.mubr.bf16.mxu0 0
    %3907 = vmatmul.mubr.bf16.gmra.mrb[0].mxu0 %v3580
    %v3908 = vpop.f32.mrb[0].mxu0
    %v3909 = vadd.f32 %v3624, %v3908
    %v3910 = vpop.f32.mrb[0].mxu0
    %v3911 = vadd.f32 %v3628, %v3910
    %v3912 = vpop.f32.mrb[0].mxu0
    %v3913 = vadd.f32 %v3624, %v3912
    %v3914 = vpop.f32.mrb[0].mxu0
    %v3915 = vadd.f32 %v3628, %v3914
    %3916 = vmatprep.mubr.bf16.mxu0 0
    %3917 = vmatmul.mubr.bf16.gmra.mrb[0].mxu0 %v3581
    %v3918 = vpop.f32.mrb[0].mxu0
    %v3919 = vadd.f32 %v3624, %v3918
    %v3920 = vpop.f32.mrb[0].mxu0
    %v3921 = vadd.f32 %v3628, %v3920
    %v3922 = vpop.f32.mrb[0].mxu0
    %v3923 = vadd.f32 %v3624, %v3922
    %v3924 = vpop.f32.mrb[0].mxu0
    %v3925 = vadd.f32 %v3628, %v3924
    %3926 = vmatprep.mubr.bf16.mxu0 0
    %3927 = vmatmul.mubr.bf16.gmra.mrb[0].mxu0 %v3582
    %v3928 = vpop.f32.mrb[0].mxu0
    %v3929 = vadd.f32 %v3624, %v3928
    %v3930 = vpop.f32.mrb[0].mxu0
    %v3931 = vadd.f32 %v3628, %v3930
    %v3932 = vpop.f32.mrb[0].mxu0
    %v3933 = vadd.f32 %v3624, %v3932
    %v3934 = vpop.f32.mrb[0].mxu0
    %v3935 = vadd.f32 %v3628, %v3934
    %3936 = vmatprep.mubr.bf16.mxu0 0
    %3937 = vmatmul.mubr.bf16.gmra.mrb[0].mxu0 %v3583
    %v3938 = vpop.f32.mrb[0].mxu0
    %v3939 = vadd.f32 %v3624, %v3938
    %v3940 = vpop.f32.mrb[0].mxu0
    %v3941 = vadd.f32 %v3628, %v3940
    %v3942 = vpop.f32.mrb[0].mxu0
    %v3943 = vadd.f32 %v3624, %v3942
    %v3944 = vpop.f32.mrb[0].mxu0
    %v3945 = vadd.f32 %v3628, %v3944
    %3946 = vmatprep.mubr.bf16.mxu0 0
    %3947 = vmatmul.mubr.bf16.gmra.mrb[0].mxu0 %v3584
    %v3948 = vpop.f32.mrb[0].mxu0
    %v3949 = vadd.f32 %v3624, %v3948
    %v3950 = vpop.f32.mrb[0].mxu0
    %v3951 = vadd.f32 %v3628, %v3950
    %v3952 = vpop.f32.mrb[0].mxu0
    %v3953 = vadd.f32 %v3624, %v3952
    %v3954 = vpop.f32.mrb[0].mxu0
    %v3955 = vadd.f32 %v3628, %v3954
    %3956 = vdwg.mxu0
    %3957 = vmatprep.subr.bf16.mxu0 0
    %3958 = vmatpush1.bf16.msra.mxu0 %v3718
    %3959 = vmatprep.subr.bf16.mxu0 0
    %3960 = vmatpush1.bf16.msra.mxu0 %v3721
    %3961 = vmatprep.subr.bf16.mxu0 0
    %3962 = vmatpush1.bf16.msra.mxu0 %v3724
    %3963 = vmatprep.subr.bf16.mxu0 0
    %3964 = vmatpush1.bf16.msra.mxu0 %v3727
    %3965 = vmatprep.subr.bf16.mxu0 0
    %3966 = vmatpush1.bf16.msra.mxu0 %v3730
    %3967 = vmatprep.subr.bf16.mxu0 0
    %3968 = vmatpush1.bf16.msra.mxu0 %v3733
    %3969 = vmatprep.subr.bf16.mxu0 0
    %3970 = vmatpush1.bf16.msra.mxu0 %v3736
    %3971 = vmatprep.subr.bf16.mxu0 0
    %3972 = vmatpush1.bf16.msra.mxu0 %v3739
    %3973 = vmatprep.subr.bf16.mxu0 0
    %3974 = vmatpush1.bf16.msra.mxu0 0
    %3975 = vmatprep.subr.bf16.mxu0 0
    %3976 = vmatpush1.bf16.msra.mxu0 0
    %3977 = vmatprep.subr.bf16.mxu0 0
    %3978 = vmatpush1.bf16.msra.mxu0 0
    %3979 = vmatprep.subr.bf16.mxu0 0
    %3980 = vmatpush1.bf16.msra.mxu0 0
    %3981 = vmatprep.subr.bf16.mxu0 0
    %3982 = vmatpush1.bf16.msra.mxu0 0
    %3983 = vmatprep.subr.bf16.mxu0 0
    %3984 = vmatpush1.bf16.msra.mxu0 0
    %3985 = vmatprep.subr.bf16.mxu0 0
    %3986 = vmatpush1.bf16.msra.mxu0 0
    %3987 = vmatprep.subr.bf16.mxu0 0
    %3988 = vmatpush1.bf16.msra.mxu0 0
    %3989 = vmatprep.mubr.bf16.mxu0 0
    %3990 = vmatmul.mubr.bf16.gmra.mrb[0].mxu0 %v3569
    %v3991 = vpop.f32.mrb[0].mxu0
    %v3992 = vadd.f32 %v3632, %v3991
    %v3993 = vpop.f32.mrb[0].mxu0
    %v3994 = vpop.f32.mrb[0].mxu0
    %v3995 = vadd.f32 %v3632, %v3994
    %v3996 = vpop.f32.mrb[0].mxu0
    %3997 = vmatprep.mubr.bf16.mxu0 0
    %3998 = vmatmul.mubr.bf16.gmra.mrb[0].mxu0 %v3570
    %v3999 = vpop.f32.mrb[0].mxu0
    %v4000 = vadd.f32 %v3632, %v3999
    %v4001 = vpop.f32.mrb[0].mxu0
    %v4002 = vpop.f32.mrb[0].mxu0
    %v4003 = vadd.f32 %v3632, %v4002
    %v4004 = vpop.f32.mrb[0].mxu0
    %4005 = vmatprep.mubr.bf16.mxu0 0
    %4006 = vmatmul.mubr.bf16.gmra.mrb[0].mxu0 %v3571
    %v4007 = vpop.f32.mrb[0].mxu0
    %v4008 = vadd.f32 %v3632, %v4007
    %v4009 = vpop.f32.mrb[0].mxu0
    %v4010 = vpop.f32.mrb[0].mxu0
    %v4011 = vadd.f32 %v3632, %v4010
    %v4012 = vpop.f32.mrb[0].mxu0
    %4013 = vmatprep.mubr.bf16.mxu0 0
    %4014 = vmatmul.mubr.bf16.gmra.mrb[0].mxu0 %v3572
    %v4015 = vpop.f32.mrb[0].mxu0
    %v4016 = vadd.f32 %v3632, %v4015
    %v4017 = vpop.f32.mrb[0].mxu0
    %v4018 = vpop.f32.mrb[0].mxu0
    %v4019 = vadd.f32 %v3632, %v4018
    %v4020 = vpop.f32.mrb[0].mxu0
    %4021 = vmatprep.mubr.bf16.mxu0 0
    %4022 = vmatmul.mubr.bf16.gmra.mrb[0].mxu0 %v3573
    %v4023 = vpop.f32.mrb[0].mxu0
    %v4024 = vadd.f32 %v3632, %v4023
    %v4025 = vpop.f32.mrb[0].mxu0
    %v4026 = vpop.f32.mrb[0].mxu0
    %v4027 = vadd.f32 %v3632, %v4026
    %v4028 = vpop.f32.mrb[0].mxu0
    %4029 = vmatprep.mubr.bf16.mxu0 0
    %4030 = vmatmul.mubr.bf16.gmra.mrb[0].mxu0 %v3574
    %v4031 = vpop.f32.mrb[0].mxu0
    %v4032 = vadd.f32 %v3632, %v4031
    %v4033 = vpop.f32.mrb[0].mxu0
    %v4034 = vpop.f32.mrb[0].mxu0
    %v4035 = vadd.f32 %v3632, %v4034
    %v4036 = vpop.f32.mrb[0].mxu0
    %4037 = vmatprep.mubr.bf16.mxu0 0
    %4038 = vmatmul.mubr.bf16.gmra.mrb[0].mxu0 %v3575
    %v4039 = vpop.f32.mrb[0].mxu0
    %v4040 = vadd.f32 %v3632, %v4039
    %v4041 = vpop.f32.mrb[0].mxu0
    %v4042 = vpop.f32.mrb[0].mxu0
    %v4043 = vadd.f32 %v3632, %v4042
    %v4044 = vpop.f32.mrb[0].mxu0
    %4045 = vmatprep.mubr.bf16.mxu0 0
    %4046 = vmatmul.mubr.bf16.gmra.mrb[0].mxu0 %v3576
    %v4047 = vpop.f32.mrb[0].mxu0
    %v4048 = vadd.f32 %v3632, %v4047
    %v4049 = vpop.f32.mrb[0].mxu0
    %v4050 = vpop.f32.mrb[0].mxu0
    %v4051 = vadd.f32 %v3632, %v4050
    %v4052 = vpop.f32.mrb[0].mxu0
    %4053 = vmatprep.mubr.bf16.mxu0 0
    %4054 = vmatmul.mubr.bf16.gmra.mrb[0].mxu0 %v3577
    %v4055 = vpop.f32.mrb[0].mxu0
    %v4056 = vadd.f32 %v3632, %v4055
    %v4057 = vpop.f32.mrb[0].mxu0
    %v4058 = vpop.f32.mrb[0].mxu0
    %v4059 = vadd.f32 %v3632, %v4058
    %v4060 = vpop.f32.mrb[0].mxu0
    %4061 = vmatprep.mubr.bf16.mxu0 0
    %4062 = vmatmul.mubr.bf16.gmra.mrb[0].mxu0 %v3578
    %v4063 = vpop.f32.mrb[0].mxu0
    %v4064 = vadd.f32 %v3632, %v4063
    %v4065 = vpop.f32.mrb[0].mxu0
    %v4066 = vpop.f32.mrb[0].mxu0
    %v4067 = vadd.f32 %v3632, %v4066
    %v4068 = vpop.f32.mrb[0].mxu0
    %4069 = vmatprep.mubr.bf16.mxu0 0
    %4070 = vmatmul.mubr.bf16.gmra.mrb[0].mxu0 %v3579
    %v4071 = vpop.f32.mrb[0].mxu0
    %v4072 = vadd.f32 %v3632, %v4071
    %v4073 = vpop.f32.mrb[0].mxu0
    %v4074 = vpop.f32.mrb[0].mxu0
    %v4075 = vadd.f32 %v3632, %v4074
    %v4076 = vpop.f32.mrb[0].mxu0
    %4077 = vmatprep.mubr.bf16.mxu0 0
    %4078 = vmatmul.mubr.bf16.gmra.mrb[0].mxu0 %v3580
    %v4079 = vpop.f32.mrb[0].mxu0
    %v4080 = vadd.f32 %v3632, %v4079
    %v4081 = vpop.f32.mrb[0].mxu0
    %v4082 = vpop.f32.mrb[0].mxu0
    %v4083 = vadd.f32 %v3632, %v4082
    %v4084 = vpop.f32.mrb[0].mxu0
    %4085 = vmatprep.mubr.bf16.mxu0 0
    %4086 = vmatmul.mubr.bf16.gmra.mrb[0].mxu0 %v3581
    %v4087 = vpop.f32.mrb[0].mxu0
    %v4088 = vadd.f32 %v3632, %v4087
    %v4089 = vpop.f32.mrb[0].mxu0
    %v4090 = vpop.f32.mrb[0].mxu0
    %v4091 = vadd.f32 %v3632, %v4090
    %v4092 = vpop.f32.mrb[0].mxu0
    %4093 = vmatprep.mubr.bf16.mxu0 0
    %4094 = vmatmul.mubr.bf16.gmra.mrb[0].mxu0 %v3582
    %v4095 = vpop.f32.mrb[0].mxu0
    %v4096 = vadd.f32 %v3632, %v4095
    %v4097 = vpop.f32.mrb[0].mxu0
    %v4098 = vpop.f32.mrb[0].mxu0
    %v4099 = vadd.f32 %v3632, %v4098
    %v4100 = vpop.f32.mrb[0].mxu0
    %4101 = vmatprep.mubr.bf16.mxu0 0
    %4102 = vmatmul.mubr.bf16.gmra.mrb[0].mxu0 %v3583
    %v4103 = vpop.f32.mrb[0].mxu0
    %v4104 = vadd.f32 %v3632, %v4103
    %v4105 = vpop.f32.mrb[0].mxu0
    %v4106 = vpop.f32.mrb[0].mxu0
    %v4107 = vadd.f32 %v3632, %v4106
    %v4108 = vpop.f32.mrb[0].mxu0
    %4109 = vmatprep.mubr.bf16.mxu0 0
    %4110 = vmatmul.mubr.bf16.gmra.mrb[0].mxu0 %v3584
    %v4111 = vpop.f32.mrb[0].mxu0
    %v4112 = vadd.f32 %v3632, %v4111
    %v4113 = vpop.f32.mrb[0].mxu0
    %v4114 = vpop.f32.mrb[0].mxu0
    %v4115 = vadd.f32 %v3632, %v4114
    %v4116 = vpop.f32.mrb[0].mxu0
    %4117 = vdwg.mxu0
    %v4118 = vmul.f32 %v3799, %v3801
    %v4119 = vmul.f32 %v3803, %v3805
    %v4120 = vmul.f32 %v3809, %v3811
    %v4121 = vmul.f32 %v3813, %v3815
    %v4122 = vmul.f32 %v3819, %v3821
    %v4123 = vmul.f32 %v3823, %v3825
    %v4124 = vmul.f32 %v3829, %v3831
    %v4125 = vmul.f32 %v3833, %v3835
    %v4126 = vmul.f32 %v3839, %v3841
    %v4127 = vmul.f32 %v3843, %v3845
    %v4128 = vmul.f32 %v3849, %v3851
    %v4129 = vmul.f32 %v3853, %v3855
    %v4130 = vmul.f32 %v3859, %v3861
    %v4131 = vmul.f32 %v3863, %v3865
    %v4132 = vmul.f32 %v3869, %v3871
    %v4133 = vmul.f32 %v3873, %v3875
    %v4134 = vmul.f32 %v3799, %v3881
    %v4135 = vmul.f32 %v3803, %v3885
    %v4136 = vmul.f32 %v3809, %v3891
    %v4137 = vmul.f32 %v3813, %v3895
    %v4138 = vmul.f32 %v3819, %v3901
    %v4139 = vmul.f32 %v3823, %v3905
    %v4140 = vmul.f32 %v3829, %v3911
    %v4141 = vmul.f32 %v3833, %v3915
    %v4142 = vmul.f32 %v3839, %v3921
    %v4143 = vmul.f32 %v3843, %v3925
    %v4144 = vmul.f32 %v3849, %v3931
    %v4145 = vmul.f32 %v3853, %v3935
    %v4146 = vmul.f32 %v3859, %v3941
    %v4147 = vmul.f32 %v3863, %v3945
    %v4148 = vmul.f32 %v3869, %v3951
    %v4149 = vmul.f32 %v3873, %v3955
    %v4150 = vmul.f32 %v3879, %v3801
    %v4151 = vmul.f32 %v3883, %v3805
    %v4152 = vmul.f32 %v3889, %v3811
    %v4153 = vmul.f32 %v3893, %v3815
    %v4154 = vmul.f32 %v3899, %v3821
    %v4155 = vmul.f32 %v3903, %v3825
    %v4156 = vmul.f32 %v3909, %v3831
    %v4157 = vmul.f32 %v3913, %v3835
    %v4158 = vmul.f32 %v3919, %v3841
    %v4159 = vmul.f32 %v3923, %v3845
    %v4160 = vmul.f32 %v3929, %v3851
    %v4161 = vmul.f32 %v3933, %v3855
    %v4162 = vmul.f32 %v3939, %v3861
    %v4163 = vmul.f32 %v3943, %v3865
    %v4164 = vmul.f32 %v3949, %v3871
    %v4165 = vmul.f32 %v3953, %v3875
    %v4166 = vmul.f32 %v3879, %v3881
    %v4167 = vmul.f32 %v3883, %v3885
    %v4168 = vmul.f32 %v3889, %v3891
    %v4169 = vmul.f32 %v3893, %v3895
    %v4170 = vmul.f32 %v3899, %v3901
    %v4171 = vmul.f32 %v3903, %v3905
    %v4172 = vmul.f32 %v3909, %v3911
    %v4173 = vmul.f32 %v3913, %v3915
    %v4174 = vmul.f32 %v3919, %v3921
    %v4175 = vmul.f32 %v3923, %v3925
    %v4176 = vmul.f32 %v3929, %v3931
    %v4177 = vmul.f32 %v3933, %v3935
    %v4178 = vmul.f32 %v3939, %v3941
    %v4179 = vmul.f32 %v3943, %v3945
    %v4180 = vmul.f32 %v3949, %v3951
    %v4181 = vmul.f32 %v3953, %v3955
    %v4182 = vpack.c.bf16 %v4119, %v4118
    %v4183 = vpack.c.bf16 %v4121, %v4120
    %v4184 = vpack.c.bf16 %v4123, %v4122
    %v4185 = vpack.c.bf16 %v4125, %v4124
    %v4186 = vpack.c.bf16 %v4127, %v4126
    %v4187 = vpack.c.bf16 %v4129, %v4128
    %v4188 = vpack.c.bf16 %v4131, %v4130
    %v4189 = vpack.c.bf16 %v4133, %v4132
    %v4190 = vpack.c.bf16 %v4135, %v4134
    %v4191 = vpack.c.bf16 %v4137, %v4136
    %v4192 = vpack.c.bf16 %v4139, %v4138
    %v4193 = vpack.c.bf16 %v4141, %v4140
    %v4194 = vpack.c.bf16 %v4143, %v4142
    %v4195 = vpack.c.bf16 %v4145, %v4144
    %v4196 = vpack.c.bf16 %v4147, %v4146
    %v4197 = vpack.c.bf16 %v4149, %v4148
    %v4198 = vpack.c.bf16 %v4151, %v4150
    %v4199 = vpack.c.bf16 %v4153, %v4152
    %v4200 = vpack.c.bf16 %v4155, %v4154
    %v4201 = vpack.c.bf16 %v4157, %v4156
    %v4202 = vpack.c.bf16 %v4159, %v4158
    %v4203 = vpack.c.bf16 %v4161, %v4160
    %v4204 = vpack.c.bf16 %v4163, %v4162
    %v4205 = vpack.c.bf16 %v4165, %v4164
    %v4206 = vpack.c.bf16 %v4167, %v4166
    %v4207 = vpack.c.bf16 %v4169, %v4168
    %v4208 = vpack.c.bf16 %v4171, %v4170
    %v4209 = vpack.c.bf16 %v4173, %v4172
    %v4210 = vpack.c.bf16 %v4175, %v4174
    %v4211 = vpack.c.bf16 %v4177, %v4176
    %v4212 = vpack.c.bf16 %v4179, %v4178
    %v4213 = vpack.c.bf16 %v4181, %v4180
    %4214 = vmatprep.subr.bf16.mxu0 0
    %4215 = vmatpush1.bf16.msra.mxu0 %v1115
    %4216 = vmatprep.subr.bf16.mxu0 0
    %4217 = vmatpush1.bf16.msra.mxu0 %v1116
    %4218 = vmatprep.subr.bf16.mxu0 0
    %4219 = vmatpush1.bf16.msra.mxu0 %v1117
    %4220 = vmatprep.subr.bf16.mxu0 0
    %4221 = vmatpush1.bf16.msra.mxu0 %v1118
    %4222 = vmatprep.subr.bf16.mxu0 0
    %4223 = vmatpush1.bf16.msra.mxu0 %v1119
    %4224 = vmatprep.subr.bf16.mxu0 0
    %4225 = vmatpush1.bf16.msra.mxu0 %v1120
    %4226 = vmatprep.subr.bf16.mxu0 0
    %4227 = vmatpush1.bf16.msra.mxu0 %v1121
    %4228 = vmatprep.subr.bf16.mxu0 0
    %4229 = vmatpush1.bf16.msra.mxu0 %v1122
    %4230 = vmatprep.subr.bf16.mxu0 0
    %4231 = vmatpush1.bf16.msra.mxu0 0
    %4232 = vmatprep.subr.bf16.mxu0 0
    %4233 = vmatpush1.bf16.msra.mxu0 0
    %4234 = vmatprep.subr.bf16.mxu0 0
    %4235 = vmatpush1.bf16.msra.mxu0 0
    %4236 = vmatprep.subr.bf16.mxu0 0
    %4237 = vmatpush1.bf16.msra.mxu0 0
    %4238 = vmatprep.subr.bf16.mxu0 0
    %4239 = vmatpush1.bf16.msra.mxu0 0
    %4240 = vmatprep.subr.bf16.mxu0 0
    %4241 = vmatpush1.bf16.msra.mxu0 0
    %4242 = vmatprep.subr.bf16.mxu0 0
    %4243 = vmatpush1.bf16.msra.mxu0 0
    %4244 = vmatprep.subr.bf16.mxu0 0
    %4245 = vmatpush1.bf16.msra.mxu0 0
    %4246 = vmatprep.mubr.bf16.mxu0 0
    %4247 = vmatmul.mubr.bf16.gmra.mrb[0].mxu0 %v4182
    %v4248 = vpop.f32.mrb[0].mxu0
    %v4249 = vadd.f32 0.0, %v4248
    %v4250 = vpop.f32.mrb[0].mxu0
    %v4251 = vpop.f32.mrb[0].mxu0
    %v4252 = vadd.f32 0.0, %v4251
    %v4253 = vpop.f32.mrb[0].mxu0
    %4254 = vmatprep.mubr.bf16.mxu0 0
    %4255 = vmatmul.mubr.bf16.gmra.mrb[0].mxu0 %v4183
    %v4256 = vpop.f32.mrb[0].mxu0
    %v4257 = vadd.f32 0.0, %v4256
    %v4258 = vpop.f32.mrb[0].mxu0
    %v4259 = vpop.f32.mrb[0].mxu0
    %v4260 = vadd.f32 0.0, %v4259
    %v4261 = vpop.f32.mrb[0].mxu0
    %4262 = vmatprep.mubr.bf16.mxu0 0
    %4263 = vmatmul.mubr.bf16.gmra.mrb[0].mxu0 %v4184
    %v4264 = vpop.f32.mrb[0].mxu0
    %v4265 = vadd.f32 0.0, %v4264
    %v4266 = vpop.f32.mrb[0].mxu0
    %v4267 = vpop.f32.mrb[0].mxu0
    %v4268 = vadd.f32 0.0, %v4267
    %v4269 = vpop.f32.mrb[0].mxu0
    %4270 = vmatprep.mubr.bf16.mxu0 0
    %4271 = vmatmul.mubr.bf16.gmra.mrb[0].mxu0 %v4185
    %v4272 = vpop.f32.mrb[0].mxu0
    %v4273 = vadd.f32 0.0, %v4272
    %v4274 = vpop.f32.mrb[0].mxu0
    %v4275 = vpop.f32.mrb[0].mxu0
    %v4276 = vadd.f32 0.0, %v4275
    %v4277 = vpop.f32.mrb[0].mxu0
    %4278 = vmatprep.mubr.bf16.mxu0 0
    %4279 = vmatmul.mubr.bf16.gmra.mrb[0].mxu0 %v4186
    %v4280 = vpop.f32.mrb[0].mxu0
    %v4281 = vadd.f32 0.0, %v4280
    %v4282 = vpop.f32.mrb[0].mxu0
    %v4283 = vpop.f32.mrb[0].mxu0
    %v4284 = vadd.f32 0.0, %v4283
    %v4285 = vpop.f32.mrb[0].mxu0
    %4286 = vmatprep.mubr.bf16.mxu0 0
    %4287 = vmatmul.mubr.bf16.gmra.mrb[0].mxu0 %v4187
    %v4288 = vpop.f32.mrb[0].mxu0
    %v4289 = vadd.f32 0.0, %v4288
    %v4290 = vpop.f32.mrb[0].mxu0
    %v4291 = vpop.f32.mrb[0].mxu0
    %v4292 = vadd.f32 0.0, %v4291
    %v4293 = vpop.f32.mrb[0].mxu0
    %4294 = vmatprep.mubr.bf16.mxu0 0
    %4295 = vmatmul.mubr.bf16.gmra.mrb[0].mxu0 %v4188
    %v4296 = vpop.f32.mrb[0].mxu0
    %v4297 = vadd.f32 0.0, %v4296
    %v4298 = vpop.f32.mrb[0].mxu0
    %v4299 = vpop.f32.mrb[0].mxu0
    %v4300 = vadd.f32 0.0, %v4299
    %v4301 = vpop.f32.mrb[0].mxu0
    %4302 = vmatprep.mubr.bf16.mxu0 0
    %4303 = vmatmul.mubr.bf16.gmra.mrb[0].mxu0 %v4189
    %v4304 = vpop.f32.mrb[0].mxu0
    %v4305 = vadd.f32 0.0, %v4304
    %v4306 = vpop.f32.mrb[0].mxu0
    %v4307 = vpop.f32.mrb[0].mxu0
    %v4308 = vadd.f32 0.0, %v4307
    %v4309 = vpop.f32.mrb[0].mxu0
    %4310 = vmatprep.mubr.bf16.mxu0 0
    %4311 = vmatmul.mubr.bf16.gmra.mrb[0].mxu0 %v4190
    %v4312 = vpop.f32.mrb[0].mxu0
    %v4313 = vadd.f32 0.0, %v4312
    %v4314 = vpop.f32.mrb[0].mxu0
    %v4315 = vpop.f32.mrb[0].mxu0
    %v4316 = vadd.f32 0.0, %v4315
    %v4317 = vpop.f32.mrb[0].mxu0
    %4318 = vmatprep.mubr.bf16.mxu0 0
    %4319 = vmatmul.mubr.bf16.gmra.mrb[0].mxu0 %v4191
    %v4320 = vpop.f32.mrb[0].mxu0
    %v4321 = vadd.f32 0.0, %v4320
    %v4322 = vpop.f32.mrb[0].mxu0
    %v4323 = vpop.f32.mrb[0].mxu0
    %v4324 = vadd.f32 0.0, %v4323
    %v4325 = vpop.f32.mrb[0].mxu0
    %4326 = vmatprep.mubr.bf16.mxu0 0
    %4327 = vmatmul.mubr.bf16.gmra.mrb[0].mxu0 %v4192
    %v4328 = vpop.f32.mrb[0].mxu0
    %v4329 = vadd.f32 0.0, %v4328
    %v4330 = vpop.f32.mrb[0].mxu0
    %v4331 = vpop.f32.mrb[0].mxu0
    %v4332 = vadd.f32 0.0, %v4331
    %v4333 = vpop.f32.mrb[0].mxu0
    %4334 = vmatprep.mubr.bf16.mxu0 0
    %4335 = vmatmul.mubr.bf16.gmra.mrb[0].mxu0 %v4193
    %v4336 = vpop.f32.mrb[0].mxu0
    %v4337 = vadd.f32 0.0, %v4336
    %v4338 = vpop.f32.mrb[0].mxu0
    %v4339 = vpop.f32.mrb[0].mxu0
    %v4340 = vadd.f32 0.0, %v4339
    %v4341 = vpop.f32.mrb[0].mxu0
    %4342 = vmatprep.mubr.bf16.mxu0 0
    %4343 = vmatmul.mubr.bf16.gmra.mrb[0].mxu0 %v4194
    %v4344 = vpop.f32.mrb[0].mxu0
    %v4345 = vadd.f32 0.0, %v4344
    %v4346 = vpop.f32.mrb[0].mxu0
    %v4347 = vpop.f32.mrb[0].mxu0
    %v4348 = vadd.f32 0.0, %v4347
    %v4349 = vpop.f32.mrb[0].mxu0
    %4350 = vmatprep.mubr.bf16.mxu0 0
    %4351 = vmatmul.mubr.bf16.gmra.mrb[0].mxu0 %v4195
    %v4352 = vpop.f32.mrb[0].mxu0
    %v4353 = vadd.f32 0.0, %v4352
    %v4354 = vpop.f32.mrb[0].mxu0
    %v4355 = vpop.f32.mrb[0].mxu0
    %v4356 = vadd.f32 0.0, %v4355
    %v4357 = vpop.f32.mrb[0].mxu0
    %4358 = vmatprep.mubr.bf16.mxu0 0
    %4359 = vmatmul.mubr.bf16.gmra.mrb[0].mxu0 %v4196
    %v4360 = vpop.f32.mrb[0].mxu0
    %v4361 = vadd.f32 0.0, %v4360
    %v4362 = vpop.f32.mrb[0].mxu0
    %v4363 = vpop.f32.mrb[0].mxu0
    %v4364 = vadd.f32 0.0, %v4363
    %v4365 = vpop.f32.mrb[0].mxu0
    %4366 = vmatprep.mubr.bf16.mxu0 0
    %4367 = vmatmul.mubr.bf16.gmra.mrb[0].mxu0 %v4197
    %v4368 = vpop.f32.mrb[0].mxu0
    %v4369 = vadd.f32 0.0, %v4368
    %v4370 = vpop.f32.mrb[0].mxu0
    %v4371 = vpop.f32.mrb[0].mxu0
    %v4372 = vadd.f32 0.0, %v4371
    %v4373 = vpop.f32.mrb[0].mxu0
    %4374 = vmatprep.mubr.bf16.mxu0 0
    %4375 = vmatmul.mubr.bf16.gmra.mrb[0].mxu0 %v4198
    %v4376 = vpop.f32.mrb[0].mxu0
    %v4377 = vadd.f32 0.0, %v4376
    %v4378 = vpop.f32.mrb[0].mxu0
    %v4379 = vpop.f32.mrb[0].mxu0
    %v4380 = vadd.f32 0.0, %v4379
    %v4381 = vpop.f32.mrb[0].mxu0
    %4382 = vmatprep.mubr.bf16.mxu0 0
    %4383 = vmatmul.mubr.bf16.gmra.mrb[0].mxu0 %v4199
    %v4384 = vpop.f32.mrb[0].mxu0
    %v4385 = vadd.f32 0.0, %v4384
    %v4386 = vpop.f32.mrb[0].mxu0
    %v4387 = vpop.f32.mrb[0].mxu0
    %v4388 = vadd.f32 0.0, %v4387
    %v4389 = vpop.f32.mrb[0].mxu0
    %4390 = vmatprep.mubr.bf16.mxu0 0
    %4391 = vmatmul.mubr.bf16.gmra.mrb[0].mxu0 %v4200
    %v4392 = vpop.f32.mrb[0].mxu0
    %v4393 = vadd.f32 0.0, %v4392
    %v4394 = vpop.f32.mrb[0].mxu0
    %v4395 = vpop.f32.mrb[0].mxu0
    %v4396 = vadd.f32 0.0, %v4395
    %v4397 = vpop.f32.mrb[0].mxu0
    %4398 = vmatprep.mubr.bf16.mxu0 0
    %4399 = vmatmul.mubr.bf16.gmra.mrb[0].mxu0 %v4201
    %v4400 = vpop.f32.mrb[0].mxu0
    %v4401 = vadd.f32 0.0, %v4400
    %v4402 = vpop.f32.mrb[0].mxu0
    %v4403 = vpop.f32.mrb[0].mxu0
    %v4404 = vadd.f32 0.0, %v4403
    %v4405 = vpop.f32.mrb[0].mxu0
    %4406 = vmatprep.mubr.bf16.mxu0 0
    %4407 = vmatmul.mubr.bf16.gmra.mrb[0].mxu0 %v4202
    %v4408 = vpop.f32.mrb[0].mxu0
    %v4409 = vadd.f32 0.0, %v4408
    %v4410 = vpop.f32.mrb[0].mxu0
    %v4411 = vpop.f32.mrb[0].mxu0
    %v4412 = vadd.f32 0.0, %v4411
    %v4413 = vpop.f32.mrb[0].mxu0
    %4414 = vmatprep.mubr.bf16.mxu0 0
    %4415 = vmatmul.mubr.bf16.gmra.mrb[0].mxu0 %v4203
    %v4416 = vpop.f32.mrb[0].mxu0
    %v4417 = vadd.f32 0.0, %v4416
    %v4418 = vpop.f32.mrb[0].mxu0
    %v4419 = vpop.f32.mrb[0].mxu0
    %v4420 = vadd.f32 0.0, %v4419
    %v4421 = vpop.f32.mrb[0].mxu0
    %4422 = vmatprep.mubr.bf16.mxu0 0
    %4423 = vmatmul.mubr.bf16.gmra.mrb[0].mxu0 %v4204
    %v4424 = vpop.f32.mrb[0].mxu0
    %v4425 = vadd.f32 0.0, %v4424
    %v4426 = vpop.f32.mrb[0].mxu0
    %v4427 = vpop.f32.mrb[0].mxu0
    %v4428 = vadd.f32 0.0, %v4427
    %v4429 = vpop.f32.mrb[0].mxu0
    %4430 = vmatprep.mubr.bf16.mxu0 0
    %4431 = vmatmul.mubr.bf16.gmra.mrb[0].mxu0 %v4205
    %v4432 = vpop.f32.mrb[0].mxu0
    %v4433 = vadd.f32 0.0, %v4432
    %v4434 = vpop.f32.mrb[0].mxu0
    %v4435 = vpop.f32.mrb[0].mxu0
    %v4436 = vadd.f32 0.0, %v4435
    %v4437 = vpop.f32.mrb[0].mxu0
    %4438 = vmatprep.mubr.bf16.mxu0 0
    %4439 = vmatmul.mubr.bf16.gmra.mrb[0].mxu0 %v4206
    %v4440 = vpop.f32.mrb[0].mxu0
    %v4441 = vadd.f32 0.0, %v4440
    %v4442 = vpop.f32.mrb[0].mxu0
    %v4443 = vpop.f32.mrb[0].mxu0
    %v4444 = vadd.f32 0.0, %v4443
    %v4445 = vpop.f32.mrb[0].mxu0
    %4446 = vmatprep.mubr.bf16.mxu0 0
    %4447 = vmatmul.mubr.bf16.gmra.mrb[0].mxu0 %v4207
    %v4448 = vpop.f32.mrb[0].mxu0
    %v4449 = vadd.f32 0.0, %v4448
    %v4450 = vpop.f32.mrb[0].mxu0
    %v4451 = vpop.f32.mrb[0].mxu0
    %v4452 = vadd.f32 0.0, %v4451
    %v4453 = vpop.f32.mrb[0].mxu0
    %4454 = vmatprep.mubr.bf16.mxu0 0
    %4455 = vmatmul.mubr.bf16.gmra.mrb[0].mxu0 %v4208
    %v4456 = vpop.f32.mrb[0].mxu0
    %v4457 = vadd.f32 0.0, %v4456
    %v4458 = vpop.f32.mrb[0].mxu0
    %v4459 = vpop.f32.mrb[0].mxu0
    %v4460 = vadd.f32 0.0, %v4459
    %v4461 = vpop.f32.mrb[0].mxu0
    %4462 = vmatprep.mubr.bf16.mxu0 0
    %4463 = vmatmul.mubr.bf16.gmra.mrb[0].mxu0 %v4209
    %v4464 = vpop.f32.mrb[0].mxu0
    %v4465 = vadd.f32 0.0, %v4464
    %v4466 = vpop.f32.mrb[0].mxu0
    %v4467 = vpop.f32.mrb[0].mxu0
    %v4468 = vadd.f32 0.0, %v4467
    %v4469 = vpop.f32.mrb[0].mxu0
    %4470 = vmatprep.mubr.bf16.mxu0 0
    %4471 = vmatmul.mubr.bf16.gmra.mrb[0].mxu0 %v4210
    %v4472 = vpop.f32.mrb[0].mxu0
    %v4473 = vadd.f32 0.0, %v4472
    %v4474 = vpop.f32.mrb[0].mxu0
    %v4475 = vpop.f32.mrb[0].mxu0
    %v4476 = vadd.f32 0.0, %v4475
    %v4477 = vpop.f32.mrb[0].mxu0
    %4478 = vmatprep.mubr.bf16.mxu0 0
    %4479 = vmatmul.mubr.bf16.gmra.mrb[0].mxu0 %v4211
    %v4480 = vpop.f32.mrb[0].mxu0
    %v4481 = vadd.f32 0.0, %v4480
    %v4482 = vpop.f32.mrb[0].mxu0
    %v4483 = vpop.f32.mrb[0].mxu0
    %v4484 = vadd.f32 0.0, %v4483
    %v4485 = vpop.f32.mrb[0].mxu0
    %4486 = vmatprep.mubr.bf16.mxu0 0
    %4487 = vmatmul.mubr.bf16.gmra.mrb[0].mxu0 %v4212
    %v4488 = vpop.f32.mrb[0].mxu0
    %v4489 = vadd.f32 0.0, %v4488
    %v4490 = vpop.f32.mrb[0].mxu0
    %v4491 = vpop.f32.mrb[0].mxu0
    %v4492 = vadd.f32 0.0, %v4491
    %v4493 = vpop.f32.mrb[0].mxu0
    %4494 = vmatprep.mubr.bf16.mxu0 0
    %4495 = vmatmul.mubr.bf16.gmra.mrb[0].mxu0 %v4213
    %v4496 = vpop.f32.mrb[0].mxu0
    %v4497 = vadd.f32 0.0, %v4496
    %v4498 = vpop.f32.mrb[0].mxu0
    %v4499 = vpop.f32.mrb[0].mxu0
    %v4500 = vadd.f32 0.0, %v4499
    %v4501 = vpop.f32.mrb[0].mxu0
    %4502 = vdwg.mxu0
    %v4503 = vmax.f32 %v4249, %v4313
    %v4504 = vmax.f32 %v4252, %v4316
    %v4505 = vmax.f32 %v4257, %v4321
    %v4506 = vmax.f32 %v4260, %v4324
    %v4507 = vmax.f32 %v4265, %v4329
    %v4508 = vmax.f32 %v4268, %v4332
    %v4509 = vmax.f32 %v4273, %v4337
    %v4510 = vmax.f32 %v4276, %v4340
    %v4511 = vmax.f32 %v4281, %v4345
    %v4512 = vmax.f32 %v4284, %v4348
    %v4513 = vmax.f32 %v4289, %v4353
    %v4514 = vmax.f32 %v4292, %v4356
    %v4515 = vmax.f32 %v4297, %v4361
    %v4516 = vmax.f32 %v4300, %v4364
    %v4517 = vmax.f32 %v4305, %v4369
    %v4518 = vmax.f32 %v4308, %v4372
    %v4519 = vsub.f32 %v4249, %v4503
    %v4520 = vsub.f32 %v4252, %v4504
    %v4521 = vsub.f32 %v4257, %v4505
    %v4522 = vsub.f32 %v4260, %v4506
    %v4523 = vsub.f32 %v4265, %v4507
    %v4524 = vsub.f32 %v4268, %v4508
    %v4525 = vsub.f32 %v4273, %v4509
    %v4526 = vsub.f32 %v4276, %v4510
    %v4527 = vsub.f32 %v4281, %v4511
    %v4528 = vsub.f32 %v4284, %v4512
    %v4529 = vsub.f32 %v4289, %v4513
    %v4530 = vsub.f32 %v4292, %v4514
    %v4531 = vsub.f32 %v4297, %v4515
    %v4532 = vsub.f32 %v4300, %v4516
    %v4533 = vsub.f32 %v4305, %v4517
    %v4534 = vsub.f32 %v4308, %v4518
    %v4535 = vmul.f32 %v4519, 1.442695
    %v4536 = vpow.pop %v4535
    %v4537 = vmul.f32 %v4520, 1.442695
    %v4538 = vpow.pop %v4537
    %v4539 = vmul.f32 %v4521, 1.442695
    %v4540 = vpow.pop %v4539
    %v4541 = vmul.f32 %v4522, 1.442695
    %v4542 = vpow.pop %v4541
    %v4543 = vmul.f32 %v4523, 1.442695
    %v4544 = vpow.pop %v4543
    %v4545 = vmul.f32 %v4524, 1.442695
    %v4546 = vpow.pop %v4545
    %v4547 = vmul.f32 %v4525, 1.442695
    %v4548 = vpow.pop %v4547
    %v4549 = vmul.f32 %v4526, 1.442695
    %v4550 = vpow.pop %v4549
    %v4551 = vmul.f32 %v4527, 1.442695
    %v4552 = vpow.pop %v4551
    %v4553 = vmul.f32 %v4528, 1.442695
    %v4554 = vpow.pop %v4553
    %v4555 = vmul.f32 %v4529, 1.442695
    %v4556 = vpow.pop %v4555
    %v4557 = vmul.f32 %v4530, 1.442695
    %v4558 = vpow.pop %v4557
    %v4559 = vmul.f32 %v4531, 1.442695
    %v4560 = vpow.pop %v4559
    %v4561 = vmul.f32 %v4532, 1.442695
    %v4562 = vpow.pop %v4561
    %v4563 = vmul.f32 %v4533, 1.442695
    %v4564 = vpow.pop %v4563
    %v4565 = vmul.f32 %v4534, 1.442695
    %v4566 = vpow.pop %v4565
    %v4567 = vmul.f32 %v4536, %v3992
    %v4568 = vmul.f32 %v4538, %v3995
    %v4569 = vmul.f32 %v4540, %v4000
    %v4570 = vmul.f32 %v4542, %v4003
    %v4571 = vmul.f32 %v4544, %v4008
    %v4572 = vmul.f32 %v4546, %v4011
    %v4573 = vmul.f32 %v4548, %v4016
    %v4574 = vmul.f32 %v4550, %v4019
    %v4575 = vmul.f32 %v4552, %v4024
    %v4576 = vmul.f32 %v4554, %v4027
    %v4577 = vmul.f32 %v4556, %v4032
    %v4578 = vmul.f32 %v4558, %v4035
    %v4579 = vmul.f32 %v4560, %v4040
    %v4580 = vmul.f32 %v4562, %v4043
    %v4581 = vmul.f32 %v4564, %v4048
    %v4582 = vmul.f32 %v4566, %v4051
    %v4583 = vsub.f32 %v4313, %v4503
    %v4584 = vsub.f32 %v4316, %v4504
    %v4585 = vsub.f32 %v4321, %v4505
    %v4586 = vsub.f32 %v4324, %v4506
    %v4587 = vsub.f32 %v4329, %v4507
    %v4588 = vsub.f32 %v4332, %v4508
    %v4589 = vsub.f32 %v4337, %v4509
    %v4590 = vsub.f32 %v4340, %v4510
    %v4591 = vsub.f32 %v4345, %v4511
    %v4592 = vsub.f32 %v4348, %v4512
    %v4593 = vsub.f32 %v4353, %v4513
    %v4594 = vsub.f32 %v4356, %v4514
    %v4595 = vsub.f32 %v4361, %v4515
    %v4596 = vsub.f32 %v4364, %v4516
    %v4597 = vsub.f32 %v4369, %v4517
    %v4598 = vsub.f32 %v4372, %v4518
    %v4599 = vmul.f32 %v4583, 1.442695
    %v4600 = vpow.pop %v4599
    %v4601 = vmul.f32 %v4584, 1.442695
    %v4602 = vpow.pop %v4601
    %v4603 = vmul.f32 %v4585, 1.442695
    %v4604 = vpow.pop %v4603
    %v4605 = vmul.f32 %v4586, 1.442695
    %v4606 = vpow.pop %v4605
    %v4607 = vmul.f32 %v4587, 1.442695
    %v4608 = vpow.pop %v4607
    %v4609 = vmul.f32 %v4588, 1.442695
    %v4610 = vpow.pop %v4609
    %v4611 = vmul.f32 %v4589, 1.442695
    %v4612 = vpow.pop %v4611
    %v4613 = vmul.f32 %v4590, 1.442695
    %v4614 = vpow.pop %v4613
    %v4615 = vmul.f32 %v4591, 1.442695
    %v4616 = vpow.pop %v4615
    %v4617 = vmul.f32 %v4592, 1.442695
    %v4618 = vpow.pop %v4617
    %v4619 = vmul.f32 %v4593, 1.442695
    %v4620 = vpow.pop %v4619
    %v4621 = vmul.f32 %v4594, 1.442695
    %v4622 = vpow.pop %v4621
    %v4623 = vmul.f32 %v4595, 1.442695
    %v4624 = vpow.pop %v4623
    %v4625 = vmul.f32 %v4596, 1.442695
    %v4626 = vpow.pop %v4625
    %v4627 = vmul.f32 %v4597, 1.442695
    %v4628 = vpow.pop %v4627
    %v4629 = vmul.f32 %v4598, 1.442695
    %v4630 = vpow.pop %v4629
    %v4631 = vadd.f32 %v4536, %v4600
    %v4632 = vadd.f32 %v4538, %v4602
    %v4633 = vadd.f32 %v4540, %v4604
    %v4634 = vadd.f32 %v4542, %v4606
    %v4635 = vadd.f32 %v4544, %v4608
    %v4636 = vadd.f32 %v4546, %v4610
    %v4637 = vadd.f32 %v4548, %v4612
    %v4638 = vadd.f32 %v4550, %v4614
    %v4639 = vadd.f32 %v4552, %v4616
    %v4640 = vadd.f32 %v4554, %v4618
    %v4641 = vadd.f32 %v4556, %v4620
    %v4642 = vadd.f32 %v4558, %v4622
    %v4643 = vadd.f32 %v4560, %v4624
    %v4644 = vadd.f32 %v4562, %v4626
    %v4645 = vadd.f32 %v4564, %v4628
    %v4646 = vadd.f32 %v4566, %v4630
    %v4647 = vmul.f32 %v4600, %v4056
    %v4648 = vmul.f32 %v4602, %v4059
    %v4649 = vmul.f32 %v4604, %v4064
    %v4650 = vmul.f32 %v4606, %v4067
    %v4651 = vmul.f32 %v4608, %v4072
    %v4652 = vmul.f32 %v4610, %v4075
    %v4653 = vmul.f32 %v4612, %v4080
    %v4654 = vmul.f32 %v4614, %v4083
    %v4655 = vmul.f32 %v4616, %v4088
    %v4656 = vmul.f32 %v4618, %v4091
    %v4657 = vmul.f32 %v4620, %v4096
    %v4658 = vmul.f32 %v4622, %v4099
    %v4659 = vmul.f32 %v4624, %v4104
    %v4660 = vmul.f32 %v4626, %v4107
    %v4661 = vmul.f32 %v4628, %v4112
    %v4662 = vmul.f32 %v4630, %v4115
    %v4663 = vadd.f32 %v4567, %v4647
    %v4664 = vadd.f32 %v4568, %v4648
    %v4665 = vadd.f32 %v4569, %v4649
    %v4666 = vadd.f32 %v4570, %v4650
    %v4667 = vadd.f32 %v4571, %v4651
    %v4668 = vadd.f32 %v4572, %v4652
    %v4669 = vadd.f32 %v4573, %v4653
    %v4670 = vadd.f32 %v4574, %v4654
    %v4671 = vadd.f32 %v4575, %v4655
    %v4672 = vadd.f32 %v4576, %v4656
    %v4673 = vadd.f32 %v4577, %v4657
    %v4674 = vadd.f32 %v4578, %v4658
    %v4675 = vadd.f32 %v4579, %v4659
    %v4676 = vadd.f32 %v4580, %v4660
    %v4677 = vadd.f32 %v4581, %v4661
    %v4678 = vadd.f32 %v4582, %v4662
    %v4679 = vrcp.pop %v4631
    %v4680 = vrcp.pop %v4632
    %v4681 = vrcp.pop %v4633
    %v4682 = vrcp.pop %v4634
    %v4683 = vrcp.pop %v4635
    %v4684 = vrcp.pop %v4636
    %v4685 = vrcp.pop %v4637
    %v4686 = vrcp.pop %v4638
    %v4687 = vrcp.pop %v4639
    %v4688 = vrcp.pop %v4640
    %v4689 = vrcp.pop %v4641
    %v4690 = vrcp.pop %v4642
    %v4691 = vrcp.pop %v4643
    %v4692 = vrcp.pop %v4644
    %v4693 = vrcp.pop %v4645
    %v4694 = vrcp.pop %v4646
    %v4695 = vmul.f32 %v4663, %v4679
    %v4696 = vmul.f32 %v4664, %v4680
    %v4697 = vmul.f32 %v4665, %v4681
    %v4698 = vmul.f32 %v4666, %v4682
    %v4699 = vmul.f32 %v4667, %v4683
    %v4700 = vmul.f32 %v4668, %v4684
    %v4701 = vmul.f32 %v4669, %v4685
    %v4702 = vmul.f32 %v4670, %v4686
    %v4703 = vmul.f32 %v4671, %v4687
    %v4704 = vmul.f32 %v4672, %v4688
    %v4705 = vmul.f32 %v4673, %v4689
    %v4706 = vmul.f32 %v4674, %v4690
    %v4707 = vmul.f32 %v4675, %v4691
    %v4708 = vmul.f32 %v4676, %v4692
    %v4709 = vmul.f32 %v4677, %v4693
    %v4710 = vmul.f32 %v4678, %v4694
    %v4711 = vpack.c.bf16 %v4696, %v4695
    %v4712 = vpack.c.bf16 %v4698, %v4697
    %v4713 = vpack.c.bf16 %v4700, %v4699
    %v4714 = vpack.c.bf16 %v4702, %v4701
    %v4715 = vpack.c.bf16 %v4704, %v4703
    %v4716 = vpack.c.bf16 %v4706, %v4705
    %v4717 = vpack.c.bf16 %v4708, %v4707
    %v4718 = vpack.c.bf16 %v4710, %v4709
    %4719 = vst [vmem:[#allocation2] sm:$0xff] %v4711
    %4720 = vst [vmem:[#allocation2 + $0x8] sm:$0xff] %v4712
    %4721 = vst [vmem:[#allocation2 + $0x10] sm:$0xff] %v4713
    %4722 = vst [vmem:[#allocation2 + $0x18] sm:$0xff] %v4714
    %4723 = vst [vmem:[#allocation2 + $0x20] sm:$0xff] %v4715
    %4724 = vst [vmem:[#allocation2 + $0x28] sm:$0xff] %v4716
    %4725 = vst [vmem:[#allocation2 + $0x30] sm:$0xff] %v4717
    %4726 = vst [vmem:[#allocation2 + $0x38] sm:$0xff] %v4718
    %v4727 = vmax.f32 %v4377, %v4441
    %v4728 = vmax.f32 %v4380, %v4444
    %v4729 = vmax.f32 %v4385, %v4449
    %v4730 = vmax.f32 %v4388, %v4452
    %v4731 = vmax.f32 %v4393, %v4457
    %v4732 = vmax.f32 %v4396, %v4460
    %v4733 = vmax.f32 %v4401, %v4465
    %v4734 = vmax.f32 %v4404, %v4468
    %v4735 = vmax.f32 %v4409, %v4473
    %v4736 = vmax.f32 %v4412, %v4476
    %v4737 = vmax.f32 %v4417, %v4481
    %v4738 = vmax.f32 %v4420, %v4484
    %v4739 = vmax.f32 %v4425, %v4489
    %v4740 = vmax.f32 %v4428, %v4492
    %v4741 = vmax.f32 %v4433, %v4497
    %v4742 = vmax.f32 %v4436, %v4500
    %v4743 = vsub.f32 %v4377, %v4727
    %v4744 = vsub.f32 %v4380, %v4728
    %v4745 = vsub.f32 %v4385, %v4729
    %v4746 = vsub.f32 %v4388, %v4730
    %v4747 = vsub.f32 %v4393, %v4731
    %v4748 = vsub.f32 %v4396, %v4732
    %v4749 = vsub.f32 %v4401, %v4733
    %v4750 = vsub.f32 %v4404, %v4734
    %v4751 = vsub.f32 %v4409, %v4735
    %v4752 = vsub.f32 %v4412, %v4736
    %v4753 = vsub.f32 %v4417, %v4737
    %v4754 = vsub.f32 %v4420, %v4738
    %v4755 = vsub.f32 %v4425, %v4739
    %v4756 = vsub.f32 %v4428, %v4740
    %v4757 = vsub.f32 %v4433, %v4741
    %v4758 = vsub.f32 %v4436, %v4742
    %v4759 = vmul.f32 %v4743, 1.442695
    %v4760 = vpow.pop %v4759
    %v4761 = vmul.f32 %v4744, 1.442695
    %v4762 = vpow.pop %v4761
    %v4763 = vmul.f32 %v4745, 1.442695
    %v4764 = vpow.pop %v4763
    %v4765 = vmul.f32 %v4746, 1.442695
    %v4766 = vpow.pop %v4765
    %v4767 = vmul.f32 %v4747, 1.442695
    %v4768 = vpow.pop %v4767
    %v4769 = vmul.f32 %v4748, 1.442695
    %v4770 = vpow.pop %v4769
    %v4771 = vmul.f32 %v4749, 1.442695
    %v4772 = vpow.pop %v4771
    %v4773 = vmul.f32 %v4750, 1.442695
    %v4774 = vpow.pop %v4773
    %v4775 = vmul.f32 %v4751, 1.442695
    %v4776 = vpow.pop %v4775
    %v4777 = vmul.f32 %v4752, 1.442695
    %v4778 = vpow.pop %v4777
    %v4779 = vmul.f32 %v4753, 1.442695
    %v4780 = vpow.pop %v4779
    %v4781 = vmul.f32 %v4754, 1.442695
    %v4782 = vpow.pop %v4781
    %v4783 = vmul.f32 %v4755, 1.442695
    %v4784 = vpow.pop %v4783
    %v4785 = vmul.f32 %v4756, 1.442695
    %v4786 = vpow.pop %v4785
    %v4787 = vmul.f32 %v4757, 1.442695
    %v4788 = vpow.pop %v4787
    %v4789 = vmul.f32 %v4758, 1.442695
    %v4790 = vpow.pop %v4789
    %v4791 = vmul.f32 %v4760, %v3992
    %v4792 = vmul.f32 %v4762, %v3995
    %v4793 = vmul.f32 %v4764, %v4000
    %v4794 = vmul.f32 %v4766, %v4003
    %v4795 = vmul.f32 %v4768, %v4008
    %v4796 = vmul.f32 %v4770, %v4011
    %v4797 = vmul.f32 %v4772, %v4016
    %v4798 = vmul.f32 %v4774, %v4019
    %v4799 = vmul.f32 %v4776, %v4024
    %v4800 = vmul.f32 %v4778, %v4027
    %v4801 = vmul.f32 %v4780, %v4032
    %v4802 = vmul.f32 %v4782, %v4035
    %v4803 = vmul.f32 %v4784, %v4040
    %v4804 = vmul.f32 %v4786, %v4043
    %v4805 = vmul.f32 %v4788, %v4048
    %v4806 = vmul.f32 %v4790, %v4051
    %v4807 = vsub.f32 %v4441, %v4727
    %v4808 = vsub.f32 %v4444, %v4728
    %v4809 = vsub.f32 %v4449, %v4729
    %v4810 = vsub.f32 %v4452, %v4730
    %v4811 = vsub.f32 %v4457, %v4731
    %v4812 = vsub.f32 %v4460, %v4732
    %v4813 = vsub.f32 %v4465, %v4733
    %v4814 = vsub.f32 %v4468, %v4734
    %v4815 = vsub.f32 %v4473, %v4735
    %v4816 = vsub.f32 %v4476, %v4736
    %v4817 = vsub.f32 %v4481, %v4737
    %v4818 = vsub.f32 %v4484, %v4738
    %v4819 = vsub.f32 %v4489, %v4739
    %v4820 = vsub.f32 %v4492, %v4740
    %v4821 = vsub.f32 %v4497, %v4741
    %v4822 = vsub.f32 %v4500, %v4742
    %v4823 = vmul.f32 %v4807, 1.442695
    %v4824 = vpow.pop %v4823
    %v4825 = vmul.f32 %v4808, 1.442695
    %v4826 = vpow.pop %v4825
    %v4827 = vmul.f32 %v4809, 1.442695
    %v4828 = vpow.pop %v4827
    %v4829 = vmul.f32 %v4810, 1.442695
    %v4830 = vpow.pop %v4829
    %v4831 = vmul.f32 %v4811, 1.442695
    %v4832 = vpow.pop %v4831
    %v4833 = vmul.f32 %v4812, 1.442695
    %v4834 = vpow.pop %v4833
    %v4835 = vmul.f32 %v4813, 1.442695
    %v4836 = vpow.pop %v4835
    %v4837 = vmul.f32 %v4814, 1.442695
    %v4838 = vpow.pop %v4837
    %v4839 = vmul.f32 %v4815, 1.442695
    %v4840 = vpow.pop %v4839
    %v4841 = vmul.f32 %v4816, 1.442695
    %v4842 = vpow.pop %v4841
    %v4843 = vmul.f32 %v4817, 1.442695
    %v4844 = vpow.pop %v4843
    %v4845 = vmul.f32 %v4818, 1.442695
    %v4846 = vpow.pop %v4845
    %v4847 = vmul.f32 %v4819, 1.442695
    %v4848 = vpow.pop %v4847
    %v4849 = vmul.f32 %v4820, 1.442695
    %v4850 = vpow.pop %v4849
    %v4851 = vmul.f32 %v4821, 1.442695
    %v4852 = vpow.pop %v4851
    %v4853 = vmul.f32 %v4822, 1.442695
    %v4854 = vpow.pop %v4853
    %v4855 = vadd.f32 %v4760, %v4824
    %v4856 = vadd.f32 %v4762, %v4826
    %v4857 = vadd.f32 %v4764, %v4828
    %v4858 = vadd.f32 %v4766, %v4830
    %v4859 = vadd.f32 %v4768, %v4832
    %v4860 = vadd.f32 %v4770, %v4834
    %v4861 = vadd.f32 %v4772, %v4836
    %v4862 = vadd.f32 %v4774, %v4838
    %v4863 = vadd.f32 %v4776, %v4840
    %v4864 = vadd.f32 %v4778, %v4842
    %v4865 = vadd.f32 %v4780, %v4844
    %v4866 = vadd.f32 %v4782, %v4846
    %v4867 = vadd.f32 %v4784, %v4848
    %v4868 = vadd.f32 %v4786, %v4850
    %v4869 = vadd.f32 %v4788, %v4852
    %v4870 = vadd.f32 %v4790, %v4854
    %v4871 = vmul.f32 %v4824, %v4056
    %v4872 = vmul.f32 %v4826, %v4059
    %v4873 = vmul.f32 %v4828, %v4064
    %v4874 = vmul.f32 %v4830, %v4067
    %v4875 = vmul.f32 %v4832, %v4072
    %v4876 = vmul.f32 %v4834, %v4075
    %v4877 = vmul.f32 %v4836, %v4080
    %v4878 = vmul.f32 %v4838, %v4083
    %v4879 = vmul.f32 %v4840, %v4088
    %v4880 = vmul.f32 %v4842, %v4091
    %v4881 = vmul.f32 %v4844, %v4096
    %v4882 = vmul.f32 %v4846, %v4099
    %v4883 = vmul.f32 %v4848, %v4104
    %v4884 = vmul.f32 %v4850, %v4107
    %v4885 = vmul.f32 %v4852, %v4112
    %v4886 = vmul.f32 %v4854, %v4115
    %v4887 = vadd.f32 %v4791, %v4871
    %v4888 = vadd.f32 %v4792, %v4872
    %v4889 = vadd.f32 %v4793, %v4873
    %v4890 = vadd.f32 %v4794, %v4874
    %v4891 = vadd.f32 %v4795, %v4875
    %v4892 = vadd.f32 %v4796, %v4876
    %v4893 = vadd.f32 %v4797, %v4877
    %v4894 = vadd.f32 %v4798, %v4878
    %v4895 = vadd.f32 %v4799, %v4879
    %v4896 = vadd.f32 %v4800, %v4880
    %v4897 = vadd.f32 %v4801, %v4881
    %v4898 = vadd.f32 %v4802, %v4882
    %v4899 = vadd.f32 %v4803, %v4883
    %v4900 = vadd.f32 %v4804, %v4884
    %v4901 = vadd.f32 %v4805, %v4885
    %v4902 = vadd.f32 %v4806, %v4886
    %v4903 = vrcp.pop %v4855
    %v4904 = vrcp.pop %v4856
    %v4905 = vrcp.pop %v4857
    %v4906 = vrcp.pop %v4858
    %v4907 = vrcp.pop %v4859
    %v4908 = vrcp.pop %v4860
    %v4909 = vrcp.pop %v4861
    %v4910 = vrcp.pop %v4862
    %v4911 = vrcp.pop %v4863
    %v4912 = vrcp.pop %v4864
    %v4913 = vrcp.pop %v4865
    %v4914 = vrcp.pop %v4866
    %v4915 = vrcp.pop %v4867
    %v4916 = vrcp.pop %v4868
    %v4917 = vrcp.pop %v4869
    %v4918 = vrcp.pop %v4870
    %v4919 = vmul.f32 %v4887, %v4903
    %v4920 = vmul.f32 %v4888, %v4904
    %v4921 = vmul.f32 %v4889, %v4905
    %v4922 = vmul.f32 %v4890, %v4906
    %v4923 = vmul.f32 %v4891, %v4907
    %v4924 = vmul.f32 %v4892, %v4908
    %v4925 = vmul.f32 %v4893, %v4909
    %v4926 = vmul.f32 %v4894, %v4910
    %v4927 = vmul.f32 %v4895, %v4911
    %v4928 = vmul.f32 %v4896, %v4912
    %v4929 = vmul.f32 %v4897, %v4913
    %v4930 = vmul.f32 %v4898, %v4914
    %v4931 = vmul.f32 %v4899, %v4915
    %v4932 = vmul.f32 %v4900, %v4916
    %v4933 = vmul.f32 %v4901, %v4917
    %v4934 = vmul.f32 %v4902, %v4918
    %v4935 = vpack.c.bf16 %v4920, %v4919
    %v4936 = vpack.c.bf16 %v4922, %v4921
    %v4937 = vpack.c.bf16 %v4924, %v4923
    %v4938 = vpack.c.bf16 %v4926, %v4925
    %v4939 = vpack.c.bf16 %v4928, %v4927
    %v4940 = vpack.c.bf16 %v4930, %v4929
    %v4941 = vpack.c.bf16 %v4932, %v4931
    %v4942 = vpack.c.bf16 %v4934, %v4933
    %4943 = vst [vmem:[#allocation2 + $0x40] sm:$0xff] %v4935
    %4944 = vst [vmem:[#allocation2 + $0x48] sm:$0xff] %v4936
    %4945 = vst [vmem:[#allocation2 + $0x50] sm:$0xff] %v4937
    %4946 = vst [vmem:[#allocation2 + $0x58] sm:$0xff] %v4938
    %4947 = vst [vmem:[#allocation2 + $0x60] sm:$0xff] %v4939
    %4948 = vst [vmem:[#allocation2 + $0x68] sm:$0xff] %v4940
    %4949 = vst [vmem:[#allocation2 + $0x70] sm:$0xff] %v4941
    %4950 = vst [vmem:[#allocation2 + $0x78] sm:$0xff] %v4942
    %v4951 = vld [vmem:[#allocation2] sm:$0xff]
    %v4952 = vld [vmem:[#allocation2 + $0x8] sm:$0xff]
    %v4953 = vld [vmem:[#allocation2 + $0x10] sm:$0xff]
    %v4954 = vld [vmem:[#allocation2 + $0x18] sm:$0xff]
    %v4955 = vld [vmem:[#allocation2 + $0x20] sm:$0xff]
    %v4956 = vld [vmem:[#allocation2 + $0x28] sm:$0xff]
    %v4957 = vld [vmem:[#allocation2 + $0x30] sm:$0xff]
    %v4958 = vld [vmem:[#allocation2 + $0x38] sm:$0xff]
    %v4959 = vld [vmem:[#allocation2 + $0x40] sm:$0xff]
    %v4960 = vld [vmem:[#allocation2 + $0x48] sm:$0xff]
    %v4961 = vld [vmem:[#allocation2 + $0x50] sm:$0xff]
    %v4962 = vld [vmem:[#allocation2 + $0x58] sm:$0xff]
    %v4963 = vld [vmem:[#allocation2 + $0x60] sm:$0xff]
    %v4964 = vld [vmem:[#allocation2 + $0x68] sm:$0xff]
    %v4965 = vld [vmem:[#allocation2 + $0x70] sm:$0xff]
    %v4966 = vld [vmem:[#allocation2 + $0x78] sm:$0xff]
    %s4967 = scalar_lea.vmem %s6, 64
    %v4968 = vld [vmem:[%s4967] sm:$0xf]
    %v4969 = vld [vmem:[%s4967 + $0x4] sm:$0xf]
    %v4970 = vld [vmem:[%s4967 + $0x8] sm:$0xf]
    %v4971 = vld [vmem:[%s4967 + $0xc] sm:$0xf]
    %v4972 = vld [vmem:[%s4967 + $0x10] sm:$0xf]
    %v4973 = vld [vmem:[%s4967 + $0x14] sm:$0xf]
    %v4974 = vld [vmem:[%s4967 + $0x18] sm:$0xf]
    %v4975 = vld [vmem:[%s4967 + $0x1c] sm:$0xf]
    %v4976 = vld [vmem:[%s4967 + $0x20] sm:$0xf]
    %v4977 = vld [vmem:[%s4967 + $0x24] sm:$0xf]
    %v4978 = vld [vmem:[%s4967 + $0x28] sm:$0xf]
    %v4979 = vld [vmem:[%s4967 + $0x2c] sm:$0xf]
    %v4980 = vld [vmem:[%s4967 + $0x30] sm:$0xf]
    %v4981 = vld [vmem:[%s4967 + $0x34] sm:$0xf]
    %v4982 = vld [vmem:[%s4967 + $0x38] sm:$0xf]
    %v4983 = vld [vmem:[%s4967 + $0x3c] sm:$0xf]
    %s4984 = scalar_lea.vmem %s7, 1
    %v4985 = vld [vmem:[%s4984] sm:$0x1]
    %v4987 = vlaneseq
    %v4988 = vshrl.u32 %v4987, 7
    %v4989 = vsub.s32 0, %v4988
    %v4990 = vrot.slane %v4985, %v4989
    %v5008 = vunpack.c.l.b16 %v4968
    %v5009 = vunpack.c.l.b16 %v4969
    %v5010 = vunpack.c.l.b16 %v4970
    %v5011 = vunpack.c.l.b16 %v4971
    %v5012 = vunpack.c.l.b16 %v4972
    %v5013 = vunpack.c.l.b16 %v4973
    %v5014 = vunpack.c.l.b16 %v4974
    %v5015 = vunpack.c.l.b16 %v4975
    %v5016 = vunpack.c.l.b16 %v4976
    %v5017 = vunpack.c.l.b16 %v4977
    %v5018 = vunpack.c.l.b16 %v4978
    %v5019 = vunpack.c.l.b16 %v4979
    %v5020 = vunpack.c.l.b16 %v4980
    %v5021 = vunpack.c.l.b16 %v4981
    %v5022 = vunpack.c.l.b16 %v4982
    %v5023 = vunpack.c.l.b16 %v4983
    %v5024 = vpack.c.b16 %v5009, %v5008
    %v5025 = vpack.c.b16 %v5011, %v5010
    %v5026 = vpack.c.b16 %v5013, %v5012
    %v5027 = vpack.c.b16 %v5015, %v5014
    %v5028 = vpack.c.b16 %v5017, %v5016
    %v5029 = vpack.c.b16 %v5019, %v5018
    %v5030 = vpack.c.b16 %v5021, %v5020
    %v5031 = vpack.c.b16 %v5023, %v5022
    %5040 = vmatprep.subr.bf16.mxu0 0
    %5041 = vmatpush1.bf16.msra.mxu0 %v5024
    %5042 = vmatprep.subr.bf16.mxu0 0
    %5043 = vmatpush1.bf16.msra.mxu0 %v5025
    %5044 = vmatprep.subr.bf16.mxu0 0
    %5045 = vmatpush1.bf16.msra.mxu0 %v5026
    %5046 = vmatprep.subr.bf16.mxu0 0
    %5047 = vmatpush1.bf16.msra.mxu0 %v5027
    %5048 = vmatprep.subr.bf16.mxu0 0
    %5049 = vmatpush1.bf16.msra.mxu0 %v5028
    %5050 = vmatprep.subr.bf16.mxu0 0
    %5051 = vmatpush1.bf16.msra.mxu0 %v5029
    %5052 = vmatprep.subr.bf16.mxu0 0
    %5053 = vmatpush1.bf16.msra.mxu0 %v5030
    %5054 = vmatprep.subr.bf16.mxu0 0
    %5055 = vmatpush1.bf16.msra.mxu0 %v5031
    %5056 = vmatprep.subr.bf16.mxu0 0
    %5057 = vmatpush1.bf16.msra.mxu0 0
    %5058 = vmatprep.subr.bf16.mxu0 0
    %5059 = vmatpush1.bf16.msra.mxu0 0
    %5060 = vmatprep.subr.bf16.mxu0 0
    %5061 = vmatpush1.bf16.msra.mxu0 0
    %5062 = vmatprep.subr.bf16.mxu0 0
    %5063 = vmatpush1.bf16.msra.mxu0 0
    %5064 = vmatprep.subr.bf16.mxu0 0
    %5065 = vmatpush1.bf16.msra.mxu0 0
    %5066 = vmatprep.subr.bf16.mxu0 0
    %5067 = vmatpush1.bf16.msra.mxu0 0
    %5068 = vmatprep.subr.bf16.mxu0 0
    %5069 = vmatpush1.bf16.msra.mxu0 0
    %5070 = vmatprep.subr.bf16.mxu0 0
    %5071 = vmatpush1.bf16.msra.mxu0 0
    %5072 = vmatprep.mubr.bf16.mxu0 0
    %5073 = vmatmul.mubr.bf16.gmra.mrb[0].mxu0 %v4951
    %v5074 = vpop.f32.mrb[0].mxu0
    %v5075 = vadd.f32 %v4990, %v5074
    %v5076 = vpop.f32.mrb[0].mxu0
    %v5077 = vpop.f32.mrb[0].mxu0
    %v5078 = vadd.f32 %v4990, %v5077
    %v5079 = vpop.f32.mrb[0].mxu0
    %5080 = vmatprep.mubr.bf16.mxu0 0
    %5081 = vmatmul.mubr.bf16.gmra.mrb[0].mxu0 %v4952
    %v5082 = vpop.f32.mrb[0].mxu0
    %v5083 = vadd.f32 %v4990, %v5082
    %v5084 = vpop.f32.mrb[0].mxu0
    %v5085 = vpop.f32.mrb[0].mxu0
    %v5086 = vadd.f32 %v4990, %v5085
    %v5087 = vpop.f32.mrb[0].mxu0
    %5088 = vmatprep.mubr.bf16.mxu0 0
    %5089 = vmatmul.mubr.bf16.gmra.mrb[0].mxu0 %v4953
    %v5090 = vpop.f32.mrb[0].mxu0
    %v5091 = vadd.f32 %v4990, %v5090
    %v5092 = vpop.f32.mrb[0].mxu0
    %v5093 = vpop.f32.mrb[0].mxu0
    %v5094 = vadd.f32 %v4990, %v5093
    %v5095 = vpop.f32.mrb[0].mxu0
    %5096 = vmatprep.mubr.bf16.mxu0 0
    %5097 = vmatmul.mubr.bf16.gmra.mrb[0].mxu0 %v4954
    %v5098 = vpop.f32.mrb[0].mxu0
    %v5099 = vadd.f32 %v4990, %v5098
    %v5100 = vpop.f32.mrb[0].mxu0
    %v5101 = vpop.f32.mrb[0].mxu0
    %v5102 = vadd.f32 %v4990, %v5101
    %v5103 = vpop.f32.mrb[0].mxu0
    %5104 = vmatprep.mubr.bf16.mxu0 0
    %5105 = vmatmul.mubr.bf16.gmra.mrb[0].mxu0 %v4955
    %v5106 = vpop.f32.mrb[0].mxu0
    %v5107 = vadd.f32 %v4990, %v5106
    %v5108 = vpop.f32.mrb[0].mxu0
    %v5109 = vpop.f32.mrb[0].mxu0
    %v5110 = vadd.f32 %v4990, %v5109
    %v5111 = vpop.f32.mrb[0].mxu0
    %5112 = vmatprep.mubr.bf16.mxu0 0
    %5113 = vmatmul.mubr.bf16.gmra.mrb[0].mxu0 %v4956
    %v5114 = vpop.f32.mrb[0].mxu0
    %v5115 = vadd.f32 %v4990, %v5114
    %v5116 = vpop.f32.mrb[0].mxu0
    %v5117 = vpop.f32.mrb[0].mxu0
    %v5118 = vadd.f32 %v4990, %v5117
    %v5119 = vpop.f32.mrb[0].mxu0
    %5120 = vmatprep.mubr.bf16.mxu0 0
    %5121 = vmatmul.mubr.bf16.gmra.mrb[0].mxu0 %v4957
    %v5122 = vpop.f32.mrb[0].mxu0
    %v5123 = vadd.f32 %v4990, %v5122
    %v5124 = vpop.f32.mrb[0].mxu0
    %v5125 = vpop.f32.mrb[0].mxu0
    %v5126 = vadd.f32 %v4990, %v5125
    %v5127 = vpop.f32.mrb[0].mxu0
    %5128 = vmatprep.mubr.bf16.mxu0 0
    %5129 = vmatmul.mubr.bf16.gmra.mrb[0].mxu0 %v4958
    %v5130 = vpop.f32.mrb[0].mxu0
    %v5131 = vadd.f32 %v4990, %v5130
    %v5132 = vpop.f32.mrb[0].mxu0
    %v5133 = vpop.f32.mrb[0].mxu0
    %v5134 = vadd.f32 %v4990, %v5133
    %v5135 = vpop.f32.mrb[0].mxu0
    %5136 = vmatprep.mubr.bf16.mxu0 0
    %5137 = vmatmul.mubr.bf16.gmra.mrb[0].mxu0 %v4959
    %v5138 = vpop.f32.mrb[0].mxu0
    %v5139 = vadd.f32 %v4990, %v5138
    %v5140 = vpop.f32.mrb[0].mxu0
    %v5141 = vpop.f32.mrb[0].mxu0
    %v5142 = vadd.f32 %v4990, %v5141
    %v5143 = vpop.f32.mrb[0].mxu0
    %5144 = vmatprep.mubr.bf16.mxu0 0
    %5145 = vmatmul.mubr.bf16.gmra.mrb[0].mxu0 %v4960
    %v5146 = vpop.f32.mrb[0].mxu0
    %v5147 = vadd.f32 %v4990, %v5146
    %v5148 = vpop.f32.mrb[0].mxu0
    %v5149 = vpop.f32.mrb[0].mxu0
    %v5150 = vadd.f32 %v4990, %v5149
    %v5151 = vpop.f32.mrb[0].mxu0
    %5152 = vmatprep.mubr.bf16.mxu0 0
    %5153 = vmatmul.mubr.bf16.gmra.mrb[0].mxu0 %v4961
    %v5154 = vpop.f32.mrb[0].mxu0
    %v5155 = vadd.f32 %v4990, %v5154
    %v5156 = vpop.f32.mrb[0].mxu0
    %v5157 = vpop.f32.mrb[0].mxu0
    %v5158 = vadd.f32 %v4990, %v5157
    %v5159 = vpop.f32.mrb[0].mxu0
    %5160 = vmatprep.mubr.bf16.mxu0 0
    %5161 = vmatmul.mubr.bf16.gmra.mrb[0].mxu0 %v4962
    %v5162 = vpop.f32.mrb[0].mxu0
    %v5163 = vadd.f32 %v4990, %v5162
    %v5164 = vpop.f32.mrb[0].mxu0
    %v5165 = vpop.f32.mrb[0].mxu0
    %v5166 = vadd.f32 %v4990, %v5165
    %v5167 = vpop.f32.mrb[0].mxu0
    %5168 = vmatprep.mubr.bf16.mxu0 0
    %5169 = vmatmul.mubr.bf16.gmra.mrb[0].mxu0 %v4963
    %v5170 = vpop.f32.mrb[0].mxu0
    %v5171 = vadd.f32 %v4990, %v5170
    %v5172 = vpop.f32.mrb[0].mxu0
    %v5173 = vpop.f32.mrb[0].mxu0
    %v5174 = vadd.f32 %v4990, %v5173
    %v5175 = vpop.f32.mrb[0].mxu0
    %5176 = vmatprep.mubr.bf16.mxu0 0
    %5177 = vmatmul.mubr.bf16.gmra.mrb[0].mxu0 %v4964
    %v5178 = vpop.f32.mrb[0].mxu0
    %v5179 = vadd.f32 %v4990, %v5178
    %v5180 = vpop.f32.mrb[0].mxu0
    %v5181 = vpop.f32.mrb[0].mxu0
    %v5182 = vadd.f32 %v4990, %v5181
    %v5183 = vpop.f32.mrb[0].mxu0
    %5184 = vmatprep.mubr.bf16.mxu0 0
    %5185 = vmatmul.mubr.bf16.gmra.mrb[0].mxu0 %v4965
    %v5186 = vpop.f32.mrb[0].mxu0
    %v5187 = vadd.f32 %v4990, %v5186
    %v5188 = vpop.f32.mrb[0].mxu0
    %v5189 = vpop.f32.mrb[0].mxu0
    %v5190 = vadd.f32 %v4990, %v5189
    %v5191 = vpop.f32.mrb[0].mxu0
    %5192 = vmatprep.mubr.bf16.mxu0 0
    %5193 = vmatmul.mubr.bf16.gmra.mrb[0].mxu0 %v4966
    %v5194 = vpop.f32.mrb[0].mxu0
    %v5195 = vadd.f32 %v4990, %v5194
    %v5196 = vpop.f32.mrb[0].mxu0
    %v5197 = vpop.f32.mrb[0].mxu0
    %v5198 = vadd.f32 %v4990, %v5197
    %v5199 = vpop.f32.mrb[0].mxu0
    %5200 = vdwg.mxu0
    %v5201 = vadd.f32 %v3537, %v5075
    %v5202 = vadd.f32 %v3538, %v5078
    %v5203 = vadd.f32 %v3539, %v5083
    %v5204 = vadd.f32 %v3540, %v5086
    %v5205 = vadd.f32 %v3541, %v5091
    %v5206 = vadd.f32 %v3542, %v5094
    %v5207 = vadd.f32 %v3543, %v5099
    %v5208 = vadd.f32 %v3544, %v5102
    %v5209 = vadd.f32 %v3545, %v5107
    %v5210 = vadd.f32 %v3546, %v5110
    %v5211 = vadd.f32 %v3547, %v5115
    %v5212 = vadd.f32 %v3548, %v5118
    %v5213 = vadd.f32 %v3549, %v5123
    %v5214 = vadd.f32 %v3550, %v5126
    %v5215 = vadd.f32 %v3551, %v5131
    %v5216 = vadd.f32 %v3552, %v5134
    %v5217 = vadd.f32 %v3553, %v5139
    %v5218 = vadd.f32 %v3554, %v5142
    %v5219 = vadd.f32 %v3555, %v5147
    %v5220 = vadd.f32 %v3556, %v5150
    %v5221 = vadd.f32 %v3557, %v5155
    %v5222 = vadd.f32 %v3558, %v5158
    %v5223 = vadd.f32 %v3559, %v5163
    %v5224 = vadd.f32 %v3560, %v5166
    %v5225 = vadd.f32 %v3561, %v5171
    %v5226 = vadd.f32 %v3562, %v5174
    %v5227 = vadd.f32 %v3563, %v5179
    %v5228 = vadd.f32 %v3564, %v5182
    %v5229 = vadd.f32 %v3565, %v5187
    %v5230 = vadd.f32 %v3566, %v5190
    %v5231 = vadd.f32 %v3567, %v5195
    %v5232 = vadd.f32 %v3568, %v5198
    %s5233 = scalar_lea.vmem %s12, 1
    %v5234 = vld [vmem:[%s5233] sm:$0x1]
    %s5235 = scalar_lea.vmem %s13, 1
    %v5236 = vld [vmem:[%s5235] sm:$0x1]
    %5237 = vadd.xlane.f32.xlu0 %v5201
    %v5238 = vpop.xlane.xlu0 %5237
    %5239 = vadd.xlane.f32.xlu0 %v5202
    %v5240 = vpop.xlane.xlu0 %5239
    %5241 = vadd.xlane.f32.xlu0 %v5203
    %v5242 = vpop.xlane.xlu0 %5241
    %5243 = vadd.xlane.f32.xlu0 %v5204
    %v5244 = vpop.xlane.xlu0 %5243
    %5245 = vadd.xlane.f32.xlu0 %v5205
    %v5246 = vpop.xlane.xlu0 %5245
    %5247 = vadd.xlane.f32.xlu0 %v5206
    %v5248 = vpop.xlane.xlu0 %5247
    %5249 = vadd.xlane.f32.xlu0 %v5207
    %v5250 = vpop.xlane.xlu0 %5249
    %5251 = vadd.xlane.f32.xlu0 %v5208
    %v5252 = vpop.xlane.xlu0 %5251
    %5253 = vadd.xlane.f32.xlu0 %v5209
    %v5254 = vpop.xlane.xlu0 %5253
    %5255 = vadd.xlane.f32.xlu0 %v5210
    %v5256 = vpop.xlane.xlu0 %5255
    %5257 = vadd.xlane.f32.xlu0 %v5211
    %v5258 = vpop.xlane.xlu0 %5257
    %5259 = vadd.xlane.f32.xlu0 %v5212
    %v5260 = vpop.xlane.xlu0 %5259
    %5261 = vadd.xlane.f32.xlu0 %v5213
    %v5262 = vpop.xlane.xlu0 %5261
    %5263 = vadd.xlane.f32.xlu0 %v5214
    %v5264 = vpop.xlane.xlu0 %5263
    %5265 = vadd.xlane.f32.xlu0 %v5215
    %v5266 = vpop.xlane.xlu0 %5265
    %5267 = vadd.xlane.f32.xlu0 %v5216
    %v5268 = vpop.xlane.xlu0 %5267
    %5269 = vadd.xlane.f32.xlu0 %v5217
    %v5270 = vpop.xlane.xlu0 %5269
    %5271 = vadd.xlane.f32.xlu0 %v5218
    %v5272 = vpop.xlane.xlu0 %5271
    %5273 = vadd.xlane.f32.xlu0 %v5219
    %v5274 = vpop.xlane.xlu0 %5273
    %5275 = vadd.xlane.f32.xlu0 %v5220
    %v5276 = vpop.xlane.xlu0 %5275
    %5277 = vadd.xlane.f32.xlu0 %v5221
    %v5278 = vpop.xlane.xlu0 %5277
    %5279 = vadd.xlane.f32.xlu0 %v5222
    %v5280 = vpop.xlane.xlu0 %5279
    %5281 = vadd.xlane.f32.xlu0 %v5223
    %v5282 = vpop.xlane.xlu0 %5281
    %5283 = vadd.xlane.f32.xlu0 %v5224
    %v5284 = vpop.xlane.xlu0 %5283
    %5285 = vadd.xlane.f32.xlu0 %v5225
    %v5286 = vpop.xlane.xlu0 %5285
    %5287 = vadd.xlane.f32.xlu0 %v5226
    %v5288 = vpop.xlane.xlu0 %5287
    %5289 = vadd.xlane.f32.xlu0 %v5227
    %v5290 = vpop.xlane.xlu0 %5289
    %5291 = vadd.xlane.f32.xlu0 %v5228
    %v5292 = vpop.xlane.xlu0 %5291
    %5293 = vadd.xlane.f32.xlu0 %v5229
    %v5294 = vpop.xlane.xlu0 %5293
    %5295 = vadd.xlane.f32.xlu0 %v5230
    %v5296 = vpop.xlane.xlu0 %5295
    %5297 = vadd.xlane.f32.xlu0 %v5231
    %v5298 = vpop.xlane.xlu0 %5297
    %5299 = vadd.xlane.f32.xlu0 %v5232
    %v5300 = vpop.xlane.xlu0 %5299
    %v5301 = vmul.f32 %v5238, %v2214
    %v5302 = vmul.f32 %v5240, %v2214
    %v5303 = vmul.f32 %v5242, %v2214
    %v5304 = vmul.f32 %v5244, %v2214
    %v5305 = vmul.f32 %v5246, %v2214
    %v5306 = vmul.f32 %v5248, %v2214
    %v5307 = vmul.f32 %v5250, %v2214
    %v5308 = vmul.f32 %v5252, %v2214
    %v5309 = vmul.f32 %v5254, %v2214
    %v5310 = vmul.f32 %v5256, %v2214
    %v5311 = vmul.f32 %v5258, %v2214
    %v5312 = vmul.f32 %v5260, %v2214
    %v5313 = vmul.f32 %v5262, %v2214
    %v5314 = vmul.f32 %v5264, %v2214
    %v5315 = vmul.f32 %v5266, %v2214
    %v5316 = vmul.f32 %v5268, %v2214
    %v5317 = vmul.f32 %v5270, %v2214
    %v5318 = vmul.f32 %v5272, %v2214
    %v5319 = vmul.f32 %v5274, %v2214
    %v5320 = vmul.f32 %v5276, %v2214
    %v5321 = vmul.f32 %v5278, %v2214
    %v5322 = vmul.f32 %v5280, %v2214
    %v5323 = vmul.f32 %v5282, %v2214
    %v5324 = vmul.f32 %v5284, %v2214
    %v5325 = vmul.f32 %v5286, %v2214
    %v5326 = vmul.f32 %v5288, %v2214
    %v5327 = vmul.f32 %v5290, %v2214
    %v5328 = vmul.f32 %v5292, %v2214
    %v5329 = vmul.f32 %v5294, %v2214
    %v5330 = vmul.f32 %v5296, %v2214
    %v5331 = vmul.f32 %v5298, %v2214
    %v5332 = vmul.f32 %v5300, %v2214
    %v5333 = vsub.f32 %v5201, %v5301
    %v5334 = vsub.f32 %v5202, %v5302
    %v5335 = vsub.f32 %v5203, %v5303
    %v5336 = vsub.f32 %v5204, %v5304
    %v5337 = vsub.f32 %v5205, %v5305
    %v5338 = vsub.f32 %v5206, %v5306
    %v5339 = vsub.f32 %v5207, %v5307
    %v5340 = vsub.f32 %v5208, %v5308
    %v5341 = vsub.f32 %v5209, %v5309
    %v5342 = vsub.f32 %v5210, %v5310
    %v5343 = vsub.f32 %v5211, %v5311
    %v5344 = vsub.f32 %v5212, %v5312
    %v5345 = vsub.f32 %v5213, %v5313
    %v5346 = vsub.f32 %v5214, %v5314
    %v5347 = vsub.f32 %v5215, %v5315
    %v5348 = vsub.f32 %v5216, %v5316
    %v5349 = vsub.f32 %v5217, %v5317
    %v5350 = vsub.f32 %v5218, %v5318
    %v5351 = vsub.f32 %v5219, %v5319
    %v5352 = vsub.f32 %v5220, %v5320
    %v5353 = vsub.f32 %v5221, %v5321
    %v5354 = vsub.f32 %v5222, %v5322
    %v5355 = vsub.f32 %v5223, %v5323
    %v5356 = vsub.f32 %v5224, %v5324
    %v5357 = vsub.f32 %v5225, %v5325
    %v5358 = vsub.f32 %v5226, %v5326
    %v5359 = vsub.f32 %v5227, %v5327
    %v5360 = vsub.f32 %v5228, %v5328
    %v5361 = vsub.f32 %v5229, %v5329
    %v5362 = vsub.f32 %v5230, %v5330
    %v5363 = vsub.f32 %v5231, %v5331
    %v5364 = vsub.f32 %v5232, %v5332
    %v5365 = vmul.f32 %v5333, %v5333
    %v5366 = vmul.f32 %v5334, %v5334
    %v5367 = vmul.f32 %v5335, %v5335
    %v5368 = vmul.f32 %v5336, %v5336
    %v5369 = vmul.f32 %v5337, %v5337
    %v5370 = vmul.f32 %v5338, %v5338
    %v5371 = vmul.f32 %v5339, %v5339
    %v5372 = vmul.f32 %v5340, %v5340
    %v5373 = vmul.f32 %v5341, %v5341
    %v5374 = vmul.f32 %v5342, %v5342
    %v5375 = vmul.f32 %v5343, %v5343
    %v5376 = vmul.f32 %v5344, %v5344
    %v5377 = vmul.f32 %v5345, %v5345
    %v5378 = vmul.f32 %v5346, %v5346
    %v5379 = vmul.f32 %v5347, %v5347
    %v5380 = vmul.f32 %v5348, %v5348
    %v5381 = vmul.f32 %v5349, %v5349
    %v5382 = vmul.f32 %v5350, %v5350
    %v5383 = vmul.f32 %v5351, %v5351
    %v5384 = vmul.f32 %v5352, %v5352
    %v5385 = vmul.f32 %v5353, %v5353
    %v5386 = vmul.f32 %v5354, %v5354
    %v5387 = vmul.f32 %v5355, %v5355
    %v5388 = vmul.f32 %v5356, %v5356
    %v5389 = vmul.f32 %v5357, %v5357
    %v5390 = vmul.f32 %v5358, %v5358
    %v5391 = vmul.f32 %v5359, %v5359
    %v5392 = vmul.f32 %v5360, %v5360
    %v5393 = vmul.f32 %v5361, %v5361
    %v5394 = vmul.f32 %v5362, %v5362
    %v5395 = vmul.f32 %v5363, %v5363
    %v5396 = vmul.f32 %v5364, %v5364
    %5397 = vadd.xlane.f32.xlu0 %v5365
    %v5398 = vpop.xlane.xlu0 %5397
    %5399 = vadd.xlane.f32.xlu0 %v5366
    %v5400 = vpop.xlane.xlu0 %5399
    %5401 = vadd.xlane.f32.xlu0 %v5367
    %v5402 = vpop.xlane.xlu0 %5401
    %5403 = vadd.xlane.f32.xlu0 %v5368
    %v5404 = vpop.xlane.xlu0 %5403
    %5405 = vadd.xlane.f32.xlu0 %v5369
    %v5406 = vpop.xlane.xlu0 %5405
    %5407 = vadd.xlane.f32.xlu0 %v5370
    %v5408 = vpop.xlane.xlu0 %5407
    %5409 = vadd.xlane.f32.xlu0 %v5371
    %v5410 = vpop.xlane.xlu0 %5409
    %5411 = vadd.xlane.f32.xlu0 %v5372
    %v5412 = vpop.xlane.xlu0 %5411
    %5413 = vadd.xlane.f32.xlu0 %v5373
    %v5414 = vpop.xlane.xlu0 %5413
    %5415 = vadd.xlane.f32.xlu0 %v5374
    %v5416 = vpop.xlane.xlu0 %5415
    %5417 = vadd.xlane.f32.xlu0 %v5375
    %v5418 = vpop.xlane.xlu0 %5417
    %5419 = vadd.xlane.f32.xlu0 %v5376
    %v5420 = vpop.xlane.xlu0 %5419
    %5421 = vadd.xlane.f32.xlu0 %v5377
    %v5422 = vpop.xlane.xlu0 %5421
    %5423 = vadd.xlane.f32.xlu0 %v5378
    %v5424 = vpop.xlane.xlu0 %5423
    %5425 = vadd.xlane.f32.xlu0 %v5379
    %v5426 = vpop.xlane.xlu0 %5425
    %5427 = vadd.xlane.f32.xlu0 %v5380
    %v5428 = vpop.xlane.xlu0 %5427
    %5429 = vadd.xlane.f32.xlu0 %v5381
    %v5430 = vpop.xlane.xlu0 %5429
    %5431 = vadd.xlane.f32.xlu0 %v5382
    %v5432 = vpop.xlane.xlu0 %5431
    %5433 = vadd.xlane.f32.xlu0 %v5383
    %v5434 = vpop.xlane.xlu0 %5433
    %5435 = vadd.xlane.f32.xlu0 %v5384
    %v5436 = vpop.xlane.xlu0 %5435
    %5437 = vadd.xlane.f32.xlu0 %v5385
    %v5438 = vpop.xlane.xlu0 %5437
    %5439 = vadd.xlane.f32.xlu0 %v5386
    %v5440 = vpop.xlane.xlu0 %5439
    %5441 = vadd.xlane.f32.xlu0 %v5387
    %v5442 = vpop.xlane.xlu0 %5441
    %5443 = vadd.xlane.f32.xlu0 %v5388
    %v5444 = vpop.xlane.xlu0 %5443
    %5445 = vadd.xlane.f32.xlu0 %v5389
    %v5446 = vpop.xlane.xlu0 %5445
    %5447 = vadd.xlane.f32.xlu0 %v5390
    %v5448 = vpop.xlane.xlu0 %5447
    %5449 = vadd.xlane.f32.xlu0 %v5391
    %v5450 = vpop.xlane.xlu0 %5449
    %5451 = vadd.xlane.f32.xlu0 %v5392
    %v5452 = vpop.xlane.xlu0 %5451
    %5453 = vadd.xlane.f32.xlu0 %v5393
    %v5454 = vpop.xlane.xlu0 %5453
    %5455 = vadd.xlane.f32.xlu0 %v5394
    %v5456 = vpop.xlane.xlu0 %5455
    %5457 = vadd.xlane.f32.xlu0 %v5395
    %v5458 = vpop.xlane.xlu0 %5457
    %5459 = vadd.xlane.f32.xlu0 %v5396
    %v5460 = vpop.xlane.xlu0 %5459
    %v5461 = vmul.f32 %v5398, %v2214
    %v5462 = vmul.f32 %v5400, %v2214
    %v5463 = vmul.f32 %v5402, %v2214
    %v5464 = vmul.f32 %v5404, %v2214
    %v5465 = vmul.f32 %v5406, %v2214
    %v5466 = vmul.f32 %v5408, %v2214
    %v5467 = vmul.f32 %v5410, %v2214
    %v5468 = vmul.f32 %v5412, %v2214
    %v5469 = vmul.f32 %v5414, %v2214
    %v5470 = vmul.f32 %v5416, %v2214
    %v5471 = vmul.f32 %v5418, %v2214
    %v5472 = vmul.f32 %v5420, %v2214
    %v5473 = vmul.f32 %v5422, %v2214
    %v5474 = vmul.f32 %v5424, %v2214
    %v5475 = vmul.f32 %v5426, %v2214
    %v5476 = vmul.f32 %v5428, %v2214
    %v5477 = vmul.f32 %v5430, %v2214
    %v5478 = vmul.f32 %v5432, %v2214
    %v5479 = vmul.f32 %v5434, %v2214
    %v5480 = vmul.f32 %v5436, %v2214
    %v5481 = vmul.f32 %v5438, %v2214
    %v5482 = vmul.f32 %v5440, %v2214
    %v5483 = vmul.f32 %v5442, %v2214
    %v5484 = vmul.f32 %v5444, %v2214
    %v5485 = vmul.f32 %v5446, %v2214
    %v5486 = vmul.f32 %v5448, %v2214
    %v5487 = vmul.f32 %v5450, %v2214
    %v5488 = vmul.f32 %v5452, %v2214
    %v5489 = vmul.f32 %v5454, %v2214
    %v5490 = vmul.f32 %v5456, %v2214
    %v5491 = vmul.f32 %v5458, %v2214
    %v5492 = vmul.f32 %v5460, %v2214
    %v5493 = vadd.f32 %v5461, 1e-05
    %v5494 = vadd.f32 %v5462, 1e-05
    %v5495 = vadd.f32 %v5463, 1e-05
    %v5496 = vadd.f32 %v5464, 1e-05
    %v5497 = vadd.f32 %v5465, 1e-05
    %v5498 = vadd.f32 %v5466, 1e-05
    %v5499 = vadd.f32 %v5467, 1e-05
    %v5500 = vadd.f32 %v5468, 1e-05
    %v5501 = vadd.f32 %v5469, 1e-05
    %v5502 = vadd.f32 %v5470, 1e-05
    %v5503 = vadd.f32 %v5471, 1e-05
    %v5504 = vadd.f32 %v5472, 1e-05
    %v5505 = vadd.f32 %v5473, 1e-05
    %v5506 = vadd.f32 %v5474, 1e-05
    %v5507 = vadd.f32 %v5475, 1e-05
    %v5508 = vadd.f32 %v5476, 1e-05
    %v5509 = vadd.f32 %v5477, 1e-05
    %v5510 = vadd.f32 %v5478, 1e-05
    %v5511 = vadd.f32 %v5479, 1e-05
    %v5512 = vadd.f32 %v5480, 1e-05
    %v5513 = vadd.f32 %v5481, 1e-05
    %v5514 = vadd.f32 %v5482, 1e-05
    %v5515 = vadd.f32 %v5483, 1e-05
    %v5516 = vadd.f32 %v5484, 1e-05
    %v5517 = vadd.f32 %v5485, 1e-05
    %v5518 = vadd.f32 %v5486, 1e-05
    %v5519 = vadd.f32 %v5487, 1e-05
    %v5520 = vadd.f32 %v5488, 1e-05
    %v5521 = vadd.f32 %v5489, 1e-05
    %v5522 = vadd.f32 %v5490, 1e-05
    %v5523 = vadd.f32 %v5491, 1e-05
    %v5524 = vadd.f32 %v5492, 1e-05
    %v5525 = vrsqrt.pop %v5493
    %v5526 = vrsqrt.pop %v5494
    %v5527 = vrsqrt.pop %v5495
    %v5528 = vrsqrt.pop %v5496
    %v5529 = vrsqrt.pop %v5497
    %v5530 = vrsqrt.pop %v5498
    %v5531 = vrsqrt.pop %v5499
    %v5532 = vrsqrt.pop %v5500
    %v5533 = vrsqrt.pop %v5501
    %v5534 = vrsqrt.pop %v5502
    %v5535 = vrsqrt.pop %v5503
    %v5536 = vrsqrt.pop %v5504
    %v5537 = vrsqrt.pop %v5505
    %v5538 = vrsqrt.pop %v5506
    %v5539 = vrsqrt.pop %v5507
    %v5540 = vrsqrt.pop %v5508
    %v5541 = vrsqrt.pop %v5509
    %v5542 = vrsqrt.pop %v5510
    %v5543 = vrsqrt.pop %v5511
    %v5544 = vrsqrt.pop %v5512
    %v5545 = vrsqrt.pop %v5513
    %v5546 = vrsqrt.pop %v5514
    %v5547 = vrsqrt.pop %v5515
    %v5548 = vrsqrt.pop %v5516
    %v5549 = vrsqrt.pop %v5517
    %v5550 = vrsqrt.pop %v5518
    %v5551 = vrsqrt.pop %v5519
    %v5552 = vrsqrt.pop %v5520
    %v5553 = vrsqrt.pop %v5521
    %v5554 = vrsqrt.pop %v5522
    %v5555 = vrsqrt.pop %v5523
    %v5556 = vrsqrt.pop %v5524
    %v5557 = vmul.f32 %v5333, %v5525
    %v5558 = vmul.f32 %v5334, %v5526
    %v5559 = vmul.f32 %v5335, %v5527
    %v5560 = vmul.f32 %v5336, %v5528
    %v5561 = vmul.f32 %v5337, %v5529
    %v5562 = vmul.f32 %v5338, %v5530
    %v5563 = vmul.f32 %v5339, %v5531
    %v5564 = vmul.f32 %v5340, %v5532
    %v5565 = vmul.f32 %v5341, %v5533
    %v5566 = vmul.f32 %v5342, %v5534
    %v5567 = vmul.f32 %v5343, %v5535
    %v5568 = vmul.f32 %v5344, %v5536
    %v5569 = vmul.f32 %v5345, %v5537
    %v5570 = vmul.f32 %v5346, %v5538
    %v5571 = vmul.f32 %v5347, %v5539
    %v5572 = vmul.f32 %v5348, %v5540
    %v5573 = vmul.f32 %v5349, %v5541
    %v5574 = vmul.f32 %v5350, %v5542
    %v5575 = vmul.f32 %v5351, %v5543
    %v5576 = vmul.f32 %v5352, %v5544
    %v5577 = vmul.f32 %v5353, %v5545
    %v5578 = vmul.f32 %v5354, %v5546
    %v5579 = vmul.f32 %v5355, %v5547
    %v5580 = vmul.f32 %v5356, %v5548
    %v5581 = vmul.f32 %v5357, %v5549
    %v5582 = vmul.f32 %v5358, %v5550
    %v5583 = vmul.f32 %v5359, %v5551
    %v5584 = vmul.f32 %v5360, %v5552
    %v5585 = vmul.f32 %v5361, %v5553
    %v5586 = vmul.f32 %v5362, %v5554
    %v5587 = vmul.f32 %v5363, %v5555
    %v5588 = vmul.f32 %v5364, %v5556
    %v5590 = vlaneseq
    %v5591 = vshrl.u32 %v5590, 7
    %v5592 = vsub.s32 0, %v5591
    %v5593 = vrot.slane %v5234, %v5592
    %v5595 = vmul.f32 %v5557, %v5593
    %v5596 = vmul.f32 %v5558, %v5593
    %v5597 = vmul.f32 %v5559, %v5593
    %v5598 = vmul.f32 %v5560, %v5593
    %v5599 = vmul.f32 %v5561, %v5593
    %v5600 = vmul.f32 %v5562, %v5593
    %v5601 = vmul.f32 %v5563, %v5593
    %v5602 = vmul.f32 %v5564, %v5593
    %v5603 = vmul.f32 %v5565, %v5593
    %v5604 = vmul.f32 %v5566, %v5593
    %v5605 = vmul.f32 %v5567, %v5593
    %v5606 = vmul.f32 %v5568, %v5593
    %v5607 = vmul.f32 %v5569, %v5593
    %v5608 = vmul.f32 %v5570, %v5593
    %v5609 = vmul.f32 %v5571, %v5593
    %v5610 = vmul.f32 %v5572, %v5593
    %v5611 = vmul.f32 %v5573, %v5593
    %v5612 = vmul.f32 %v5574, %v5593
    %v5613 = vmul.f32 %v5575, %v5593
    %v5614 = vmul.f32 %v5576, %v5593
    %v5615 = vmul.f32 %v5577, %v5593
    %v5616 = vmul.f32 %v5578, %v5593
    %v5617 = vmul.f32 %v5579, %v5593
    %v5618 = vmul.f32 %v5580, %v5593
    %v5619 = vmul.f32 %v5581, %v5593
    %v5620 = vmul.f32 %v5582, %v5593
    %v5621 = vmul.f32 %v5583, %v5593
    %v5622 = vmul.f32 %v5584, %v5593
    %v5623 = vmul.f32 %v5585, %v5593
    %v5624 = vmul.f32 %v5586, %v5593
    %v5625 = vmul.f32 %v5587, %v5593
    %v5626 = vmul.f32 %v5588, %v5593
    %v5628 = vlaneseq
    %v5629 = vshrl.u32 %v5628, 7
    %v5630 = vsub.s32 0, %v5629
    %v5631 = vrot.slane %v5236, %v5630
    %v5633 = vadd.f32 %v5595, %v5631
    %v5634 = vadd.f32 %v5596, %v5631
    %v5635 = vadd.f32 %v5597, %v5631
    %v5636 = vadd.f32 %v5598, %v5631
    %v5637 = vadd.f32 %v5599, %v5631
    %v5638 = vadd.f32 %v5600, %v5631
    %v5639 = vadd.f32 %v5601, %v5631
    %v5640 = vadd.f32 %v5602, %v5631
    %v5641 = vadd.f32 %v5603, %v5631
    %v5642 = vadd.f32 %v5604, %v5631
    %v5643 = vadd.f32 %v5605, %v5631
    %v5644 = vadd.f32 %v5606, %v5631
    %v5645 = vadd.f32 %v5607, %v5631
    %v5646 = vadd.f32 %v5608, %v5631
    %v5647 = vadd.f32 %v5609, %v5631
    %v5648 = vadd.f32 %v5610, %v5631
    %v5649 = vadd.f32 %v5611, %v5631
    %v5650 = vadd.f32 %v5612, %v5631
    %v5651 = vadd.f32 %v5613, %v5631
    %v5652 = vadd.f32 %v5614, %v5631
    %v5653 = vadd.f32 %v5615, %v5631
    %v5654 = vadd.f32 %v5616, %v5631
    %v5655 = vadd.f32 %v5617, %v5631
    %v5656 = vadd.f32 %v5618, %v5631
    %v5657 = vadd.f32 %v5619, %v5631
    %v5658 = vadd.f32 %v5620, %v5631
    %v5659 = vadd.f32 %v5621, %v5631
    %v5660 = vadd.f32 %v5622, %v5631
    %v5661 = vadd.f32 %v5623, %v5631
    %v5662 = vadd.f32 %v5624, %v5631
    %v5663 = vadd.f32 %v5625, %v5631
    %v5664 = vadd.f32 %v5626, %v5631
    %v5665 = vpack.c.bf16 %v5634, %v5633
    %v5666 = vpack.c.bf16 %v5636, %v5635
    %v5667 = vpack.c.bf16 %v5638, %v5637
    %v5668 = vpack.c.bf16 %v5640, %v5639
    %v5669 = vpack.c.bf16 %v5642, %v5641
    %v5670 = vpack.c.bf16 %v5644, %v5643
    %v5671 = vpack.c.bf16 %v5646, %v5645
    %v5672 = vpack.c.bf16 %v5648, %v5647
    %v5673 = vpack.c.bf16 %v5650, %v5649
    %v5674 = vpack.c.bf16 %v5652, %v5651
    %v5675 = vpack.c.bf16 %v5654, %v5653
    %v5676 = vpack.c.bf16 %v5656, %v5655
    %v5677 = vpack.c.bf16 %v5658, %v5657
    %v5678 = vpack.c.bf16 %v5660, %v5659
    %v5679 = vpack.c.bf16 %v5662, %v5661
    %v5680 = vpack.c.bf16 %v5664, %v5663
    %s5681 = scalar_lea.vmem [#allocation8], 64
    %v5682 = vld [vmem:[%s5681] sm:$0xf]
    %v5683 = vld [vmem:[%s5681 + $0x4] sm:$0xf]
    %v5684 = vld [vmem:[%s5681 + $0x8] sm:$0xf]
    %v5685 = vld [vmem:[%s5681 + $0xc] sm:$0xf]
    %v5686 = vld [vmem:[%s5681 + $0x10] sm:$0xf]
    %v5687 = vld [vmem:[%s5681 + $0x14] sm:$0xf]
    %v5688 = vld [vmem:[%s5681 + $0x18] sm:$0xf]
    %v5689 = vld [vmem:[%s5681 + $0x1c] sm:$0xf]
    %v5690 = vld [vmem:[%s5681 + $0x20] sm:$0xf]
    %v5691 = vld [vmem:[%s5681 + $0x24] sm:$0xf]
    %v5692 = vld [vmem:[%s5681 + $0x28] sm:$0xf]
    %v5693 = vld [vmem:[%s5681 + $0x2c] sm:$0xf]
    %v5694 = vld [vmem:[%s5681 + $0x30] sm:$0xf]
    %v5695 = vld [vmem:[%s5681 + $0x34] sm:$0xf]
    %v5696 = vld [vmem:[%s5681 + $0x38] sm:$0xf]
    %v5697 = vld [vmem:[%s5681 + $0x3c] sm:$0xf]
    %s5698 = scalar_lea.vmem %s9, 1
    %v5699 = vld [vmem:[%s5698] sm:$0x1]
    %v5701 = vlaneseq
    %v5702 = vshrl.u32 %v5701, 7
    %v5703 = vsub.s32 0, %v5702
    %v5704 = vrot.slane %v5699, %v5703
    %v5722 = vunpack.c.l.b16 %v5682
    %v5723 = vunpack.c.l.b16 %v5683
    %v5724 = vunpack.c.l.b16 %v5684
    %v5725 = vunpack.c.l.b16 %v5685
    %v5726 = vunpack.c.l.b16 %v5686
    %v5727 = vunpack.c.l.b16 %v5687
    %v5728 = vunpack.c.l.b16 %v5688
    %v5729 = vunpack.c.l.b16 %v5689
    %v5730 = vunpack.c.l.b16 %v5690
    %v5731 = vunpack.c.l.b16 %v5691
    %v5732 = vunpack.c.l.b16 %v5692
    %v5733 = vunpack.c.l.b16 %v5693
    %v5734 = vunpack.c.l.b16 %v5694
    %v5735 = vunpack.c.l.b16 %v5695
    %v5736 = vunpack.c.l.b16 %v5696
    %v5737 = vunpack.c.l.b16 %v5697
    %v5738 = vpack.c.b16 %v5723, %v5722
    %v5739 = vpack.c.b16 %v5725, %v5724
    %v5740 = vpack.c.b16 %v5727, %v5726
    %v5741 = vpack.c.b16 %v5729, %v5728
    %v5742 = vpack.c.b16 %v5731, %v5730
    %v5743 = vpack.c.b16 %v5733, %v5732
    %v5744 = vpack.c.b16 %v5735, %v5734
    %v5745 = vpack.c.b16 %v5737, %v5736
    %5754 = vmatprep.subr.bf16.mxu0 0
    %5755 = vmatpush1.bf16.msra.mxu0 %v5738
    %5756 = vmatprep.subr.bf16.mxu0 0
    %5757 = vmatpush1.bf16.msra.mxu0 %v5739
    %5758 = vmatprep.subr.bf16.mxu0 0
    %5759 = vmatpush1.bf16.msra.mxu0 %v5740
    %5760 = vmatprep.subr.bf16.mxu0 0
    %5761 = vmatpush1.bf16.msra.mxu0 %v5741
    %5762 = vmatprep.subr.bf16.mxu0 0
    %5763 = vmatpush1.bf16.msra.mxu0 %v5742
    %5764 = vmatprep.subr.bf16.mxu0 0
    %5765 = vmatpush1.bf16.msra.mxu0 %v5743
    %5766 = vmatprep.subr.bf16.mxu0 0
    %5767 = vmatpush1.bf16.msra.mxu0 %v5744
    %5768 = vmatprep.subr.bf16.mxu0 0
    %5769 = vmatpush1.bf16.msra.mxu0 %v5745
    %5770 = vmatprep.subr.bf16.mxu0 0
    %5771 = vmatpush1.bf16.msra.mxu0 0
    %5772 = vmatprep.subr.bf16.mxu0 0
    %5773 = vmatpush1.bf16.msra.mxu0 0
    %5774 = vmatprep.subr.bf16.mxu0 0
    %5775 = vmatpush1.bf16.msra.mxu0 0
    %5776 = vmatprep.subr.bf16.mxu0 0
    %5777 = vmatpush1.bf16.msra.mxu0 0
    %5778 = vmatprep.subr.bf16.mxu0 0
    %5779 = vmatpush1.bf16.msra.mxu0 0
    %5780 = vmatprep.subr.bf16.mxu0 0
    %5781 = vmatpush1.bf16.msra.mxu0 0
    %5782 = vmatprep.subr.bf16.mxu0 0
    %5783 = vmatpush1.bf16.msra.mxu0 0
    %5784 = vmatprep.subr.bf16.mxu0 0
    %5785 = vmatpush1.bf16.msra.mxu0 0
    %5786 = vmatprep.mubr.bf16.mxu0 0
    %5787 = vmatmul.mubr.bf16.gmra.mrb[0].mxu0 %v5665
    %v5788 = vpop.f32.mrb[0].mxu0
    %v5789 = vadd.f32 %v5704, %v5788
    %v5790 = vpop.f32.mrb[0].mxu0
    %v5791 = vpop.f32.mrb[0].mxu0
    %v5792 = vadd.f32 %v5704, %v5791
    %v5793 = vpop.f32.mrb[0].mxu0
    %5794 = vmatprep.mubr.bf16.mxu0 0
    %5795 = vmatmul.mubr.bf16.gmra.mrb[0].mxu0 %v5666
    %v5796 = vpop.f32.mrb[0].mxu0
    %v5797 = vadd.f32 %v5704, %v5796
    %v5798 = vpop.f32.mrb[0].mxu0
    %v5799 = vpop.f32.mrb[0].mxu0
    %v5800 = vadd.f32 %v5704, %v5799
    %v5801 = vpop.f32.mrb[0].mxu0
    %5802 = vmatprep.mubr.bf16.mxu0 0
    %5803 = vmatmul.mubr.bf16.gmra.mrb[0].mxu0 %v5667
    %v5804 = vpop.f32.mrb[0].mxu0
    %v5805 = vadd.f32 %v5704, %v5804
    %v5806 = vpop.f32.mrb[0].mxu0
    %v5807 = vpop.f32.mrb[0].mxu0
    %v5808 = vadd.f32 %v5704, %v5807
    %v5809 = vpop.f32.mrb[0].mxu0
    %5810 = vmatprep.mubr.bf16.mxu0 0
    %5811 = vmatmul.mubr.bf16.gmra.mrb[0].mxu0 %v5668
    %v5812 = vpop.f32.mrb[0].mxu0
    %v5813 = vadd.f32 %v5704, %v5812
    %v5814 = vpop.f32.mrb[0].mxu0
    %v5815 = vpop.f32.mrb[0].mxu0
    %v5816 = vadd.f32 %v5704, %v5815
    %v5817 = vpop.f32.mrb[0].mxu0
    %5818 = vmatprep.mubr.bf16.mxu0 0
    %5819 = vmatmul.mubr.bf16.gmra.mrb[0].mxu0 %v5669
    %v5820 = vpop.f32.mrb[0].mxu0
    %v5821 = vadd.f32 %v5704, %v5820
    %v5822 = vpop.f32.mrb[0].mxu0
    %v5823 = vpop.f32.mrb[0].mxu0
    %v5824 = vadd.f32 %v5704, %v5823
    %v5825 = vpop.f32.mrb[0].mxu0
    %5826 = vmatprep.mubr.bf16.mxu0 0
    %5827 = vmatmul.mubr.bf16.gmra.mrb[0].mxu0 %v5670
    %v5828 = vpop.f32.mrb[0].mxu0
    %v5829 = vadd.f32 %v5704, %v5828
    %v5830 = vpop.f32.mrb[0].mxu0
    %v5831 = vpop.f32.mrb[0].mxu0
    %v5832 = vadd.f32 %v5704, %v5831
    %v5833 = vpop.f32.mrb[0].mxu0
    %5834 = vmatprep.mubr.bf16.mxu0 0
    %5835 = vmatmul.mubr.bf16.gmra.mrb[0].mxu0 %v5671
    %v5836 = vpop.f32.mrb[0].mxu0
    %v5837 = vadd.f32 %v5704, %v5836
    %v5838 = vpop.f32.mrb[0].mxu0
    %v5839 = vpop.f32.mrb[0].mxu0
    %v5840 = vadd.f32 %v5704, %v5839
    %v5841 = vpop.f32.mrb[0].mxu0
    %5842 = vmatprep.mubr.bf16.mxu0 0
    %5843 = vmatmul.mubr.bf16.gmra.mrb[0].mxu0 %v5672
    %v5844 = vpop.f32.mrb[0].mxu0
    %v5845 = vadd.f32 %v5704, %v5844
    %v5846 = vpop.f32.mrb[0].mxu0
    %v5847 = vpop.f32.mrb[0].mxu0
    %v5848 = vadd.f32 %v5704, %v5847
    %v5849 = vpop.f32.mrb[0].mxu0
    %5850 = vmatprep.mubr.bf16.mxu0 0
    %5851 = vmatmul.mubr.bf16.gmra.mrb[0].mxu0 %v5673
    %v5852 = vpop.f32.mrb[0].mxu0
    %v5853 = vadd.f32 %v5704, %v5852
    %v5854 = vpop.f32.mrb[0].mxu0
    %v5855 = vpop.f32.mrb[0].mxu0
    %v5856 = vadd.f32 %v5704, %v5855
    %v5857 = vpop.f32.mrb[0].mxu0
    %5858 = vmatprep.mubr.bf16.mxu0 0
    %5859 = vmatmul.mubr.bf16.gmra.mrb[0].mxu0 %v5674
    %v5860 = vpop.f32.mrb[0].mxu0
    %v5861 = vadd.f32 %v5704, %v5860
    %v5862 = vpop.f32.mrb[0].mxu0
    %v5863 = vpop.f32.mrb[0].mxu0
    %v5864 = vadd.f32 %v5704, %v5863
    %v5865 = vpop.f32.mrb[0].mxu0
    %5866 = vmatprep.mubr.bf16.mxu0 0
    %5867 = vmatmul.mubr.bf16.gmra.mrb[0].mxu0 %v5675
    %v5868 = vpop.f32.mrb[0].mxu0
    %v5869 = vadd.f32 %v5704, %v5868
    %v5870 = vpop.f32.mrb[0].mxu0
    %v5871 = vpop.f32.mrb[0].mxu0
    %v5872 = vadd.f32 %v5704, %v5871
    %v5873 = vpop.f32.mrb[0].mxu0
    %5874 = vmatprep.mubr.bf16.mxu0 0
    %5875 = vmatmul.mubr.bf16.gmra.mrb[0].mxu0 %v5676
    %v5876 = vpop.f32.mrb[0].mxu0
    %v5877 = vadd.f32 %v5704, %v5876
    %v5878 = vpop.f32.mrb[0].mxu0
    %v5879 = vpop.f32.mrb[0].mxu0
    %v5880 = vadd.f32 %v5704, %v5879
    %v5881 = vpop.f32.mrb[0].mxu0
    %5882 = vmatprep.mubr.bf16.mxu0 0
    %5883 = vmatmul.mubr.bf16.gmra.mrb[0].mxu0 %v5677
    %v5884 = vpop.f32.mrb[0].mxu0
    %v5885 = vadd.f32 %v5704, %v5884
    %v5886 = vpop.f32.mrb[0].mxu0
    %v5887 = vpop.f32.mrb[0].mxu0
    %v5888 = vadd.f32 %v5704, %v5887
    %v5889 = vpop.f32.mrb[0].mxu0
    %5890 = vmatprep.mubr.bf16.mxu0 0
    %5891 = vmatmul.mubr.bf16.gmra.mrb[0].mxu0 %v5678
    %v5892 = vpop.f32.mrb[0].mxu0
    %v5893 = vadd.f32 %v5704, %v5892
    %v5894 = vpop.f32.mrb[0].mxu0
    %v5895 = vpop.f32.mrb[0].mxu0
    %v5896 = vadd.f32 %v5704, %v5895
    %v5897 = vpop.f32.mrb[0].mxu0
    %5898 = vmatprep.mubr.bf16.mxu0 0
    %5899 = vmatmul.mubr.bf16.gmra.mrb[0].mxu0 %v5679
    %v5900 = vpop.f32.mrb[0].mxu0
    %v5901 = vadd.f32 %v5704, %v5900
    %v5902 = vpop.f32.mrb[0].mxu0
    %v5903 = vpop.f32.mrb[0].mxu0
    %v5904 = vadd.f32 %v5704, %v5903
    %v5905 = vpop.f32.mrb[0].mxu0
    %5906 = vmatprep.mubr.bf16.mxu0 0
    %5907 = vmatmul.mubr.bf16.gmra.mrb[0].mxu0 %v5680
    %v5908 = vpop.f32.mrb[0].mxu0
    %v5909 = vadd.f32 %v5704, %v5908
    %v5910 = vpop.f32.mrb[0].mxu0
    %v5911 = vpop.f32.mrb[0].mxu0
    %v5912 = vadd.f32 %v5704, %v5911
    %v5913 = vpop.f32.mrb[0].mxu0
    %5914 = vdwg.mxu0
    %v5915 = vmax.f32 %v5789, 0.0
    %v5916 = vmax.f32 %v5792, 0.0
    %v5917 = vmax.f32 %v5797, 0.0
    %v5918 = vmax.f32 %v5800, 0.0
    %v5919 = vmax.f32 %v5805, 0.0
    %v5920 = vmax.f32 %v5808, 0.0
    %v5921 = vmax.f32 %v5813, 0.0
    %v5922 = vmax.f32 %v5816, 0.0
    %v5923 = vmax.f32 %v5821, 0.0
    %v5924 = vmax.f32 %v5824, 0.0
    %v5925 = vmax.f32 %v5829, 0.0
    %v5926 = vmax.f32 %v5832, 0.0
    %v5927 = vmax.f32 %v5837, 0.0
    %v5928 = vmax.f32 %v5840, 0.0
    %v5929 = vmax.f32 %v5845, 0.0
    %v5930 = vmax.f32 %v5848, 0.0
    %v5931 = vmax.f32 %v5853, 0.0
    %v5932 = vmax.f32 %v5856, 0.0
    %v5933 = vmax.f32 %v5861, 0.0
    %v5934 = vmax.f32 %v5864, 0.0
    %v5935 = vmax.f32 %v5869, 0.0
    %v5936 = vmax.f32 %v5872, 0.0
    %v5937 = vmax.f32 %v5877, 0.0
    %v5938 = vmax.f32 %v5880, 0.0
    %v5939 = vmax.f32 %v5885, 0.0
    %v5940 = vmax.f32 %v5888, 0.0
    %v5941 = vmax.f32 %v5893, 0.0
    %v5942 = vmax.f32 %v5896, 0.0
    %v5943 = vmax.f32 %v5901, 0.0
    %v5944 = vmax.f32 %v5904, 0.0
    %v5945 = vmax.f32 %v5909, 0.0
    %v5946 = vmax.f32 %v5912, 0.0
    %v5947 = vpack.c.bf16 %v5916, %v5915
    %v5948 = vpack.c.bf16 %v5918, %v5917
    %v5949 = vpack.c.bf16 %v5920, %v5919
    %v5950 = vpack.c.bf16 %v5922, %v5921
    %v5951 = vpack.c.bf16 %v5924, %v5923
    %v5952 = vpack.c.bf16 %v5926, %v5925
    %v5953 = vpack.c.bf16 %v5928, %v5927
    %v5954 = vpack.c.bf16 %v5930, %v5929
    %v5955 = vpack.c.bf16 %v5932, %v5931
    %v5956 = vpack.c.bf16 %v5934, %v5933
    %v5957 = vpack.c.bf16 %v5936, %v5935
    %v5958 = vpack.c.bf16 %v5938, %v5937
    %v5959 = vpack.c.bf16 %v5940, %v5939
    %v5960 = vpack.c.bf16 %v5942, %v5941
    %v5961 = vpack.c.bf16 %v5944, %v5943
    %v5962 = vpack.c.bf16 %v5946, %v5945
    %s5963 = scalar_lea.vmem [#allocation9], 64
    %v5964 = vld [vmem:[%s5963] sm:$0xf]
    %v5965 = vld [vmem:[%s5963 + $0x4] sm:$0xf]
    %v5966 = vld [vmem:[%s5963 + $0x8] sm:$0xf]
    %v5967 = vld [vmem:[%s5963 + $0xc] sm:$0xf]
    %v5968 = vld [vmem:[%s5963 + $0x10] sm:$0xf]
    %v5969 = vld [vmem:[%s5963 + $0x14] sm:$0xf]
    %v5970 = vld [vmem:[%s5963 + $0x18] sm:$0xf]
    %v5971 = vld [vmem:[%s5963 + $0x1c] sm:$0xf]
    %v5972 = vld [vmem:[%s5963 + $0x20] sm:$0xf]
    %v5973 = vld [vmem:[%s5963 + $0x24] sm:$0xf]
    %v5974 = vld [vmem:[%s5963 + $0x28] sm:$0xf]
    %v5975 = vld [vmem:[%s5963 + $0x2c] sm:$0xf]
    %v5976 = vld [vmem:[%s5963 + $0x30] sm:$0xf]
    %v5977 = vld [vmem:[%s5963 + $0x34] sm:$0xf]
    %v5978 = vld [vmem:[%s5963 + $0x38] sm:$0xf]
    %v5979 = vld [vmem:[%s5963 + $0x3c] sm:$0xf]
    %s5980 = scalar_lea.vmem %s11, 1
    %v5981 = vld [vmem:[%s5980] sm:$0x1]
    %v5983 = vlaneseq
    %v5984 = vshrl.u32 %v5983, 7
    %v5985 = vsub.s32 0, %v5984
    %v5986 = vrot.slane %v5981, %v5985
    %v6004 = vunpack.c.l.b16 %v5964
    %v6005 = vunpack.c.l.b16 %v5965
    %v6006 = vunpack.c.l.b16 %v5966
    %v6007 = vunpack.c.l.b16 %v5967
    %v6008 = vunpack.c.l.b16 %v5968
    %v6009 = vunpack.c.l.b16 %v5969
    %v6010 = vunpack.c.l.b16 %v5970
    %v6011 = vunpack.c.l.b16 %v5971
    %v6012 = vunpack.c.l.b16 %v5972
    %v6013 = vunpack.c.l.b16 %v5973
    %v6014 = vunpack.c.l.b16 %v5974
    %v6015 = vunpack.c.l.b16 %v5975
    %v6016 = vunpack.c.l.b16 %v5976
    %v6017 = vunpack.c.l.b16 %v5977
    %v6018 = vunpack.c.l.b16 %v5978
    %v6019 = vunpack.c.l.b16 %v5979
    %v6020 = vpack.c.b16 %v6005, %v6004
    %v6021 = vpack.c.b16 %v6007, %v6006
    %v6022 = vpack.c.b16 %v6009, %v6008
    %v6023 = vpack.c.b16 %v6011, %v6010
    %v6024 = vpack.c.b16 %v6013, %v6012
    %v6025 = vpack.c.b16 %v6015, %v6014
    %v6026 = vpack.c.b16 %v6017, %v6016
    %v6027 = vpack.c.b16 %v6019, %v6018
    %6036 = vmatprep.subr.bf16.mxu0 0
    %6037 = vmatpush1.bf16.msra.mxu0 %v6020
    %6038 = vmatprep.subr.bf16.mxu0 0
    %6039 = vmatpush1.bf16.msra.mxu0 %v6021
    %6040 = vmatprep.subr.bf16.mxu0 0
    %6041 = vmatpush1.bf16.msra.mxu0 %v6022
    %6042 = vmatprep.subr.bf16.mxu0 0
    %6043 = vmatpush1.bf16.msra.mxu0 %v6023
    %6044 = vmatprep.subr.bf16.mxu0 0
    %6045 = vmatpush1.bf16.msra.mxu0 %v6024
    %6046 = vmatprep.subr.bf16.mxu0 0
    %6047 = vmatpush1.bf16.msra.mxu0 %v6025
    %6048 = vmatprep.subr.bf16.mxu0 0
    %6049 = vmatpush1.bf16.msra.mxu0 %v6026
    %6050 = vmatprep.subr.bf16.mxu0 0
    %6051 = vmatpush1.bf16.msra.mxu0 %v6027
    %6052 = vmatprep.subr.bf16.mxu0 0
    %6053 = vmatpush1.bf16.msra.mxu0 0
    %6054 = vmatprep.subr.bf16.mxu0 0
    %6055 = vmatpush1.bf16.msra.mxu0 0
    %6056 = vmatprep.subr.bf16.mxu0 0
    %6057 = vmatpush1.bf16.msra.mxu0 0
    %6058 = vmatprep.subr.bf16.mxu0 0
    %6059 = vmatpush1.bf16.msra.mxu0 0
    %6060 = vmatprep.subr.bf16.mxu0 0
    %6061 = vmatpush1.bf16.msra.mxu0 0
    %6062 = vmatprep.subr.bf16.mxu0 0
    %6063 = vmatpush1.bf16.msra.mxu0 0
    %6064 = vmatprep.subr.bf16.mxu0 0
    %6065 = vmatpush1.bf16.msra.mxu0 0
    %6066 = vmatprep.subr.bf16.mxu0 0
    %6067 = vmatpush1.bf16.msra.mxu0 0
    %6068 = vmatprep.mubr.bf16.mxu0 0
    %6069 = vmatmul.mubr.bf16.gmra.mrb[0].mxu0 %v5947
    %v6070 = vpop.f32.mrb[0].mxu0
    %v6071 = vadd.f32 %v5986, %v6070
    %v6072 = vpop.f32.mrb[0].mxu0
    %v6073 = vpop.f32.mrb[0].mxu0
    %v6074 = vadd.f32 %v5986, %v6073
    %v6075 = vpop.f32.mrb[0].mxu0
    %6076 = vmatprep.mubr.bf16.mxu0 0
    %6077 = vmatmul.mubr.bf16.gmra.mrb[0].mxu0 %v5948
    %v6078 = vpop.f32.mrb[0].mxu0
    %v6079 = vadd.f32 %v5986, %v6078
    %v6080 = vpop.f32.mrb[0].mxu0
    %v6081 = vpop.f32.mrb[0].mxu0
    %v6082 = vadd.f32 %v5986, %v6081
    %v6083 = vpop.f32.mrb[0].mxu0
    %6084 = vmatprep.mubr.bf16.mxu0 0
    %6085 = vmatmul.mubr.bf16.gmra.mrb[0].mxu0 %v5949
    %v6086 = vpop.f32.mrb[0].mxu0
    %v6087 = vadd.f32 %v5986, %v6086
    %v6088 = vpop.f32.mrb[0].mxu0
    %v6089 = vpop.f32.mrb[0].mxu0
    %v6090 = vadd.f32 %v5986, %v6089
    %v6091 = vpop.f32.mrb[0].mxu0
    %6092 = vmatprep.mubr.bf16.mxu0 0
    %6093 = vmatmul.mubr.bf16.gmra.mrb[0].mxu0 %v5950
    %v6094 = vpop.f32.mrb[0].mxu0
    %v6095 = vadd.f32 %v5986, %v6094
    %v6096 = vpop.f32.mrb[0].mxu0
    %v6097 = vpop.f32.mrb[0].mxu0
    %v6098 = vadd.f32 %v5986, %v6097
    %v6099 = vpop.f32.mrb[0].mxu0
    %6100 = vmatprep.mubr.bf16.mxu0 0
    %6101 = vmatmul.mubr.bf16.gmra.mrb[0].mxu0 %v5951
    %v6102 = vpop.f32.mrb[0].mxu0
    %v6103 = vadd.f32 %v5986, %v6102
    %v6104 = vpop.f32.mrb[0].mxu0
    %v6105 = vpop.f32.mrb[0].mxu0
    %v6106 = vadd.f32 %v5986, %v6105
    %v6107 = vpop.f32.mrb[0].mxu0
    %6108 = vmatprep.mubr.bf16.mxu0 0
    %6109 = vmatmul.mubr.bf16.gmra.mrb[0].mxu0 %v5952
    %v6110 = vpop.f32.mrb[0].mxu0
    %v6111 = vadd.f32 %v5986, %v6110
    %v6112 = vpop.f32.mrb[0].mxu0
    %v6113 = vpop.f32.mrb[0].mxu0
    %v6114 = vadd.f32 %v5986, %v6113
    %v6115 = vpop.f32.mrb[0].mxu0
    %6116 = vmatprep.mubr.bf16.mxu0 0
    %6117 = vmatmul.mubr.bf16.gmra.mrb[0].mxu0 %v5953
    %v6118 = vpop.f32.mrb[0].mxu0
    %v6119 = vadd.f32 %v5986, %v6118
    %v6120 = vpop.f32.mrb[0].mxu0
    %v6121 = vpop.f32.mrb[0].mxu0
    %v6122 = vadd.f32 %v5986, %v6121
    %v6123 = vpop.f32.mrb[0].mxu0
    %6124 = vmatprep.mubr.bf16.mxu0 0
    %6125 = vmatmul.mubr.bf16.gmra.mrb[0].mxu0 %v5954
    %v6126 = vpop.f32.mrb[0].mxu0
    %v6127 = vadd.f32 %v5986, %v6126
    %v6128 = vpop.f32.mrb[0].mxu0
    %v6129 = vpop.f32.mrb[0].mxu0
    %v6130 = vadd.f32 %v5986, %v6129
    %v6131 = vpop.f32.mrb[0].mxu0
    %6132 = vmatprep.mubr.bf16.mxu0 0
    %6133 = vmatmul.mubr.bf16.gmra.mrb[0].mxu0 %v5955
    %v6134 = vpop.f32.mrb[0].mxu0
    %v6135 = vadd.f32 %v5986, %v6134
    %v6136 = vpop.f32.mrb[0].mxu0
    %v6137 = vpop.f32.mrb[0].mxu0
    %v6138 = vadd.f32 %v5986, %v6137
    %v6139 = vpop.f32.mrb[0].mxu0
    %6140 = vmatprep.mubr.bf16.mxu0 0
    %6141 = vmatmul.mubr.bf16.gmra.mrb[0].mxu0 %v5956
    %v6142 = vpop.f32.mrb[0].mxu0
    %v6143 = vadd.f32 %v5986, %v6142
    %v6144 = vpop.f32.mrb[0].mxu0
    %v6145 = vpop.f32.mrb[0].mxu0
    %v6146 = vadd.f32 %v5986, %v6145
    %v6147 = vpop.f32.mrb[0].mxu0
    %6148 = vmatprep.mubr.bf16.mxu0 0
    %6149 = vmatmul.mubr.bf16.gmra.mrb[0].mxu0 %v5957
    %v6150 = vpop.f32.mrb[0].mxu0
    %v6151 = vadd.f32 %v5986, %v6150
    %v6152 = vpop.f32.mrb[0].mxu0
    %v6153 = vpop.f32.mrb[0].mxu0
    %v6154 = vadd.f32 %v5986, %v6153
    %v6155 = vpop.f32.mrb[0].mxu0
    %6156 = vmatprep.mubr.bf16.mxu0 0
    %6157 = vmatmul.mubr.bf16.gmra.mrb[0].mxu0 %v5958
    %v6158 = vpop.f32.mrb[0].mxu0
    %v6159 = vadd.f32 %v5986, %v6158
    %v6160 = vpop.f32.mrb[0].mxu0
    %v6161 = vpop.f32.mrb[0].mxu0
    %v6162 = vadd.f32 %v5986, %v6161
    %v6163 = vpop.f32.mrb[0].mxu0
    %6164 = vmatprep.mubr.bf16.mxu0 0
    %6165 = vmatmul.mubr.bf16.gmra.mrb[0].mxu0 %v5959
    %v6166 = vpop.f32.mrb[0].mxu0
    %v6167 = vadd.f32 %v5986, %v6166
    %v6168 = vpop.f32.mrb[0].mxu0
    %v6169 = vpop.f32.mrb[0].mxu0
    %v6170 = vadd.f32 %v5986, %v6169
    %v6171 = vpop.f32.mrb[0].mxu0
    %6172 = vmatprep.mubr.bf16.mxu0 0
    %6173 = vmatmul.mubr.bf16.gmra.mrb[0].mxu0 %v5960
    %v6174 = vpop.f32.mrb[0].mxu0
    %v6175 = vadd.f32 %v5986, %v6174
    %v6176 = vpop.f32.mrb[0].mxu0
    %v6177 = vpop.f32.mrb[0].mxu0
    %v6178 = vadd.f32 %v5986, %v6177
    %v6179 = vpop.f32.mrb[0].mxu0
    %6180 = vmatprep.mubr.bf16.mxu0 0
    %6181 = vmatmul.mubr.bf16.gmra.mrb[0].mxu0 %v5961
    %v6182 = vpop.f32.mrb[0].mxu0
    %v6183 = vadd.f32 %v5986, %v6182
    %v6184 = vpop.f32.mrb[0].mxu0
    %v6185 = vpop.f32.mrb[0].mxu0
    %v6186 = vadd.f32 %v5986, %v6185
    %v6187 = vpop.f32.mrb[0].mxu0
    %6188 = vmatprep.mubr.bf16.mxu0 0
    %6189 = vmatmul.mubr.bf16.gmra.mrb[0].mxu0 %v5962
    %v6190 = vpop.f32.mrb[0].mxu0
    %v6191 = vadd.f32 %v5986, %v6190
    %v6192 = vpop.f32.mrb[0].mxu0
    %v6193 = vpop.f32.mrb[0].mxu0
    %v6194 = vadd.f32 %v5986, %v6193
    %v6195 = vpop.f32.mrb[0].mxu0
    %6196 = vdwg.mxu0
    %v6197 = vadd.f32 %v5633, %v6071
    %v6198 = vadd.f32 %v5634, %v6074
    %v6199 = vadd.f32 %v5635, %v6079
    %v6200 = vadd.f32 %v5636, %v6082
    %v6201 = vadd.f32 %v5637, %v6087
    %v6202 = vadd.f32 %v5638, %v6090
    %v6203 = vadd.f32 %v5639, %v6095
    %v6204 = vadd.f32 %v5640, %v6098
    %v6205 = vadd.f32 %v5641, %v6103
    %v6206 = vadd.f32 %v5642, %v6106
    %v6207 = vadd.f32 %v5643, %v6111
    %v6208 = vadd.f32 %v5644, %v6114
    %v6209 = vadd.f32 %v5645, %v6119
    %v6210 = vadd.f32 %v5646, %v6122
    %v6211 = vadd.f32 %v5647, %v6127
    %v6212 = vadd.f32 %v5648, %v6130
    %v6213 = vadd.f32 %v5649, %v6135
    %v6214 = vadd.f32 %v5650, %v6138
    %v6215 = vadd.f32 %v5651, %v6143
    %v6216 = vadd.f32 %v5652, %v6146
    %v6217 = vadd.f32 %v5653, %v6151
    %v6218 = vadd.f32 %v5654, %v6154
    %v6219 = vadd.f32 %v5655, %v6159
    %v6220 = vadd.f32 %v5656, %v6162
    %v6221 = vadd.f32 %v5657, %v6167
    %v6222 = vadd.f32 %v5658, %v6170
    %v6223 = vadd.f32 %v5659, %v6175
    %v6224 = vadd.f32 %v5660, %v6178
    %v6225 = vadd.f32 %v5661, %v6183
    %v6226 = vadd.f32 %v5662, %v6186
    %v6227 = vadd.f32 %v5663, %v6191
    %v6228 = vadd.f32 %v5664, %v6194
    %s6229 = scalar_lea.vmem %s14, 1
    %v6230 = vld [vmem:[%s6229] sm:$0x1]
    %s6231 = scalar_lea.vmem %s15, 1
    %v6232 = vld [vmem:[%s6231] sm:$0x1]
    %6233 = vadd.xlane.f32.xlu0 %v6197
    %v6234 = vpop.xlane.xlu0 %6233
    %6235 = vadd.xlane.f32.xlu0 %v6198
    %v6236 = vpop.xlane.xlu0 %6235
    %6237 = vadd.xlane.f32.xlu0 %v6199
    %v6238 = vpop.xlane.xlu0 %6237
    %6239 = vadd.xlane.f32.xlu0 %v6200
    %v6240 = vpop.xlane.xlu0 %6239
    %6241 = vadd.xlane.f32.xlu0 %v6201
    %v6242 = vpop.xlane.xlu0 %6241
    %6243 = vadd.xlane.f32.xlu0 %v6202
    %v6244 = vpop.xlane.xlu0 %6243
    %6245 = vadd.xlane.f32.xlu0 %v6203
    %v6246 = vpop.xlane.xlu0 %6245
    %6247 = vadd.xlane.f32.xlu0 %v6204
    %v6248 = vpop.xlane.xlu0 %6247
    %6249 = vadd.xlane.f32.xlu0 %v6205
    %v6250 = vpop.xlane.xlu0 %6249
    %6251 = vadd.xlane.f32.xlu0 %v6206
    %v6252 = vpop.xlane.xlu0 %6251
    %6253 = vadd.xlane.f32.xlu0 %v6207
    %v6254 = vpop.xlane.xlu0 %6253
    %6255 = vadd.xlane.f32.xlu0 %v6208
    %v6256 = vpop.xlane.xlu0 %6255
    %6257 = vadd.xlane.f32.xlu0 %v6209
    %v6258 = vpop.xlane.xlu0 %6257
    %6259 = vadd.xlane.f32.xlu0 %v6210
    %v6260 = vpop.xlane.xlu0 %6259
    %6261 = vadd.xlane.f32.xlu0 %v6211
    %v6262 = vpop.xlane.xlu0 %6261
    %6263 = vadd.xlane.f32.xlu0 %v6212
    %v6264 = vpop.xlane.xlu0 %6263
    %6265 = vadd.xlane.f32.xlu0 %v6213
    %v6266 = vpop.xlane.xlu0 %6265
    %6267 = vadd.xlane.f32.xlu0 %v6214
    %v6268 = vpop.xlane.xlu0 %6267
    %6269 = vadd.xlane.f32.xlu0 %v6215
    %v6270 = vpop.xlane.xlu0 %6269
    %6271 = vadd.xlane.f32.xlu0 %v6216
    %v6272 = vpop.xlane.xlu0 %6271
    %6273 = vadd.xlane.f32.xlu0 %v6217
    %v6274 = vpop.xlane.xlu0 %6273
    %6275 = vadd.xlane.f32.xlu0 %v6218
    %v6276 = vpop.xlane.xlu0 %6275
    %6277 = vadd.xlane.f32.xlu0 %v6219
    %v6278 = vpop.xlane.xlu0 %6277
    %6279 = vadd.xlane.f32.xlu0 %v6220
    %v6280 = vpop.xlane.xlu0 %6279
    %6281 = vadd.xlane.f32.xlu0 %v6221
    %v6282 = vpop.xlane.xlu0 %6281
    %6283 = vadd.xlane.f32.xlu0 %v6222
    %v6284 = vpop.xlane.xlu0 %6283
    %6285 = vadd.xlane.f32.xlu0 %v6223
    %v6286 = vpop.xlane.xlu0 %6285
    %6287 = vadd.xlane.f32.xlu0 %v6224
    %v6288 = vpop.xlane.xlu0 %6287
    %6289 = vadd.xlane.f32.xlu0 %v6225
    %v6290 = vpop.xlane.xlu0 %6289
    %6291 = vadd.xlane.f32.xlu0 %v6226
    %v6292 = vpop.xlane.xlu0 %6291
    %6293 = vadd.xlane.f32.xlu0 %v6227
    %v6294 = vpop.xlane.xlu0 %6293
    %6295 = vadd.xlane.f32.xlu0 %v6228
    %v6296 = vpop.xlane.xlu0 %6295
    %v6297 = vmul.f32 %v6234, %v2214
    %v6298 = vmul.f32 %v6236, %v2214
    %v6299 = vmul.f32 %v6238, %v2214
    %v6300 = vmul.f32 %v6240, %v2214
    %v6301 = vmul.f32 %v6242, %v2214
    %v6302 = vmul.f32 %v6244, %v2214
    %v6303 = vmul.f32 %v6246, %v2214
    %v6304 = vmul.f32 %v6248, %v2214
    %v6305 = vmul.f32 %v6250, %v2214
    %v6306 = vmul.f32 %v6252, %v2214
    %v6307 = vmul.f32 %v6254, %v2214
    %v6308 = vmul.f32 %v6256, %v2214
    %v6309 = vmul.f32 %v6258, %v2214
    %v6310 = vmul.f32 %v6260, %v2214
    %v6311 = vmul.f32 %v6262, %v2214
    %v6312 = vmul.f32 %v6264, %v2214
    %v6313 = vmul.f32 %v6266, %v2214
    %v6314 = vmul.f32 %v6268, %v2214
    %v6315 = vmul.f32 %v6270, %v2214
    %v6316 = vmul.f32 %v6272, %v2214
    %v6317 = vmul.f32 %v6274, %v2214
    %v6318 = vmul.f32 %v6276, %v2214
    %v6319 = vmul.f32 %v6278, %v2214
    %v6320 = vmul.f32 %v6280, %v2214
    %v6321 = vmul.f32 %v6282, %v2214
    %v6322 = vmul.f32 %v6284, %v2214
    %v6323 = vmul.f32 %v6286, %v2214
    %v6324 = vmul.f32 %v6288, %v2214
    %v6325 = vmul.f32 %v6290, %v2214
    %v6326 = vmul.f32 %v6292, %v2214
    %v6327 = vmul.f32 %v6294, %v2214
    %v6328 = vmul.f32 %v6296, %v2214
    %v6329 = vsub.f32 %v6197, %v6297
    %v6330 = vsub.f32 %v6198, %v6298
    %v6331 = vsub.f32 %v6199, %v6299
    %v6332 = vsub.f32 %v6200, %v6300
    %v6333 = vsub.f32 %v6201, %v6301
    %v6334 = vsub.f32 %v6202, %v6302
    %v6335 = vsub.f32 %v6203, %v6303
    %v6336 = vsub.f32 %v6204, %v6304
    %v6337 = vsub.f32 %v6205, %v6305
    %v6338 = vsub.f32 %v6206, %v6306
    %v6339 = vsub.f32 %v6207, %v6307
    %v6340 = vsub.f32 %v6208, %v6308
    %v6341 = vsub.f32 %v6209, %v6309
    %v6342 = vsub.f32 %v6210, %v6310
    %v6343 = vsub.f32 %v6211, %v6311
    %v6344 = vsub.f32 %v6212, %v6312
    %v6345 = vsub.f32 %v6213, %v6313
    %v6346 = vsub.f32 %v6214, %v6314
    %v6347 = vsub.f32 %v6215, %v6315
    %v6348 = vsub.f32 %v6216, %v6316
    %v6349 = vsub.f32 %v6217, %v6317
    %v6350 = vsub.f32 %v6218, %v6318
    %v6351 = vsub.f32 %v6219, %v6319
    %v6352 = vsub.f32 %v6220, %v6320
    %v6353 = vsub.f32 %v6221, %v6321
    %v6354 = vsub.f32 %v6222, %v6322
    %v6355 = vsub.f32 %v6223, %v6323
    %v6356 = vsub.f32 %v6224, %v6324
    %v6357 = vsub.f32 %v6225, %v6325
    %v6358 = vsub.f32 %v6226, %v6326
    %v6359 = vsub.f32 %v6227, %v6327
    %v6360 = vsub.f32 %v6228, %v6328
    %v6361 = vmul.f32 %v6329, %v6329
    %v6362 = vmul.f32 %v6330, %v6330
    %v6363 = vmul.f32 %v6331, %v6331
    %v6364 = vmul.f32 %v6332, %v6332
    %v6365 = vmul.f32 %v6333, %v6333
    %v6366 = vmul.f32 %v6334, %v6334
    %v6367 = vmul.f32 %v6335, %v6335
    %v6368 = vmul.f32 %v6336, %v6336
    %v6369 = vmul.f32 %v6337, %v6337
    %v6370 = vmul.f32 %v6338, %v6338
    %v6371 = vmul.f32 %v6339, %v6339
    %v6372 = vmul.f32 %v6340, %v6340
    %v6373 = vmul.f32 %v6341, %v6341
    %v6374 = vmul.f32 %v6342, %v6342
    %v6375 = vmul.f32 %v6343, %v6343
    %v6376 = vmul.f32 %v6344, %v6344
    %v6377 = vmul.f32 %v6345, %v6345
    %v6378 = vmul.f32 %v6346, %v6346
    %v6379 = vmul.f32 %v6347, %v6347
    %v6380 = vmul.f32 %v6348, %v6348
    %v6381 = vmul.f32 %v6349, %v6349
    %v6382 = vmul.f32 %v6350, %v6350
    %v6383 = vmul.f32 %v6351, %v6351
    %v6384 = vmul.f32 %v6352, %v6352
    %v6385 = vmul.f32 %v6353, %v6353
    %v6386 = vmul.f32 %v6354, %v6354
    %v6387 = vmul.f32 %v6355, %v6355
    %v6388 = vmul.f32 %v6356, %v6356
    %v6389 = vmul.f32 %v6357, %v6357
    %v6390 = vmul.f32 %v6358, %v6358
    %v6391 = vmul.f32 %v6359, %v6359
    %v6392 = vmul.f32 %v6360, %v6360
    %6393 = vadd.xlane.f32.xlu0 %v6361
    %v6394 = vpop.xlane.xlu0 %6393
    %6395 = vadd.xlane.f32.xlu0 %v6362
    %v6396 = vpop.xlane.xlu0 %6395
    %6397 = vadd.xlane.f32.xlu0 %v6363
    %v6398 = vpop.xlane.xlu0 %6397
    %6399 = vadd.xlane.f32.xlu0 %v6364
    %v6400 = vpop.xlane.xlu0 %6399
    %6401 = vadd.xlane.f32.xlu0 %v6365
    %v6402 = vpop.xlane.xlu0 %6401
    %6403 = vadd.xlane.f32.xlu0 %v6366
    %v6404 = vpop.xlane.xlu0 %6403
    %6405 = vadd.xlane.f32.xlu0 %v6367
    %v6406 = vpop.xlane.xlu0 %6405
    %6407 = vadd.xlane.f32.xlu0 %v6368
    %v6408 = vpop.xlane.xlu0 %6407
    %6409 = vadd.xlane.f32.xlu0 %v6369
    %v6410 = vpop.xlane.xlu0 %6409
    %6411 = vadd.xlane.f32.xlu0 %v6370
    %v6412 = vpop.xlane.xlu0 %6411
    %6413 = vadd.xlane.f32.xlu0 %v6371
    %v6414 = vpop.xlane.xlu0 %6413
    %6415 = vadd.xlane.f32.xlu0 %v6372
    %v6416 = vpop.xlane.xlu0 %6415
    %6417 = vadd.xlane.f32.xlu0 %v6373
    %v6418 = vpop.xlane.xlu0 %6417
    %6419 = vadd.xlane.f32.xlu0 %v6374
    %v6420 = vpop.xlane.xlu0 %6419
    %6421 = vadd.xlane.f32.xlu0 %v6375
    %v6422 = vpop.xlane.xlu0 %6421
    %6423 = vadd.xlane.f32.xlu0 %v6376
    %v6424 = vpop.xlane.xlu0 %6423
    %6425 = vadd.xlane.f32.xlu0 %v6377
    %v6426 = vpop.xlane.xlu0 %6425
    %6427 = vadd.xlane.f32.xlu0 %v6378
    %v6428 = vpop.xlane.xlu0 %6427
    %6429 = vadd.xlane.f32.xlu0 %v6379
    %v6430 = vpop.xlane.xlu0 %6429
    %6431 = vadd.xlane.f32.xlu0 %v6380
    %v6432 = vpop.xlane.xlu0 %6431
    %6433 = vadd.xlane.f32.xlu0 %v6381
    %v6434 = vpop.xlane.xlu0 %6433
    %6435 = vadd.xlane.f32.xlu0 %v6382
    %v6436 = vpop.xlane.xlu0 %6435
    %6437 = vadd.xlane.f32.xlu0 %v6383
    %v6438 = vpop.xlane.xlu0 %6437
    %6439 = vadd.xlane.f32.xlu0 %v6384
    %v6440 = vpop.xlane.xlu0 %6439
    %6441 = vadd.xlane.f32.xlu0 %v6385
    %v6442 = vpop.xlane.xlu0 %6441
    %6443 = vadd.xlane.f32.xlu0 %v6386
    %v6444 = vpop.xlane.xlu0 %6443
    %6445 = vadd.xlane.f32.xlu0 %v6387
    %v6446 = vpop.xlane.xlu0 %6445
    %6447 = vadd.xlane.f32.xlu0 %v6388
    %v6448 = vpop.xlane.xlu0 %6447
    %6449 = vadd.xlane.f32.xlu0 %v6389
    %v6450 = vpop.xlane.xlu0 %6449
    %6451 = vadd.xlane.f32.xlu0 %v6390
    %v6452 = vpop.xlane.xlu0 %6451
    %6453 = vadd.xlane.f32.xlu0 %v6391
    %v6454 = vpop.xlane.xlu0 %6453
    %6455 = vadd.xlane.f32.xlu0 %v6392
    %v6456 = vpop.xlane.xlu0 %6455
    %v6457 = vmul.f32 %v6394, %v2214
    %v6458 = vmul.f32 %v6396, %v2214
    %v6459 = vmul.f32 %v6398, %v2214
    %v6460 = vmul.f32 %v6400, %v2214
    %v6461 = vmul.f32 %v6402, %v2214
    %v6462 = vmul.f32 %v6404, %v2214
    %v6463 = vmul.f32 %v6406, %v2214
    %v6464 = vmul.f32 %v6408, %v2214
    %v6465 = vmul.f32 %v6410, %v2214
    %v6466 = vmul.f32 %v6412, %v2214
    %v6467 = vmul.f32 %v6414, %v2214
    %v6468 = vmul.f32 %v6416, %v2214
    %v6469 = vmul.f32 %v6418, %v2214
    %v6470 = vmul.f32 %v6420, %v2214
    %v6471 = vmul.f32 %v6422, %v2214
    %v6472 = vmul.f32 %v6424, %v2214
    %v6473 = vmul.f32 %v6426, %v2214
    %v6474 = vmul.f32 %v6428, %v2214
    %v6475 = vmul.f32 %v6430, %v2214
    %v6476 = vmul.f32 %v6432, %v2214
    %v6477 = vmul.f32 %v6434, %v2214
    %v6478 = vmul.f32 %v6436, %v2214
    %v6479 = vmul.f32 %v6438, %v2214
    %v6480 = vmul.f32 %v6440, %v2214
    %v6481 = vmul.f32 %v6442, %v2214
    %v6482 = vmul.f32 %v6444, %v2214
    %v6483 = vmul.f32 %v6446, %v2214
    %v6484 = vmul.f32 %v6448, %v2214
    %v6485 = vmul.f32 %v6450, %v2214
    %v6486 = vmul.f32 %v6452, %v2214
    %v6487 = vmul.f32 %v6454, %v2214
    %v6488 = vmul.f32 %v6456, %v2214
    %v6489 = vadd.f32 %v6457, 1e-05
    %v6490 = vadd.f32 %v6458, 1e-05
    %v6491 = vadd.f32 %v6459, 1e-05
    %v6492 = vadd.f32 %v6460, 1e-05
    %v6493 = vadd.f32 %v6461, 1e-05
    %v6494 = vadd.f32 %v6462, 1e-05
    %v6495 = vadd.f32 %v6463, 1e-05
    %v6496 = vadd.f32 %v6464, 1e-05
    %v6497 = vadd.f32 %v6465, 1e-05
    %v6498 = vadd.f32 %v6466, 1e-05
    %v6499 = vadd.f32 %v6467, 1e-05
    %v6500 = vadd.f32 %v6468, 1e-05
    %v6501 = vadd.f32 %v6469, 1e-05
    %v6502 = vadd.f32 %v6470, 1e-05
    %v6503 = vadd.f32 %v6471, 1e-05
    %v6504 = vadd.f32 %v6472, 1e-05
    %v6505 = vadd.f32 %v6473, 1e-05
    %v6506 = vadd.f32 %v6474, 1e-05
    %v6507 = vadd.f32 %v6475, 1e-05
    %v6508 = vadd.f32 %v6476, 1e-05
    %v6509 = vadd.f32 %v6477, 1e-05
    %v6510 = vadd.f32 %v6478, 1e-05
    %v6511 = vadd.f32 %v6479, 1e-05
    %v6512 = vadd.f32 %v6480, 1e-05
    %v6513 = vadd.f32 %v6481, 1e-05
    %v6514 = vadd.f32 %v6482, 1e-05
    %v6515 = vadd.f32 %v6483, 1e-05
    %v6516 = vadd.f32 %v6484, 1e-05
    %v6517 = vadd.f32 %v6485, 1e-05
    %v6518 = vadd.f32 %v6486, 1e-05
    %v6519 = vadd.f32 %v6487, 1e-05
    %v6520 = vadd.f32 %v6488, 1e-05
    %v6521 = vrsqrt.pop %v6489
    %v6522 = vrsqrt.pop %v6490
    %v6523 = vrsqrt.pop %v6491
    %v6524 = vrsqrt.pop %v6492
    %v6525 = vrsqrt.pop %v6493
    %v6526 = vrsqrt.pop %v6494
    %v6527 = vrsqrt.pop %v6495
    %v6528 = vrsqrt.pop %v6496
    %v6529 = vrsqrt.pop %v6497
    %v6530 = vrsqrt.pop %v6498
    %v6531 = vrsqrt.pop %v6499
    %v6532 = vrsqrt.pop %v6500
    %v6533 = vrsqrt.pop %v6501
    %v6534 = vrsqrt.pop %v6502
    %v6535 = vrsqrt.pop %v6503
    %v6536 = vrsqrt.pop %v6504
    %v6537 = vrsqrt.pop %v6505
    %v6538 = vrsqrt.pop %v6506
    %v6539 = vrsqrt.pop %v6507
    %v6540 = vrsqrt.pop %v6508
    %v6541 = vrsqrt.pop %v6509
    %v6542 = vrsqrt.pop %v6510
    %v6543 = vrsqrt.pop %v6511
    %v6544 = vrsqrt.pop %v6512
    %v6545 = vrsqrt.pop %v6513
    %v6546 = vrsqrt.pop %v6514
    %v6547 = vrsqrt.pop %v6515
    %v6548 = vrsqrt.pop %v6516
    %v6549 = vrsqrt.pop %v6517
    %v6550 = vrsqrt.pop %v6518
    %v6551 = vrsqrt.pop %v6519
    %v6552 = vrsqrt.pop %v6520
    %v6553 = vmul.f32 %v6329, %v6521
    %v6554 = vmul.f32 %v6330, %v6522
    %v6555 = vmul.f32 %v6331, %v6523
    %v6556 = vmul.f32 %v6332, %v6524
    %v6557 = vmul.f32 %v6333, %v6525
    %v6558 = vmul.f32 %v6334, %v6526
    %v6559 = vmul.f32 %v6335, %v6527
    %v6560 = vmul.f32 %v6336, %v6528
    %v6561 = vmul.f32 %v6337, %v6529
    %v6562 = vmul.f32 %v6338, %v6530
    %v6563 = vmul.f32 %v6339, %v6531
    %v6564 = vmul.f32 %v6340, %v6532
    %v6565 = vmul.f32 %v6341, %v6533
    %v6566 = vmul.f32 %v6342, %v6534
    %v6567 = vmul.f32 %v6343, %v6535
    %v6568 = vmul.f32 %v6344, %v6536
    %v6569 = vmul.f32 %v6345, %v6537
    %v6570 = vmul.f32 %v6346, %v6538
    %v6571 = vmul.f32 %v6347, %v6539
    %v6572 = vmul.f32 %v6348, %v6540
    %v6573 = vmul.f32 %v6349, %v6541
    %v6574 = vmul.f32 %v6350, %v6542
    %v6575 = vmul.f32 %v6351, %v6543
    %v6576 = vmul.f32 %v6352, %v6544
    %v6577 = vmul.f32 %v6353, %v6545
    %v6578 = vmul.f32 %v6354, %v6546
    %v6579 = vmul.f32 %v6355, %v6547
    %v6580 = vmul.f32 %v6356, %v6548
    %v6581 = vmul.f32 %v6357, %v6549
    %v6582 = vmul.f32 %v6358, %v6550
    %v6583 = vmul.f32 %v6359, %v6551
    %v6584 = vmul.f32 %v6360, %v6552
    %v6586 = vlaneseq
    %v6587 = vshrl.u32 %v6586, 7
    %v6588 = vsub.s32 0, %v6587
    %v6589 = vrot.slane %v6230, %v6588
    %v6591 = vmul.f32 %v6553, %v6589
    %v6592 = vmul.f32 %v6554, %v6589
    %v6593 = vmul.f32 %v6555, %v6589
    %v6594 = vmul.f32 %v6556, %v6589
    %v6595 = vmul.f32 %v6557, %v6589
    %v6596 = vmul.f32 %v6558, %v6589
    %v6597 = vmul.f32 %v6559, %v6589
    %v6598 = vmul.f32 %v6560, %v6589
    %v6599 = vmul.f32 %v6561, %v6589
    %v6600 = vmul.f32 %v6562, %v6589
    %v6601 = vmul.f32 %v6563, %v6589
    %v6602 = vmul.f32 %v6564, %v6589
    %v6603 = vmul.f32 %v6565, %v6589
    %v6604 = vmul.f32 %v6566, %v6589
    %v6605 = vmul.f32 %v6567, %v6589
    %v6606 = vmul.f32 %v6568, %v6589
    %v6607 = vmul.f32 %v6569, %v6589
    %v6608 = vmul.f32 %v6570, %v6589
    %v6609 = vmul.f32 %v6571, %v6589
    %v6610 = vmul.f32 %v6572, %v6589
    %v6611 = vmul.f32 %v6573, %v6589
    %v6612 = vmul.f32 %v6574, %v6589
    %v6613 = vmul.f32 %v6575, %v6589
    %v6614 = vmul.f32 %v6576, %v6589
    %v6615 = vmul.f32 %v6577, %v6589
    %v6616 = vmul.f32 %v6578, %v6589
    %v6617 = vmul.f32 %v6579, %v6589
    %v6618 = vmul.f32 %v6580, %v6589
    %v6619 = vmul.f32 %v6581, %v6589
    %v6620 = vmul.f32 %v6582, %v6589
    %v6621 = vmul.f32 %v6583, %v6589
    %v6622 = vmul.f32 %v6584, %v6589
    %v6624 = vlaneseq
    %v6625 = vshrl.u32 %v6624, 7
    %v6626 = vsub.s32 0, %v6625
    %v6627 = vrot.slane %v6232, %v6626
    %v6629 = vadd.f32 %v6591, %v6627
    %v6630 = vadd.f32 %v6592, %v6627
    %v6631 = vadd.f32 %v6593, %v6627
    %v6632 = vadd.f32 %v6594, %v6627
    %v6633 = vadd.f32 %v6595, %v6627
    %v6634 = vadd.f32 %v6596, %v6627
    %v6635 = vadd.f32 %v6597, %v6627
    %v6636 = vadd.f32 %v6598, %v6627
    %v6637 = vadd.f32 %v6599, %v6627
    %v6638 = vadd.f32 %v6600, %v6627
    %v6639 = vadd.f32 %v6601, %v6627
    %v6640 = vadd.f32 %v6602, %v6627
    %v6641 = vadd.f32 %v6603, %v6627
    %v6642 = vadd.f32 %v6604, %v6627
    %v6643 = vadd.f32 %v6605, %v6627
    %v6644 = vadd.f32 %v6606, %v6627
    %v6645 = vadd.f32 %v6607, %v6627
    %v6646 = vadd.f32 %v6608, %v6627
    %v6647 = vadd.f32 %v6609, %v6627
    %v6648 = vadd.f32 %v6610, %v6627
    %v6649 = vadd.f32 %v6611, %v6627
    %v6650 = vadd.f32 %v6612, %v6627
    %v6651 = vadd.f32 %v6613, %v6627
    %v6652 = vadd.f32 %v6614, %v6627
    %v6653 = vadd.f32 %v6615, %v6627
    %v6654 = vadd.f32 %v6616, %v6627
    %v6655 = vadd.f32 %v6617, %v6627
    %v6656 = vadd.f32 %v6618, %v6627
    %v6657 = vadd.f32 %v6619, %v6627
    %v6658 = vadd.f32 %v6620, %v6627
    %v6659 = vadd.f32 %v6621, %v6627
    %v6660 = vadd.f32 %v6622, %v6627
    %6661 = vst [vmem:[#allocation11] sm:$0xff] %v6629
    %6662 = vst [vmem:[#allocation11 + $0x8] sm:$0xff] %v6630
    %6663 = vst [vmem:[#allocation11 + $0x10] sm:$0xff] %v6631
    %6664 = vst [vmem:[#allocation11 + $0x18] sm:$0xff] %v6632
    %6665 = vst [vmem:[#allocation11 + $0x20] sm:$0xff] %v6633
    %6666 = vst [vmem:[#allocation11 + $0x28] sm:$0xff] %v6634
    %6667 = vst [vmem:[#allocation11 + $0x30] sm:$0xff] %v6635
    %6668 = vst [vmem:[#allocation11 + $0x38] sm:$0xff] %v6636
    %6669 = vst [vmem:[#allocation11 + $0x40] sm:$0xff] %v6637
    %6670 = vst [vmem:[#allocation11 + $0x48] sm:$0xff] %v6638
    %6671 = vst [vmem:[#allocation11 + $0x50] sm:$0xff] %v6639
    %6672 = vst [vmem:[#allocation11 + $0x58] sm:$0xff] %v6640
    %6673 = vst [vmem:[#allocation11 + $0x60] sm:$0xff] %v6641
    %6674 = vst [vmem:[#allocation11 + $0x68] sm:$0xff] %v6642
    %6675 = vst [vmem:[#allocation11 + $0x70] sm:$0xff] %v6643
    %6676 = vst [vmem:[#allocation11 + $0x78] sm:$0xff] %v6644
    %6677 = vst [vmem:[#allocation11 + $0x80] sm:$0xff] %v6645
    %6678 = vst [vmem:[#allocation11 + $0x88] sm:$0xff] %v6646
    %6679 = vst [vmem:[#allocation11 + $0x90] sm:$0xff] %v6647
    %6680 = vst [vmem:[#allocation11 + $0x98] sm:$0xff] %v6648
    %6681 = vst [vmem:[#allocation11 + $0xa0] sm:$0xff] %v6649
    %6682 = vst [vmem:[#allocation11 + $0xa8] sm:$0xff] %v6650
    %6683 = vst [vmem:[#allocation11 + $0xb0] sm:$0xff] %v6651
    %6684 = vst [vmem:[#allocation11 + $0xb8] sm:$0xff] %v6652
    %6685 = vst [vmem:[#allocation11 + $0xc0] sm:$0xff] %v6653
    %6686 = vst [vmem:[#allocation11 + $0xc8] sm:$0xff] %v6654
    %6687 = vst [vmem:[#allocation11 + $0xd0] sm:$0xff] %v6655
    %6688 = vst [vmem:[#allocation11 + $0xd8] sm:$0xff] %v6656
    %6689 = vst [vmem:[#allocation11 + $0xe0] sm:$0xff] %v6657
    %6690 = vst [vmem:[#allocation11 + $0xe8] sm:$0xff] %v6658
    %6691 = vst [vmem:[#allocation11 + $0xf0] sm:$0xff] %v6659
    %6692 = vst [vmem:[#allocation11 + $0xf8] sm:$0xff] %v6660
    // Predicated region
    $region82: #{tpu_custom_call.1} parent=1 // pred_check
      _
    $region83: #{tpu_custom_call.1} parent=1 // pred_check_branch
      %6694 = sbr.rel (0) target = $region85
    $region84: #{tpu_custom_call.1} parent=1 // pred_region
      %s6696 = ssub.s32 4096, 4096
      %6697 = vsyncadd [#allocation5], %s6696
      %s6698 = sshll.u32 [#allocation11], 4
      %s6699 = int_to_ptr.vmem [resolvable:$true] %s6698
      %6704 = dma.vmem_to_hbm [thread:$0]  %s6699, 4096, %s16, [#allocation5], 128, 128, 8
    $region85: #{tpu_custom_call.1} parent=1 // pred_fallthru
      _
    // Predicated region
    $region86: #{tpu_custom_call.1} parent=1 // pred_check
      _
    $region87: #{tpu_custom_call.1} parent=1 // pred_check_branch
      %6706 = sbr.rel (0) target = $region89
    $region88: #{tpu_custom_call.1} parent=1 // pred_region
      %6707 = dma.done [#allocation5], 4096
    $region89: #{tpu_custom_call.1} parent=1 // pred_fallthru
      _
    %6708 = vsyncpa [#allocation4], 1
    %6709 = vsyncpa [#allocation7], 1
    %6710 = vsyncpa [#allocation10], 1
    %6711 = vsyncpa [#allocation5], 1

</llo_original>
